<compile_context>
chip_gen: v5e
topology: v5e:2x2
jax: 0.10.0
libtpu: 0.0.40
codegen_flags: <defaults>
</compile_context>

<pallas_src>
import jax
import jax.numpy as jnp
from jax import lax
from jax.experimental import pallas as pl
from jax.experimental.pallas import tpu as pltpu

# ---------------------------------------------------------------------------
# Static shape constants.
# ---------------------------------------------------------------------------
H1 = W1 = 28                  # conv1 spatial size
H2 = W2 = 14                  # after first 2x2 max-pool
H3 = W3 = 7                   # after second 2x2 max-pool
C = 128                       # channel width (100 real channels, padded to 128)

P2 = W2 + 2                   # 16: pitch of the zero-padded conv2 input image
N2 = P2 * P2                  # 256: rows of the padded conv2 image / conv2 output
P3 = W3 + 2                   # 9
N3 = P3 * P3                  # 81
MARGIN2 = 24                  # OOB margin rows (>= P2 + 1), multiple of 8
MARGIN3 = 16                  # OOB margin rows (>= P3 + 1), multiple of 8
XP2_ROWS = MARGIN2 + N2 + MARGIN2   # 304
XP3_ROWS = 120                      # >= MARGIN3 + N3 + (P3 + 1)


# ---------------------------------------------------------------------------
# The fused kernel: conv1 -> pool -> conv2 -> pool -> conv3 -> linear, one image
# per grid step.  Activations are kept flattened (rows = pixels, lanes = 128
# channels).  conv2/conv3 inputs live in "padded image, flat" form so each 3x3
# tap is a contiguous shifted slice and border handling is just zeros.
# ---------------------------------------------------------------------------
def _demo_net_kernel(cols1_ref, w1_ref, b1_ref, w2_ref, b2_ref, w3_ref, b3_ref,
                     lwp_ref, lb_ref, o_ref, a1_ref, a2_ref, xp2_ref, xp3_ref):
    f32, bf16 = jnp.float32, jnp.bfloat16

    # Zero the padded-image buffers: the zero ring is the conv padding and the
    # margins guarantee the shifted tap slices never read uninitialised data.
    xp2_ref[...] = jnp.zeros((XP2_ROWS, C), bf16)
    xp3_ref[...] = jnp.zeros((XP3_ROWS, C), bf16)

    # --- conv1 + bias + ReLU: one MXU dot with K = 9 (no K padding). ----------
    a1 = jnp.dot(cols1_ref[0], w1_ref[...], preferred_element_type=f32)
    a1_ref[...] = jnp.maximum(a1 + b1_ref[...], 0.0)            # (784, 128) f32

    # Exact 0/1 "pick even / odd column" matrices for the 2x2 max-pool.
    def _sel(wd, w):
        r = lax.broadcasted_iota(jnp.int32, (wd, w), 0)
        c = lax.broadcasted_iota(jnp.int32, (wd, w), 1)
        even = jnp.where(c == 2 * r, 1.0, 0.0).astype(bf16)
        odd = jnp.where(c == 2 * r + 1, 1.0, 0.0).astype(bf16)
        return even, odd

    sel_e1, sel_o1 = _sel(W2, W1)          # (14, 28)
    sel_e2, sel_o2 = _sel(W3, W2)          # (7, 14)

    # --- max-pool 2x2 (28x28 -> 14x14) straight into conv2's padded input. ----
    for ho in range(H2):
        top = a1_ref[(2 * ho) * W1:(2 * ho + 1) * W1, :]        # (28, 128)
        bot = a1_ref[(2 * ho + 1) * W1:(2 * ho + 2) * W1, :]
        hp = jnp.maximum(top, bot).astype(bf16)
        wp = jnp.maximum(
            jnp.dot(sel_e1, hp, preferred_element_type=f32),
            jnp.dot(sel_o1, hp, preferred_element_type=f32))    # (14, 128)
        dst = MARGIN2 + (ho + 1) * P2 + 1
        xp2_ref[dst:dst + W2, :] = wp.astype(bf16)

    # --- conv2 + bias + ReLU: 9 shifted taps, (256,128)@(128,128) MXU dots. ---
    acc2 = None
    for t in range(9):
        dho, dwo = t // 3 - 1, t % 3 - 1
        src = MARGIN2 + dho * P2 + dwo
        tap = xp2_ref[src:src + N2, :]                          # (256, 128) bf16
        wt = w2_ref[t * C:(t + 1) * C, :]                       # (128, 128) bf16
        d = jnp.dot(tap, wt, preferred_element_type=f32)
        acc2 = d if acc2 is None else acc2 + d
    a2_ref[...] = jnp.maximum(acc2 + b2_ref[...], 0.0)          # (256, 128) f32
    # (rows on the zero-pad ring of the 16x16 grid hold junk; never read below)

    # --- max-pool 2x2 (14x14 -> 7x7) straight into conv3's padded input. ------
    for ho in range(H3):
        r_top = (2 * ho + 1) * P2 + 1
        r_bot = (2 * ho + 2) * P2 + 1
        top = a2_ref[r_top:r_top + W2, :]                       # (14, 128)
        bot = a2_ref[r_bot:r_bot + W2, :]
        hp = jnp.maximum(top, bot).astype(bf16)
        wp = jnp.maximum(
            jnp.dot(sel_e2, hp, preferred_element_type=f32),
            jnp.dot(sel_o2, hp, preferred_element_type=f32))    # (7, 128)
        dst = MARGIN3 + (ho + 1) * P3 + 1
        xp3_ref[dst:dst + W3, :] = wp.astype(bf16)

    # --- conv3 + bias + ReLU (Cout padded 1 -> 128; only lane 0 is real). -----
    acc3 = None
    for t in range(9):
        dho, dwo = t // 3 - 1, t % 3 - 1
        src = MARGIN3 + dho * P3 + dwo
        tap = xp3_ref[src:src + N3, :]                          # (81, 128) bf16
        wt = w3_ref[t * C:(t + 1) * C, :]                       # (128, 128) bf16
        d = jnp.dot(tap, wt, preferred_element_type=f32)
        acc3 = d if acc3 is None else acc3 + d
    h3 = jnp.maximum(acc3 + b3_ref[...], 0.0)                   # (81, 128) f32

    # --- linear (49 -> 10): weight pre-scattered onto the padded 9x9 grid, ----
    # --- so flatten + gather + matmul is a single dot; junk rows hit zeros. ---
    z = jnp.dot(lwp_ref[...], h3.astype(bf16),
                preferred_element_type=f32)                     # (10, 128)
    o_ref[0, :, :] = z[:, 0:1] + lb_ref[...]                    # (10, 1)


# ---------------------------------------------------------------------------
# One-time parameter preparation (channel padding to 128, tap-major layout).
# ---------------------------------------------------------------------------
def _conv_weight_to_taps(w, cin_pad, cout_pad):
    """(Cout, Cin, 3, 3) torch layout -> (9 * cin_pad, cout_pad), tap-major rows."""
    cout, cin = w.shape[0], w.shape[1]
    w = jnp.pad(w, ((0, cout_pad - cout), (0, cin_pad - cin), (0, 0), (0, 0)))
    w = jnp.transpose(w, (2, 3, 1, 0)).reshape(9 * cin_pad, cout_pad)
    return w.astype(jnp.bfloat16)


def prepare_params(params):
    w1 = _conv_weight_to_taps(params["conv1_w"], 1, C)          # (9, 128)
    b1 = jnp.pad(params["conv1_b"], (0, C - 100)).reshape(1, C).astype(jnp.float32)
    w2 = _conv_weight_to_taps(params["conv2_w"], C, C)          # (1152, 128)
    b2 = jnp.pad(params["conv2_b"], (0, C - 100)).reshape(1, C).astype(jnp.float32)
    w3 = _conv_weight_to_taps(params["conv3_w"], C, C)          # (1152, 128)
    b3 = jnp.pad(params["conv3_b"], (0, C - 1)).reshape(1, C).astype(jnp.float32)
    # nn.Linear weight (10, 49) scattered onto the padded 9x9 grid -> (10, 81).
    lwp = jnp.zeros((10, P3, P3), jnp.float32)
    lwp = lwp.at[:, 1:1 + H3, 1:1 + W3].set(params["lin_w"].reshape(10, H3, W3))
    lwp = lwp.reshape(10, N3).astype(jnp.bfloat16)
    lb = params["lin_b"].reshape(10, 1).astype(jnp.float32)
    return dict(w1=w1, b1=b1, w2=w2, b2=b2, w3=w3, b3=b3, lwp=lwp, lb=lb)


# ---------------------------------------------------------------------------
# Forward pass.
# ---------------------------------------------------------------------------
def _conv1_im2col(x_nchw):
    """(B, 1, 28, 28) -> (B, 784, 9) bf16; patch order (kh, kw) matches w1 rows.
    Cin == 1, so this is ~28 KB/image -- negligible HBM traffic."""
    b = x_nchw.shape[0]
    x = x_nchw.reshape(b, H1, W1).astype(jnp.float32)
    xp = jnp.pad(x, ((0, 0), (1, 1), (1, 1)))
    cols = jnp.stack(
        [xp[:, dh:dh + H1, dw:dw + W1] for dh in range(3) for dw in range(3)],
        axis=-1)
    return cols.reshape(b, H1 * W1, 9).astype(jnp.bfloat16)


@jax.jit
def demo_net_forward(prepped, x_nchw):
    b = x_nchw.shape[0]
    cols1 = _conv1_im2col(x_nchw)
    const2 = lambda i: (0, 0)

    out = pl.pallas_call(
        _demo_net_kernel,
        out_shape=jax.ShapeDtypeStruct((b, 10, 1), jnp.float32),
        grid=(b,),
        in_specs=[
            pl.BlockSpec((1, H1 * W1, 9), lambda i: (i, 0, 0)),   # conv1 im2col
            pl.BlockSpec((9, C), const2),                         # w1
            pl.BlockSpec((1, C), const2),                         # b1
            pl.BlockSpec((9 * C, C), const2),                     # w2 (tap-major)
            pl.BlockSpec((1, C), const2),                         # b2
            pl.BlockSpec((9 * C, C), const2),                     # w3 (tap-major)
            pl.BlockSpec((1, C), const2),                         # b3
            pl.BlockSpec((10, N3), const2),                       # linear w (padded)
            pl.BlockSpec((10, 1), const2),                        # linear b
        ],
        out_specs=pl.BlockSpec((1, 10, 1), lambda i: (i, 0, 0)),
        scratch_shapes=[
            pltpu.VMEM((H1 * W1, C), jnp.float32),    # conv1 output (flat)
            pltpu.VMEM((N2, C), jnp.float32),         # conv2 output (padded 16x16 flat)
            pltpu.VMEM((XP2_ROWS, C), jnp.bfloat16),  # conv2 padded flat input
            pltpu.VMEM((XP3_ROWS, C), jnp.bfloat16),  # conv3 padded flat input
        ],
        compiler_params=pltpu.CompilerParams(
            dimension_semantics=("parallel",)),
    )(cols1, prepped["w1"], prepped["b1"], prepped["w2"], prepped["b2"],
      prepped["w3"], prepped["b3"], prepped["lwp"], prepped["lb"])
    return out.reshape(b, 10)


# ---------------------------------------------------------------------------
# Parameter init (PyTorch-style uniform) and pure-JAX reference for sanity check.
# ---------------------------------------------------------------------------
def init_params(key):
    ks = jax.random.split(key, 8)

    def uni(k, shape, fan_in):
        bound = 1.0 / jnp.sqrt(fan_in)
        return jax.random.uniform(k, shape, jnp.float32, -bound, bound)

    return {
        "conv1_w": uni(ks[0], (100, 1, 3, 3), 1 * 9),
        "conv1_b": uni(ks[1], (100,), 1 * 9),
        "conv2_w": uni(ks[2], (100, 100, 3, 3), 100 * 9),
        "conv2_b": uni(ks[3], (100,), 100 * 9),
        "conv3_w": uni(ks[4], (1, 100, 3, 3), 100 * 9),
        "conv3_b": uni(ks[5], (1,), 100 * 9),
        "lin_w": uni(ks[6], (10, 49), 49),   # PyTorch layout (out, in)
        "lin_b": uni(ks[7], (10,), 49),
    }


def demo_net_reference(params, x_nchw):
    def conv(x, w, b):
        y = lax.conv_general_dilated(
            x, w, window_strides=(1, 1), padding=((1, 1), (1, 1)),
            dimension_numbers=("NCHW", "OIHW", "NCHW"),
            precision=lax.Precision.HIGHEST)
        return y + b.reshape(1, -1, 1, 1)

    def pool(x):
        b, c, h, w = x.shape
        return x.reshape(b, c, h // 2, 2, w // 2, 2).max(axis=(3, 5))

    h = jax.nn.relu(conv(x_nchw, params["conv1_w"], params["conv1_b"]))
    h = pool(h)
    h = jax.nn.relu(conv(h, params["conv2_w"], params["conv2_b"]))
    h = pool(h)
    h = jax.nn.relu(conv(h, params["conv3_w"], params["conv3_b"]))
    h = h.reshape(-1, 49)
    return h @ params["lin_w"].T + params["lin_b"]


if __name__ == "__main__":
    key = jax.random.PRNGKey(0)
    k_param, k_x = jax.random.split(key)
    params = init_params(k_param)
    prepped = prepare_params(params)

    # Input consistent with the module: 28x28 so that view(-1, 49) is valid.
    x = jax.random.normal(k_x, (2, 1, 28, 28), dtype=jnp.float32)

    out = jax.block_until_ready(demo_net_forward(prepped, x))
    assert out.shape == (2, 10), out.shape

    ref = jax.block_until_ready(demo_net_reference(params, x))
    max_err = float(jnp.max(jnp.abs(out - ref)))
    assert jnp.allclose(out, ref, rtol=5e-2, atol=5e-2), max_err

    print("KERNEL_OK")
</pallas_src>

<mosaic_0001>
module attributes {stable_mosaic.version = 11 : i64} {
  func.func @_demo_net_kernel(%arg0: i32, %arg1: memref<1x784x9xbf16, #tpu.memory_space<vmem>>, %arg2: memref<9x128xbf16, #tpu.memory_space<vmem>>, %arg3: memref<1x128xf32, #tpu.memory_space<vmem>>, %arg4: memref<1152x128xbf16, #tpu.memory_space<vmem>>, %arg5: memref<1x128xf32, #tpu.memory_space<vmem>>, %arg6: memref<1152x128xbf16, #tpu.memory_space<vmem>>, %arg7: memref<1x128xf32, #tpu.memory_space<vmem>>, %arg8: memref<10x81xbf16, #tpu.memory_space<vmem>>, %arg9: memref<10x1xf32, #tpu.memory_space<vmem>>, %arg10: memref<1x10x1xf32, #tpu.memory_space<vmem>>, %arg11: memref<784x128xf32, #tpu.memory_space<vmem>>, %arg12: memref<256x128xf32, #tpu.memory_space<vmem>>, %arg13: memref<304x128xbf16, #tpu.memory_space<vmem>>, %arg14: memref<120x128xbf16, #tpu.memory_space<vmem>>) attributes {dimension_semantics = [#tpu.dimension_semantics<parallel>], iteration_bounds = array<i64: 2>, scalar_prefetch = 0 : i64, scratch_operands = 4 : i64, tpu.core_type = #tpu.core_type<tc>, window_params = [{transform_indices = @transform_0, window_bounds = array<i64: 1, 784, 9>}, {pipeline_mode = #tpu.pipeline_mode<synchronous>, transform_indices = @transform_1, window_bounds = array<i64: 9, 128>}, {pipeline_mode = #tpu.pipeline_mode<synchronous>, transform_indices = @transform_2, window_bounds = array<i64: 1, 128>}, {pipeline_mode = #tpu.pipeline_mode<synchronous>, transform_indices = @transform_3, window_bounds = array<i64: 1152, 128>}, {pipeline_mode = #tpu.pipeline_mode<synchronous>, transform_indices = @transform_4, window_bounds = array<i64: 1, 128>}, {pipeline_mode = #tpu.pipeline_mode<synchronous>, transform_indices = @transform_5, window_bounds = array<i64: 1152, 128>}, {pipeline_mode = #tpu.pipeline_mode<synchronous>, transform_indices = @transform_6, window_bounds = array<i64: 1, 128>}, {pipeline_mode = #tpu.pipeline_mode<synchronous>, transform_indices = @transform_7, window_bounds = array<i64: 10, 81>}, {pipeline_mode = #tpu.pipeline_mode<synchronous>, transform_indices = @transform_8, window_bounds = array<i64: 10, 1>}, {transform_indices = @transform_9, window_bounds = array<i64: 1, 10, 1>}]} {
    %cst = arith.constant 0.000000e+00 : bf16
    %0 = vector.broadcast %cst : bf16 to vector<304x128xbf16>
    %c0 = arith.constant 0 : index
    %c0_0 = arith.constant 0 : index
    %1 = vector.load %arg13[%c0, %c0_0] : memref<304x128xbf16, #tpu.memory_space<vmem>>, vector<304x128xbf16>
    tpu.vector_store %arg13[%c0, %c0_0], %0 {strides = array<i32>} : memref<304x128xbf16, #tpu.memory_space<vmem>>, vector<304x128xbf16>,
    %cst_1 = arith.constant 0.000000e+00 : bf16
    %2 = vector.broadcast %cst_1 : bf16 to vector<120x128xbf16>
    %c0_2 = arith.constant 0 : index
    %c0_3 = arith.constant 0 : index
    %3 = vector.load %arg14[%c0_2, %c0_3] : memref<120x128xbf16, #tpu.memory_space<vmem>>, vector<120x128xbf16>
    tpu.vector_store %arg14[%c0_2, %c0_3], %2 {strides = array<i32>} : memref<120x128xbf16, #tpu.memory_space<vmem>>, vector<120x128xbf16>,
    %c0_4 = arith.constant 0 : index
    %c0_5 = arith.constant 0 : index
    %c0_6 = arith.constant 0 : index
    %4 = vector.load %arg1[%c0_4, %c0_5, %c0_6] : memref<1x784x9xbf16, #tpu.memory_space<vmem>>, vector<1x784x9xbf16>
    %5 = vector.shape_cast %4 : vector<1x784x9xbf16> to vector<784x9xbf16>
    %c0_7 = arith.constant 0 : index
    %c0_8 = arith.constant 0 : index
    %6 = vector.load %arg2[%c0_7, %c0_8] : memref<9x128xbf16, #tpu.memory_space<vmem>>, vector<9x128xbf16>
    %cst_9 = arith.constant dense<0.000000e+00> : vector<784x128xf32>
    %7 = tpu.matmul %5, %6, %cst_9 {dimension_numbers = #tpu.dot_dimension_numbers<[1], [0], [0], [1], [0, 0, 1, 1], [], []>} : vector<784x9xbf16>, vector<9x128xbf16>, vector<784x128xf32> -> vector<784x128xf32>
    %c0_10 = arith.constant 0 : index
    %c0_11 = arith.constant 0 : index
    %8 = vector.load %arg3[%c0_10, %c0_11] : memref<1x128xf32, #tpu.memory_space<vmem>>, vector<1x128xf32>
    %9 = vector.broadcast %8 : vector<1x128xf32> to vector<784x128xf32>
    %10 = arith.addf %7, %9 : vector<784x128xf32>
    %cst_12 = arith.constant 0.000000e+00 : f32
    %11 = vector.broadcast %cst_12 : f32 to vector<784x128xf32>
    %12 = arith.maximumf %10, %11 : vector<784x128xf32>
    %c0_13 = arith.constant 0 : index
    %c0_14 = arith.constant 0 : index
    %13 = vector.load %arg11[%c0_13, %c0_14] : memref<784x128xf32, #tpu.memory_space<vmem>>, vector<784x128xf32>
    tpu.vector_store %arg11[%c0_13, %c0_14], %12 {strides = array<i32>} : memref<784x128xf32, #tpu.memory_space<vmem>>, vector<784x128xf32>,
    %14 = tpu.iota {dimensions = array<i32: 0>} : vector<14x28xi32>
    %15 = tpu.iota {dimensions = array<i32: 1>} : vector<14x28xi32>
    %c2_i32 = arith.constant 2 : i32
    %16 = vector.broadcast %c2_i32 : i32 to vector<14x28xi32>
    %17 = arith.muli %16, %14 : vector<14x28xi32>
    %18 = arith.cmpi eq, %15, %17 : vector<14x28xi32>
    %cst_15 = arith.constant 1.000000e+00 : f32
    %cst_16 = arith.constant 0.000000e+00 : f32
    %19 = vector.broadcast %cst_15 : f32 to vector<14x28xf32>
    %20 = vector.broadcast %cst_16 : f32 to vector<14x28xf32>
    %21 = arith.select %18, %19, %20 : vector<14x28xi1>, vector<14x28xf32>
    %22 = arith.truncf %21 : vector<14x28xf32> to vector<14x28xbf16>
    %c2_i32_17 = arith.constant 2 : i32
    %23 = vector.broadcast %c2_i32_17 : i32 to vector<14x28xi32>
    %24 = arith.muli %23, %14 : vector<14x28xi32>
    %c1_i32 = arith.constant 1 : i32
    %25 = vector.broadcast %c1_i32 : i32 to vector<14x28xi32>
    %26 = arith.addi %24, %25 : vector<14x28xi32>
    %27 = arith.cmpi eq, %15, %26 : vector<14x28xi32>
    %cst_18 = arith.constant 1.000000e+00 : f32
    %cst_19 = arith.constant 0.000000e+00 : f32
    %28 = vector.broadcast %cst_18 : f32 to vector<14x28xf32>
    %29 = vector.broadcast %cst_19 : f32 to vector<14x28xf32>
    %30 = arith.select %27, %28, %29 : vector<14x28xi1>, vector<14x28xf32>
    %31 = arith.truncf %30 : vector<14x28xf32> to vector<14x28xbf16>
    %32 = tpu.iota {dimensions = array<i32: 0>} : vector<7x14xi32>
    %33 = tpu.iota {dimensions = array<i32: 1>} : vector<7x14xi32>
    %c2_i32_20 = arith.constant 2 : i32
    %34 = vector.broadcast %c2_i32_20 : i32 to vector<7x14xi32>
    %35 = arith.muli %34, %32 : vector<7x14xi32>
    %36 = arith.cmpi eq, %33, %35 : vector<7x14xi32>
    %cst_21 = arith.constant 1.000000e+00 : f32
    %cst_22 = arith.constant 0.000000e+00 : f32
    %37 = vector.broadcast %cst_21 : f32 to vector<7x14xf32>
    %38 = vector.broadcast %cst_22 : f32 to vector<7x14xf32>
    %39 = arith.select %36, %37, %38 : vector<7x14xi1>, vector<7x14xf32>
    %40 = arith.truncf %39 : vector<7x14xf32> to vector<7x14xbf16>
    %c2_i32_23 = arith.constant 2 : i32
    %41 = vector.broadcast %c2_i32_23 : i32 to vector<7x14xi32>
    %42 = arith.muli %41, %32 : vector<7x14xi32>
    %c1_i32_24 = arith.constant 1 : i32
    %43 = vector.broadcast %c1_i32_24 : i32 to vector<7x14xi32>
    %44 = arith.addi %42, %43 : vector<7x14xi32>
    %45 = arith.cmpi eq, %33, %44 : vector<7x14xi32>
    %cst_25 = arith.constant 1.000000e+00 : f32
    %cst_26 = arith.constant 0.000000e+00 : f32
    %46 = vector.broadcast %cst_25 : f32 to vector<7x14xf32>
    %47 = vector.broadcast %cst_26 : f32 to vector<7x14xf32>
    %48 = arith.select %45, %46, %47 : vector<7x14xi1>, vector<7x14xf32>
    %49 = arith.truncf %48 : vector<7x14xf32> to vector<7x14xbf16>
    %c0_27 = arith.constant 0 : index
    %c0_28 = arith.constant 0 : index
    %50 = vector.load %arg11[%c0_27, %c0_28] : memref<784x128xf32, #tpu.memory_space<vmem>>, vector<28x128xf32>
    %c28 = arith.constant 28 : index
    %c0_29 = arith.constant 0 : index
    %51 = vector.load %arg11[%c28, %c0_29] : memref<784x128xf32, #tpu.memory_space<vmem>>, vector<28x128xf32>
    %52 = arith.maximumf %50, %51 : vector<28x128xf32>
    %53 = arith.truncf %52 : vector<28x128xf32> to vector<28x128xbf16>
    %cst_30 = arith.constant dense<0.000000e+00> : vector<14x128xf32>
    %54 = tpu.matmul %22, %53, %cst_30 {dimension_numbers = #tpu.dot_dimension_numbers<[1], [0], [0], [1], [0, 0, 1, 1], [], []>} : vector<14x28xbf16>, vector<28x128xbf16>, vector<14x128xf32> -> vector<14x128xf32>
    %cst_31 = arith.constant dense<0.000000e+00> : vector<14x128xf32>
    %55 = tpu.matmul %31, %53, %cst_31 {dimension_numbers = #tpu.dot_dimension_numbers<[1], [0], [0], [1], [0, 0, 1, 1], [], []>} : vector<14x28xbf16>, vector<28x128xbf16>, vector<14x128xf32> -> vector<14x128xf32>
    %56 = arith.maximumf %54, %55 : vector<14x128xf32>
    %57 = arith.truncf %56 : vector<14x128xf32> to vector<14x128xbf16>
    %c41 = arith.constant 41 : index
    %c0_32 = arith.constant 0 : index
    %58 = vector.load %arg13[%c41, %c0_32] : memref<304x128xbf16, #tpu.memory_space<vmem>>, vector<14x128xbf16>
    tpu.vector_store %arg13[%c41, %c0_32], %57 {strides = array<i32>} : memref<304x128xbf16, #tpu.memory_space<vmem>>, vector<14x128xbf16>,
    %c56 = arith.constant 56 : index
    %c0_33 = arith.constant 0 : index
    %59 = vector.load %arg11[%c56, %c0_33] : memref<784x128xf32, #tpu.memory_space<vmem>>, vector<28x128xf32>
    %c84 = arith.constant 84 : index
    %c0_34 = arith.constant 0 : index
    %60 = vector.load %arg11[%c84, %c0_34] : memref<784x128xf32, #tpu.memory_space<vmem>>, vector<28x128xf32>
    %61 = arith.maximumf %59, %60 : vector<28x128xf32>
    %62 = arith.truncf %61 : vector<28x128xf32> to vector<28x128xbf16>
    %cst_35 = arith.constant dense<0.000000e+00> : vector<14x128xf32>
    %63 = tpu.matmul %22, %62, %cst_35 {dimension_numbers = #tpu.dot_dimension_numbers<[1], [0], [0], [1], [0, 0, 1, 1], [], []>} : vector<14x28xbf16>, vector<28x128xbf16>, vector<14x128xf32> -> vector<14x128xf32>
    %cst_36 = arith.constant dense<0.000000e+00> : vector<14x128xf32>
    %64 = tpu.matmul %31, %62, %cst_36 {dimension_numbers = #tpu.dot_dimension_numbers<[1], [0], [0], [1], [0, 0, 1, 1], [], []>} : vector<14x28xbf16>, vector<28x128xbf16>, vector<14x128xf32> -> vector<14x128xf32>
    %65 = arith.maximumf %63, %64 : vector<14x128xf32>
    %66 = arith.truncf %65 : vector<14x128xf32> to vector<14x128xbf16>
    %c57 = arith.constant 57 : index
    %c0_37 = arith.constant 0 : index
    %67 = vector.load %arg13[%c57, %c0_37] : memref<304x128xbf16, #tpu.memory_space<vmem>>, vector<14x128xbf16>
    tpu.vector_store %arg13[%c57, %c0_37], %66 {strides = array<i32>} : memref<304x128xbf16, #tpu.memory_space<vmem>>, vector<14x128xbf16>,
    %c112 = arith.constant 112 : index
    %c0_38 = arith.constant 0 : index
    %68 = vector.load %arg11[%c112, %c0_38] : memref<784x128xf32, #tpu.memory_space<vmem>>, vector<28x128xf32>
    %c140 = arith.constant 140 : index
    %c0_39 = arith.constant 0 : index
    %69 = vector.load %arg11[%c140, %c0_39] : memref<784x128xf32, #tpu.memory_space<vmem>>, vector<28x128xf32>
    %70 = arith.maximumf %68, %69 : vector<28x128xf32>
    %71 = arith.truncf %70 : vector<28x128xf32> to vector<28x128xbf16>
    %cst_40 = arith.constant dense<0.000000e+00> : vector<14x128xf32>
    %72 = tpu.matmul %22, %71, %cst_40 {dimension_numbers = #tpu.dot_dimension_numbers<[1], [0], [0], [1], [0, 0, 1, 1], [], []>} : vector<14x28xbf16>, vector<28x128xbf16>, vector<14x128xf32> -> vector<14x128xf32>
    %cst_41 = arith.constant dense<0.000000e+00> : vector<14x128xf32>
    %73 = tpu.matmul %31, %71, %cst_41 {dimension_numbers = #tpu.dot_dimension_numbers<[1], [0], [0], [1], [0, 0, 1, 1], [], []>} : vector<14x28xbf16>, vector<28x128xbf16>, vector<14x128xf32> -> vector<14x128xf32>
    %74 = arith.maximumf %72, %73 : vector<14x128xf32>
    %75 = arith.truncf %74 : vector<14x128xf32> to vector<14x128xbf16>
    %c73 = arith.constant 73 : index
    %c0_42 = arith.constant 0 : index
    %76 = vector.load %arg13[%c73, %c0_42] : memref<304x128xbf16, #tpu.memory_space<vmem>>, vector<14x128xbf16>
    tpu.vector_store %arg13[%c73, %c0_42], %75 {strides = array<i32>} : memref<304x128xbf16, #tpu.memory_space<vmem>>, vector<14x128xbf16>,
    %c168 = arith.constant 168 : index
    %c0_43 = arith.constant 0 : index
    %77 = vector.load %arg11[%c168, %c0_43] : memref<784x128xf32, #tpu.memory_space<vmem>>, vector<28x128xf32>
    %c196 = arith.constant 196 : index
    %c0_44 = arith.constant 0 : index
    %78 = vector.load %arg11[%c196, %c0_44] : memref<784x128xf32, #tpu.memory_space<vmem>>, vector<28x128xf32>
    %79 = arith.maximumf %77, %78 : vector<28x128xf32>
    %80 = arith.truncf %79 : vector<28x128xf32> to vector<28x128xbf16>
    %cst_45 = arith.constant dense<0.000000e+00> : vector<14x128xf32>
    %81 = tpu.matmul %22, %80, %cst_45 {dimension_numbers = #tpu.dot_dimension_numbers<[1], [0], [0], [1], [0, 0, 1, 1], [], []>} : vector<14x28xbf16>, vector<28x128xbf16>, vector<14x128xf32> -> vector<14x128xf32>
    %cst_46 = arith.constant dense<0.000000e+00> : vector<14x128xf32>
    %82 = tpu.matmul %31, %80, %cst_46 {dimension_numbers = #tpu.dot_dimension_numbers<[1], [0], [0], [1], [0, 0, 1, 1], [], []>} : vector<14x28xbf16>, vector<28x128xbf16>, vector<14x128xf32> -> vector<14x128xf32>
    %83 = arith.maximumf %81, %82 : vector<14x128xf32>
    %84 = arith.truncf %83 : vector<14x128xf32> to vector<14x128xbf16>
    %c89 = arith.constant 89 : index
    %c0_47 = arith.constant 0 : index
    %85 = vector.load %arg13[%c89, %c0_47] : memref<304x128xbf16, #tpu.memory_space<vmem>>, vector<14x128xbf16>
    tpu.vector_store %arg13[%c89, %c0_47], %84 {strides = array<i32>} : memref<304x128xbf16, #tpu.memory_space<vmem>>, vector<14x128xbf16>,
    %c224 = arith.constant 224 : index
    %c0_48 = arith.constant 0 : index
    %86 = vector.load %arg11[%c224, %c0_48] : memref<784x128xf32, #tpu.memory_space<vmem>>, vector<28x128xf32>
    %c252 = arith.constant 252 : index
    %c0_49 = arith.constant 0 : index
    %87 = vector.load %arg11[%c252, %c0_49] : memref<784x128xf32, #tpu.memory_space<vmem>>, vector<28x128xf32>
    %88 = arith.maximumf %86, %87 : vector<28x128xf32>
    %89 = arith.truncf %88 : vector<28x128xf32> to vector<28x128xbf16>
    %cst_50 = arith.constant dense<0.000000e+00> : vector<14x128xf32>
    %90 = tpu.matmul %22, %89, %cst_50 {dimension_numbers = #tpu.dot_dimension_numbers<[1], [0], [0], [1], [0, 0, 1, 1], [], []>} : vector<14x28xbf16>, vector<28x128xbf16>, vector<14x128xf32> -> vector<14x128xf32>
    %cst_51 = arith.constant dense<0.000000e+00> : vector<14x128xf32>
    %91 = tpu.matmul %31, %89, %cst_51 {dimension_numbers = #tpu.dot_dimension_numbers<[1], [0], [0], [1], [0, 0, 1, 1], [], []>} : vector<14x28xbf16>, vector<28x128xbf16>, vector<14x128xf32> -> vector<14x128xf32>
    %92 = arith.maximumf %90, %91 : vector<14x128xf32>
    %93 = arith.truncf %92 : vector<14x128xf32> to vector<14x128xbf16>
    %c105 = arith.constant 105 : index
    %c0_52 = arith.constant 0 : index
    %94 = vector.load %arg13[%c105, %c0_52] : memref<304x128xbf16, #tpu.memory_space<vmem>>, vector<14x128xbf16>
    tpu.vector_store %arg13[%c105, %c0_52], %93 {strides = array<i32>} : memref<304x128xbf16, #tpu.memory_space<vmem>>, vector<14x128xbf16>,
    %c280 = arith.constant 280 : index
    %c0_53 = arith.constant 0 : index
    %95 = vector.load %arg11[%c280, %c0_53] : memref<784x128xf32, #tpu.memory_space<vmem>>, vector<28x128xf32>
    %c308 = arith.constant 308 : index
    %c0_54 = arith.constant 0 : index
    %96 = vector.load %arg11[%c308, %c0_54] : memref<784x128xf32, #tpu.memory_space<vmem>>, vector<28x128xf32>
    %97 = arith.maximumf %95, %96 : vector<28x128xf32>
    %98 = arith.truncf %97 : vector<28x128xf32> to vector<28x128xbf16>
    %cst_55 = arith.constant dense<0.000000e+00> : vector<14x128xf32>
    %99 = tpu.matmul %22, %98, %cst_55 {dimension_numbers = #tpu.dot_dimension_numbers<[1], [0], [0], [1], [0, 0, 1, 1], [], []>} : vector<14x28xbf16>, vector<28x128xbf16>, vector<14x128xf32> -> vector<14x128xf32>
    %cst_56 = arith.constant dense<0.000000e+00> : vector<14x128xf32>
    %100 = tpu.matmul %31, %98, %cst_56 {dimension_numbers = #tpu.dot_dimension_numbers<[1], [0], [0], [1], [0, 0, 1, 1], [], []>} : vector<14x28xbf16>, vector<28x128xbf16>, vector<14x128xf32> -> vector<14x128xf32>
    %101 = arith.maximumf %99, %100 : vector<14x128xf32>
    %102 = arith.truncf %101 : vector<14x128xf32> to vector<14x128xbf16>
    %c121 = arith.constant 121 : index
    %c0_57 = arith.constant 0 : index
    %103 = vector.load %arg13[%c121, %c0_57] : memref<304x128xbf16, #tpu.memory_space<vmem>>, vector<14x128xbf16>
    tpu.vector_store %arg13[%c121, %c0_57], %102 {strides = array<i32>} : memref<304x128xbf16, #tpu.memory_space<vmem>>, vector<14x128xbf16>,
    %c336 = arith.constant 336 : index
    %c0_58 = arith.constant 0 : index
    %104 = vector.load %arg11[%c336, %c0_58] : memref<784x128xf32, #tpu.memory_space<vmem>>, vector<28x128xf32>
    %c364 = arith.constant 364 : index
    %c0_59 = arith.constant 0 : index
    %105 = vector.load %arg11[%c364, %c0_59] : memref<784x128xf32, #tpu.memory_space<vmem>>, vector<28x128xf32>
    %106 = arith.maximumf %104, %105 : vector<28x128xf32>
    %107 = arith.truncf %106 : vector<28x128xf32> to vector<28x128xbf16>
    %cst_60 = arith.constant dense<0.000000e+00> : vector<14x128xf32>
    %108 = tpu.matmul %22, %107, %cst_60 {dimension_numbers = #tpu.dot_dimension_numbers<[1], [0], [0], [1], [0, 0, 1, 1], [], []>} : vector<14x28xbf16>, vector<28x128xbf16>, vector<14x128xf32> -> vector<14x128xf32>
    %cst_61 = arith.constant dense<0.000000e+00> : vector<14x128xf32>
    %109 = tpu.matmul %31, %107, %cst_61 {dimension_numbers = #tpu.dot_dimension_numbers<[1], [0], [0], [1], [0, 0, 1, 1], [], []>} : vector<14x28xbf16>, vector<28x128xbf16>, vector<14x128xf32> -> vector<14x128xf32>
    %110 = arith.maximumf %108, %109 : vector<14x128xf32>
    %111 = arith.truncf %110 : vector<14x128xf32> to vector<14x128xbf16>
    %c137 = arith.constant 137 : index
    %c0_62 = arith.constant 0 : index
    %112 = vector.load %arg13[%c137, %c0_62] : memref<304x128xbf16, #tpu.memory_space<vmem>>, vector<14x128xbf16>
    tpu.vector_store %arg13[%c137, %c0_62], %111 {strides = array<i32>} : memref<304x128xbf16, #tpu.memory_space<vmem>>, vector<14x128xbf16>,
    %c392 = arith.constant 392 : index
    %c0_63 = arith.constant 0 : index
    %113 = vector.load %arg11[%c392, %c0_63] : memref<784x128xf32, #tpu.memory_space<vmem>>, vector<28x128xf32>
    %c420 = arith.constant 420 : index
    %c0_64 = arith.constant 0 : index
    %114 = vector.load %arg11[%c420, %c0_64] : memref<784x128xf32, #tpu.memory_space<vmem>>, vector<28x128xf32>
    %115 = arith.maximumf %113, %114 : vector<28x128xf32>
    %116 = arith.truncf %115 : vector<28x128xf32> to vector<28x128xbf16>
    %cst_65 = arith.constant dense<0.000000e+00> : vector<14x128xf32>
    %117 = tpu.matmul %22, %116, %cst_65 {dimension_numbers = #tpu.dot_dimension_numbers<[1], [0], [0], [1], [0, 0, 1, 1], [], []>} : vector<14x28xbf16>, vector<28x128xbf16>, vector<14x128xf32> -> vector<14x128xf32>
    %cst_66 = arith.constant dense<0.000000e+00> : vector<14x128xf32>
    %118 = tpu.matmul %31, %116, %cst_66 {dimension_numbers = #tpu.dot_dimension_numbers<[1], [0], [0], [1], [0, 0, 1, 1], [], []>} : vector<14x28xbf16>, vector<28x128xbf16>, vector<14x128xf32> -> vector<14x128xf32>
    %119 = arith.maximumf %117, %118 : vector<14x128xf32>
    %120 = arith.truncf %119 : vector<14x128xf32> to vector<14x128xbf16>
    %c153 = arith.constant 153 : index
    %c0_67 = arith.constant 0 : index
    %121 = vector.load %arg13[%c153, %c0_67] : memref<304x128xbf16, #tpu.memory_space<vmem>>, vector<14x128xbf16>
    tpu.vector_store %arg13[%c153, %c0_67], %120 {strides = array<i32>} : memref<304x128xbf16, #tpu.memory_space<vmem>>, vector<14x128xbf16>,
    %c448 = arith.constant 448 : index
    %c0_68 = arith.constant 0 : index
    %122 = vector.load %arg11[%c448, %c0_68] : memref<784x128xf32, #tpu.memory_space<vmem>>, vector<28x128xf32>
    %c476 = arith.constant 476 : index
    %c0_69 = arith.constant 0 : index
    %123 = vector.load %arg11[%c476, %c0_69] : memref<784x128xf32, #tpu.memory_space<vmem>>, vector<28x128xf32>
    %124 = arith.maximumf %122, %123 : vector<28x128xf32>
    %125 = arith.truncf %124 : vector<28x128xf32> to vector<28x128xbf16>
    %cst_70 = arith.constant dense<0.000000e+00> : vector<14x128xf32>
    %126 = tpu.matmul %22, %125, %cst_70 {dimension_numbers = #tpu.dot_dimension_numbers<[1], [0], [0], [1], [0, 0, 1, 1], [], []>} : vector<14x28xbf16>, vector<28x128xbf16>, vector<14x128xf32> -> vector<14x128xf32>
    %cst_71 = arith.constant dense<0.000000e+00> : vector<14x128xf32>
    %127 = tpu.matmul %31, %125, %cst_71 {dimension_numbers = #tpu.dot_dimension_numbers<[1], [0], [0], [1], [0, 0, 1, 1], [], []>} : vector<14x28xbf16>, vector<28x128xbf16>, vector<14x128xf32> -> vector<14x128xf32>
    %128 = arith.maximumf %126, %127 : vector<14x128xf32>
    %129 = arith.truncf %128 : vector<14x128xf32> to vector<14x128xbf16>
    %c169 = arith.constant 169 : index
    %c0_72 = arith.constant 0 : index
    %130 = vector.load %arg13[%c169, %c0_72] : memref<304x128xbf16, #tpu.memory_space<vmem>>, vector<14x128xbf16>
    tpu.vector_store %arg13[%c169, %c0_72], %129 {strides = array<i32>} : memref<304x128xbf16, #tpu.memory_space<vmem>>, vector<14x128xbf16>,
    %c504 = arith.constant 504 : index
    %c0_73 = arith.constant 0 : index
    %131 = vector.load %arg11[%c504, %c0_73] : memref<784x128xf32, #tpu.memory_space<vmem>>, vector<28x128xf32>
    %c532 = arith.constant 532 : index
    %c0_74 = arith.constant 0 : index
    %132 = vector.load %arg11[%c532, %c0_74] : memref<784x128xf32, #tpu.memory_space<vmem>>, vector<28x128xf32>
    %133 = arith.maximumf %131, %132 : vector<28x128xf32>
    %134 = arith.truncf %133 : vector<28x128xf32> to vector<28x128xbf16>
    %cst_75 = arith.constant dense<0.000000e+00> : vector<14x128xf32>
    %135 = tpu.matmul %22, %134, %cst_75 {dimension_numbers = #tpu.dot_dimension_numbers<[1], [0], [0], [1], [0, 0, 1, 1], [], []>} : vector<14x28xbf16>, vector<28x128xbf16>, vector<14x128xf32> -> vector<14x128xf32>
    %cst_76 = arith.constant dense<0.000000e+00> : vector<14x128xf32>
    %136 = tpu.matmul %31, %134, %cst_76 {dimension_numbers = #tpu.dot_dimension_numbers<[1], [0], [0], [1], [0, 0, 1, 1], [], []>} : vector<14x28xbf16>, vector<28x128xbf16>, vector<14x128xf32> -> vector<14x128xf32>
    %137 = arith.maximumf %135, %136 : vector<14x128xf32>
    %138 = arith.truncf %137 : vector<14x128xf32> to vector<14x128xbf16>
    %c185 = arith.constant 185 : index
    %c0_77 = arith.constant 0 : index
    %139 = vector.load %arg13[%c185, %c0_77] : memref<304x128xbf16, #tpu.memory_space<vmem>>, vector<14x128xbf16>
    tpu.vector_store %arg13[%c185, %c0_77], %138 {strides = array<i32>} : memref<304x128xbf16, #tpu.memory_space<vmem>>, vector<14x128xbf16>,
    %c560 = arith.constant 560 : index
    %c0_78 = arith.constant 0 : index
    %140 = vector.load %arg11[%c560, %c0_78] : memref<784x128xf32, #tpu.memory_space<vmem>>, vector<28x128xf32>
    %c588 = arith.constant 588 : index
    %c0_79 = arith.constant 0 : index
    %141 = vector.load %arg11[%c588, %c0_79] : memref<784x128xf32, #tpu.memory_space<vmem>>, vector<28x128xf32>
    %142 = arith.maximumf %140, %141 : vector<28x128xf32>
    %143 = arith.truncf %142 : vector<28x128xf32> to vector<28x128xbf16>
    %cst_80 = arith.constant dense<0.000000e+00> : vector<14x128xf32>
    %144 = tpu.matmul %22, %143, %cst_80 {dimension_numbers = #tpu.dot_dimension_numbers<[1], [0], [0], [1], [0, 0, 1, 1], [], []>} : vector<14x28xbf16>, vector<28x128xbf16>, vector<14x128xf32> -> vector<14x128xf32>
    %cst_81 = arith.constant dense<0.000000e+00> : vector<14x128xf32>
    %145 = tpu.matmul %31, %143, %cst_81 {dimension_numbers = #tpu.dot_dimension_numbers<[1], [0], [0], [1], [0, 0, 1, 1], [], []>} : vector<14x28xbf16>, vector<28x128xbf16>, vector<14x128xf32> -> vector<14x128xf32>
    %146 = arith.maximumf %144, %145 : vector<14x128xf32>
    %147 = arith.truncf %146 : vector<14x128xf32> to vector<14x128xbf16>
    %c201 = arith.constant 201 : index
    %c0_82 = arith.constant 0 : index
    %148 = vector.load %arg13[%c201, %c0_82] : memref<304x128xbf16, #tpu.memory_space<vmem>>, vector<14x128xbf16>
    tpu.vector_store %arg13[%c201, %c0_82], %147 {strides = array<i32>} : memref<304x128xbf16, #tpu.memory_space<vmem>>, vector<14x128xbf16>,
    %c616 = arith.constant 616 : index
    %c0_83 = arith.constant 0 : index
    %149 = vector.load %arg11[%c616, %c0_83] : memref<784x128xf32, #tpu.memory_space<vmem>>, vector<28x128xf32>
    %c644 = arith.constant 644 : index
    %c0_84 = arith.constant 0 : index
    %150 = vector.load %arg11[%c644, %c0_84] : memref<784x128xf32, #tpu.memory_space<vmem>>, vector<28x128xf32>
    %151 = arith.maximumf %149, %150 : vector<28x128xf32>
    %152 = arith.truncf %151 : vector<28x128xf32> to vector<28x128xbf16>
    %cst_85 = arith.constant dense<0.000000e+00> : vector<14x128xf32>
    %153 = tpu.matmul %22, %152, %cst_85 {dimension_numbers = #tpu.dot_dimension_numbers<[1], [0], [0], [1], [0, 0, 1, 1], [], []>} : vector<14x28xbf16>, vector<28x128xbf16>, vector<14x128xf32> -> vector<14x128xf32>
    %cst_86 = arith.constant dense<0.000000e+00> : vector<14x128xf32>
    %154 = tpu.matmul %31, %152, %cst_86 {dimension_numbers = #tpu.dot_dimension_numbers<[1], [0], [0], [1], [0, 0, 1, 1], [], []>} : vector<14x28xbf16>, vector<28x128xbf16>, vector<14x128xf32> -> vector<14x128xf32>
    %155 = arith.maximumf %153, %154 : vector<14x128xf32>
    %156 = arith.truncf %155 : vector<14x128xf32> to vector<14x128xbf16>
    %c217 = arith.constant 217 : index
    %c0_87 = arith.constant 0 : index
    %157 = vector.load %arg13[%c217, %c0_87] : memref<304x128xbf16, #tpu.memory_space<vmem>>, vector<14x128xbf16>
    tpu.vector_store %arg13[%c217, %c0_87], %156 {strides = array<i32>} : memref<304x128xbf16, #tpu.memory_space<vmem>>, vector<14x128xbf16>,
    %c672 = arith.constant 672 : index
    %c0_88 = arith.constant 0 : index
    %158 = vector.load %arg11[%c672, %c0_88] : memref<784x128xf32, #tpu.memory_space<vmem>>, vector<28x128xf32>
    %c700 = arith.constant 700 : index
    %c0_89 = arith.constant 0 : index
    %159 = vector.load %arg11[%c700, %c0_89] : memref<784x128xf32, #tpu.memory_space<vmem>>, vector<28x128xf32>
    %160 = arith.maximumf %158, %159 : vector<28x128xf32>
    %161 = arith.truncf %160 : vector<28x128xf32> to vector<28x128xbf16>
    %cst_90 = arith.constant dense<0.000000e+00> : vector<14x128xf32>
    %162 = tpu.matmul %22, %161, %cst_90 {dimension_numbers = #tpu.dot_dimension_numbers<[1], [0], [0], [1], [0, 0, 1, 1], [], []>} : vector<14x28xbf16>, vector<28x128xbf16>, vector<14x128xf32> -> vector<14x128xf32>
    %cst_91 = arith.constant dense<0.000000e+00> : vector<14x128xf32>
    %163 = tpu.matmul %31, %161, %cst_91 {dimension_numbers = #tpu.dot_dimension_numbers<[1], [0], [0], [1], [0, 0, 1, 1], [], []>} : vector<14x28xbf16>, vector<28x128xbf16>, vector<14x128xf32> -> vector<14x128xf32>
    %164 = arith.maximumf %162, %163 : vector<14x128xf32>
    %165 = arith.truncf %164 : vector<14x128xf32> to vector<14x128xbf16>
    %c233 = arith.constant 233 : index
    %c0_92 = arith.constant 0 : index
    %166 = vector.load %arg13[%c233, %c0_92] : memref<304x128xbf16, #tpu.memory_space<vmem>>, vector<14x128xbf16>
    tpu.vector_store %arg13[%c233, %c0_92], %165 {strides = array<i32>} : memref<304x128xbf16, #tpu.memory_space<vmem>>, vector<14x128xbf16>,
    %c728 = arith.constant 728 : index
    %c0_93 = arith.constant 0 : index
    %167 = vector.load %arg11[%c728, %c0_93] : memref<784x128xf32, #tpu.memory_space<vmem>>, vector<28x128xf32>
    %c756 = arith.constant 756 : index
    %c0_94 = arith.constant 0 : index
    %168 = vector.load %arg11[%c756, %c0_94] : memref<784x128xf32, #tpu.memory_space<vmem>>, vector<28x128xf32>
    %169 = arith.maximumf %167, %168 : vector<28x128xf32>
    %170 = arith.truncf %169 : vector<28x128xf32> to vector<28x128xbf16>
    %cst_95 = arith.constant dense<0.000000e+00> : vector<14x128xf32>
    %171 = tpu.matmul %22, %170, %cst_95 {dimension_numbers = #tpu.dot_dimension_numbers<[1], [0], [0], [1], [0, 0, 1, 1], [], []>} : vector<14x28xbf16>, vector<28x128xbf16>, vector<14x128xf32> -> vector<14x128xf32>
    %cst_96 = arith.constant dense<0.000000e+00> : vector<14x128xf32>
    %172 = tpu.matmul %31, %170, %cst_96 {dimension_numbers = #tpu.dot_dimension_numbers<[1], [0], [0], [1], [0, 0, 1, 1], [], []>} : vector<14x28xbf16>, vector<28x128xbf16>, vector<14x128xf32> -> vector<14x128xf32>
    %173 = arith.maximumf %171, %172 : vector<14x128xf32>
    %174 = arith.truncf %173 : vector<14x128xf32> to vector<14x128xbf16>
    %c249 = arith.constant 249 : index
    %c0_97 = arith.constant 0 : index
    %175 = vector.load %arg13[%c249, %c0_97] : memref<304x128xbf16, #tpu.memory_space<vmem>>, vector<14x128xbf16>
    tpu.vector_store %arg13[%c249, %c0_97], %174 {strides = array<i32>} : memref<304x128xbf16, #tpu.memory_space<vmem>>, vector<14x128xbf16>,
    %c7 = arith.constant 7 : index
    %c0_98 = arith.constant 0 : index
    %176 = vector.load %arg13[%c7, %c0_98] : memref<304x128xbf16, #tpu.memory_space<vmem>>, vector<256x128xbf16>
    %c0_99 = arith.constant 0 : index
    %c0_100 = arith.constant 0 : index
    %177 = vector.load %arg4[%c0_99, %c0_100] : memref<1152x128xbf16, #tpu.memory_space<vmem>>, vector<128x128xbf16>
    %cst_101 = arith.constant dense<0.000000e+00> : vector<256x128xf32>
    %178 = tpu.matmul %176, %177, %cst_101 {dimension_numbers = #tpu.dot_dimension_numbers<[1], [0], [0], [1], [0, 0, 1, 1], [], []>} : vector<256x128xbf16>, vector<128x128xbf16>, vector<256x128xf32> -> vector<256x128xf32>
    %c8 = arith.constant 8 : index
    %c0_102 = arith.constant 0 : index
    %179 = vector.load %arg13[%c8, %c0_102] : memref<304x128xbf16, #tpu.memory_space<vmem>>, vector<256x128xbf16>
    %c128 = arith.constant 128 : index
    %c0_103 = arith.constant 0 : index
    %180 = vector.load %arg4[%c128, %c0_103] : memref<1152x128xbf16, #tpu.memory_space<vmem>>, vector<128x128xbf16>
    %cst_104 = arith.constant dense<0.000000e+00> : vector<256x128xf32>
    %181 = tpu.matmul %179, %180, %cst_104 {dimension_numbers = #tpu.dot_dimension_numbers<[1], [0], [0], [1], [0, 0, 1, 1], [], []>} : vector<256x128xbf16>, vector<128x128xbf16>, vector<256x128xf32> -> vector<256x128xf32>
    %182 = arith.addf %178, %181 : vector<256x128xf32>
    %c9 = arith.constant 9 : index
    %c0_105 = arith.constant 0 : index
    %183 = vector.load %arg13[%c9, %c0_105] : memref<304x128xbf16, #tpu.memory_space<vmem>>, vector<256x128xbf16>
    %c256 = arith.constant 256 : index
    %c0_106 = arith.constant 0 : index
    %184 = vector.load %arg4[%c256, %c0_106] : memref<1152x128xbf16, #tpu.memory_space<vmem>>, vector<128x128xbf16>
    %cst_107 = arith.constant dense<0.000000e+00> : vector<256x128xf32>
    %185 = tpu.matmul %183, %184, %cst_107 {dimension_numbers = #tpu.dot_dimension_numbers<[1], [0], [0], [1], [0, 0, 1, 1], [], []>} : vector<256x128xbf16>, vector<128x128xbf16>, vector<256x128xf32> -> vector<256x128xf32>
    %186 = arith.addf %182, %185 : vector<256x128xf32>
    %c23 = arith.constant 23 : index
    %c0_108 = arith.constant 0 : index
    %187 = vector.load %arg13[%c23, %c0_108] : memref<304x128xbf16, #tpu.memory_space<vmem>>, vector<256x128xbf16>
    %c384 = arith.constant 384 : index
    %c0_109 = arith.constant 0 : index
    %188 = vector.load %arg4[%c384, %c0_109] : memref<1152x128xbf16, #tpu.memory_space<vmem>>, vector<128x128xbf16>
    %cst_110 = arith.constant dense<0.000000e+00> : vector<256x128xf32>
    %189 = tpu.matmul %187, %188, %cst_110 {dimension_numbers = #tpu.dot_dimension_numbers<[1], [0], [0], [1], [0, 0, 1, 1], [], []>} : vector<256x128xbf16>, vector<128x128xbf16>, vector<256x128xf32> -> vector<256x128xf32>
    %190 = arith.addf %186, %189 : vector<256x128xf32>
    %c24 = arith.constant 24 : index
    %c0_111 = arith.constant 0 : index
    %191 = vector.load %arg13[%c24, %c0_111] : memref<304x128xbf16, #tpu.memory_space<vmem>>, vector<256x128xbf16>
    %c512 = arith.constant 512 : index
    %c0_112 = arith.constant 0 : index
    %192 = vector.load %arg4[%c512, %c0_112] : memref<1152x128xbf16, #tpu.memory_space<vmem>>, vector<128x128xbf16>
    %cst_113 = arith.constant dense<0.000000e+00> : vector<256x128xf32>
    %193 = tpu.matmul %191, %192, %cst_113 {dimension_numbers = #tpu.dot_dimension_numbers<[1], [0], [0], [1], [0, 0, 1, 1], [], []>} : vector<256x128xbf16>, vector<128x128xbf16>, vector<256x128xf32> -> vector<256x128xf32>
    %194 = arith.addf %190, %193 : vector<256x128xf32>
    %c25 = arith.constant 25 : index
    %c0_114 = arith.constant 0 : index
    %195 = vector.load %arg13[%c25, %c0_114] : memref<304x128xbf16, #tpu.memory_space<vmem>>, vector<256x128xbf16>
    %c640 = arith.constant 640 : index
    %c0_115 = arith.constant 0 : index
    %196 = vector.load %arg4[%c640, %c0_115] : memref<1152x128xbf16, #tpu.memory_space<vmem>>, vector<128x128xbf16>
    %cst_116 = arith.constant dense<0.000000e+00> : vector<256x128xf32>
    %197 = tpu.matmul %195, %196, %cst_116 {dimension_numbers = #tpu.dot_dimension_numbers<[1], [0], [0], [1], [0, 0, 1, 1], [], []>} : vector<256x128xbf16>, vector<128x128xbf16>, vector<256x128xf32> -> vector<256x128xf32>
    %198 = arith.addf %194, %197 : vector<256x128xf32>
    %c39 = arith.constant 39 : index
    %c0_117 = arith.constant 0 : index
    %199 = vector.load %arg13[%c39, %c0_117] : memref<304x128xbf16, #tpu.memory_space<vmem>>, vector<256x128xbf16>
    %c768 = arith.constant 768 : index
    %c0_118 = arith.constant 0 : index
    %200 = vector.load %arg4[%c768, %c0_118] : memref<1152x128xbf16, #tpu.memory_space<vmem>>, vector<128x128xbf16>
    %cst_119 = arith.constant dense<0.000000e+00> : vector<256x128xf32>
    %201 = tpu.matmul %199, %200, %cst_119 {dimension_numbers = #tpu.dot_dimension_numbers<[1], [0], [0], [1], [0, 0, 1, 1], [], []>} : vector<256x128xbf16>, vector<128x128xbf16>, vector<256x128xf32> -> vector<256x128xf32>
    %202 = arith.addf %198, %201 : vector<256x128xf32>
    %c40 = arith.constant 40 : index
    %c0_120 = arith.constant 0 : index
    %203 = vector.load %arg13[%c40, %c0_120] : memref<304x128xbf16, #tpu.memory_space<vmem>>, vector<256x128xbf16>
    %c896 = arith.constant 896 : index
    %c0_121 = arith.constant 0 : index
    %204 = vector.load %arg4[%c896, %c0_121] : memref<1152x128xbf16, #tpu.memory_space<vmem>>, vector<128x128xbf16>
    %cst_122 = arith.constant dense<0.000000e+00> : vector<256x128xf32>
    %205 = tpu.matmul %203, %204, %cst_122 {dimension_numbers = #tpu.dot_dimension_numbers<[1], [0], [0], [1], [0, 0, 1, 1], [], []>} : vector<256x128xbf16>, vector<128x128xbf16>, vector<256x128xf32> -> vector<256x128xf32>
    %206 = arith.addf %202, %205 : vector<256x128xf32>
    %c41_123 = arith.constant 41 : index
    %c0_124 = arith.constant 0 : index
    %207 = vector.load %arg13[%c41_123, %c0_124] : memref<304x128xbf16, #tpu.memory_space<vmem>>, vector<256x128xbf16>
    %c1024 = arith.constant 1024 : index
    %c0_125 = arith.constant 0 : index
    %208 = vector.load %arg4[%c1024, %c0_125] : memref<1152x128xbf16, #tpu.memory_space<vmem>>, vector<128x128xbf16>
    %cst_126 = arith.constant dense<0.000000e+00> : vector<256x128xf32>
    %209 = tpu.matmul %207, %208, %cst_126 {dimension_numbers = #tpu.dot_dimension_numbers<[1], [0], [0], [1], [0, 0, 1, 1], [], []>} : vector<256x128xbf16>, vector<128x128xbf16>, vector<256x128xf32> -> vector<256x128xf32>
    %210 = arith.addf %206, %209 : vector<256x128xf32>
    %c0_127 = arith.constant 0 : index
    %c0_128 = arith.constant 0 : index
    %211 = vector.load %arg5[%c0_127, %c0_128] : memref<1x128xf32, #tpu.memory_space<vmem>>, vector<1x128xf32>
    %212 = vector.broadcast %211 : vector<1x128xf32> to vector<256x128xf32>
    %213 = arith.addf %210, %212 : vector<256x128xf32>
    %cst_129 = arith.constant 0.000000e+00 : f32
    %214 = vector.broadcast %cst_129 : f32 to vector<256x128xf32>
    %215 = arith.maximumf %213, %214 : vector<256x128xf32>
    %c0_130 = arith.constant 0 : index
    %c0_131 = arith.constant 0 : index
    %216 = vector.load %arg12[%c0_130, %c0_131] : memref<256x128xf32, #tpu.memory_space<vmem>>, vector<256x128xf32>
    tpu.vector_store %arg12[%c0_130, %c0_131], %215 {strides = array<i32>} : memref<256x128xf32, #tpu.memory_space<vmem>>, vector<256x128xf32>,
    %c17 = arith.constant 17 : index
    %c0_132 = arith.constant 0 : index
    %217 = vector.load %arg12[%c17, %c0_132] : memref<256x128xf32, #tpu.memory_space<vmem>>, vector<14x128xf32>
    %c33 = arith.constant 33 : index
    %c0_133 = arith.constant 0 : index
    %218 = vector.load %arg12[%c33, %c0_133] : memref<256x128xf32, #tpu.memory_space<vmem>>, vector<14x128xf32>
    %219 = arith.maximumf %217, %218 : vector<14x128xf32>
    %220 = arith.truncf %219 : vector<14x128xf32> to vector<14x128xbf16>
    %cst_134 = arith.constant dense<0.000000e+00> : vector<7x128xf32>
    %221 = tpu.matmul %40, %220, %cst_134 {dimension_numbers = #tpu.dot_dimension_numbers<[1], [0], [0], [1], [0, 0, 1, 1], [], []>} : vector<7x14xbf16>, vector<14x128xbf16>, vector<7x128xf32> -> vector<7x128xf32>
    %cst_135 = arith.constant dense<0.000000e+00> : vector<7x128xf32>
    %222 = tpu.matmul %49, %220, %cst_135 {dimension_numbers = #tpu.dot_dimension_numbers<[1], [0], [0], [1], [0, 0, 1, 1], [], []>} : vector<7x14xbf16>, vector<14x128xbf16>, vector<7x128xf32> -> vector<7x128xf32>
    %223 = arith.maximumf %221, %222 : vector<7x128xf32>
    %224 = arith.truncf %223 : vector<7x128xf32> to vector<7x128xbf16>
    %c26 = arith.constant 26 : index
    %c0_136 = arith.constant 0 : index
    %225 = vector.load %arg14[%c26, %c0_136] : memref<120x128xbf16, #tpu.memory_space<vmem>>, vector<7x128xbf16>
    tpu.vector_store %arg14[%c26, %c0_136], %224 {strides = array<i32>} : memref<120x128xbf16, #tpu.memory_space<vmem>>, vector<7x128xbf16>,
    %c49 = arith.constant 49 : index
    %c0_137 = arith.constant 0 : index
    %226 = vector.load %arg12[%c49, %c0_137] : memref<256x128xf32, #tpu.memory_space<vmem>>, vector<14x128xf32>
    %c65 = arith.constant 65 : index
    %c0_138 = arith.constant 0 : index
    %227 = vector.load %arg12[%c65, %c0_138] : memref<256x128xf32, #tpu.memory_space<vmem>>, vector<14x128xf32>
    %228 = arith.maximumf %226, %227 : vector<14x128xf32>
    %229 = arith.truncf %228 : vector<14x128xf32> to vector<14x128xbf16>
    %cst_139 = arith.constant dense<0.000000e+00> : vector<7x128xf32>
    %230 = tpu.matmul %40, %229, %cst_139 {dimension_numbers = #tpu.dot_dimension_numbers<[1], [0], [0], [1], [0, 0, 1, 1], [], []>} : vector<7x14xbf16>, vector<14x128xbf16>, vector<7x128xf32> -> vector<7x128xf32>
    %cst_140 = arith.constant dense<0.000000e+00> : vector<7x128xf32>
    %231 = tpu.matmul %49, %229, %cst_140 {dimension_numbers = #tpu.dot_dimension_numbers<[1], [0], [0], [1], [0, 0, 1, 1], [], []>} : vector<7x14xbf16>, vector<14x128xbf16>, vector<7x128xf32> -> vector<7x128xf32>
    %232 = arith.maximumf %230, %231 : vector<7x128xf32>
    %233 = arith.truncf %232 : vector<7x128xf32> to vector<7x128xbf16>
    %c35 = arith.constant 35 : index
    %c0_141 = arith.constant 0 : index
    %234 = vector.load %arg14[%c35, %c0_141] : memref<120x128xbf16, #tpu.memory_space<vmem>>, vector<7x128xbf16>
    tpu.vector_store %arg14[%c35, %c0_141], %233 {strides = array<i32>} : memref<120x128xbf16, #tpu.memory_space<vmem>>, vector<7x128xbf16>,
    %c81 = arith.constant 81 : index
    %c0_142 = arith.constant 0 : index
    %235 = vector.load %arg12[%c81, %c0_142] : memref<256x128xf32, #tpu.memory_space<vmem>>, vector<14x128xf32>
    %c97 = arith.constant 97 : index
    %c0_143 = arith.constant 0 : index
    %236 = vector.load %arg12[%c97, %c0_143] : memref<256x128xf32, #tpu.memory_space<vmem>>, vector<14x128xf32>
    %237 = arith.maximumf %235, %236 : vector<14x128xf32>
    %238 = arith.truncf %237 : vector<14x128xf32> to vector<14x128xbf16>
    %cst_144 = arith.constant dense<0.000000e+00> : vector<7x128xf32>
    %239 = tpu.matmul %40, %238, %cst_144 {dimension_numbers = #tpu.dot_dimension_numbers<[1], [0], [0], [1], [0, 0, 1, 1], [], []>} : vector<7x14xbf16>, vector<14x128xbf16>, vector<7x128xf32> -> vector<7x128xf32>
    %cst_145 = arith.constant dense<0.000000e+00> : vector<7x128xf32>
    %240 = tpu.matmul %49, %238, %cst_145 {dimension_numbers = #tpu.dot_dimension_numbers<[1], [0], [0], [1], [0, 0, 1, 1], [], []>} : vector<7x14xbf16>, vector<14x128xbf16>, vector<7x128xf32> -> vector<7x128xf32>
    %241 = arith.maximumf %239, %240 : vector<7x128xf32>
    %242 = arith.truncf %241 : vector<7x128xf32> to vector<7x128xbf16>
    %c44 = arith.constant 44 : index
    %c0_146 = arith.constant 0 : index
    %243 = vector.load %arg14[%c44, %c0_146] : memref<120x128xbf16, #tpu.memory_space<vmem>>, vector<7x128xbf16>
    tpu.vector_store %arg14[%c44, %c0_146], %242 {strides = array<i32>} : memref<120x128xbf16, #tpu.memory_space<vmem>>, vector<7x128xbf16>,
    %c113 = arith.constant 113 : index
    %c0_147 = arith.constant 0 : index
    %244 = vector.load %arg12[%c113, %c0_147] : memref<256x128xf32, #tpu.memory_space<vmem>>, vector<14x128xf32>
    %c129 = arith.constant 129 : index
    %c0_148 = arith.constant 0 : index
    %245 = vector.load %arg12[%c129, %c0_148] : memref<256x128xf32, #tpu.memory_space<vmem>>, vector<14x128xf32>
    %246 = arith.maximumf %244, %245 : vector<14x128xf32>
    %247 = arith.truncf %246 : vector<14x128xf32> to vector<14x128xbf16>
    %cst_149 = arith.constant dense<0.000000e+00> : vector<7x128xf32>
    %248 = tpu.matmul %40, %247, %cst_149 {dimension_numbers = #tpu.dot_dimension_numbers<[1], [0], [0], [1], [0, 0, 1, 1], [], []>} : vector<7x14xbf16>, vector<14x128xbf16>, vector<7x128xf32> -> vector<7x128xf32>
    %cst_150 = arith.constant dense<0.000000e+00> : vector<7x128xf32>
    %249 = tpu.matmul %49, %247, %cst_150 {dimension_numbers = #tpu.dot_dimension_numbers<[1], [0], [0], [1], [0, 0, 1, 1], [], []>} : vector<7x14xbf16>, vector<14x128xbf16>, vector<7x128xf32> -> vector<7x128xf32>
    %250 = arith.maximumf %248, %249 : vector<7x128xf32>
    %251 = arith.truncf %250 : vector<7x128xf32> to vector<7x128xbf16>
    %c53 = arith.constant 53 : index
    %c0_151 = arith.constant 0 : index
    %252 = vector.load %arg14[%c53, %c0_151] : memref<120x128xbf16, #tpu.memory_space<vmem>>, vector<7x128xbf16>
    tpu.vector_store %arg14[%c53, %c0_151], %251 {strides = array<i32>} : memref<120x128xbf16, #tpu.memory_space<vmem>>, vector<7x128xbf16>,
    %c145 = arith.constant 145 : index
    %c0_152 = arith.constant 0 : index
    %253 = vector.load %arg12[%c145, %c0_152] : memref<256x128xf32, #tpu.memory_space<vmem>>, vector<14x128xf32>
    %c161 = arith.constant 161 : index
    %c0_153 = arith.constant 0 : index
    %254 = vector.load %arg12[%c161, %c0_153] : memref<256x128xf32, #tpu.memory_space<vmem>>, vector<14x128xf32>
    %255 = arith.maximumf %253, %254 : vector<14x128xf32>
    %256 = arith.truncf %255 : vector<14x128xf32> to vector<14x128xbf16>
    %cst_154 = arith.constant dense<0.000000e+00> : vector<7x128xf32>
    %257 = tpu.matmul %40, %256, %cst_154 {dimension_numbers = #tpu.dot_dimension_numbers<[1], [0], [0], [1], [0, 0, 1, 1], [], []>} : vector<7x14xbf16>, vector<14x128xbf16>, vector<7x128xf32> -> vector<7x128xf32>
    %cst_155 = arith.constant dense<0.000000e+00> : vector<7x128xf32>
    %258 = tpu.matmul %49, %256, %cst_155 {dimension_numbers = #tpu.dot_dimension_numbers<[1], [0], [0], [1], [0, 0, 1, 1], [], []>} : vector<7x14xbf16>, vector<14x128xbf16>, vector<7x128xf32> -> vector<7x128xf32>
    %259 = arith.maximumf %257, %258 : vector<7x128xf32>
    %260 = arith.truncf %259 : vector<7x128xf32> to vector<7x128xbf16>
    %c62 = arith.constant 62 : index
    %c0_156 = arith.constant 0 : index
    %261 = vector.load %arg14[%c62, %c0_156] : memref<120x128xbf16, #tpu.memory_space<vmem>>, vector<7x128xbf16>
    tpu.vector_store %arg14[%c62, %c0_156], %260 {strides = array<i32>} : memref<120x128xbf16, #tpu.memory_space<vmem>>, vector<7x128xbf16>,
    %c177 = arith.constant 177 : index
    %c0_157 = arith.constant 0 : index
    %262 = vector.load %arg12[%c177, %c0_157] : memref<256x128xf32, #tpu.memory_space<vmem>>, vector<14x128xf32>
    %c193 = arith.constant 193 : index
    %c0_158 = arith.constant 0 : index
    %263 = vector.load %arg12[%c193, %c0_158] : memref<256x128xf32, #tpu.memory_space<vmem>>, vector<14x128xf32>
    %264 = arith.maximumf %262, %263 : vector<14x128xf32>
    %265 = arith.truncf %264 : vector<14x128xf32> to vector<14x128xbf16>
    %cst_159 = arith.constant dense<0.000000e+00> : vector<7x128xf32>
    %266 = tpu.matmul %40, %265, %cst_159 {dimension_numbers = #tpu.dot_dimension_numbers<[1], [0], [0], [1], [0, 0, 1, 1], [], []>} : vector<7x14xbf16>, vector<14x128xbf16>, vector<7x128xf32> -> vector<7x128xf32>
    %cst_160 = arith.constant dense<0.000000e+00> : vector<7x128xf32>
    %267 = tpu.matmul %49, %265, %cst_160 {dimension_numbers = #tpu.dot_dimension_numbers<[1], [0], [0], [1], [0, 0, 1, 1], [], []>} : vector<7x14xbf16>, vector<14x128xbf16>, vector<7x128xf32> -> vector<7x128xf32>
    %268 = arith.maximumf %266, %267 : vector<7x128xf32>
    %269 = arith.truncf %268 : vector<7x128xf32> to vector<7x128xbf16>
    %c71 = arith.constant 71 : index
    %c0_161 = arith.constant 0 : index
    %270 = vector.load %arg14[%c71, %c0_161] : memref<120x128xbf16, #tpu.memory_space<vmem>>, vector<7x128xbf16>
    tpu.vector_store %arg14[%c71, %c0_161], %269 {strides = array<i32>} : memref<120x128xbf16, #tpu.memory_space<vmem>>, vector<7x128xbf16>,
    %c209 = arith.constant 209 : index
    %c0_162 = arith.constant 0 : index
    %271 = vector.load %arg12[%c209, %c0_162] : memref<256x128xf32, #tpu.memory_space<vmem>>, vector<14x128xf32>
    %c225 = arith.constant 225 : index
    %c0_163 = arith.constant 0 : index
    %272 = vector.load %arg12[%c225, %c0_163] : memref<256x128xf32, #tpu.memory_space<vmem>>, vector<14x128xf32>
    %273 = arith.maximumf %271, %272 : vector<14x128xf32>
    %274 = arith.truncf %273 : vector<14x128xf32> to vector<14x128xbf16>
    %cst_164 = arith.constant dense<0.000000e+00> : vector<7x128xf32>
    %275 = tpu.matmul %40, %274, %cst_164 {dimension_numbers = #tpu.dot_dimension_numbers<[1], [0], [0], [1], [0, 0, 1, 1], [], []>} : vector<7x14xbf16>, vector<14x128xbf16>, vector<7x128xf32> -> vector<7x128xf32>
    %cst_165 = arith.constant dense<0.000000e+00> : vector<7x128xf32>
    %276 = tpu.matmul %49, %274, %cst_165 {dimension_numbers = #tpu.dot_dimension_numbers<[1], [0], [0], [1], [0, 0, 1, 1], [], []>} : vector<7x14xbf16>, vector<14x128xbf16>, vector<7x128xf32> -> vector<7x128xf32>
    %277 = arith.maximumf %275, %276 : vector<7x128xf32>
    %278 = arith.truncf %277 : vector<7x128xf32> to vector<7x128xbf16>
    %c80 = arith.constant 80 : index
    %c0_166 = arith.constant 0 : index
    %279 = vector.load %arg14[%c80, %c0_166] : memref<120x128xbf16, #tpu.memory_space<vmem>>, vector<7x128xbf16>
    tpu.vector_store %arg14[%c80, %c0_166], %278 {strides = array<i32>} : memref<120x128xbf16, #tpu.memory_space<vmem>>, vector<7x128xbf16>,
    %c6 = arith.constant 6 : index
    %c0_167 = arith.constant 0 : index
    %280 = vector.load %arg14[%c6, %c0_167] : memref<120x128xbf16, #tpu.memory_space<vmem>>, vector<81x128xbf16>
    %c0_168 = arith.constant 0 : index
    %c0_169 = arith.constant 0 : index
    %281 = vector.load %arg6[%c0_168, %c0_169] : memref<1152x128xbf16, #tpu.memory_space<vmem>>, vector<128x128xbf16>
    %cst_170 = arith.constant dense<0.000000e+00> : vector<81x128xf32>
    %282 = tpu.matmul %280, %281, %cst_170 {dimension_numbers = #tpu.dot_dimension_numbers<[1], [0], [0], [1], [0, 0, 1, 1], [], []>} : vector<81x128xbf16>, vector<128x128xbf16>, vector<81x128xf32> -> vector<81x128xf32>
    %c7_171 = arith.constant 7 : index
    %c0_172 = arith.constant 0 : index
    %283 = vector.load %arg14[%c7_171, %c0_172] : memref<120x128xbf16, #tpu.memory_space<vmem>>, vector<81x128xbf16>
    %c128_173 = arith.constant 128 : index
    %c0_174 = arith.constant 0 : index
    %284 = vector.load %arg6[%c128_173, %c0_174] : memref<1152x128xbf16, #tpu.memory_space<vmem>>, vector<128x128xbf16>
    %cst_175 = arith.constant dense<0.000000e+00> : vector<81x128xf32>
    %285 = tpu.matmul %283, %284, %cst_175 {dimension_numbers = #tpu.dot_dimension_numbers<[1], [0], [0], [1], [0, 0, 1, 1], [], []>} : vector<81x128xbf16>, vector<128x128xbf16>, vector<81x128xf32> -> vector<81x128xf32>
    %286 = arith.addf %282, %285 : vector<81x128xf32>
    %c8_176 = arith.constant 8 : index
    %c0_177 = arith.constant 0 : index
    %287 = vector.load %arg14[%c8_176, %c0_177] : memref<120x128xbf16, #tpu.memory_space<vmem>>, vector<81x128xbf16>
    %c256_178 = arith.constant 256 : index
    %c0_179 = arith.constant 0 : index
    %288 = vector.load %arg6[%c256_178, %c0_179] : memref<1152x128xbf16, #tpu.memory_space<vmem>>, vector<128x128xbf16>
    %cst_180 = arith.constant dense<0.000000e+00> : vector<81x128xf32>
    %289 = tpu.matmul %287, %288, %cst_180 {dimension_numbers = #tpu.dot_dimension_numbers<[1], [0], [0], [1], [0, 0, 1, 1], [], []>} : vector<81x128xbf16>, vector<128x128xbf16>, vector<81x128xf32> -> vector<81x128xf32>
    %290 = arith.addf %286, %289 : vector<81x128xf32>
    %c15 = arith.constant 15 : index
    %c0_181 = arith.constant 0 : index
    %291 = vector.load %arg14[%c15, %c0_181] : memref<120x128xbf16, #tpu.memory_space<vmem>>, vector<81x128xbf16>
    %c384_182 = arith.constant 384 : index
    %c0_183 = arith.constant 0 : index
    %292 = vector.load %arg6[%c384_182, %c0_183] : memref<1152x128xbf16, #tpu.memory_space<vmem>>, vector<128x128xbf16>
    %cst_184 = arith.constant dense<0.000000e+00> : vector<81x128xf32>
    %293 = tpu.matmul %291, %292, %cst_184 {dimension_numbers = #tpu.dot_dimension_numbers<[1], [0], [0], [1], [0, 0, 1, 1], [], []>} : vector<81x128xbf16>, vector<128x128xbf16>, vector<81x128xf32> -> vector<81x128xf32>
    %294 = arith.addf %290, %293 : vector<81x128xf32>
    %c16 = arith.constant 16 : index
    %c0_185 = arith.constant 0 : index
    %295 = vector.load %arg14[%c16, %c0_185] : memref<120x128xbf16, #tpu.memory_space<vmem>>, vector<81x128xbf16>
    %c512_186 = arith.constant 512 : index
    %c0_187 = arith.constant 0 : index
    %296 = vector.load %arg6[%c512_186, %c0_187] : memref<1152x128xbf16, #tpu.memory_space<vmem>>, vector<128x128xbf16>
    %cst_188 = arith.constant dense<0.000000e+00> : vector<81x128xf32>
    %297 = tpu.matmul %295, %296, %cst_188 {dimension_numbers = #tpu.dot_dimension_numbers<[1], [0], [0], [1], [0, 0, 1, 1], [], []>} : vector<81x128xbf16>, vector<128x128xbf16>, vector<81x128xf32> -> vector<81x128xf32>
    %298 = arith.addf %294, %297 : vector<81x128xf32>
    %c17_189 = arith.constant 17 : index
    %c0_190 = arith.constant 0 : index
    %299 = vector.load %arg14[%c17_189, %c0_190] : memref<120x128xbf16, #tpu.memory_space<vmem>>, vector<81x128xbf16>
    %c640_191 = arith.constant 640 : index
    %c0_192 = arith.constant 0 : index
    %300 = vector.load %arg6[%c640_191, %c0_192] : memref<1152x128xbf16, #tpu.memory_space<vmem>>, vector<128x128xbf16>
    %cst_193 = arith.constant dense<0.000000e+00> : vector<81x128xf32>
    %301 = tpu.matmul %299, %300, %cst_193 {dimension_numbers = #tpu.dot_dimension_numbers<[1], [0], [0], [1], [0, 0, 1, 1], [], []>} : vector<81x128xbf16>, vector<128x128xbf16>, vector<81x128xf32> -> vector<81x128xf32>
    %302 = arith.addf %298, %301 : vector<81x128xf32>
    %c24_194 = arith.constant 24 : index
    %c0_195 = arith.constant 0 : index
    %303 = vector.load %arg14[%c24_194, %c0_195] : memref<120x128xbf16, #tpu.memory_space<vmem>>, vector<81x128xbf16>
    %c768_196 = arith.constant 768 : index
    %c0_197 = arith.constant 0 : index
    %304 = vector.load %arg6[%c768_196, %c0_197] : memref<1152x128xbf16, #tpu.memory_space<vmem>>, vector<128x128xbf16>
    %cst_198 = arith.constant dense<0.000000e+00> : vector<81x128xf32>
    %305 = tpu.matmul %303, %304, %cst_198 {dimension_numbers = #tpu.dot_dimension_numbers<[1], [0], [0], [1], [0, 0, 1, 1], [], []>} : vector<81x128xbf16>, vector<128x128xbf16>, vector<81x128xf32> -> vector<81x128xf32>
    %306 = arith.addf %302, %305 : vector<81x128xf32>
    %c25_199 = arith.constant 25 : index
    %c0_200 = arith.constant 0 : index
    %307 = vector.load %arg14[%c25_199, %c0_200] : memref<120x128xbf16, #tpu.memory_space<vmem>>, vector<81x128xbf16>
    %c896_201 = arith.constant 896 : index
    %c0_202 = arith.constant 0 : index
    %308 = vector.load %arg6[%c896_201, %c0_202] : memref<1152x128xbf16, #tpu.memory_space<vmem>>, vector<128x128xbf16>
    %cst_203 = arith.constant dense<0.000000e+00> : vector<81x128xf32>
    %309 = tpu.matmul %307, %308, %cst_203 {dimension_numbers = #tpu.dot_dimension_numbers<[1], [0], [0], [1], [0, 0, 1, 1], [], []>} : vector<81x128xbf16>, vector<128x128xbf16>, vector<81x128xf32> -> vector<81x128xf32>
    %310 = arith.addf %306, %309 : vector<81x128xf32>
    %c26_204 = arith.constant 26 : index
    %c0_205 = arith.constant 0 : index
    %311 = vector.load %arg14[%c26_204, %c0_205] : memref<120x128xbf16, #tpu.memory_space<vmem>>, vector<81x128xbf16>
    %c1024_206 = arith.constant 1024 : index
    %c0_207 = arith.constant 0 : index
    %312 = vector.load %arg6[%c1024_206, %c0_207] : memref<1152x128xbf16, #tpu.memory_space<vmem>>, vector<128x128xbf16>
    %cst_208 = arith.constant dense<0.000000e+00> : vector<81x128xf32>
    %313 = tpu.matmul %311, %312, %cst_208 {dimension_numbers = #tpu.dot_dimension_numbers<[1], [0], [0], [1], [0, 0, 1, 1], [], []>} : vector<81x128xbf16>, vector<128x128xbf16>, vector<81x128xf32> -> vector<81x128xf32>
    %314 = arith.addf %310, %313 : vector<81x128xf32>
    %c0_209 = arith.constant 0 : index
    %c0_210 = arith.constant 0 : index
    %315 = vector.load %arg7[%c0_209, %c0_210] : memref<1x128xf32, #tpu.memory_space<vmem>>, vector<1x128xf32>
    %316 = vector.broadcast %315 : vector<1x128xf32> to vector<81x128xf32>
    %317 = arith.addf %314, %316 : vector<81x128xf32>
    %cst_211 = arith.constant 0.000000e+00 : f32
    %318 = vector.broadcast %cst_211 : f32 to vector<81x128xf32>
    %319 = arith.maximumf %317, %318 : vector<81x128xf32>
    %c0_212 = arith.constant 0 : index
    %c0_213 = arith.constant 0 : index
    %320 = vector.load %arg8[%c0_212, %c0_213] : memref<10x81xbf16, #tpu.memory_space<vmem>>, vector<10x81xbf16>
    %321 = arith.truncf %319 : vector<81x128xf32> to vector<81x128xbf16>
    %cst_214 = arith.constant dense<0.000000e+00> : vector<10x128xf32>
    %322 = tpu.matmul %320, %321, %cst_214 {dimension_numbers = #tpu.dot_dimension_numbers<[1], [0], [0], [1], [0, 0, 1, 1], [], []>} : vector<10x81xbf16>, vector<81x128xbf16>, vector<10x128xf32> -> vector<10x128xf32>
    %323 = vector.extract_strided_slice %322 {offsets = [0, 0], sizes = [10, 1], strides = [1, 1]} : vector<10x128xf32> to vector<10x1xf32>
    %c0_215 = arith.constant 0 : index
    %c0_216 = arith.constant 0 : index
    %324 = vector.load %arg9[%c0_215, %c0_216] : memref<10x1xf32, #tpu.memory_space<vmem>>, vector<10x1xf32>
    %325 = arith.addf %323, %324 : vector<10x1xf32>
    %c0_217 = arith.constant 0 : index
    %c0_218 = arith.constant 0 : index
    %c0_219 = arith.constant 0 : index
    %326 = vector.load %arg10[%c0_217, %c0_218, %c0_219] : memref<1x10x1xf32, #tpu.memory_space<vmem>>, vector<1x10x1xf32>
    %327 = vector.shape_cast %326 : vector<1x10x1xf32> to vector<10x1xf32>
    %328 = vector.shape_cast %325 : vector<10x1xf32> to vector<1x10x1xf32>
    tpu.vector_store %arg10[%c0_217, %c0_218, %c0_219], %328 {strides = array<i32>} : memref<1x10x1xf32, #tpu.memory_space<vmem>>, vector<1x10x1xf32>,
    return
  }
  func.func @transform_0(%arg0: i32) -> (i32, i32, i32) {
    %c0_i32 = arith.constant 0 : i32
    %c0_i32_0 = arith.constant 0 : i32
    %c0_i32_1 = arith.constant 0 : i32
    return %arg0, %c0_i32, %c0_i32_0 : i32, i32, i32
  }
  func.func @transform_1(%arg0: i32) -> (i32, i32) {
    %c0_i32 = arith.constant 0 : i32
    %c0_i32_0 = arith.constant 0 : i32
    %c0_i32_1 = arith.constant 0 : i32
    return %c0_i32, %c0_i32_0 : i32, i32
  }
  func.func @transform_2(%arg0: i32) -> (i32, i32) {
    %c0_i32 = arith.constant 0 : i32
    %c0_i32_0 = arith.constant 0 : i32
    %c0_i32_1 = arith.constant 0 : i32
    return %c0_i32, %c0_i32_0 : i32, i32
  }
  func.func @transform_3(%arg0: i32) -> (i32, i32) {
    %c0_i32 = arith.constant 0 : i32
    %c0_i32_0 = arith.constant 0 : i32
    %c0_i32_1 = arith.constant 0 : i32
    return %c0_i32, %c0_i32_0 : i32, i32
  }
  func.func @transform_4(%arg0: i32) -> (i32, i32) {
    %c0_i32 = arith.constant 0 : i32
    %c0_i32_0 = arith.constant 0 : i32
    %c0_i32_1 = arith.constant 0 : i32
    return %c0_i32, %c0_i32_0 : i32, i32
  }
  func.func @transform_5(%arg0: i32) -> (i32, i32) {
    %c0_i32 = arith.constant 0 : i32
    %c0_i32_0 = arith.constant 0 : i32
    %c0_i32_1 = arith.constant 0 : i32
    return %c0_i32, %c0_i32_0 : i32, i32
  }
  func.func @transform_6(%arg0: i32) -> (i32, i32) {
    %c0_i32 = arith.constant 0 : i32
    %c0_i32_0 = arith.constant 0 : i32
    %c0_i32_1 = arith.constant 0 : i32
    return %c0_i32, %c0_i32_0 : i32, i32
  }
  func.func @transform_7(%arg0: i32) -> (i32, i32) {
    %c0_i32 = arith.constant 0 : i32
    %c0_i32_0 = arith.constant 0 : i32
    %c0_i32_1 = arith.constant 0 : i32
    return %c0_i32, %c0_i32_0 : i32, i32
  }
  func.func @transform_8(%arg0: i32) -> (i32, i32) {
    %c0_i32 = arith.constant 0 : i32
    %c0_i32_0 = arith.constant 0 : i32
    %c0_i32_1 = arith.constant 0 : i32
    return %c0_i32, %c0_i32_0 : i32, i32
  }
  func.func @transform_9(%arg0: i32) -> (i32, i32, i32) {
    %c0_i32 = arith.constant 0 : i32
    %c0_i32_0 = arith.constant 0 : i32
    %c0_i32_1 = arith.constant 0 : i32
    return %arg0, %c0_i32, %c0_i32_0 : i32, i32, i32
  }
}

</mosaic_0001>

<llo_original>
// kernel: demo_net_forward.1
$region0: #{demo_net_forward.1}
  #allocation0 [shape = 'u32[]', space=smem, size = 0x4, offset = 0x4, fixed_abs, tag = 'smem constant byte address 0x4 - core index']
  #allocation1 [shape = 'u32[72,128]{1,0:T(1,128)}', space=vmem, size = 0x9000, scoped, tag = 'internal scratch']
  #allocation2 [shape = 'f32[784,128]{1,0:T(8,128)}', space=vmem, size = 0x62000, scoped, tag = 'scratch operand']
  #allocation3 [shape = 'f32[256,128]{1,0:T(8,128)}', space=vmem, size = 0x20000, scoped, tag = 'scratch operand']
  #allocation4 [shape = 'bf16[304,128]{1,0:T(8,128)(2,1)}', space=vmem, size = 0x13000, scoped, tag = 'scratch operand']
  #allocation5 [shape = 'bf16[120,128]{1,0:T(8,128)(2,1)}', space=vmem, size = 0x7800, scoped, tag = 'scratch operand']
  %s0 = inlined_call_operand.vmem [shape: bf16[2,784,9], index: 0, kind: input, shape index: {}]
  %s1 = inlined_call_operand.vmem [shape: bf16[9,128], index: 1, kind: input, shape index: {}]
  %s2 = inlined_call_operand.vmem [shape: f32[1,128], index: 2, kind: input, shape index: {}]
  %s3 = inlined_call_operand.vmem [shape: bf16[1152,128], index: 3, kind: input, shape index: {}]
  %s4 = inlined_call_operand.vmem [shape: f32[1,128], index: 4, kind: input, shape index: {}]
  %s5 = inlined_call_operand.vmem [shape: bf16[1152,128], index: 5, kind: input, shape index: {}]
  %s6 = inlined_call_operand.vmem [shape: f32[1,128], index: 6, kind: input, shape index: {}]
  %s7 = inlined_call_operand.vmem [shape: bf16[10,81], index: 7, kind: input, shape index: {}]
  %s8 = inlined_call_operand.vmem [shape: f32[10,1], index: 8, kind: input, shape index: {}]
  %s9 = inlined_call_operand.vmem [shape: f32[2,10,1], index: 9, kind: output, shape index: {}]
  %s10 = sld [smem:[#allocation0]]
  $region69: #{demo_net_forward.1} parent=0
    _
  %s12 = ssub.s32 1, %s10
  %s13 = scalar_select 0, %s12, %s10
  loop: start=0, step=1, limit=4
  $region2: #{demo_net_forward.1} parent=0 // loop_pre_header
    _
  $region3: #{demo_net_forward.1} parent=0 // loop_header
    %s15 = sphi 0, %s19
    %p16 = scmp.ge.s32.totalorder %s15, 4
    %s25 = sphi 0, %s27
    %s28 = sphi 0, %s25
    %s29 = sphi 0, %s28
    %s45 = sphi 0, %s29
    %s49 = sphi 0, %s49
    %s51 = sphi 0, %s49
    %s52 = sphi 0, %s51
    %s66 = sphi 0, %s52
    %s70 = sphi 0, %s70
    %s72 = sphi 0, %s70
    %s73 = sphi 0, %s72
    %s87 = sphi 0, %s73
    %s91 = sphi 0, %s91
    %s93 = sphi 0, %s91
    %s94 = sphi 0, %s93
    %s108 = sphi 0, %s94
    %s112 = sphi 0, %s112
    %s114 = sphi 0, %s112
    %s115 = sphi 0, %s114
    %s129 = sphi 0, %s115
    %s133 = sphi 0, %s133
    %s135 = sphi 0, %s133
    %s136 = sphi 0, %s135
    %s150 = sphi 0, %s136
    %s154 = sphi 0, %s154
    %s156 = sphi 0, %s154
    %s157 = sphi 0, %s156
    %s171 = sphi 0, %s157
    %s175 = sphi 0, %s175
    %s177 = sphi 0, %s175
    %s178 = sphi 0, %s177
    %s192 = sphi 0, %s178
    %s196 = sphi 0, %s196
    %s198 = sphi 0, %s196
    %s199 = sphi 0, %s198
    %s213 = sphi 0, %s199
    %s219 = sphi 0, %s221
    %s222 = sphi 0, %s219
    %s223 = sphi 0, %s222
    %s239 = sphi 0, %s223
  $region4: #{demo_net_forward.1} parent=0 // loop_header_branch
    %18 = sbr.rel (%p16) target = $region8
  $region5: #{demo_net_forward.1} parent=0 // loop_body
    %s20 = ssub.s32 %s15, 1
    %s21 = ssub.s32 %s15, 2
    %s22 = sadd.s32 %s15, 1
    %s23 = ssub.s32 %s15, %s22
    %p24 = scmp.eq.s32.totalorder %s23, 0
    %s26 = sadd.s32 %s25, 1
    %s27 = scalar_select %p24, %s25, %s26
    %p30 = pneg %p24
    %p31 = scmp.eq.s32.totalorder %s15, 1
    %p32 = por %p30, %p31
    %p33 = scmp.ne.s32.totalorder %s25, %s28
    %p34 = scmp.eq.s32.totalorder %s15, 0
    %p35 = por %p33, %p34
    %p36 = scmp.ne.s32.totalorder %s25, %s28
    %p37 = scmp.eq.s32.totalorder %s20, 1
    %p38 = por %p36, %p37
    %p39 = scmp.ne.s32.totalorder %s28, %s29
    %p40 = scmp.eq.s32.totalorder %s20, 0
    %p41 = por %p39, %p40
    %p42 = scmp.ne.s32.totalorder %s28, %s29
    %p43 = scmp.eq.s32.totalorder %s21, 1
    %p44 = por %p42, %p43
    %p46 = scmp.ne.s32.totalorder %s29, %s45
    %p47 = scmp.eq.s32.totalorder %s21, 0
    %p48 = por %p46, %p47
    %s50 = sadd.s32 %s49, 1
    %p53 = scmp.eq.s32.totalorder %s15, 1
    %p54 = scmp.ne.s32.totalorder %s49, %s51
    %p55 = scmp.eq.s32.totalorder %s15, 0
    %p56 = por %p54, %p55
    %p57 = scmp.ne.s32.totalorder %s49, %s51
    %p58 = scmp.eq.s32.totalorder %s20, 1
    %p59 = por %p57, %p58
    %p60 = scmp.ne.s32.totalorder %s51, %s52
    %p61 = scmp.eq.s32.totalorder %s20, 0
    %p62 = por %p60, %p61
    %p63 = scmp.ne.s32.totalorder %s51, %s52
    %p64 = scmp.eq.s32.totalorder %s21, 1
    %p65 = por %p63, %p64
    %p67 = scmp.ne.s32.totalorder %s52, %s66
    %p68 = scmp.eq.s32.totalorder %s21, 0
    %p69 = por %p67, %p68
    %s71 = sadd.s32 %s70, 1
    %p74 = scmp.eq.s32.totalorder %s15, 1
    %p75 = scmp.ne.s32.totalorder %s70, %s72
    %p76 = scmp.eq.s32.totalorder %s15, 0
    %p77 = por %p75, %p76
    %p78 = scmp.ne.s32.totalorder %s70, %s72
    %p79 = scmp.eq.s32.totalorder %s20, 1
    %p80 = por %p78, %p79
    %p81 = scmp.ne.s32.totalorder %s72, %s73
    %p82 = scmp.eq.s32.totalorder %s20, 0
    %p83 = por %p81, %p82
    %p84 = scmp.ne.s32.totalorder %s72, %s73
    %p85 = scmp.eq.s32.totalorder %s21, 1
    %p86 = por %p84, %p85
    %p88 = scmp.ne.s32.totalorder %s73, %s87
    %p89 = scmp.eq.s32.totalorder %s21, 0
    %p90 = por %p88, %p89
    %s92 = sadd.s32 %s91, 1
    %p95 = scmp.eq.s32.totalorder %s15, 1
    %p96 = scmp.ne.s32.totalorder %s91, %s93
    %p97 = scmp.eq.s32.totalorder %s15, 0
    %p98 = por %p96, %p97
    %p99 = scmp.ne.s32.totalorder %s91, %s93
    %p100 = scmp.eq.s32.totalorder %s20, 1
    %p101 = por %p99, %p100
    %p102 = scmp.ne.s32.totalorder %s93, %s94
    %p103 = scmp.eq.s32.totalorder %s20, 0
    %p104 = por %p102, %p103
    %p105 = scmp.ne.s32.totalorder %s93, %s94
    %p106 = scmp.eq.s32.totalorder %s21, 1
    %p107 = por %p105, %p106
    %p109 = scmp.ne.s32.totalorder %s94, %s108
    %p110 = scmp.eq.s32.totalorder %s21, 0
    %p111 = por %p109, %p110
    %s113 = sadd.s32 %s112, 1
    %p116 = scmp.eq.s32.totalorder %s15, 1
    %p117 = scmp.ne.s32.totalorder %s112, %s114
    %p118 = scmp.eq.s32.totalorder %s15, 0
    %p119 = por %p117, %p118
    %p120 = scmp.ne.s32.totalorder %s112, %s114
    %p121 = scmp.eq.s32.totalorder %s20, 1
    %p122 = por %p120, %p121
    %p123 = scmp.ne.s32.totalorder %s114, %s115
    %p124 = scmp.eq.s32.totalorder %s20, 0
    %p125 = por %p123, %p124
    %p126 = scmp.ne.s32.totalorder %s114, %s115
    %p127 = scmp.eq.s32.totalorder %s21, 1
    %p128 = por %p126, %p127
    %p130 = scmp.ne.s32.totalorder %s115, %s129
    %p131 = scmp.eq.s32.totalorder %s21, 0
    %p132 = por %p130, %p131
    %s134 = sadd.s32 %s133, 1
    %p137 = scmp.eq.s32.totalorder %s15, 1
    %p138 = scmp.ne.s32.totalorder %s133, %s135
    %p139 = scmp.eq.s32.totalorder %s15, 0
    %p140 = por %p138, %p139
    %p141 = scmp.ne.s32.totalorder %s133, %s135
    %p142 = scmp.eq.s32.totalorder %s20, 1
    %p143 = por %p141, %p142
    %p144 = scmp.ne.s32.totalorder %s135, %s136
    %p145 = scmp.eq.s32.totalorder %s20, 0
    %p146 = por %p144, %p145
    %p147 = scmp.ne.s32.totalorder %s135, %s136
    %p148 = scmp.eq.s32.totalorder %s21, 1
    %p149 = por %p147, %p148
    %p151 = scmp.ne.s32.totalorder %s136, %s150
    %p152 = scmp.eq.s32.totalorder %s21, 0
    %p153 = por %p151, %p152
    %s155 = sadd.s32 %s154, 1
    %p158 = scmp.eq.s32.totalorder %s15, 1
    %p159 = scmp.ne.s32.totalorder %s154, %s156
    %p160 = scmp.eq.s32.totalorder %s15, 0
    %p161 = por %p159, %p160
    %p162 = scmp.ne.s32.totalorder %s154, %s156
    %p163 = scmp.eq.s32.totalorder %s20, 1
    %p164 = por %p162, %p163
    %p165 = scmp.ne.s32.totalorder %s156, %s157
    %p166 = scmp.eq.s32.totalorder %s20, 0
    %p167 = por %p165, %p166
    %p168 = scmp.ne.s32.totalorder %s156, %s157
    %p169 = scmp.eq.s32.totalorder %s21, 1
    %p170 = por %p168, %p169
    %p172 = scmp.ne.s32.totalorder %s157, %s171
    %p173 = scmp.eq.s32.totalorder %s21, 0
    %p174 = por %p172, %p173
    %s176 = sadd.s32 %s175, 1
    %p179 = scmp.eq.s32.totalorder %s15, 1
    %p180 = scmp.ne.s32.totalorder %s175, %s177
    %p181 = scmp.eq.s32.totalorder %s15, 0
    %p182 = por %p180, %p181
    %p183 = scmp.ne.s32.totalorder %s175, %s177
    %p184 = scmp.eq.s32.totalorder %s20, 1
    %p185 = por %p183, %p184
    %p186 = scmp.ne.s32.totalorder %s177, %s178
    %p187 = scmp.eq.s32.totalorder %s20, 0
    %p188 = por %p186, %p187
    %p189 = scmp.ne.s32.totalorder %s177, %s178
    %p190 = scmp.eq.s32.totalorder %s21, 1
    %p191 = por %p189, %p190
    %p193 = scmp.ne.s32.totalorder %s178, %s192
    %p194 = scmp.eq.s32.totalorder %s21, 0
    %p195 = por %p193, %p194
    %s197 = sadd.s32 %s196, 1
    %p200 = scmp.eq.s32.totalorder %s15, 1
    %p201 = scmp.ne.s32.totalorder %s196, %s198
    %p202 = scmp.eq.s32.totalorder %s15, 0
    %p203 = por %p201, %p202
    %p204 = scmp.ne.s32.totalorder %s196, %s198
    %p205 = scmp.eq.s32.totalorder %s20, 1
    %p206 = por %p204, %p205
    %p207 = scmp.ne.s32.totalorder %s198, %s199
    %p208 = scmp.eq.s32.totalorder %s20, 0
    %p209 = por %p207, %p208
    %p210 = scmp.ne.s32.totalorder %s198, %s199
    %p211 = scmp.eq.s32.totalorder %s21, 1
    %p212 = por %p210, %p211
    %p214 = scmp.ne.s32.totalorder %s199, %s213
    %p215 = scmp.eq.s32.totalorder %s21, 0
    %p216 = por %p214, %p215
    %s217 = ssub.s32 %s15, %s22
    %p218 = scmp.eq.s32.totalorder %s217, 0
    %s220 = sadd.s32 %s219, 1
    %s221 = scalar_select %p218, %s219, %s220
    %p224 = pneg %p218
    %p225 = scmp.eq.s32.totalorder %s15, 1
    %p226 = por %p224, %p225
    %p227 = scmp.ne.s32.totalorder %s219, %s222
    %p228 = scmp.eq.s32.totalorder %s15, 0
    %p229 = por %p227, %p228
    %p230 = scmp.ne.s32.totalorder %s219, %s222
    %p231 = scmp.eq.s32.totalorder %s20, 1
    %p232 = por %p230, %p231
    %p233 = scmp.ne.s32.totalorder %s222, %s223
    %p234 = scmp.eq.s32.totalorder %s20, 0
    %p235 = por %p233, %p234
    %p236 = scmp.ne.s32.totalorder %s222, %s223
    %p237 = scmp.eq.s32.totalorder %s21, 1
    %p238 = por %p236, %p237
    %p240 = scmp.ne.s32.totalorder %s223, %s239
    %p241 = scmp.eq.s32.totalorder %s21, 0
    %p242 = por %p240, %p241
    %p243 = scmp.le.s32.totalorder 1, %s15
    %p244 = scmp.lt.s32.totalorder %s15, 3
    %p245 = pnand %p243, %p244
    %p246 = pneg %p245
    // Predicated region
    $region9: #{demo_net_forward.1} parent=5 // pred_check
      _
    $region10: #{demo_net_forward.1} parent=5 // pred_check_branch
      %248 = sbr.rel (%p245) target = $region12
    $region11: #{demo_net_forward.1} parent=5 // pred_region
      %s249 = ssub.s32 %s15, 1
      // Predicated region
      $region13: #{demo_net_forward.1} parent=11 // pred_check
        %p250 = pneg %p62
      $region14: #{demo_net_forward.1} parent=11 // pred_check_branch
        %252 = sbr.rel (%p250) target = $region16
      $region15: #{demo_net_forward.1} parent=11 // pred_region
        _
      $region16: #{demo_net_forward.1} parent=11 // pred_fallthru
        _
      // Predicated region
      $region17: #{demo_net_forward.1} parent=11 // pred_check
        %p253 = pneg %p83
      $region18: #{demo_net_forward.1} parent=11 // pred_check_branch
        %255 = sbr.rel (%p253) target = $region20
      $region19: #{demo_net_forward.1} parent=11 // pred_region
        _
      $region20: #{demo_net_forward.1} parent=11 // pred_fallthru
        _
      // Predicated region
      $region21: #{demo_net_forward.1} parent=11 // pred_check
        %p256 = pneg %p104
      $region22: #{demo_net_forward.1} parent=11 // pred_check_branch
        %258 = sbr.rel (%p256) target = $region24
      $region23: #{demo_net_forward.1} parent=11 // pred_region
        _
      $region24: #{demo_net_forward.1} parent=11 // pred_fallthru
        _
      // Predicated region
      $region25: #{demo_net_forward.1} parent=11 // pred_check
        %p259 = pneg %p125
      $region26: #{demo_net_forward.1} parent=11 // pred_check_branch
        %261 = sbr.rel (%p259) target = $region28
      $region27: #{demo_net_forward.1} parent=11 // pred_region
        _
      $region28: #{demo_net_forward.1} parent=11 // pred_fallthru
        _
      // Predicated region
      $region29: #{demo_net_forward.1} parent=11 // pred_check
        %p262 = pneg %p146
      $region30: #{demo_net_forward.1} parent=11 // pred_check_branch
        %264 = sbr.rel (%p262) target = $region32
      $region31: #{demo_net_forward.1} parent=11 // pred_region
        _
      $region32: #{demo_net_forward.1} parent=11 // pred_fallthru
        _
      // Predicated region
      $region33: #{demo_net_forward.1} parent=11 // pred_check
        %p265 = pneg %p167
      $region34: #{demo_net_forward.1} parent=11 // pred_check_branch
        %267 = sbr.rel (%p265) target = $region36
      $region35: #{demo_net_forward.1} parent=11 // pred_region
        _
      $region36: #{demo_net_forward.1} parent=11 // pred_fallthru
        _
      // Predicated region
      $region37: #{demo_net_forward.1} parent=11 // pred_check
        %p268 = pneg %p188
      $region38: #{demo_net_forward.1} parent=11 // pred_check_branch
        %270 = sbr.rel (%p268) target = $region40
      $region39: #{demo_net_forward.1} parent=11 // pred_region
        _
      $region40: #{demo_net_forward.1} parent=11 // pred_fallthru
        _
      // Predicated region
      $region41: #{demo_net_forward.1} parent=11 // pred_check
        %p271 = pneg %p209
      $region42: #{demo_net_forward.1} parent=11 // pred_check_branch
        %273 = sbr.rel (%p271) target = $region44
      $region43: #{demo_net_forward.1} parent=11 // pred_region
        _
      $region44: #{demo_net_forward.1} parent=11 // pred_fallthru
        _
    $region12: #{demo_net_forward.1} parent=5 // pred_fallthru
      _
    %p274 = scmp.lt.s32.totalorder %s15, 2
    // Predicated region
    $region45: #{demo_net_forward.1} parent=5 // pred_check
      %p275 = pneg %p274
    $region46: #{demo_net_forward.1} parent=5 // pred_check_branch
      %277 = sbr.rel (%p275) target = $region48
    $region47: #{demo_net_forward.1} parent=5 // pred_region
      // Predicated region
      $region49: #{demo_net_forward.1} parent=47 // pred_check
        %p278 = pneg %p35
      $region50: #{demo_net_forward.1} parent=47 // pred_check_branch
        %280 = sbr.rel (%p278) target = $region52
      $region51: #{demo_net_forward.1} parent=47 // pred_region
        %p281 = scmp.lt.s32.totalorder %s15, 1
        %s282 = scalar_select %p281, %s15, 1
        %s283 = smul.addr %s282, 98
        %s284 = smul.addr %s283, 4
        %s285 = scalar_lea.vmem %s0, %s284
      $region52: #{demo_net_forward.1} parent=47 // pred_fallthru
        _
    $region48: #{demo_net_forward.1} parent=5 // pred_fallthru
      _
    %p286 = scmp.le.s32.totalorder 1, %s15
    %p287 = scmp.lt.s32.totalorder %s15, 3
    %p288 = pnand %p286, %p287
    %p289 = pneg %p288
    // Predicated region
    $region53: #{demo_net_forward.1} parent=5 // pred_check
      _
    $region54: #{demo_net_forward.1} parent=5 // pred_check_branch
      %291 = sbr.rel (%p288) target = $region56
    $region55: #{demo_net_forward.1} parent=5 // pred_region
      %s292 = ssub.s32 %s15, 1
      %p293 = scmp.lt.s32.totalorder %s20, 1
      %s294 = scalar_select %p293, %s20, 1
      %s295 = smul.addr %s294, 98
      %s296 = smul.addr %s295, 4
      %s297 = scalar_lea.vmem %s0, %s296
      %p298 = pneg %p41
      %p299 = pneg %p38
      %p300 = pneg %p62
      %p301 = pneg %p59
      %p302 = pneg %p83
      %p303 = pneg %p80
      %p304 = pneg %p104
      %p305 = pneg %p101
      %p306 = pneg %p125
      %p307 = pneg %p122
      %p308 = pneg %p146
      %p309 = pneg %p143
      %p310 = pneg %p167
      %p311 = pneg %p164
      %p312 = pneg %p188
      %p313 = pneg %p185
      %p314 = pneg %p209
      %p315 = pneg %p206
      %p316 = pneg %p235
      %p317 = pneg %p232
      %p318 = scmp.lt.s32.totalorder %s20, 1
      %s319 = scalar_select %p318, %s20, 1
      %s320 = smul.addr %s319, 2
      %s321 = smul.addr %s320, 8
      %s322 = scalar_lea.vmem %s9, %s321
      %p323 = scmp.lt.s32.totalorder %s20, 1
      %s324 = scalar_select %p323, %s20, 1
      %s325 = smul.addr %s324, 98
      %s326 = smul.addr %s325, 4
      %s327 = scalar_lea.vmem %s0, %s326
      %p328 = scmp.lt.s32.totalorder %s20, 1
      %s329 = scalar_select %p328, %s20, 1
      %s330 = smul.addr %s329, 2
      %s331 = smul.addr %s330, 8
      %s332 = scalar_lea.vmem %s9, %s331
      %334 = vst [vmem:[#allocation4] sm:$0xf] 0
      %335 = vst [vmem:[#allocation4 + $0x4] sm:$0xf] 0
      %336 = vst [vmem:[#allocation4 + $0x8] sm:$0xf] 0
      %337 = vst [vmem:[#allocation4 + $0xc] sm:$0xf] 0
      %338 = vst [vmem:[#allocation4 + $0x10] sm:$0xf] 0
      %339 = vst [vmem:[#allocation4 + $0x14] sm:$0xf] 0
      %340 = vst [vmem:[#allocation4 + $0x18] sm:$0xf] 0
      %341 = vst [vmem:[#allocation4 + $0x1c] sm:$0xf] 0
      %342 = vst [vmem:[#allocation4 + $0x20] sm:$0xf] 0
      %343 = vst [vmem:[#allocation4 + $0x24] sm:$0xf] 0
      %344 = vst [vmem:[#allocation4 + $0x28] sm:$0xf] 0
      %345 = vst [vmem:[#allocation4 + $0x2c] sm:$0xf] 0
      %346 = vst [vmem:[#allocation4 + $0x30] sm:$0xf] 0
      %347 = vst [vmem:[#allocation4 + $0x34] sm:$0xf] 0
      %348 = vst [vmem:[#allocation4 + $0x38] sm:$0xf] 0
      %349 = vst [vmem:[#allocation4 + $0x3c] sm:$0xf] 0
      %350 = vst [vmem:[#allocation4 + $0x40] sm:$0xf] 0
      %351 = vst [vmem:[#allocation4 + $0x44] sm:$0xf] 0
      %352 = vst [vmem:[#allocation4 + $0x48] sm:$0xf] 0
      %353 = vst [vmem:[#allocation4 + $0x4c] sm:$0xf] 0
      %354 = vst [vmem:[#allocation4 + $0x50] sm:$0xf] 0
      %355 = vst [vmem:[#allocation4 + $0x54] sm:$0xf] 0
      %356 = vst [vmem:[#allocation4 + $0x58] sm:$0xf] 0
      %357 = vst [vmem:[#allocation4 + $0x5c] sm:$0xf] 0
      %358 = vst [vmem:[#allocation4 + $0x60] sm:$0xf] 0
      %359 = vst [vmem:[#allocation4 + $0x64] sm:$0xf] 0
      %360 = vst [vmem:[#allocation4 + $0x68] sm:$0xf] 0
      %361 = vst [vmem:[#allocation4 + $0x6c] sm:$0xf] 0
      %362 = vst [vmem:[#allocation4 + $0x70] sm:$0xf] 0
      %363 = vst [vmem:[#allocation4 + $0x74] sm:$0xf] 0
      %364 = vst [vmem:[#allocation4 + $0x78] sm:$0xf] 0
      %365 = vst [vmem:[#allocation4 + $0x7c] sm:$0xf] 0
      %366 = vst [vmem:[#allocation4 + $0x80] sm:$0xf] 0
      %367 = vst [vmem:[#allocation4 + $0x84] sm:$0xf] 0
      %368 = vst [vmem:[#allocation4 + $0x88] sm:$0xf] 0
      %369 = vst [vmem:[#allocation4 + $0x8c] sm:$0xf] 0
      %370 = vst [vmem:[#allocation4 + $0x90] sm:$0xf] 0
      %371 = vst [vmem:[#allocation4 + $0x94] sm:$0xf] 0
      %372 = vst [vmem:[#allocation5] sm:$0xf] 0
      %373 = vst [vmem:[#allocation5 + $0x4] sm:$0xf] 0
      %374 = vst [vmem:[#allocation5 + $0x8] sm:$0xf] 0
      %375 = vst [vmem:[#allocation5 + $0xc] sm:$0xf] 0
      %376 = vst [vmem:[#allocation5 + $0x10] sm:$0xf] 0
      %377 = vst [vmem:[#allocation5 + $0x14] sm:$0xf] 0
      %378 = vst [vmem:[#allocation5 + $0x18] sm:$0xf] 0
      %379 = vst [vmem:[#allocation5 + $0x1c] sm:$0xf] 0
      %380 = vst [vmem:[#allocation5 + $0x20] sm:$0xf] 0
      %381 = vst [vmem:[#allocation5 + $0x24] sm:$0xf] 0
      %382 = vst [vmem:[#allocation5 + $0x28] sm:$0xf] 0
      %383 = vst [vmem:[#allocation5 + $0x2c] sm:$0xf] 0
      %384 = vst [vmem:[#allocation5 + $0x30] sm:$0xf] 0
      %385 = vst [vmem:[#allocation5 + $0x34] sm:$0xf] 0
      %386 = vst [vmem:[#allocation5 + $0x38] sm:$0xf] 0
      %v387 = vld [vmem:[%s327] sm:$0xf]
      %v388 = vld [vmem:[%s327 + $0x4] sm:$0xf]
      %v389 = vld [vmem:[%s327 + $0x8] sm:$0xf]
      %v390 = vld [vmem:[%s327 + $0xc] sm:$0xf]
      %v391 = vld [vmem:[%s327 + $0x10] sm:$0xf]
      %v392 = vld [vmem:[%s327 + $0x14] sm:$0xf]
      %v393 = vld [vmem:[%s327 + $0x18] sm:$0xf]
      %v394 = vld [vmem:[%s327 + $0x1c] sm:$0xf]
      %v395 = vld [vmem:[%s327 + $0x20] sm:$0xf]
      %v396 = vld [vmem:[%s327 + $0x24] sm:$0xf]
      %v397 = vld [vmem:[%s327 + $0x28] sm:$0xf]
      %v398 = vld [vmem:[%s327 + $0x2c] sm:$0xf]
      %v399 = vld [vmem:[%s327 + $0x30] sm:$0xf]
      %v400 = vld [vmem:[%s327 + $0x34] sm:$0xf]
      %v401 = vld [vmem:[%s327 + $0x38] sm:$0xf]
      %v402 = vld [vmem:[%s327 + $0x3c] sm:$0xf]
      %v403 = vld [vmem:[%s327 + $0x40] sm:$0xf]
      %v404 = vld [vmem:[%s327 + $0x44] sm:$0xf]
      %v405 = vld [vmem:[%s327 + $0x48] sm:$0xf]
      %v406 = vld [vmem:[%s327 + $0x4c] sm:$0xf]
      %v407 = vld [vmem:[%s327 + $0x50] sm:$0xf]
      %v408 = vld [vmem:[%s327 + $0x54] sm:$0xf]
      %v409 = vld [vmem:[%s327 + $0x58] sm:$0xf]
      %v410 = vld [vmem:[%s327 + $0x5c] sm:$0xf]
      %v411 = vld [vmem:[%s327 + $0x60] sm:$0xf]
      %v412 = vld [vmem:[%s327 + $0x64] sm:$0xf]
      %v413 = vld [vmem:[%s327 + $0x68] sm:$0xf]
      %v414 = vld [vmem:[%s327 + $0x6c] sm:$0xf]
      %v415 = vld [vmem:[%s327 + $0x70] sm:$0xf]
      %v416 = vld [vmem:[%s327 + $0x74] sm:$0xf]
      %v417 = vld [vmem:[%s327 + $0x78] sm:$0xf]
      %v418 = vld [vmem:[%s327 + $0x7c] sm:$0xf]
      %v419 = vld [vmem:[%s327 + $0x80] sm:$0xf]
      %v420 = vld [vmem:[%s327 + $0x84] sm:$0xf]
      %v421 = vld [vmem:[%s327 + $0x88] sm:$0xf]
      %v422 = vld [vmem:[%s327 + $0x8c] sm:$0xf]
      %v423 = vld [vmem:[%s327 + $0x90] sm:$0xf]
      %v424 = vld [vmem:[%s327 + $0x94] sm:$0xf]
      %v425 = vld [vmem:[%s327 + $0x98] sm:$0xf]
      %v426 = vld [vmem:[%s327 + $0x9c] sm:$0xf]
      %v427 = vld [vmem:[%s327 + $0xa0] sm:$0xf]
      %v428 = vld [vmem:[%s327 + $0xa4] sm:$0xf]
      %v429 = vld [vmem:[%s327 + $0xa8] sm:$0xf]
      %v430 = vld [vmem:[%s327 + $0xac] sm:$0xf]
      %v431 = vld [vmem:[%s327 + $0xb0] sm:$0xf]
      %v432 = vld [vmem:[%s327 + $0xb4] sm:$0xf]
      %v433 = vld [vmem:[%s327 + $0xb8] sm:$0xf]
      %v434 = vld [vmem:[%s327 + $0xbc] sm:$0xf]
      %v435 = vld [vmem:[%s327 + $0xc0] sm:$0xf]
      %v436 = vld [vmem:[%s327 + $0xc4] sm:$0xf]
      %v437 = vld [vmem:[%s327 + $0xc8] sm:$0xf]
      %v438 = vld [vmem:[%s327 + $0xcc] sm:$0xf]
      %v439 = vld [vmem:[%s327 + $0xd0] sm:$0xf]
      %v440 = vld [vmem:[%s327 + $0xd4] sm:$0xf]
      %v441 = vld [vmem:[%s327 + $0xd8] sm:$0xf]
      %v442 = vld [vmem:[%s327 + $0xdc] sm:$0xf]
      %v443 = vld [vmem:[%s327 + $0xe0] sm:$0xf]
      %v444 = vld [vmem:[%s327 + $0xe4] sm:$0xf]
      %v445 = vld [vmem:[%s327 + $0xe8] sm:$0xf]
      %v446 = vld [vmem:[%s327 + $0xec] sm:$0xf]
      %v447 = vld [vmem:[%s327 + $0xf0] sm:$0xf]
      %v448 = vld [vmem:[%s327 + $0xf4] sm:$0xf]
      %v449 = vld [vmem:[%s327 + $0xf8] sm:$0xf]
      %v450 = vld [vmem:[%s327 + $0xfc] sm:$0xf]
      %v451 = vld [vmem:[%s327 + $0x100] sm:$0xf]
      %v452 = vld [vmem:[%s327 + $0x104] sm:$0xf]
      %v453 = vld [vmem:[%s327 + $0x108] sm:$0xf]
      %v454 = vld [vmem:[%s327 + $0x10c] sm:$0xf]
      %v455 = vld [vmem:[%s327 + $0x110] sm:$0xf]
      %v456 = vld [vmem:[%s327 + $0x114] sm:$0xf]
      %v457 = vld [vmem:[%s327 + $0x118] sm:$0xf]
      %v458 = vld [vmem:[%s327 + $0x11c] sm:$0xf]
      %v459 = vld [vmem:[%s327 + $0x120] sm:$0xf]
      %v460 = vld [vmem:[%s327 + $0x124] sm:$0xf]
      %v461 = vld [vmem:[%s327 + $0x128] sm:$0xf]
      %v462 = vld [vmem:[%s327 + $0x12c] sm:$0xf]
      %v463 = vld [vmem:[%s327 + $0x130] sm:$0xf]
      %v464 = vld [vmem:[%s327 + $0x134] sm:$0xf]
      %v465 = vld [vmem:[%s327 + $0x138] sm:$0xf]
      %v466 = vld [vmem:[%s327 + $0x13c] sm:$0xf]
      %v467 = vld [vmem:[%s327 + $0x140] sm:$0xf]
      %v468 = vld [vmem:[%s327 + $0x144] sm:$0xf]
      %v469 = vld [vmem:[%s327 + $0x148] sm:$0xf]
      %v470 = vld [vmem:[%s327 + $0x14c] sm:$0xf]
      %v471 = vld [vmem:[%s327 + $0x150] sm:$0xf]
      %v472 = vld [vmem:[%s327 + $0x154] sm:$0xf]
      %v473 = vld [vmem:[%s327 + $0x158] sm:$0xf]
      %v474 = vld [vmem:[%s327 + $0x15c] sm:$0xf]
      %v475 = vld [vmem:[%s327 + $0x160] sm:$0xf]
      %v476 = vld [vmem:[%s327 + $0x164] sm:$0xf]
      %v477 = vld [vmem:[%s327 + $0x168] sm:$0xf]
      %v478 = vld [vmem:[%s327 + $0x16c] sm:$0xf]
      %v479 = vld [vmem:[%s327 + $0x170] sm:$0xf]
      %v480 = vld [vmem:[%s327 + $0x174] sm:$0xf]
      %v481 = vld [vmem:[%s327 + $0x178] sm:$0xf]
      %v482 = vld [vmem:[%s327 + $0x17c] sm:$0xf]
      %v483 = vld [vmem:[%s327 + $0x180] sm:$0xf]
      %v484 = vld [vmem:[%s327 + $0x184] sm:$0xf]
      %v485 = vld [vmem:[%s1] sm:$0xf]
      %v486 = vld [vmem:[%s1 + $0x4] sm:$0x1]
      %v487 = vld [vmem:[%s2] sm:$0x1]
      %v489 = vperm.slane %v487, 0
      %v589 = vunpack.c.l.b16 %v387
      %v590 = vunpack.c.l.b16 %v388
      %v591 = vunpack.c.l.b16 %v389
      %v592 = vunpack.c.l.b16 %v390
      %v593 = vunpack.c.l.b16 %v391
      %v594 = vunpack.c.l.b16 %v392
      %v595 = vunpack.c.l.b16 %v393
      %v596 = vunpack.c.l.b16 %v394
      %v597 = vunpack.c.l.b16 %v395
      %v598 = vunpack.c.l.b16 %v396
      %v599 = vunpack.c.l.b16 %v397
      %v600 = vunpack.c.l.b16 %v398
      %v601 = vunpack.c.l.b16 %v399
      %v602 = vunpack.c.l.b16 %v400
      %v603 = vunpack.c.l.b16 %v401
      %v604 = vunpack.c.l.b16 %v402
      %v605 = vunpack.c.l.b16 %v403
      %v606 = vunpack.c.l.b16 %v404
      %v607 = vunpack.c.l.b16 %v405
      %v608 = vunpack.c.l.b16 %v406
      %v609 = vunpack.c.l.b16 %v407
      %v610 = vunpack.c.l.b16 %v408
      %v611 = vunpack.c.l.b16 %v409
      %v612 = vunpack.c.l.b16 %v410
      %v613 = vunpack.c.l.b16 %v411
      %v614 = vunpack.c.l.b16 %v412
      %v615 = vunpack.c.l.b16 %v413
      %v616 = vunpack.c.l.b16 %v414
      %v617 = vunpack.c.l.b16 %v415
      %v618 = vunpack.c.l.b16 %v416
      %v619 = vunpack.c.l.b16 %v417
      %v620 = vunpack.c.l.b16 %v418
      %v621 = vunpack.c.l.b16 %v419
      %v622 = vunpack.c.l.b16 %v420
      %v623 = vunpack.c.l.b16 %v421
      %v624 = vunpack.c.l.b16 %v422
      %v625 = vunpack.c.l.b16 %v423
      %v626 = vunpack.c.l.b16 %v424
      %v627 = vunpack.c.l.b16 %v425
      %v628 = vunpack.c.l.b16 %v426
      %v629 = vunpack.c.l.b16 %v427
      %v630 = vunpack.c.l.b16 %v428
      %v631 = vunpack.c.l.b16 %v429
      %v632 = vunpack.c.l.b16 %v430
      %v633 = vunpack.c.l.b16 %v431
      %v634 = vunpack.c.l.b16 %v432
      %v635 = vunpack.c.l.b16 %v433
      %v636 = vunpack.c.l.b16 %v434
      %v637 = vunpack.c.l.b16 %v435
      %v638 = vunpack.c.l.b16 %v436
      %v639 = vunpack.c.l.b16 %v437
      %v640 = vunpack.c.l.b16 %v438
      %v641 = vunpack.c.l.b16 %v439
      %v642 = vunpack.c.l.b16 %v440
      %v643 = vunpack.c.l.b16 %v441
      %v644 = vunpack.c.l.b16 %v442
      %v645 = vunpack.c.l.b16 %v443
      %v646 = vunpack.c.l.b16 %v444
      %v647 = vunpack.c.l.b16 %v445
      %v648 = vunpack.c.l.b16 %v446
      %v649 = vunpack.c.l.b16 %v447
      %v650 = vunpack.c.l.b16 %v448
      %v651 = vunpack.c.l.b16 %v449
      %v652 = vunpack.c.l.b16 %v450
      %v653 = vunpack.c.l.b16 %v451
      %v654 = vunpack.c.l.b16 %v452
      %v655 = vunpack.c.l.b16 %v453
      %v656 = vunpack.c.l.b16 %v454
      %v657 = vunpack.c.l.b16 %v455
      %v658 = vunpack.c.l.b16 %v456
      %v659 = vunpack.c.l.b16 %v457
      %v660 = vunpack.c.l.b16 %v458
      %v661 = vunpack.c.l.b16 %v459
      %v662 = vunpack.c.l.b16 %v460
      %v663 = vunpack.c.l.b16 %v461
      %v664 = vunpack.c.l.b16 %v462
      %v665 = vunpack.c.l.b16 %v463
      %v666 = vunpack.c.l.b16 %v464
      %v667 = vunpack.c.l.b16 %v465
      %v668 = vunpack.c.l.b16 %v466
      %v669 = vunpack.c.l.b16 %v467
      %v670 = vunpack.c.l.b16 %v468
      %v671 = vunpack.c.l.b16 %v469
      %v672 = vunpack.c.l.b16 %v470
      %v673 = vunpack.c.l.b16 %v471
      %v674 = vunpack.c.l.b16 %v472
      %v675 = vunpack.c.l.b16 %v473
      %v676 = vunpack.c.l.b16 %v474
      %v677 = vunpack.c.l.b16 %v475
      %v678 = vunpack.c.l.b16 %v476
      %v679 = vunpack.c.l.b16 %v477
      %v680 = vunpack.c.l.b16 %v478
      %v681 = vunpack.c.l.b16 %v479
      %v682 = vunpack.c.l.b16 %v480
      %v683 = vunpack.c.l.b16 %v481
      %v684 = vunpack.c.l.b16 %v482
      %v685 = vunpack.c.l.b16 %v483
      %v686 = vunpack.c.l.b16 %v484
      %v687 = vpack.c.b16 %v590, %v589
      %v688 = vpack.c.b16 %v592, %v591
      %v689 = vpack.c.b16 %v594, %v593
      %v690 = vpack.c.b16 %v596, %v595
      %v691 = vpack.c.b16 %v598, %v597
      %v692 = vpack.c.b16 %v600, %v599
      %v693 = vpack.c.b16 %v602, %v601
      %v694 = vpack.c.b16 %v604, %v603
      %v695 = vpack.c.b16 %v606, %v605
      %v696 = vpack.c.b16 %v608, %v607
      %v697 = vpack.c.b16 %v610, %v609
      %v698 = vpack.c.b16 %v612, %v611
      %v699 = vpack.c.b16 %v614, %v613
      %v700 = vpack.c.b16 %v616, %v615
      %v701 = vpack.c.b16 %v618, %v617
      %v702 = vpack.c.b16 %v620, %v619
      %v703 = vpack.c.b16 %v622, %v621
      %v704 = vpack.c.b16 %v624, %v623
      %v705 = vpack.c.b16 %v626, %v625
      %v706 = vpack.c.b16 %v628, %v627
      %v707 = vpack.c.b16 %v630, %v629
      %v708 = vpack.c.b16 %v632, %v631
      %v709 = vpack.c.b16 %v634, %v633
      %v710 = vpack.c.b16 %v636, %v635
      %v711 = vpack.c.b16 %v638, %v637
      %v712 = vpack.c.b16 %v640, %v639
      %v713 = vpack.c.b16 %v642, %v641
      %v714 = vpack.c.b16 %v644, %v643
      %v715 = vpack.c.b16 %v646, %v645
      %v716 = vpack.c.b16 %v648, %v647
      %v717 = vpack.c.b16 %v650, %v649
      %v718 = vpack.c.b16 %v652, %v651
      %v719 = vpack.c.b16 %v654, %v653
      %v720 = vpack.c.b16 %v656, %v655
      %v721 = vpack.c.b16 %v658, %v657
      %v722 = vpack.c.b16 %v660, %v659
      %v723 = vpack.c.b16 %v662, %v661
      %v724 = vpack.c.b16 %v664, %v663
      %v725 = vpack.c.b16 %v666, %v665
      %v726 = vpack.c.b16 %v668, %v667
      %v727 = vpack.c.b16 %v670, %v669
      %v728 = vpack.c.b16 %v672, %v671
      %v729 = vpack.c.b16 %v674, %v673
      %v730 = vpack.c.b16 %v676, %v675
      %v731 = vpack.c.b16 %v678, %v677
      %v732 = vpack.c.b16 %v680, %v679
      %v733 = vpack.c.b16 %v682, %v681
      %v734 = vpack.c.b16 %v684, %v683
      %v735 = vpack.c.b16 %v686, %v685
      %v738 = vunpack.c.l.b16 %v485
      %v739 = vunpack.c.l.b16 %v486
      %v740 = vpack.c.b16 %v739, %v738
      %vm741 = vcmask 72704
      %v743 = vsel %vm741, %v687, 0
      %v746 = vsel %vm741, %v688, 0
      %v749 = vsel %vm741, %v689, 0
      %v752 = vsel %vm741, %v690, 0
      %v755 = vsel %vm741, %v691, 0
      %v758 = vsel %vm741, %v692, 0
      %v761 = vsel %vm741, %v693, 0
      %v764 = vsel %vm741, %v694, 0
      %v767 = vsel %vm741, %v695, 0
      %v770 = vsel %vm741, %v696, 0
      %v773 = vsel %vm741, %v697, 0
      %v776 = vsel %vm741, %v698, 0
      %v779 = vsel %vm741, %v699, 0
      %v782 = vsel %vm741, %v700, 0
      %v785 = vsel %vm741, %v701, 0
      %v788 = vsel %vm741, %v702, 0
      %v791 = vsel %vm741, %v703, 0
      %v794 = vsel %vm741, %v704, 0
      %v797 = vsel %vm741, %v705, 0
      %v800 = vsel %vm741, %v706, 0
      %v803 = vsel %vm741, %v707, 0
      %v806 = vsel %vm741, %v708, 0
      %v809 = vsel %vm741, %v709, 0
      %v812 = vsel %vm741, %v710, 0
      %v815 = vsel %vm741, %v711, 0
      %v818 = vsel %vm741, %v712, 0
      %v821 = vsel %vm741, %v713, 0
      %v824 = vsel %vm741, %v714, 0
      %v827 = vsel %vm741, %v715, 0
      %v830 = vsel %vm741, %v716, 0
      %v833 = vsel %vm741, %v717, 0
      %v836 = vsel %vm741, %v718, 0
      %v839 = vsel %vm741, %v719, 0
      %v842 = vsel %vm741, %v720, 0
      %v845 = vsel %vm741, %v721, 0
      %v848 = vsel %vm741, %v722, 0
      %v851 = vsel %vm741, %v723, 0
      %v854 = vsel %vm741, %v724, 0
      %v857 = vsel %vm741, %v725, 0
      %v860 = vsel %vm741, %v726, 0
      %v863 = vsel %vm741, %v727, 0
      %v866 = vsel %vm741, %v728, 0
      %v869 = vsel %vm741, %v729, 0
      %v872 = vsel %vm741, %v730, 0
      %v875 = vsel %vm741, %v731, 0
      %v878 = vsel %vm741, %v732, 0
      %v881 = vsel %vm741, %v733, 0
      %v884 = vsel %vm741, %v734, 0
      %v887 = vsel %vm741, %v735, 0
      %vm889 = vcmask 1043456
      %vm890 = vcmask 1044480
      %v891 = vsel %vm889, 4294967295, 65535
      %v892 = vsel %vm890, %v891, 0
      %v894 = vand.u32 %v740, %v892
      %896 = vmatpush.bf16.msra.mxu0 0
      %897 = vmatpush.bf16.msra.mxu0 0
      %898 = vmatpush.bf16.msra.mxu0 0
      %899 = vmatpush.bf16.msra.mxu0 0
      %900 = vmatpush.bf16.msra.mxu0 0
      %901 = vmatpush.bf16.msra.mxu0 0
      %902 = vmatpush.bf16.msra.mxu0 0
      %903 = vmatpush.bf16.msra.mxu0 %v894
      %904 = vmatmul.bf16.gmra.mxu0 %v743
      %v905 = vpop.f32.mrf.mxu0
      %v906 = vadd.f32 %v489, %v905
      %v907 = vpop.f32.mrf.mxu0
      %v908 = vadd.f32 %v489, %v907
      %909 = vmatmul.bf16.gmra.mxu0 %v746
      %v910 = vpop.f32.mrf.mxu0
      %v911 = vadd.f32 %v489, %v910
      %v912 = vpop.f32.mrf.mxu0
      %v913 = vadd.f32 %v489, %v912
      %914 = vmatmul.bf16.gmra.mxu0 %v749
      %v915 = vpop.f32.mrf.mxu0
      %v916 = vadd.f32 %v489, %v915
      %v917 = vpop.f32.mrf.mxu0
      %v918 = vadd.f32 %v489, %v917
      %919 = vmatmul.bf16.gmra.mxu0 %v752
      %v920 = vpop.f32.mrf.mxu0
      %v921 = vadd.f32 %v489, %v920
      %v922 = vpop.f32.mrf.mxu0
      %v923 = vadd.f32 %v489, %v922
      %924 = vmatmul.bf16.gmra.mxu0 %v755
      %v925 = vpop.f32.mrf.mxu0
      %v926 = vadd.f32 %v489, %v925
      %v927 = vpop.f32.mrf.mxu0
      %v928 = vadd.f32 %v489, %v927
      %929 = vmatmul.bf16.gmra.mxu0 %v758
      %v930 = vpop.f32.mrf.mxu0
      %v931 = vadd.f32 %v489, %v930
      %v932 = vpop.f32.mrf.mxu0
      %v933 = vadd.f32 %v489, %v932
      %934 = vmatmul.bf16.gmra.mxu0 %v761
      %v935 = vpop.f32.mrf.mxu0
      %v936 = vadd.f32 %v489, %v935
      %v937 = vpop.f32.mrf.mxu0
      %v938 = vadd.f32 %v489, %v937
      %939 = vmatmul.bf16.gmra.mxu0 %v764
      %v940 = vpop.f32.mrf.mxu0
      %v941 = vadd.f32 %v489, %v940
      %v942 = vpop.f32.mrf.mxu0
      %v943 = vadd.f32 %v489, %v942
      %944 = vmatmul.bf16.gmra.mxu0 %v767
      %v945 = vpop.f32.mrf.mxu0
      %v946 = vadd.f32 %v489, %v945
      %v947 = vpop.f32.mrf.mxu0
      %v948 = vadd.f32 %v489, %v947
      %949 = vmatmul.bf16.gmra.mxu0 %v770
      %v950 = vpop.f32.mrf.mxu0
      %v951 = vadd.f32 %v489, %v950
      %v952 = vpop.f32.mrf.mxu0
      %v953 = vadd.f32 %v489, %v952
      %954 = vmatmul.bf16.gmra.mxu0 %v773
      %v955 = vpop.f32.mrf.mxu0
      %v956 = vadd.f32 %v489, %v955
      %v957 = vpop.f32.mrf.mxu0
      %v958 = vadd.f32 %v489, %v957
      %959 = vmatmul.bf16.gmra.mxu0 %v776
      %v960 = vpop.f32.mrf.mxu0
      %v961 = vadd.f32 %v489, %v960
      %v962 = vpop.f32.mrf.mxu0
      %v963 = vadd.f32 %v489, %v962
      %964 = vmatmul.bf16.gmra.mxu0 %v779
      %v965 = vpop.f32.mrf.mxu0
      %v966 = vadd.f32 %v489, %v965
      %v967 = vpop.f32.mrf.mxu0
      %v968 = vadd.f32 %v489, %v967
      %969 = vmatmul.bf16.gmra.mxu0 %v782
      %v970 = vpop.f32.mrf.mxu0
      %v971 = vadd.f32 %v489, %v970
      %v972 = vpop.f32.mrf.mxu0
      %v973 = vadd.f32 %v489, %v972
      %974 = vmatmul.bf16.gmra.mxu0 %v785
      %v975 = vpop.f32.mrf.mxu0
      %v976 = vadd.f32 %v489, %v975
      %v977 = vpop.f32.mrf.mxu0
      %v978 = vadd.f32 %v489, %v977
      %979 = vmatmul.bf16.gmra.mxu0 %v788
      %v980 = vpop.f32.mrf.mxu0
      %v981 = vadd.f32 %v489, %v980
      %v982 = vpop.f32.mrf.mxu0
      %v983 = vadd.f32 %v489, %v982
      %984 = vmatmul.bf16.gmra.mxu0 %v791
      %v985 = vpop.f32.mrf.mxu0
      %v986 = vadd.f32 %v489, %v985
      %v987 = vpop.f32.mrf.mxu0
      %v988 = vadd.f32 %v489, %v987
      %989 = vmatmul.bf16.gmra.mxu0 %v794
      %v990 = vpop.f32.mrf.mxu0
      %v991 = vadd.f32 %v489, %v990
      %v992 = vpop.f32.mrf.mxu0
      %v993 = vadd.f32 %v489, %v992
      %994 = vmatmul.bf16.gmra.mxu0 %v797
      %v995 = vpop.f32.mrf.mxu0
      %v996 = vadd.f32 %v489, %v995
      %v997 = vpop.f32.mrf.mxu0
      %v998 = vadd.f32 %v489, %v997
      %999 = vmatmul.bf16.gmra.mxu0 %v800
      %v1000 = vpop.f32.mrf.mxu0
      %v1001 = vadd.f32 %v489, %v1000
      %v1002 = vpop.f32.mrf.mxu0
      %v1003 = vadd.f32 %v489, %v1002
      %1004 = vmatmul.bf16.gmra.mxu0 %v803
      %v1005 = vpop.f32.mrf.mxu0
      %v1006 = vadd.f32 %v489, %v1005
      %v1007 = vpop.f32.mrf.mxu0
      %v1008 = vadd.f32 %v489, %v1007
      %1009 = vmatmul.bf16.gmra.mxu0 %v806
      %v1010 = vpop.f32.mrf.mxu0
      %v1011 = vadd.f32 %v489, %v1010
      %v1012 = vpop.f32.mrf.mxu0
      %v1013 = vadd.f32 %v489, %v1012
      %1014 = vmatmul.bf16.gmra.mxu0 %v809
      %v1015 = vpop.f32.mrf.mxu0
      %v1016 = vadd.f32 %v489, %v1015
      %v1017 = vpop.f32.mrf.mxu0
      %v1018 = vadd.f32 %v489, %v1017
      %1019 = vmatmul.bf16.gmra.mxu0 %v812
      %v1020 = vpop.f32.mrf.mxu0
      %v1021 = vadd.f32 %v489, %v1020
      %v1022 = vpop.f32.mrf.mxu0
      %v1023 = vadd.f32 %v489, %v1022
      %1024 = vmatmul.bf16.gmra.mxu0 %v815
      %v1025 = vpop.f32.mrf.mxu0
      %v1026 = vadd.f32 %v489, %v1025
      %v1027 = vpop.f32.mrf.mxu0
      %v1028 = vadd.f32 %v489, %v1027
      %1029 = vmatmul.bf16.gmra.mxu0 %v818
      %v1030 = vpop.f32.mrf.mxu0
      %v1031 = vadd.f32 %v489, %v1030
      %v1032 = vpop.f32.mrf.mxu0
      %v1033 = vadd.f32 %v489, %v1032
      %1034 = vmatmul.bf16.gmra.mxu0 %v821
      %v1035 = vpop.f32.mrf.mxu0
      %v1036 = vadd.f32 %v489, %v1035
      %v1037 = vpop.f32.mrf.mxu0
      %v1038 = vadd.f32 %v489, %v1037
      %1039 = vmatmul.bf16.gmra.mxu0 %v824
      %v1040 = vpop.f32.mrf.mxu0
      %v1041 = vadd.f32 %v489, %v1040
      %v1042 = vpop.f32.mrf.mxu0
      %v1043 = vadd.f32 %v489, %v1042
      %1044 = vmatmul.bf16.gmra.mxu0 %v827
      %v1045 = vpop.f32.mrf.mxu0
      %v1046 = vadd.f32 %v489, %v1045
      %v1047 = vpop.f32.mrf.mxu0
      %v1048 = vadd.f32 %v489, %v1047
      %1049 = vmatmul.bf16.gmra.mxu0 %v830
      %v1050 = vpop.f32.mrf.mxu0
      %v1051 = vadd.f32 %v489, %v1050
      %v1052 = vpop.f32.mrf.mxu0
      %v1053 = vadd.f32 %v489, %v1052
      %1054 = vmatmul.bf16.gmra.mxu0 %v833
      %v1055 = vpop.f32.mrf.mxu0
      %v1056 = vadd.f32 %v489, %v1055
      %v1057 = vpop.f32.mrf.mxu0
      %v1058 = vadd.f32 %v489, %v1057
      %1059 = vmatmul.bf16.gmra.mxu0 %v836
      %v1060 = vpop.f32.mrf.mxu0
      %v1061 = vadd.f32 %v489, %v1060
      %v1062 = vpop.f32.mrf.mxu0
      %v1063 = vadd.f32 %v489, %v1062
      %1064 = vmatmul.bf16.gmra.mxu0 %v839
      %v1065 = vpop.f32.mrf.mxu0
      %v1066 = vadd.f32 %v489, %v1065
      %v1067 = vpop.f32.mrf.mxu0
      %v1068 = vadd.f32 %v489, %v1067
      %1069 = vmatmul.bf16.gmra.mxu0 %v842
      %v1070 = vpop.f32.mrf.mxu0
      %v1071 = vadd.f32 %v489, %v1070
      %v1072 = vpop.f32.mrf.mxu0
      %v1073 = vadd.f32 %v489, %v1072
      %1074 = vmatmul.bf16.gmra.mxu0 %v845
      %v1075 = vpop.f32.mrf.mxu0
      %v1076 = vadd.f32 %v489, %v1075
      %v1077 = vpop.f32.mrf.mxu0
      %v1078 = vadd.f32 %v489, %v1077
      %1079 = vmatmul.bf16.gmra.mxu0 %v848
      %v1080 = vpop.f32.mrf.mxu0
      %v1081 = vadd.f32 %v489, %v1080
      %v1082 = vpop.f32.mrf.mxu0
      %v1083 = vadd.f32 %v489, %v1082
      %1084 = vmatmul.bf16.gmra.mxu0 %v851
      %v1085 = vpop.f32.mrf.mxu0
      %v1086 = vadd.f32 %v489, %v1085
      %v1087 = vpop.f32.mrf.mxu0
      %v1088 = vadd.f32 %v489, %v1087
      %1089 = vmatmul.bf16.gmra.mxu0 %v854
      %v1090 = vpop.f32.mrf.mxu0
      %v1091 = vadd.f32 %v489, %v1090
      %v1092 = vpop.f32.mrf.mxu0
      %v1093 = vadd.f32 %v489, %v1092
      %1094 = vmatmul.bf16.gmra.mxu0 %v857
      %v1095 = vpop.f32.mrf.mxu0
      %v1096 = vadd.f32 %v489, %v1095
      %v1097 = vpop.f32.mrf.mxu0
      %v1098 = vadd.f32 %v489, %v1097
      %1099 = vmatmul.bf16.gmra.mxu0 %v860
      %v1100 = vpop.f32.mrf.mxu0
      %v1101 = vadd.f32 %v489, %v1100
      %v1102 = vpop.f32.mrf.mxu0
      %v1103 = vadd.f32 %v489, %v1102
      %1104 = vmatmul.bf16.gmra.mxu0 %v863
      %v1105 = vpop.f32.mrf.mxu0
      %v1106 = vadd.f32 %v489, %v1105
      %v1107 = vpop.f32.mrf.mxu0
      %v1108 = vadd.f32 %v489, %v1107
      %1109 = vmatmul.bf16.gmra.mxu0 %v866
      %v1110 = vpop.f32.mrf.mxu0
      %v1111 = vadd.f32 %v489, %v1110
      %v1112 = vpop.f32.mrf.mxu0
      %v1113 = vadd.f32 %v489, %v1112
      %1114 = vmatmul.bf16.gmra.mxu0 %v869
      %v1115 = vpop.f32.mrf.mxu0
      %v1116 = vadd.f32 %v489, %v1115
      %v1117 = vpop.f32.mrf.mxu0
      %v1118 = vadd.f32 %v489, %v1117
      %1119 = vmatmul.bf16.gmra.mxu0 %v872
      %v1120 = vpop.f32.mrf.mxu0
      %v1121 = vadd.f32 %v489, %v1120
      %v1122 = vpop.f32.mrf.mxu0
      %v1123 = vadd.f32 %v489, %v1122
      %1124 = vmatmul.bf16.gmra.mxu0 %v875
      %v1125 = vpop.f32.mrf.mxu0
      %v1126 = vadd.f32 %v489, %v1125
      %v1127 = vpop.f32.mrf.mxu0
      %v1128 = vadd.f32 %v489, %v1127
      %1129 = vmatmul.bf16.gmra.mxu0 %v878
      %v1130 = vpop.f32.mrf.mxu0
      %v1131 = vadd.f32 %v489, %v1130
      %v1132 = vpop.f32.mrf.mxu0
      %v1133 = vadd.f32 %v489, %v1132
      %1134 = vmatmul.bf16.gmra.mxu0 %v881
      %v1135 = vpop.f32.mrf.mxu0
      %v1136 = vadd.f32 %v489, %v1135
      %v1137 = vpop.f32.mrf.mxu0
      %v1138 = vadd.f32 %v489, %v1137
      %1139 = vmatmul.bf16.gmra.mxu0 %v884
      %v1140 = vpop.f32.mrf.mxu0
      %v1141 = vadd.f32 %v489, %v1140
      %v1142 = vpop.f32.mrf.mxu0
      %v1143 = vadd.f32 %v489, %v1142
      %1144 = vmatmul.bf16.gmra.mxu0 %v887
      %v1145 = vpop.f32.mrf.mxu0
      %v1146 = vadd.f32 %v489, %v1145
      %v1147 = vpop.f32.mrf.mxu0
      %v1148 = vadd.f32 %v489, %v1147
      %1149 = vdwg.mxu0
      %v1150 = vmax.f32 %v906, 0.0
      %v1151 = vmax.f32 %v908, 0.0
      %v1152 = vmax.f32 %v911, 0.0
      %v1153 = vmax.f32 %v913, 0.0
      %v1154 = vmax.f32 %v916, 0.0
      %v1155 = vmax.f32 %v918, 0.0
      %v1156 = vmax.f32 %v921, 0.0
      %v1157 = vmax.f32 %v923, 0.0
      %v1158 = vmax.f32 %v926, 0.0
      %v1159 = vmax.f32 %v928, 0.0
      %v1160 = vmax.f32 %v931, 0.0
      %v1161 = vmax.f32 %v933, 0.0
      %v1162 = vmax.f32 %v936, 0.0
      %v1163 = vmax.f32 %v938, 0.0
      %v1164 = vmax.f32 %v941, 0.0
      %v1165 = vmax.f32 %v943, 0.0
      %v1166 = vmax.f32 %v946, 0.0
      %v1167 = vmax.f32 %v948, 0.0
      %v1168 = vmax.f32 %v951, 0.0
      %v1169 = vmax.f32 %v953, 0.0
      %v1170 = vmax.f32 %v956, 0.0
      %v1171 = vmax.f32 %v958, 0.0
      %v1172 = vmax.f32 %v961, 0.0
      %v1173 = vmax.f32 %v963, 0.0
      %v1174 = vmax.f32 %v966, 0.0
      %v1175 = vmax.f32 %v968, 0.0
      %v1176 = vmax.f32 %v971, 0.0
      %v1177 = vmax.f32 %v973, 0.0
      %v1178 = vmax.f32 %v976, 0.0
      %v1179 = vmax.f32 %v978, 0.0
      %v1180 = vmax.f32 %v981, 0.0
      %v1181 = vmax.f32 %v983, 0.0
      %v1182 = vmax.f32 %v986, 0.0
      %v1183 = vmax.f32 %v988, 0.0
      %v1184 = vmax.f32 %v991, 0.0
      %v1185 = vmax.f32 %v993, 0.0
      %v1186 = vmax.f32 %v996, 0.0
      %v1187 = vmax.f32 %v998, 0.0
      %v1188 = vmax.f32 %v1001, 0.0
      %v1189 = vmax.f32 %v1003, 0.0
      %v1190 = vmax.f32 %v1006, 0.0
      %v1191 = vmax.f32 %v1008, 0.0
      %v1192 = vmax.f32 %v1011, 0.0
      %v1193 = vmax.f32 %v1013, 0.0
      %v1194 = vmax.f32 %v1016, 0.0
      %v1195 = vmax.f32 %v1018, 0.0
      %v1196 = vmax.f32 %v1021, 0.0
      %v1197 = vmax.f32 %v1023, 0.0
      %v1198 = vmax.f32 %v1026, 0.0
      %v1199 = vmax.f32 %v1028, 0.0
      %v1200 = vmax.f32 %v1031, 0.0
      %v1201 = vmax.f32 %v1033, 0.0
      %v1202 = vmax.f32 %v1036, 0.0
      %v1203 = vmax.f32 %v1038, 0.0
      %v1204 = vmax.f32 %v1041, 0.0
      %v1205 = vmax.f32 %v1043, 0.0
      %v1206 = vmax.f32 %v1046, 0.0
      %v1207 = vmax.f32 %v1048, 0.0
      %v1208 = vmax.f32 %v1051, 0.0
      %v1209 = vmax.f32 %v1053, 0.0
      %v1210 = vmax.f32 %v1056, 0.0
      %v1211 = vmax.f32 %v1058, 0.0
      %v1212 = vmax.f32 %v1061, 0.0
      %v1213 = vmax.f32 %v1063, 0.0
      %v1214 = vmax.f32 %v1066, 0.0
      %v1215 = vmax.f32 %v1068, 0.0
      %v1216 = vmax.f32 %v1071, 0.0
      %v1217 = vmax.f32 %v1073, 0.0
      %v1218 = vmax.f32 %v1076, 0.0
      %v1219 = vmax.f32 %v1078, 0.0
      %v1220 = vmax.f32 %v1081, 0.0
      %v1221 = vmax.f32 %v1083, 0.0
      %v1222 = vmax.f32 %v1086, 0.0
      %v1223 = vmax.f32 %v1088, 0.0
      %v1224 = vmax.f32 %v1091, 0.0
      %v1225 = vmax.f32 %v1093, 0.0
      %v1226 = vmax.f32 %v1096, 0.0
      %v1227 = vmax.f32 %v1098, 0.0
      %v1228 = vmax.f32 %v1101, 0.0
      %v1229 = vmax.f32 %v1103, 0.0
      %v1230 = vmax.f32 %v1106, 0.0
      %v1231 = vmax.f32 %v1108, 0.0
      %v1232 = vmax.f32 %v1111, 0.0
      %v1233 = vmax.f32 %v1113, 0.0
      %v1234 = vmax.f32 %v1116, 0.0
      %v1235 = vmax.f32 %v1118, 0.0
      %v1236 = vmax.f32 %v1121, 0.0
      %v1237 = vmax.f32 %v1123, 0.0
      %v1238 = vmax.f32 %v1126, 0.0
      %v1239 = vmax.f32 %v1128, 0.0
      %v1240 = vmax.f32 %v1131, 0.0
      %v1241 = vmax.f32 %v1133, 0.0
      %v1242 = vmax.f32 %v1136, 0.0
      %v1243 = vmax.f32 %v1138, 0.0
      %v1244 = vmax.f32 %v1141, 0.0
      %v1245 = vmax.f32 %v1143, 0.0
      %v1246 = vmax.f32 %v1146, 0.0
      %v1247 = vmax.f32 %v1148, 0.0
      %1248 = vst [vmem:[#allocation2] sm:$0xff] %v1150
      %1249 = vst [vmem:[#allocation2 + $0x8] sm:$0xff] %v1151
      %1250 = vst [vmem:[#allocation2 + $0x10] sm:$0xff] %v1152
      %1251 = vst [vmem:[#allocation2 + $0x18] sm:$0xff] %v1153
      %1252 = vst [vmem:[#allocation2 + $0x20] sm:$0xff] %v1154
      %1253 = vst [vmem:[#allocation2 + $0x28] sm:$0xff] %v1155
      %1254 = vst [vmem:[#allocation2 + $0x30] sm:$0xff] %v1156
      %1255 = vst [vmem:[#allocation2 + $0x38] sm:$0xff] %v1157
      %1256 = vst [vmem:[#allocation2 + $0x40] sm:$0xff] %v1158
      %1257 = vst [vmem:[#allocation2 + $0x48] sm:$0xff] %v1159
      %1258 = vst [vmem:[#allocation2 + $0x50] sm:$0xff] %v1160
      %1259 = vst [vmem:[#allocation2 + $0x58] sm:$0xff] %v1161
      %1260 = vst [vmem:[#allocation2 + $0x60] sm:$0xff] %v1162
      %1261 = vst [vmem:[#allocation2 + $0x68] sm:$0xff] %v1163
      %1262 = vst [vmem:[#allocation2 + $0x70] sm:$0xff] %v1164
      %1263 = vst [vmem:[#allocation2 + $0x78] sm:$0xff] %v1165
      %1264 = vst [vmem:[#allocation2 + $0x80] sm:$0xff] %v1166
      %1265 = vst [vmem:[#allocation2 + $0x88] sm:$0xff] %v1167
      %1266 = vst [vmem:[#allocation2 + $0x90] sm:$0xff] %v1168
      %1267 = vst [vmem:[#allocation2 + $0x98] sm:$0xff] %v1169
      %1268 = vst [vmem:[#allocation2 + $0xa0] sm:$0xff] %v1170
      %1269 = vst [vmem:[#allocation2 + $0xa8] sm:$0xff] %v1171
      %1270 = vst [vmem:[#allocation2 + $0xb0] sm:$0xff] %v1172
      %1271 = vst [vmem:[#allocation2 + $0xb8] sm:$0xff] %v1173
      %1272 = vst [vmem:[#allocation2 + $0xc0] sm:$0xff] %v1174
      %1273 = vst [vmem:[#allocation2 + $0xc8] sm:$0xff] %v1175
      %1274 = vst [vmem:[#allocation2 + $0xd0] sm:$0xff] %v1176
      %1275 = vst [vmem:[#allocation2 + $0xd8] sm:$0xff] %v1177
      %1276 = vst [vmem:[#allocation2 + $0xe0] sm:$0xff] %v1178
      %1277 = vst [vmem:[#allocation2 + $0xe8] sm:$0xff] %v1179
      %1278 = vst [vmem:[#allocation2 + $0xf0] sm:$0xff] %v1180
      %1279 = vst [vmem:[#allocation2 + $0xf8] sm:$0xff] %v1181
      %1280 = vst [vmem:[#allocation2 + $0x100] sm:$0xff] %v1182
      %1281 = vst [vmem:[#allocation2 + $0x108] sm:$0xff] %v1183
      %1282 = vst [vmem:[#allocation2 + $0x110] sm:$0xff] %v1184
      %1283 = vst [vmem:[#allocation2 + $0x118] sm:$0xff] %v1185
      %1284 = vst [vmem:[#allocation2 + $0x120] sm:$0xff] %v1186
      %1285 = vst [vmem:[#allocation2 + $0x128] sm:$0xff] %v1187
      %1286 = vst [vmem:[#allocation2 + $0x130] sm:$0xff] %v1188
      %1287 = vst [vmem:[#allocation2 + $0x138] sm:$0xff] %v1189
      %1288 = vst [vmem:[#allocation2 + $0x140] sm:$0xff] %v1190
      %1289 = vst [vmem:[#allocation2 + $0x148] sm:$0xff] %v1191
      %1290 = vst [vmem:[#allocation2 + $0x150] sm:$0xff] %v1192
      %1291 = vst [vmem:[#allocation2 + $0x158] sm:$0xff] %v1193
      %1292 = vst [vmem:[#allocation2 + $0x160] sm:$0xff] %v1194
      %1293 = vst [vmem:[#allocation2 + $0x168] sm:$0xff] %v1195
      %1294 = vst [vmem:[#allocation2 + $0x170] sm:$0xff] %v1196
      %1295 = vst [vmem:[#allocation2 + $0x178] sm:$0xff] %v1197
      %1296 = vst [vmem:[#allocation2 + $0x180] sm:$0xff] %v1198
      %1297 = vst [vmem:[#allocation2 + $0x188] sm:$0xff] %v1199
      %1298 = vst [vmem:[#allocation2 + $0x190] sm:$0xff] %v1200
      %1299 = vst [vmem:[#allocation2 + $0x198] sm:$0xff] %v1201
      %1300 = vst [vmem:[#allocation2 + $0x1a0] sm:$0xff] %v1202
      %1301 = vst [vmem:[#allocation2 + $0x1a8] sm:$0xff] %v1203
      %1302 = vst [vmem:[#allocation2 + $0x1b0] sm:$0xff] %v1204
      %1303 = vst [vmem:[#allocation2 + $0x1b8] sm:$0xff] %v1205
      %1304 = vst [vmem:[#allocation2 + $0x1c0] sm:$0xff] %v1206
      %1305 = vst [vmem:[#allocation2 + $0x1c8] sm:$0xff] %v1207
      %1306 = vst [vmem:[#allocation2 + $0x1d0] sm:$0xff] %v1208
      %1307 = vst [vmem:[#allocation2 + $0x1d8] sm:$0xff] %v1209
      %1308 = vst [vmem:[#allocation2 + $0x1e0] sm:$0xff] %v1210
      %1309 = vst [vmem:[#allocation2 + $0x1e8] sm:$0xff] %v1211
      %1310 = vst [vmem:[#allocation2 + $0x1f0] sm:$0xff] %v1212
      %1311 = vst [vmem:[#allocation2 + $0x1f8] sm:$0xff] %v1213
      %1312 = vst [vmem:[#allocation2 + $0x200] sm:$0xff] %v1214
      %1313 = vst [vmem:[#allocation2 + $0x208] sm:$0xff] %v1215
      %1314 = vst [vmem:[#allocation2 + $0x210] sm:$0xff] %v1216
      %1315 = vst [vmem:[#allocation2 + $0x218] sm:$0xff] %v1217
      %1316 = vst [vmem:[#allocation2 + $0x220] sm:$0xff] %v1218
      %1317 = vst [vmem:[#allocation2 + $0x228] sm:$0xff] %v1219
      %1318 = vst [vmem:[#allocation2 + $0x230] sm:$0xff] %v1220
      %1319 = vst [vmem:[#allocation2 + $0x238] sm:$0xff] %v1221
      %1320 = vst [vmem:[#allocation2 + $0x240] sm:$0xff] %v1222
      %1321 = vst [vmem:[#allocation2 + $0x248] sm:$0xff] %v1223
      %1322 = vst [vmem:[#allocation2 + $0x250] sm:$0xff] %v1224
      %1323 = vst [vmem:[#allocation2 + $0x258] sm:$0xff] %v1225
      %1324 = vst [vmem:[#allocation2 + $0x260] sm:$0xff] %v1226
      %1325 = vst [vmem:[#allocation2 + $0x268] sm:$0xff] %v1227
      %1326 = vst [vmem:[#allocation2 + $0x270] sm:$0xff] %v1228
      %1327 = vst [vmem:[#allocation2 + $0x278] sm:$0xff] %v1229
      %1328 = vst [vmem:[#allocation2 + $0x280] sm:$0xff] %v1230
      %1329 = vst [vmem:[#allocation2 + $0x288] sm:$0xff] %v1231
      %1330 = vst [vmem:[#allocation2 + $0x290] sm:$0xff] %v1232
      %1331 = vst [vmem:[#allocation2 + $0x298] sm:$0xff] %v1233
      %1332 = vst [vmem:[#allocation2 + $0x2a0] sm:$0xff] %v1234
      %1333 = vst [vmem:[#allocation2 + $0x2a8] sm:$0xff] %v1235
      %1334 = vst [vmem:[#allocation2 + $0x2b0] sm:$0xff] %v1236
      %1335 = vst [vmem:[#allocation2 + $0x2b8] sm:$0xff] %v1237
      %1336 = vst [vmem:[#allocation2 + $0x2c0] sm:$0xff] %v1238
      %1337 = vst [vmem:[#allocation2 + $0x2c8] sm:$0xff] %v1239
      %1338 = vst [vmem:[#allocation2 + $0x2d0] sm:$0xff] %v1240
      %1339 = vst [vmem:[#allocation2 + $0x2d8] sm:$0xff] %v1241
      %1340 = vst [vmem:[#allocation2 + $0x2e0] sm:$0xff] %v1242
      %1341 = vst [vmem:[#allocation2 + $0x2e8] sm:$0xff] %v1243
      %1342 = vst [vmem:[#allocation2 + $0x2f0] sm:$0xff] %v1244
      %1343 = vst [vmem:[#allocation2 + $0x2f8] sm:$0xff] %v1245
      %1344 = vst [vmem:[#allocation2 + $0x300] sm:$0xff] %v1246
      %1345 = vst [vmem:[#allocation2 + $0x308] sm:$0xff] %v1247
      %v1346 = vlaneseq
      %v1347 = vshrl.u32 %v1346, 7
      %v1348 = vadd.s32 %v1347, 8
      %v1349 = vlaneseq
      %v1350 = vand.u32 %v1349, 127
      %v1351 = vmul.u32 %v1347, 2
      %v1352 = vmul.u32 %v1348, 2
      %vm1353 = vcmp.eq.s32.totalorder %v1350, %v1351
      %vm1354 = vcmp.eq.s32.totalorder %v1350, %v1352
      %v1355 = vsel %vm1353, 1.0, 0.0
      %v1356 = vsel %vm1354, 1.0, 0.0
      %v1357 = vpack.c.bf16 %v1356, %v1355
      %v1358 = vadd.s32 %v1351, 1
      %v1359 = vadd.s32 %v1352, 1
      %vm1360 = vcmp.eq.s32.totalorder %v1350, %v1358
      %vm1361 = vcmp.eq.s32.totalorder %v1350, %v1359
      %v1362 = vsel %vm1360, 1.0, 0.0
      %v1363 = vsel %vm1361, 1.0, 0.0
      %v1364 = vpack.c.bf16 %v1363, %v1362
      %v1365 = vpack.c.bf16 %v1355, %v1355
      %v1366 = vpack.c.bf16 %v1362, %v1362
      %v1367 = vld [vmem:[#allocation2] sm:$0xff]
      %v1368 = vld [vmem:[#allocation2 + $0x8] sm:$0xff]
      %v1369 = vld [vmem:[#allocation2 + $0x10] sm:$0xff]
      %v1370 = vld [vmem:[#allocation2 + $0x18] sm:$0xf]
      %v1371 = vld [vmem:[#allocation2 + $0x1c] sm:$0xff]
      %v1372 = vld [vmem:[#allocation2 + $0x24] sm:$0xff]
      %v1373 = vld [vmem:[#allocation2 + $0x2c] sm:$0xff]
      %v1374 = vld [vmem:[#allocation2 + $0x34] sm:$0xf]
      %v1375 = vmax.f32 %v1367, %v1371
      %v1376 = vmax.f32 %v1368, %v1372
      %v1377 = vmax.f32 %v1369, %v1373
      %v1378 = vmax.f32 %v1370, %v1374
      %v1379 = vpack.c.bf16 %v1376, %v1375
      %v1380 = vpack.c.bf16 %v1378, %v1377
      %vm1381 = vcmask 228352
      %v1383 = vsel %vm1381, %v1357, 0
      %vm1385 = vcmask 1045504
      %v1387 = vsel %vm1385, %v1380, 0
      %1389 = vmatpush.bf16.msra.mxu0 0
      %1390 = vmatpush.bf16.msra.mxu0 0
      %1391 = vmatpush.bf16.msra.mxu0 0
      %1392 = vmatpush.bf16.msra.mxu0 0
      %1393 = vmatpush.bf16.msra.mxu0 0
      %1394 = vmatpush.bf16.msra.mxu0 0
      %1395 = vmatpush.bf16.msra.mxu0 %v1387
      %1396 = vmatpush.bf16.msra.mxu0 %v1379
      %1397 = vmatmul.bf16.gmra.mxu0 %v1383
      %v1398 = vpop.f32.mrf.mxu0
      %v1399 = vadd.f32 0.0, %v1398
      %v1400 = vpop.f32.mrf.mxu0
      %v1401 = vadd.f32 0.0, %v1400
      %1402 = vdwg.mxu0
      %v1404 = vsel %vm1381, %v1364, 0
      %1406 = vmatpush.bf16.msra.mxu0 0
      %1407 = vmatpush.bf16.msra.mxu0 0
      %1408 = vmatpush.bf16.msra.mxu0 0
      %1409 = vmatpush.bf16.msra.mxu0 0
      %1410 = vmatpush.bf16.msra.mxu0 0
      %1411 = vmatpush.bf16.msra.mxu0 0
      %1412 = vmatpush.bf16.msra.mxu0 %v1387
      %1413 = vmatpush.bf16.msra.mxu0 %v1379
      %1414 = vmatmul.bf16.gmra.mxu0 %v1404
      %v1415 = vpop.f32.mrf.mxu0
      %v1416 = vadd.f32 0.0, %v1415
      %v1417 = vpop.f32.mrf.mxu0
      %v1418 = vadd.f32 0.0, %v1417
      %1419 = vdwg.mxu0
      %v1420 = vmax.f32 %v1399, %v1416
      %v1421 = vmax.f32 %v1401, %v1418
      %v1422 = vpack.c.bf16 %v1420, %v1420
      %v1423 = vpack.c.bf16 %v1421, %v1421
      %vm1424 = vsmask.f32 256
      %vm1425 = vsmask.f32 4368
      %vm1426 = vmor %vm1424, %vm1425
      %v1428 = vshrl.u32 %v1422, 16
      %v1430 = vrot.slane %v1428, 7
      %v1431 = vshll.u32 %v1422, 16
      %v1433 = vor.u32 %v1430, %v1431
      %v1434 = vrot.slane %v1430, 4
      %v1436 = vshrl.u32 %v1423, 16
      %v1438 = vrot.slane %v1436, 7
      %v1439 = vshll.u32 %v1423, 16
      %v1441 = vor.u32 %v1438, %v1439
      %v1442 = vsel %vm1426, %v1434, %v1441
      %vm1445 = vcmask 1043456
      %vm1446 = vsmask.f32 7938
      %vm1447 = vmand %vm1445, %vm1446
      %v1448 = vld [vmem:[#allocation4 + $0x14] sm:$0xf]
      %v1449 = vsel %vm1447, %v1433, %v1448
      %1450 = vst [vmem:[#allocation4 + $0x14] sm:$0xf] %v1449
      %vm1451 = vsmask.f32 3328
      %vm1452 = vmand %vm1445, %vm1451
      %v1453 = vld [vmem:[#allocation4 + $0x18] sm:$0xf]
      %v1454 = vsel %vm1452, %v1442, %v1453
      %1455 = vst [vmem:[#allocation4 + $0x18] sm:$0xf] %v1454
      %v1456 = vld [vmem:[#allocation2 + $0x38] sm:$0xff]
      %v1457 = vld [vmem:[#allocation2 + $0x40] sm:$0xff]
      %v1458 = vld [vmem:[#allocation2 + $0x48] sm:$0xff]
      %v1459 = vld [vmem:[#allocation2 + $0x50] sm:$0xf]
      %v1460 = vld [vmem:[#allocation2 + $0x54] sm:$0xff]
      %v1461 = vld [vmem:[#allocation2 + $0x5c] sm:$0xff]
      %v1462 = vld [vmem:[#allocation2 + $0x64] sm:$0xff]
      %v1463 = vld [vmem:[#allocation2 + $0x6c] sm:$0xf]
      %v1464 = vmax.f32 %v1456, %v1460
      %v1465 = vmax.f32 %v1457, %v1461
      %v1466 = vmax.f32 %v1458, %v1462
      %v1467 = vmax.f32 %v1459, %v1463
      %v1468 = vpack.c.bf16 %v1465, %v1464
      %v1469 = vpack.c.bf16 %v1467, %v1466
      %v1471 = vsel %vm1385, %v1469, 0
      %1473 = vmatpush.bf16.msra.mxu0 0
      %1474 = vmatpush.bf16.msra.mxu0 0
      %1475 = vmatpush.bf16.msra.mxu0 0
      %1476 = vmatpush.bf16.msra.mxu0 0
      %1477 = vmatpush.bf16.msra.mxu0 0
      %1478 = vmatpush.bf16.msra.mxu0 0
      %1479 = vmatpush.bf16.msra.mxu0 %v1471
      %1480 = vmatpush.bf16.msra.mxu0 %v1468
      %1481 = vmatmul.bf16.gmra.mxu0 %v1383
      %v1482 = vpop.f32.mrf.mxu0
      %v1483 = vadd.f32 0.0, %v1482
      %v1484 = vpop.f32.mrf.mxu0
      %v1485 = vadd.f32 0.0, %v1484
      %1486 = vdwg.mxu0
      %1487 = vmatpush.bf16.msra.mxu0 0
      %1488 = vmatpush.bf16.msra.mxu0 0
      %1489 = vmatpush.bf16.msra.mxu0 0
      %1490 = vmatpush.bf16.msra.mxu0 0
      %1491 = vmatpush.bf16.msra.mxu0 0
      %1492 = vmatpush.bf16.msra.mxu0 0
      %1493 = vmatpush.bf16.msra.mxu0 %v1471
      %1494 = vmatpush.bf16.msra.mxu0 %v1468
      %1495 = vmatmul.bf16.gmra.mxu0 %v1404
      %v1496 = vpop.f32.mrf.mxu0
      %v1497 = vadd.f32 0.0, %v1496
      %v1498 = vpop.f32.mrf.mxu0
      %v1499 = vadd.f32 0.0, %v1498
      %1500 = vdwg.mxu0
      %v1501 = vmax.f32 %v1483, %v1497
      %v1502 = vmax.f32 %v1485, %v1499
      %v1503 = vpack.c.bf16 %v1501, %v1501
      %v1504 = vpack.c.bf16 %v1502, %v1502
      %v1506 = vshrl.u32 %v1503, 16
      %v1508 = vrot.slane %v1506, 7
      %v1509 = vshll.u32 %v1503, 16
      %v1511 = vor.u32 %v1508, %v1509
      %v1512 = vrot.slane %v1508, 4
      %v1514 = vshrl.u32 %v1504, 16
      %v1516 = vrot.slane %v1514, 7
      %v1517 = vshll.u32 %v1504, 16
      %v1519 = vor.u32 %v1516, %v1517
      %v1520 = vsel %vm1426, %v1512, %v1519
      %v1523 = vld [vmem:[#allocation4 + $0x1c] sm:$0xf]
      %v1524 = vsel %vm1447, %v1511, %v1523
      %1525 = vst [vmem:[#allocation4 + $0x1c] sm:$0xf] %v1524
      %v1526 = vld [vmem:[#allocation4 + $0x20] sm:$0xf]
      %v1527 = vsel %vm1452, %v1520, %v1526
      %1528 = vst [vmem:[#allocation4 + $0x20] sm:$0xf] %v1527
      %v1529 = vld [vmem:[#allocation2 + $0x70] sm:$0xff]
      %v1530 = vld [vmem:[#allocation2 + $0x78] sm:$0xff]
      %v1531 = vld [vmem:[#allocation2 + $0x80] sm:$0xff]
      %v1532 = vld [vmem:[#allocation2 + $0x88] sm:$0xf]
      %v1533 = vld [vmem:[#allocation2 + $0x8c] sm:$0xff]
      %v1534 = vld [vmem:[#allocation2 + $0x94] sm:$0xff]
      %v1535 = vld [vmem:[#allocation2 + $0x9c] sm:$0xff]
      %v1536 = vld [vmem:[#allocation2 + $0xa4] sm:$0xf]
      %v1537 = vmax.f32 %v1529, %v1533
      %v1538 = vmax.f32 %v1530, %v1534
      %v1539 = vmax.f32 %v1531, %v1535
      %v1540 = vmax.f32 %v1532, %v1536
      %v1541 = vpack.c.bf16 %v1538, %v1537
      %v1542 = vpack.c.bf16 %v1540, %v1539
      %v1544 = vsel %vm1385, %v1542, 0
      %1546 = vmatpush.bf16.msra.mxu0 0
      %1547 = vmatpush.bf16.msra.mxu0 0
      %1548 = vmatpush.bf16.msra.mxu0 0
      %1549 = vmatpush.bf16.msra.mxu0 0
      %1550 = vmatpush.bf16.msra.mxu0 0
      %1551 = vmatpush.bf16.msra.mxu0 0
      %1552 = vmatpush.bf16.msra.mxu0 %v1544
      %1553 = vmatpush.bf16.msra.mxu0 %v1541
      %1554 = vmatmul.bf16.gmra.mxu0 %v1383
      %v1555 = vpop.f32.mrf.mxu0
      %v1556 = vadd.f32 0.0, %v1555
      %v1557 = vpop.f32.mrf.mxu0
      %v1558 = vadd.f32 0.0, %v1557
      %1559 = vdwg.mxu0
      %1560 = vmatpush.bf16.msra.mxu0 0
      %1561 = vmatpush.bf16.msra.mxu0 0
      %1562 = vmatpush.bf16.msra.mxu0 0
      %1563 = vmatpush.bf16.msra.mxu0 0
      %1564 = vmatpush.bf16.msra.mxu0 0
      %1565 = vmatpush.bf16.msra.mxu0 0
      %1566 = vmatpush.bf16.msra.mxu0 %v1544
      %1567 = vmatpush.bf16.msra.mxu0 %v1541
      %1568 = vmatmul.bf16.gmra.mxu0 %v1404
      %v1569 = vpop.f32.mrf.mxu0
      %v1570 = vadd.f32 0.0, %v1569
      %v1571 = vpop.f32.mrf.mxu0
      %v1572 = vadd.f32 0.0, %v1571
      %1573 = vdwg.mxu0
      %v1574 = vmax.f32 %v1556, %v1570
      %v1575 = vmax.f32 %v1558, %v1572
      %v1576 = vpack.c.bf16 %v1574, %v1574
      %v1577 = vpack.c.bf16 %v1575, %v1575
      %v1579 = vshrl.u32 %v1576, 16
      %v1581 = vrot.slane %v1579, 7
      %v1582 = vshll.u32 %v1576, 16
      %v1584 = vor.u32 %v1581, %v1582
      %v1585 = vrot.slane %v1581, 4
      %v1587 = vshrl.u32 %v1577, 16
      %v1589 = vrot.slane %v1587, 7
      %v1590 = vshll.u32 %v1577, 16
      %v1592 = vor.u32 %v1589, %v1590
      %v1593 = vsel %vm1426, %v1585, %v1592
      %v1596 = vld [vmem:[#allocation4 + $0x24] sm:$0xf]
      %v1597 = vsel %vm1447, %v1584, %v1596
      %1598 = vst [vmem:[#allocation4 + $0x24] sm:$0xf] %v1597
      %v1599 = vld [vmem:[#allocation4 + $0x28] sm:$0xf]
      %v1600 = vsel %vm1452, %v1593, %v1599
      %1601 = vst [vmem:[#allocation4 + $0x28] sm:$0xf] %v1600
      %v1602 = vld [vmem:[#allocation2 + $0xa8] sm:$0xff]
      %v1603 = vld [vmem:[#allocation2 + $0xb0] sm:$0xff]
      %v1604 = vld [vmem:[#allocation2 + $0xb8] sm:$0xff]
      %v1605 = vld [vmem:[#allocation2 + $0xc0] sm:$0xf]
      %v1606 = vld [vmem:[#allocation2 + $0xc4] sm:$0xff]
      %v1607 = vld [vmem:[#allocation2 + $0xcc] sm:$0xff]
      %v1608 = vld [vmem:[#allocation2 + $0xd4] sm:$0xff]
      %v1609 = vld [vmem:[#allocation2 + $0xdc] sm:$0xf]
      %v1610 = vmax.f32 %v1602, %v1606
      %v1611 = vmax.f32 %v1603, %v1607
      %v1612 = vmax.f32 %v1604, %v1608
      %v1613 = vmax.f32 %v1605, %v1609
      %v1614 = vpack.c.bf16 %v1611, %v1610
      %v1615 = vpack.c.bf16 %v1613, %v1612
      %v1617 = vsel %vm1385, %v1615, 0
      %1619 = vmatpush.bf16.msra.mxu0 0
      %1620 = vmatpush.bf16.msra.mxu0 0
      %1621 = vmatpush.bf16.msra.mxu0 0
      %1622 = vmatpush.bf16.msra.mxu0 0
      %1623 = vmatpush.bf16.msra.mxu0 0
      %1624 = vmatpush.bf16.msra.mxu0 0
      %1625 = vmatpush.bf16.msra.mxu0 %v1617
      %1626 = vmatpush.bf16.msra.mxu0 %v1614
      %1627 = vmatmul.bf16.gmra.mxu0 %v1383
      %v1628 = vpop.f32.mrf.mxu0
      %v1629 = vadd.f32 0.0, %v1628
      %v1630 = vpop.f32.mrf.mxu0
      %v1631 = vadd.f32 0.0, %v1630
      %1632 = vdwg.mxu0
      %1633 = vmatpush.bf16.msra.mxu0 0
      %1634 = vmatpush.bf16.msra.mxu0 0
      %1635 = vmatpush.bf16.msra.mxu0 0
      %1636 = vmatpush.bf16.msra.mxu0 0
      %1637 = vmatpush.bf16.msra.mxu0 0
      %1638 = vmatpush.bf16.msra.mxu0 0
      %1639 = vmatpush.bf16.msra.mxu0 %v1617
      %1640 = vmatpush.bf16.msra.mxu0 %v1614
      %1641 = vmatmul.bf16.gmra.mxu0 %v1404
      %v1642 = vpop.f32.mrf.mxu0
      %v1643 = vadd.f32 0.0, %v1642
      %v1644 = vpop.f32.mrf.mxu0
      %v1645 = vadd.f32 0.0, %v1644
      %1646 = vdwg.mxu0
      %v1647 = vmax.f32 %v1629, %v1643
      %v1648 = vmax.f32 %v1631, %v1645
      %v1649 = vpack.c.bf16 %v1647, %v1647
      %v1650 = vpack.c.bf16 %v1648, %v1648
      %v1652 = vshrl.u32 %v1649, 16
      %v1654 = vrot.slane %v1652, 7
      %v1655 = vshll.u32 %v1649, 16
      %v1657 = vor.u32 %v1654, %v1655
      %v1658 = vrot.slane %v1654, 4
      %v1660 = vshrl.u32 %v1650, 16
      %v1662 = vrot.slane %v1660, 7
      %v1663 = vshll.u32 %v1650, 16
      %v1665 = vor.u32 %v1662, %v1663
      %v1666 = vsel %vm1426, %v1658, %v1665
      %v1669 = vld [vmem:[#allocation4 + $0x2c] sm:$0xf]
      %v1670 = vsel %vm1447, %v1657, %v1669
      %1671 = vst [vmem:[#allocation4 + $0x2c] sm:$0xf] %v1670
      %v1672 = vld [vmem:[#allocation4 + $0x30] sm:$0xf]
      %v1673 = vsel %vm1452, %v1666, %v1672
      %1674 = vst [vmem:[#allocation4 + $0x30] sm:$0xf] %v1673
      %v1675 = vld [vmem:[#allocation2 + $0xe0] sm:$0xff]
      %v1676 = vld [vmem:[#allocation2 + $0xe8] sm:$0xff]
      %v1677 = vld [vmem:[#allocation2 + $0xf0] sm:$0xff]
      %v1678 = vld [vmem:[#allocation2 + $0xf8] sm:$0xf]
      %v1679 = vld [vmem:[#allocation2 + $0xfc] sm:$0xff]
      %v1680 = vld [vmem:[#allocation2 + $0x104] sm:$0xff]
      %v1681 = vld [vmem:[#allocation2 + $0x10c] sm:$0xff]
      %v1682 = vld [vmem:[#allocation2 + $0x114] sm:$0xf]
      %v1683 = vmax.f32 %v1675, %v1679
      %v1684 = vmax.f32 %v1676, %v1680
      %v1685 = vmax.f32 %v1677, %v1681
      %v1686 = vmax.f32 %v1678, %v1682
      %v1687 = vpack.c.bf16 %v1684, %v1683
      %v1688 = vpack.c.bf16 %v1686, %v1685
      %v1690 = vsel %vm1385, %v1688, 0
      %1692 = vmatpush.bf16.msra.mxu0 0
      %1693 = vmatpush.bf16.msra.mxu0 0
      %1694 = vmatpush.bf16.msra.mxu0 0
      %1695 = vmatpush.bf16.msra.mxu0 0
      %1696 = vmatpush.bf16.msra.mxu0 0
      %1697 = vmatpush.bf16.msra.mxu0 0
      %1698 = vmatpush.bf16.msra.mxu0 %v1690
      %1699 = vmatpush.bf16.msra.mxu0 %v1687
      %1700 = vmatmul.bf16.gmra.mxu0 %v1383
      %v1701 = vpop.f32.mrf.mxu0
      %v1702 = vadd.f32 0.0, %v1701
      %v1703 = vpop.f32.mrf.mxu0
      %v1704 = vadd.f32 0.0, %v1703
      %1705 = vdwg.mxu0
      %1706 = vmatpush.bf16.msra.mxu0 0
      %1707 = vmatpush.bf16.msra.mxu0 0
      %1708 = vmatpush.bf16.msra.mxu0 0
      %1709 = vmatpush.bf16.msra.mxu0 0
      %1710 = vmatpush.bf16.msra.mxu0 0
      %1711 = vmatpush.bf16.msra.mxu0 0
      %1712 = vmatpush.bf16.msra.mxu0 %v1690
      %1713 = vmatpush.bf16.msra.mxu0 %v1687
      %1714 = vmatmul.bf16.gmra.mxu0 %v1404
      %v1715 = vpop.f32.mrf.mxu0
      %v1716 = vadd.f32 0.0, %v1715
      %v1717 = vpop.f32.mrf.mxu0
      %v1718 = vadd.f32 0.0, %v1717
      %1719 = vdwg.mxu0
      %v1720 = vmax.f32 %v1702, %v1716
      %v1721 = vmax.f32 %v1704, %v1718
      %v1722 = vpack.c.bf16 %v1720, %v1720
      %v1723 = vpack.c.bf16 %v1721, %v1721
      %v1725 = vshrl.u32 %v1722, 16
      %v1727 = vrot.slane %v1725, 7
      %v1728 = vshll.u32 %v1722, 16
      %v1730 = vor.u32 %v1727, %v1728
      %v1731 = vrot.slane %v1727, 4
      %v1733 = vshrl.u32 %v1723, 16
      %v1735 = vrot.slane %v1733, 7
      %v1736 = vshll.u32 %v1723, 16
      %v1738 = vor.u32 %v1735, %v1736
      %v1739 = vsel %vm1426, %v1731, %v1738
      %v1742 = vld [vmem:[#allocation4 + $0x34] sm:$0xf]
      %v1743 = vsel %vm1447, %v1730, %v1742
      %1744 = vst [vmem:[#allocation4 + $0x34] sm:$0xf] %v1743
      %v1745 = vld [vmem:[#allocation4 + $0x38] sm:$0xf]
      %v1746 = vsel %vm1452, %v1739, %v1745
      %1747 = vst [vmem:[#allocation4 + $0x38] sm:$0xf] %v1746
      %v1748 = vld [vmem:[#allocation2 + $0x118] sm:$0xff]
      %v1749 = vld [vmem:[#allocation2 + $0x120] sm:$0xff]
      %v1750 = vld [vmem:[#allocation2 + $0x128] sm:$0xff]
      %v1751 = vld [vmem:[#allocation2 + $0x130] sm:$0xf]
      %v1752 = vld [vmem:[#allocation2 + $0x134] sm:$0xff]
      %v1753 = vld [vmem:[#allocation2 + $0x13c] sm:$0xff]
      %v1754 = vld [vmem:[#allocation2 + $0x144] sm:$0xff]
      %v1755 = vld [vmem:[#allocation2 + $0x14c] sm:$0xf]
      %v1756 = vmax.f32 %v1748, %v1752
      %v1757 = vmax.f32 %v1749, %v1753
      %v1758 = vmax.f32 %v1750, %v1754
      %v1759 = vmax.f32 %v1751, %v1755
      %v1760 = vpack.c.bf16 %v1757, %v1756
      %v1761 = vpack.c.bf16 %v1759, %v1758
      %v1763 = vsel %vm1385, %v1761, 0
      %1765 = vmatpush.bf16.msra.mxu0 0
      %1766 = vmatpush.bf16.msra.mxu0 0
      %1767 = vmatpush.bf16.msra.mxu0 0
      %1768 = vmatpush.bf16.msra.mxu0 0
      %1769 = vmatpush.bf16.msra.mxu0 0
      %1770 = vmatpush.bf16.msra.mxu0 0
      %1771 = vmatpush.bf16.msra.mxu0 %v1763
      %1772 = vmatpush.bf16.msra.mxu0 %v1760
      %1773 = vmatmul.bf16.gmra.mxu0 %v1383
      %v1774 = vpop.f32.mrf.mxu0
      %v1775 = vadd.f32 0.0, %v1774
      %v1776 = vpop.f32.mrf.mxu0
      %v1777 = vadd.f32 0.0, %v1776
      %1778 = vdwg.mxu0
      %1779 = vmatpush.bf16.msra.mxu0 0
      %1780 = vmatpush.bf16.msra.mxu0 0
      %1781 = vmatpush.bf16.msra.mxu0 0
      %1782 = vmatpush.bf16.msra.mxu0 0
      %1783 = vmatpush.bf16.msra.mxu0 0
      %1784 = vmatpush.bf16.msra.mxu0 0
      %1785 = vmatpush.bf16.msra.mxu0 %v1763
      %1786 = vmatpush.bf16.msra.mxu0 %v1760
      %1787 = vmatmul.bf16.gmra.mxu0 %v1404
      %v1788 = vpop.f32.mrf.mxu0
      %v1789 = vadd.f32 0.0, %v1788
      %v1790 = vpop.f32.mrf.mxu0
      %v1791 = vadd.f32 0.0, %v1790
      %1792 = vdwg.mxu0
      %v1793 = vmax.f32 %v1775, %v1789
      %v1794 = vmax.f32 %v1777, %v1791
      %v1795 = vpack.c.bf16 %v1793, %v1793
      %v1796 = vpack.c.bf16 %v1794, %v1794
      %v1798 = vshrl.u32 %v1795, 16
      %v1800 = vrot.slane %v1798, 7
      %v1801 = vshll.u32 %v1795, 16
      %v1803 = vor.u32 %v1800, %v1801
      %v1804 = vrot.slane %v1800, 4
      %v1806 = vshrl.u32 %v1796, 16
      %v1808 = vrot.slane %v1806, 7
      %v1809 = vshll.u32 %v1796, 16
      %v1811 = vor.u32 %v1808, %v1809
      %v1812 = vsel %vm1426, %v1804, %v1811
      %v1815 = vld [vmem:[#allocation4 + $0x3c] sm:$0xf]
      %v1816 = vsel %vm1447, %v1803, %v1815
      %1817 = vst [vmem:[#allocation4 + $0x3c] sm:$0xf] %v1816
      %v1818 = vld [vmem:[#allocation4 + $0x40] sm:$0xf]
      %v1819 = vsel %vm1452, %v1812, %v1818
      %1820 = vst [vmem:[#allocation4 + $0x40] sm:$0xf] %v1819
      %v1821 = vld [vmem:[#allocation2 + $0x150] sm:$0xff]
      %v1822 = vld [vmem:[#allocation2 + $0x158] sm:$0xff]
      %v1823 = vld [vmem:[#allocation2 + $0x160] sm:$0xff]
      %v1824 = vld [vmem:[#allocation2 + $0x168] sm:$0xf]
      %v1825 = vld [vmem:[#allocation2 + $0x16c] sm:$0xff]
      %v1826 = vld [vmem:[#allocation2 + $0x174] sm:$0xff]
      %v1827 = vld [vmem:[#allocation2 + $0x17c] sm:$0xff]
      %v1828 = vld [vmem:[#allocation2 + $0x184] sm:$0xf]
      %v1829 = vmax.f32 %v1821, %v1825
      %v1830 = vmax.f32 %v1822, %v1826
      %v1831 = vmax.f32 %v1823, %v1827
      %v1832 = vmax.f32 %v1824, %v1828
      %v1833 = vpack.c.bf16 %v1830, %v1829
      %v1834 = vpack.c.bf16 %v1832, %v1831
      %v1836 = vsel %vm1385, %v1834, 0
      %1838 = vmatpush.bf16.msra.mxu0 0
      %1839 = vmatpush.bf16.msra.mxu0 0
      %1840 = vmatpush.bf16.msra.mxu0 0
      %1841 = vmatpush.bf16.msra.mxu0 0
      %1842 = vmatpush.bf16.msra.mxu0 0
      %1843 = vmatpush.bf16.msra.mxu0 0
      %1844 = vmatpush.bf16.msra.mxu0 %v1836
      %1845 = vmatpush.bf16.msra.mxu0 %v1833
      %1846 = vmatmul.bf16.gmra.mxu0 %v1383
      %v1847 = vpop.f32.mrf.mxu0
      %v1848 = vadd.f32 0.0, %v1847
      %v1849 = vpop.f32.mrf.mxu0
      %v1850 = vadd.f32 0.0, %v1849
      %1851 = vdwg.mxu0
      %1852 = vmatpush.bf16.msra.mxu0 0
      %1853 = vmatpush.bf16.msra.mxu0 0
      %1854 = vmatpush.bf16.msra.mxu0 0
      %1855 = vmatpush.bf16.msra.mxu0 0
      %1856 = vmatpush.bf16.msra.mxu0 0
      %1857 = vmatpush.bf16.msra.mxu0 0
      %1858 = vmatpush.bf16.msra.mxu0 %v1836
      %1859 = vmatpush.bf16.msra.mxu0 %v1833
      %1860 = vmatmul.bf16.gmra.mxu0 %v1404
      %v1861 = vpop.f32.mrf.mxu0
      %v1862 = vadd.f32 0.0, %v1861
      %v1863 = vpop.f32.mrf.mxu0
      %v1864 = vadd.f32 0.0, %v1863
      %1865 = vdwg.mxu0
      %v1866 = vmax.f32 %v1848, %v1862
      %v1867 = vmax.f32 %v1850, %v1864
      %v1868 = vpack.c.bf16 %v1866, %v1866
      %v1869 = vpack.c.bf16 %v1867, %v1867
      %v1871 = vshrl.u32 %v1868, 16
      %v1873 = vrot.slane %v1871, 7
      %v1874 = vshll.u32 %v1868, 16
      %v1876 = vor.u32 %v1873, %v1874
      %v1877 = vrot.slane %v1873, 4
      %v1879 = vshrl.u32 %v1869, 16
      %v1881 = vrot.slane %v1879, 7
      %v1882 = vshll.u32 %v1869, 16
      %v1884 = vor.u32 %v1881, %v1882
      %v1885 = vsel %vm1426, %v1877, %v1884
      %v1888 = vld [vmem:[#allocation4 + $0x44] sm:$0xf]
      %v1889 = vsel %vm1447, %v1876, %v1888
      %1890 = vst [vmem:[#allocation4 + $0x44] sm:$0xf] %v1889
      %v1891 = vld [vmem:[#allocation4 + $0x48] sm:$0xf]
      %v1892 = vsel %vm1452, %v1885, %v1891
      %1893 = vst [vmem:[#allocation4 + $0x48] sm:$0xf] %v1892
      %v1894 = vld [vmem:[#allocation2 + $0x188] sm:$0xff]
      %v1895 = vld [vmem:[#allocation2 + $0x190] sm:$0xff]
      %v1896 = vld [vmem:[#allocation2 + $0x198] sm:$0xff]
      %v1897 = vld [vmem:[#allocation2 + $0x1a0] sm:$0xf]
      %v1898 = vld [vmem:[#allocation2 + $0x1a4] sm:$0xff]
      %v1899 = vld [vmem:[#allocation2 + $0x1ac] sm:$0xff]
      %v1900 = vld [vmem:[#allocation2 + $0x1b4] sm:$0xff]
      %v1901 = vld [vmem:[#allocation2 + $0x1bc] sm:$0xf]
      %v1902 = vmax.f32 %v1894, %v1898
      %v1903 = vmax.f32 %v1895, %v1899
      %v1904 = vmax.f32 %v1896, %v1900
      %v1905 = vmax.f32 %v1897, %v1901
      %v1906 = vpack.c.bf16 %v1903, %v1902
      %v1907 = vpack.c.bf16 %v1905, %v1904
      %v1909 = vsel %vm1385, %v1907, 0
      %1911 = vmatpush.bf16.msra.mxu0 0
      %1912 = vmatpush.bf16.msra.mxu0 0
      %1913 = vmatpush.bf16.msra.mxu0 0
      %1914 = vmatpush.bf16.msra.mxu0 0
      %1915 = vmatpush.bf16.msra.mxu0 0
      %1916 = vmatpush.bf16.msra.mxu0 0
      %1917 = vmatpush.bf16.msra.mxu0 %v1909
      %1918 = vmatpush.bf16.msra.mxu0 %v1906
      %1919 = vmatmul.bf16.gmra.mxu0 %v1383
      %v1920 = vpop.f32.mrf.mxu0
      %v1921 = vadd.f32 0.0, %v1920
      %v1922 = vpop.f32.mrf.mxu0
      %v1923 = vadd.f32 0.0, %v1922
      %1924 = vdwg.mxu0
      %1925 = vmatpush.bf16.msra.mxu0 0
      %1926 = vmatpush.bf16.msra.mxu0 0
      %1927 = vmatpush.bf16.msra.mxu0 0
      %1928 = vmatpush.bf16.msra.mxu0 0
      %1929 = vmatpush.bf16.msra.mxu0 0
      %1930 = vmatpush.bf16.msra.mxu0 0
      %1931 = vmatpush.bf16.msra.mxu0 %v1909
      %1932 = vmatpush.bf16.msra.mxu0 %v1906
      %1933 = vmatmul.bf16.gmra.mxu0 %v1404
      %v1934 = vpop.f32.mrf.mxu0
      %v1935 = vadd.f32 0.0, %v1934
      %v1936 = vpop.f32.mrf.mxu0
      %v1937 = vadd.f32 0.0, %v1936
      %1938 = vdwg.mxu0
      %v1939 = vmax.f32 %v1921, %v1935
      %v1940 = vmax.f32 %v1923, %v1937
      %v1941 = vpack.c.bf16 %v1939, %v1939
      %v1942 = vpack.c.bf16 %v1940, %v1940
      %v1944 = vshrl.u32 %v1941, 16
      %v1946 = vrot.slane %v1944, 7
      %v1947 = vshll.u32 %v1941, 16
      %v1949 = vor.u32 %v1946, %v1947
      %v1950 = vrot.slane %v1946, 4
      %v1952 = vshrl.u32 %v1942, 16
      %v1954 = vrot.slane %v1952, 7
      %v1955 = vshll.u32 %v1942, 16
      %v1957 = vor.u32 %v1954, %v1955
      %v1958 = vsel %vm1426, %v1950, %v1957
      %v1961 = vld [vmem:[#allocation4 + $0x4c] sm:$0xf]
      %v1962 = vsel %vm1447, %v1949, %v1961
      %1963 = vst [vmem:[#allocation4 + $0x4c] sm:$0xf] %v1962
      %v1964 = vld [vmem:[#allocation4 + $0x50] sm:$0xf]
      %v1965 = vsel %vm1452, %v1958, %v1964
      %1966 = vst [vmem:[#allocation4 + $0x50] sm:$0xf] %v1965
      %v1967 = vld [vmem:[#allocation2 + $0x1c0] sm:$0xff]
      %v1968 = vld [vmem:[#allocation2 + $0x1c8] sm:$0xff]
      %v1969 = vld [vmem:[#allocation2 + $0x1d0] sm:$0xff]
      %v1970 = vld [vmem:[#allocation2 + $0x1d8] sm:$0xf]
      %v1971 = vld [vmem:[#allocation2 + $0x1dc] sm:$0xff]
      %v1972 = vld [vmem:[#allocation2 + $0x1e4] sm:$0xff]
      %v1973 = vld [vmem:[#allocation2 + $0x1ec] sm:$0xff]
      %v1974 = vld [vmem:[#allocation2 + $0x1f4] sm:$0xf]
      %v1975 = vmax.f32 %v1967, %v1971
      %v1976 = vmax.f32 %v1968, %v1972
      %v1977 = vmax.f32 %v1969, %v1973
      %v1978 = vmax.f32 %v1970, %v1974
      %v1979 = vpack.c.bf16 %v1976, %v1975
      %v1980 = vpack.c.bf16 %v1978, %v1977
      %v1982 = vsel %vm1385, %v1980, 0
      %1984 = vmatpush.bf16.msra.mxu0 0
      %1985 = vmatpush.bf16.msra.mxu0 0
      %1986 = vmatpush.bf16.msra.mxu0 0
      %1987 = vmatpush.bf16.msra.mxu0 0
      %1988 = vmatpush.bf16.msra.mxu0 0
      %1989 = vmatpush.bf16.msra.mxu0 0
      %1990 = vmatpush.bf16.msra.mxu0 %v1982
      %1991 = vmatpush.bf16.msra.mxu0 %v1979
      %1992 = vmatmul.bf16.gmra.mxu0 %v1383
      %v1993 = vpop.f32.mrf.mxu0
      %v1994 = vadd.f32 0.0, %v1993
      %v1995 = vpop.f32.mrf.mxu0
      %v1996 = vadd.f32 0.0, %v1995
      %1997 = vdwg.mxu0
      %1998 = vmatpush.bf16.msra.mxu0 0
      %1999 = vmatpush.bf16.msra.mxu0 0
      %2000 = vmatpush.bf16.msra.mxu0 0
      %2001 = vmatpush.bf16.msra.mxu0 0
      %2002 = vmatpush.bf16.msra.mxu0 0
      %2003 = vmatpush.bf16.msra.mxu0 0
      %2004 = vmatpush.bf16.msra.mxu0 %v1982
      %2005 = vmatpush.bf16.msra.mxu0 %v1979
      %2006 = vmatmul.bf16.gmra.mxu0 %v1404
      %v2007 = vpop.f32.mrf.mxu0
      %v2008 = vadd.f32 0.0, %v2007
      %v2009 = vpop.f32.mrf.mxu0
      %v2010 = vadd.f32 0.0, %v2009
      %2011 = vdwg.mxu0
      %v2012 = vmax.f32 %v1994, %v2008
      %v2013 = vmax.f32 %v1996, %v2010
      %v2014 = vpack.c.bf16 %v2012, %v2012
      %v2015 = vpack.c.bf16 %v2013, %v2013
      %v2017 = vshrl.u32 %v2014, 16
      %v2019 = vrot.slane %v2017, 7
      %v2020 = vshll.u32 %v2014, 16
      %v2022 = vor.u32 %v2019, %v2020
      %v2023 = vrot.slane %v2019, 4
      %v2025 = vshrl.u32 %v2015, 16
      %v2027 = vrot.slane %v2025, 7
      %v2028 = vshll.u32 %v2015, 16
      %v2030 = vor.u32 %v2027, %v2028
      %v2031 = vsel %vm1426, %v2023, %v2030
      %v2034 = vld [vmem:[#allocation4 + $0x54] sm:$0xf]
      %v2035 = vsel %vm1447, %v2022, %v2034
      %2036 = vst [vmem:[#allocation4 + $0x54] sm:$0xf] %v2035
      %v2037 = vld [vmem:[#allocation4 + $0x58] sm:$0xf]
      %v2038 = vsel %vm1452, %v2031, %v2037
      %2039 = vst [vmem:[#allocation4 + $0x58] sm:$0xf] %v2038
      %v2040 = vld [vmem:[#allocation2 + $0x1f8] sm:$0xff]
      %v2041 = vld [vmem:[#allocation2 + $0x200] sm:$0xff]
      %v2042 = vld [vmem:[#allocation2 + $0x208] sm:$0xff]
      %v2043 = vld [vmem:[#allocation2 + $0x210] sm:$0xf]
      %v2044 = vld [vmem:[#allocation2 + $0x214] sm:$0xff]
      %v2045 = vld [vmem:[#allocation2 + $0x21c] sm:$0xff]
      %v2046 = vld [vmem:[#allocation2 + $0x224] sm:$0xff]
      %v2047 = vld [vmem:[#allocation2 + $0x22c] sm:$0xf]
      %v2048 = vmax.f32 %v2040, %v2044
      %v2049 = vmax.f32 %v2041, %v2045
      %v2050 = vmax.f32 %v2042, %v2046
      %v2051 = vmax.f32 %v2043, %v2047
      %v2052 = vpack.c.bf16 %v2049, %v2048
      %v2053 = vpack.c.bf16 %v2051, %v2050
      %v2055 = vsel %vm1385, %v2053, 0
      %2057 = vmatpush.bf16.msra.mxu0 0
      %2058 = vmatpush.bf16.msra.mxu0 0
      %2059 = vmatpush.bf16.msra.mxu0 0
      %2060 = vmatpush.bf16.msra.mxu0 0
      %2061 = vmatpush.bf16.msra.mxu0 0
      %2062 = vmatpush.bf16.msra.mxu0 0
      %2063 = vmatpush.bf16.msra.mxu0 %v2055
      %2064 = vmatpush.bf16.msra.mxu0 %v2052
      %2065 = vmatmul.bf16.gmra.mxu0 %v1383
      %v2066 = vpop.f32.mrf.mxu0
      %v2067 = vadd.f32 0.0, %v2066
      %v2068 = vpop.f32.mrf.mxu0
      %v2069 = vadd.f32 0.0, %v2068
      %2070 = vdwg.mxu0
      %2071 = vmatpush.bf16.msra.mxu0 0
      %2072 = vmatpush.bf16.msra.mxu0 0
      %2073 = vmatpush.bf16.msra.mxu0 0
      %2074 = vmatpush.bf16.msra.mxu0 0
      %2075 = vmatpush.bf16.msra.mxu0 0
      %2076 = vmatpush.bf16.msra.mxu0 0
      %2077 = vmatpush.bf16.msra.mxu0 %v2055
      %2078 = vmatpush.bf16.msra.mxu0 %v2052
      %2079 = vmatmul.bf16.gmra.mxu0 %v1404
      %v2080 = vpop.f32.mrf.mxu0
      %v2081 = vadd.f32 0.0, %v2080
      %v2082 = vpop.f32.mrf.mxu0
      %v2083 = vadd.f32 0.0, %v2082
      %2084 = vdwg.mxu0
      %v2085 = vmax.f32 %v2067, %v2081
      %v2086 = vmax.f32 %v2069, %v2083
      %v2087 = vpack.c.bf16 %v2085, %v2085
      %v2088 = vpack.c.bf16 %v2086, %v2086
      %v2090 = vshrl.u32 %v2087, 16
      %v2092 = vrot.slane %v2090, 7
      %v2093 = vshll.u32 %v2087, 16
      %v2095 = vor.u32 %v2092, %v2093
      %v2096 = vrot.slane %v2092, 4
      %v2098 = vshrl.u32 %v2088, 16
      %v2100 = vrot.slane %v2098, 7
      %v2101 = vshll.u32 %v2088, 16
      %v2103 = vor.u32 %v2100, %v2101
      %v2104 = vsel %vm1426, %v2096, %v2103
      %v2107 = vld [vmem:[#allocation4 + $0x5c] sm:$0xf]
      %v2108 = vsel %vm1447, %v2095, %v2107
      %2109 = vst [vmem:[#allocation4 + $0x5c] sm:$0xf] %v2108
      %v2110 = vld [vmem:[#allocation4 + $0x60] sm:$0xf]
      %v2111 = vsel %vm1452, %v2104, %v2110
      %2112 = vst [vmem:[#allocation4 + $0x60] sm:$0xf] %v2111
      %v2113 = vld [vmem:[#allocation2 + $0x230] sm:$0xff]
      %v2114 = vld [vmem:[#allocation2 + $0x238] sm:$0xff]
      %v2115 = vld [vmem:[#allocation2 + $0x240] sm:$0xff]
      %v2116 = vld [vmem:[#allocation2 + $0x248] sm:$0xf]
      %v2117 = vld [vmem:[#allocation2 + $0x24c] sm:$0xff]
      %v2118 = vld [vmem:[#allocation2 + $0x254] sm:$0xff]
      %v2119 = vld [vmem:[#allocation2 + $0x25c] sm:$0xff]
      %v2120 = vld [vmem:[#allocation2 + $0x264] sm:$0xf]
      %v2121 = vmax.f32 %v2113, %v2117
      %v2122 = vmax.f32 %v2114, %v2118
      %v2123 = vmax.f32 %v2115, %v2119
      %v2124 = vmax.f32 %v2116, %v2120
      %v2125 = vpack.c.bf16 %v2122, %v2121
      %v2126 = vpack.c.bf16 %v2124, %v2123
      %v2128 = vsel %vm1385, %v2126, 0
      %2130 = vmatpush.bf16.msra.mxu0 0
      %2131 = vmatpush.bf16.msra.mxu0 0
      %2132 = vmatpush.bf16.msra.mxu0 0
      %2133 = vmatpush.bf16.msra.mxu0 0
      %2134 = vmatpush.bf16.msra.mxu0 0
      %2135 = vmatpush.bf16.msra.mxu0 0
      %2136 = vmatpush.bf16.msra.mxu0 %v2128
      %2137 = vmatpush.bf16.msra.mxu0 %v2125
      %2138 = vmatmul.bf16.gmra.mxu0 %v1383
      %v2139 = vpop.f32.mrf.mxu0
      %v2140 = vadd.f32 0.0, %v2139
      %v2141 = vpop.f32.mrf.mxu0
      %v2142 = vadd.f32 0.0, %v2141
      %2143 = vdwg.mxu0
      %2144 = vmatpush.bf16.msra.mxu0 0
      %2145 = vmatpush.bf16.msra.mxu0 0
      %2146 = vmatpush.bf16.msra.mxu0 0
      %2147 = vmatpush.bf16.msra.mxu0 0
      %2148 = vmatpush.bf16.msra.mxu0 0
      %2149 = vmatpush.bf16.msra.mxu0 0
      %2150 = vmatpush.bf16.msra.mxu0 %v2128
      %2151 = vmatpush.bf16.msra.mxu0 %v2125
      %2152 = vmatmul.bf16.gmra.mxu0 %v1404
      %v2153 = vpop.f32.mrf.mxu0
      %v2154 = vadd.f32 0.0, %v2153
      %v2155 = vpop.f32.mrf.mxu0
      %v2156 = vadd.f32 0.0, %v2155
      %2157 = vdwg.mxu0
      %v2158 = vmax.f32 %v2140, %v2154
      %v2159 = vmax.f32 %v2142, %v2156
      %v2160 = vpack.c.bf16 %v2158, %v2158
      %v2161 = vpack.c.bf16 %v2159, %v2159
      %v2163 = vshrl.u32 %v2160, 16
      %v2165 = vrot.slane %v2163, 7
      %v2166 = vshll.u32 %v2160, 16
      %v2168 = vor.u32 %v2165, %v2166
      %v2169 = vrot.slane %v2165, 4
      %v2171 = vshrl.u32 %v2161, 16
      %v2173 = vrot.slane %v2171, 7
      %v2174 = vshll.u32 %v2161, 16
      %v2176 = vor.u32 %v2173, %v2174
      %v2177 = vsel %vm1426, %v2169, %v2176
      %v2180 = vld [vmem:[#allocation4 + $0x64] sm:$0xf]
      %v2181 = vsel %vm1447, %v2168, %v2180
      %2182 = vst [vmem:[#allocation4 + $0x64] sm:$0xf] %v2181
      %v2183 = vld [vmem:[#allocation4 + $0x68] sm:$0xf]
      %v2184 = vsel %vm1452, %v2177, %v2183
      %2185 = vst [vmem:[#allocation4 + $0x68] sm:$0xf] %v2184
      %v2186 = vld [vmem:[#allocation2 + $0x268] sm:$0xff]
      %v2187 = vld [vmem:[#allocation2 + $0x270] sm:$0xff]
      %v2188 = vld [vmem:[#allocation2 + $0x278] sm:$0xff]
      %v2189 = vld [vmem:[#allocation2 + $0x280] sm:$0xf]
      %v2190 = vld [vmem:[#allocation2 + $0x284] sm:$0xff]
      %v2191 = vld [vmem:[#allocation2 + $0x28c] sm:$0xff]
      %v2192 = vld [vmem:[#allocation2 + $0x294] sm:$0xff]
      %v2193 = vld [vmem:[#allocation2 + $0x29c] sm:$0xf]
      %v2194 = vmax.f32 %v2186, %v2190
      %v2195 = vmax.f32 %v2187, %v2191
      %v2196 = vmax.f32 %v2188, %v2192
      %v2197 = vmax.f32 %v2189, %v2193
      %v2198 = vpack.c.bf16 %v2195, %v2194
      %v2199 = vpack.c.bf16 %v2197, %v2196
      %v2201 = vsel %vm1385, %v2199, 0
      %2203 = vmatpush.bf16.msra.mxu0 0
      %2204 = vmatpush.bf16.msra.mxu0 0
      %2205 = vmatpush.bf16.msra.mxu0 0
      %2206 = vmatpush.bf16.msra.mxu0 0
      %2207 = vmatpush.bf16.msra.mxu0 0
      %2208 = vmatpush.bf16.msra.mxu0 0
      %2209 = vmatpush.bf16.msra.mxu0 %v2201
      %2210 = vmatpush.bf16.msra.mxu0 %v2198
      %2211 = vmatmul.bf16.gmra.mxu0 %v1383
      %v2212 = vpop.f32.mrf.mxu0
      %v2213 = vadd.f32 0.0, %v2212
      %v2214 = vpop.f32.mrf.mxu0
      %v2215 = vadd.f32 0.0, %v2214
      %2216 = vdwg.mxu0
      %2217 = vmatpush.bf16.msra.mxu0 0
      %2218 = vmatpush.bf16.msra.mxu0 0
      %2219 = vmatpush.bf16.msra.mxu0 0
      %2220 = vmatpush.bf16.msra.mxu0 0
      %2221 = vmatpush.bf16.msra.mxu0 0
      %2222 = vmatpush.bf16.msra.mxu0 0
      %2223 = vmatpush.bf16.msra.mxu0 %v2201
      %2224 = vmatpush.bf16.msra.mxu0 %v2198
      %2225 = vmatmul.bf16.gmra.mxu0 %v1404
      %v2226 = vpop.f32.mrf.mxu0
      %v2227 = vadd.f32 0.0, %v2226
      %v2228 = vpop.f32.mrf.mxu0
      %v2229 = vadd.f32 0.0, %v2228
      %2230 = vdwg.mxu0
      %v2231 = vmax.f32 %v2213, %v2227
      %v2232 = vmax.f32 %v2215, %v2229
      %v2233 = vpack.c.bf16 %v2231, %v2231
      %v2234 = vpack.c.bf16 %v2232, %v2232
      %v2236 = vshrl.u32 %v2233, 16
      %v2238 = vrot.slane %v2236, 7
      %v2239 = vshll.u32 %v2233, 16
      %v2241 = vor.u32 %v2238, %v2239
      %v2242 = vrot.slane %v2238, 4
      %v2244 = vshrl.u32 %v2234, 16
      %v2246 = vrot.slane %v2244, 7
      %v2247 = vshll.u32 %v2234, 16
      %v2249 = vor.u32 %v2246, %v2247
      %v2250 = vsel %vm1426, %v2242, %v2249
      %v2253 = vld [vmem:[#allocation4 + $0x6c] sm:$0xf]
      %v2254 = vsel %vm1447, %v2241, %v2253
      %2255 = vst [vmem:[#allocation4 + $0x6c] sm:$0xf] %v2254
      %v2256 = vld [vmem:[#allocation4 + $0x70] sm:$0xf]
      %v2257 = vsel %vm1452, %v2250, %v2256
      %2258 = vst [vmem:[#allocation4 + $0x70] sm:$0xf] %v2257
      %v2259 = vld [vmem:[#allocation2 + $0x2a0] sm:$0xff]
      %v2260 = vld [vmem:[#allocation2 + $0x2a8] sm:$0xff]
      %v2261 = vld [vmem:[#allocation2 + $0x2b0] sm:$0xff]
      %v2262 = vld [vmem:[#allocation2 + $0x2b8] sm:$0xf]
      %v2263 = vld [vmem:[#allocation2 + $0x2bc] sm:$0xff]
      %v2264 = vld [vmem:[#allocation2 + $0x2c4] sm:$0xff]
      %v2265 = vld [vmem:[#allocation2 + $0x2cc] sm:$0xff]
      %v2266 = vld [vmem:[#allocation2 + $0x2d4] sm:$0xf]
      %v2267 = vmax.f32 %v2259, %v2263
      %v2268 = vmax.f32 %v2260, %v2264
      %v2269 = vmax.f32 %v2261, %v2265
      %v2270 = vmax.f32 %v2262, %v2266
      %v2271 = vpack.c.bf16 %v2268, %v2267
      %v2272 = vpack.c.bf16 %v2270, %v2269
      %v2274 = vsel %vm1385, %v2272, 0
      %2276 = vmatpush.bf16.msra.mxu0 0
      %2277 = vmatpush.bf16.msra.mxu0 0
      %2278 = vmatpush.bf16.msra.mxu0 0
      %2279 = vmatpush.bf16.msra.mxu0 0
      %2280 = vmatpush.bf16.msra.mxu0 0
      %2281 = vmatpush.bf16.msra.mxu0 0
      %2282 = vmatpush.bf16.msra.mxu0 %v2274
      %2283 = vmatpush.bf16.msra.mxu0 %v2271
      %2284 = vmatmul.bf16.gmra.mxu0 %v1383
      %v2285 = vpop.f32.mrf.mxu0
      %v2286 = vadd.f32 0.0, %v2285
      %v2287 = vpop.f32.mrf.mxu0
      %v2288 = vadd.f32 0.0, %v2287
      %2289 = vdwg.mxu0
      %2290 = vmatpush.bf16.msra.mxu0 0
      %2291 = vmatpush.bf16.msra.mxu0 0
      %2292 = vmatpush.bf16.msra.mxu0 0
      %2293 = vmatpush.bf16.msra.mxu0 0
      %2294 = vmatpush.bf16.msra.mxu0 0
      %2295 = vmatpush.bf16.msra.mxu0 0
      %2296 = vmatpush.bf16.msra.mxu0 %v2274
      %2297 = vmatpush.bf16.msra.mxu0 %v2271
      %2298 = vmatmul.bf16.gmra.mxu0 %v1404
      %v2299 = vpop.f32.mrf.mxu0
      %v2300 = vadd.f32 0.0, %v2299
      %v2301 = vpop.f32.mrf.mxu0
      %v2302 = vadd.f32 0.0, %v2301
      %2303 = vdwg.mxu0
      %v2304 = vmax.f32 %v2286, %v2300
      %v2305 = vmax.f32 %v2288, %v2302
      %v2306 = vpack.c.bf16 %v2304, %v2304
      %v2307 = vpack.c.bf16 %v2305, %v2305
      %v2309 = vshrl.u32 %v2306, 16
      %v2311 = vrot.slane %v2309, 7
      %v2312 = vshll.u32 %v2306, 16
      %v2314 = vor.u32 %v2311, %v2312
      %v2315 = vrot.slane %v2311, 4
      %v2317 = vshrl.u32 %v2307, 16
      %v2319 = vrot.slane %v2317, 7
      %v2320 = vshll.u32 %v2307, 16
      %v2322 = vor.u32 %v2319, %v2320
      %v2323 = vsel %vm1426, %v2315, %v2322
      %v2326 = vld [vmem:[#allocation4 + $0x74] sm:$0xf]
      %v2327 = vsel %vm1447, %v2314, %v2326
      %2328 = vst [vmem:[#allocation4 + $0x74] sm:$0xf] %v2327
      %v2329 = vld [vmem:[#allocation4 + $0x78] sm:$0xf]
      %v2330 = vsel %vm1452, %v2323, %v2329
      %2331 = vst [vmem:[#allocation4 + $0x78] sm:$0xf] %v2330
      %v2332 = vld [vmem:[#allocation2 + $0x2d8] sm:$0xff]
      %v2333 = vld [vmem:[#allocation2 + $0x2e0] sm:$0xff]
      %v2334 = vld [vmem:[#allocation2 + $0x2e8] sm:$0xff]
      %v2335 = vld [vmem:[#allocation2 + $0x2f0] sm:$0xf]
      %v2336 = vld [vmem:[#allocation2 + $0x2f4] sm:$0xff]
      %v2337 = vld [vmem:[#allocation2 + $0x2fc] sm:$0xff]
      %v2338 = vld [vmem:[#allocation2 + $0x304] sm:$0xff]
      %v2339 = vld [vmem:[#allocation2 + $0x30c] sm:$0xf]
      %v2340 = vmax.f32 %v2332, %v2336
      %v2341 = vmax.f32 %v2333, %v2337
      %v2342 = vmax.f32 %v2334, %v2338
      %v2343 = vmax.f32 %v2335, %v2339
      %v2344 = vpack.c.bf16 %v2341, %v2340
      %v2345 = vpack.c.bf16 %v2343, %v2342
      %v2347 = vsel %vm1385, %v2345, 0
      %2349 = vmatpush.bf16.msra.mxu0 0
      %2350 = vmatpush.bf16.msra.mxu0 0
      %2351 = vmatpush.bf16.msra.mxu0 0
      %2352 = vmatpush.bf16.msra.mxu0 0
      %2353 = vmatpush.bf16.msra.mxu0 0
      %2354 = vmatpush.bf16.msra.mxu0 0
      %2355 = vmatpush.bf16.msra.mxu0 %v2347
      %2356 = vmatpush.bf16.msra.mxu0 %v2344
      %2357 = vmatmul.bf16.gmra.mxu0 %v1383
      %v2358 = vpop.f32.mrf.mxu0
      %v2359 = vadd.f32 0.0, %v2358
      %v2360 = vpop.f32.mrf.mxu0
      %v2361 = vadd.f32 0.0, %v2360
      %2362 = vdwg.mxu0
      %2363 = vmatpush.bf16.msra.mxu0 0
      %2364 = vmatpush.bf16.msra.mxu0 0
      %2365 = vmatpush.bf16.msra.mxu0 0
      %2366 = vmatpush.bf16.msra.mxu0 0
      %2367 = vmatpush.bf16.msra.mxu0 0
      %2368 = vmatpush.bf16.msra.mxu0 0
      %2369 = vmatpush.bf16.msra.mxu0 %v2347
      %2370 = vmatpush.bf16.msra.mxu0 %v2344
      %2371 = vmatmul.bf16.gmra.mxu0 %v1404
      %v2372 = vpop.f32.mrf.mxu0
      %v2373 = vadd.f32 0.0, %v2372
      %v2374 = vpop.f32.mrf.mxu0
      %v2375 = vadd.f32 0.0, %v2374
      %2376 = vdwg.mxu0
      %v2377 = vmax.f32 %v2359, %v2373
      %v2378 = vmax.f32 %v2361, %v2375
      %v2379 = vpack.c.bf16 %v2377, %v2377
      %v2380 = vpack.c.bf16 %v2378, %v2378
      %v2382 = vshrl.u32 %v2379, 16
      %v2384 = vrot.slane %v2382, 7
      %v2385 = vshll.u32 %v2379, 16
      %v2387 = vor.u32 %v2384, %v2385
      %v2388 = vrot.slane %v2384, 4
      %v2390 = vshrl.u32 %v2380, 16
      %v2392 = vrot.slane %v2390, 7
      %v2393 = vshll.u32 %v2380, 16
      %v2395 = vor.u32 %v2392, %v2393
      %v2396 = vsel %vm1426, %v2388, %v2395
      %v2399 = vld [vmem:[#allocation4 + $0x7c] sm:$0xf]
      %v2400 = vsel %vm1447, %v2387, %v2399
      %2401 = vst [vmem:[#allocation4 + $0x7c] sm:$0xf] %v2400
      %v2402 = vld [vmem:[#allocation4 + $0x80] sm:$0xf]
      %v2403 = vsel %vm1452, %v2396, %v2402
      %2404 = vst [vmem:[#allocation4 + $0x80] sm:$0xf] %v2403
      %v2405 = vld [vmem:[#allocation4] sm:$0x8]
      %v2406 = vld [vmem:[#allocation4 + $0x4] sm:$0xf]
      %v2407 = vld [vmem:[#allocation4 + $0x8] sm:$0xf]
      %v2408 = vld [vmem:[#allocation4 + $0xc] sm:$0xf]
      %v2409 = vld [vmem:[#allocation4 + $0x10] sm:$0xf]
      %v2410 = vld [vmem:[#allocation4 + $0x14] sm:$0xf]
      %v2411 = vld [vmem:[#allocation4 + $0x18] sm:$0xf]
      %v2412 = vld [vmem:[#allocation4 + $0x1c] sm:$0xf]
      %v2413 = vld [vmem:[#allocation4 + $0x20] sm:$0xf]
      %v2414 = vld [vmem:[#allocation4 + $0x24] sm:$0xf]
      %v2415 = vld [vmem:[#allocation4 + $0x28] sm:$0xf]
      %v2416 = vld [vmem:[#allocation4 + $0x2c] sm:$0xf]
      %v2417 = vld [vmem:[#allocation4 + $0x30] sm:$0xf]
      %v2418 = vld [vmem:[#allocation4 + $0x34] sm:$0xf]
      %v2419 = vld [vmem:[#allocation4 + $0x38] sm:$0xf]
      %v2420 = vld [vmem:[#allocation4 + $0x3c] sm:$0xf]
      %v2421 = vld [vmem:[#allocation4 + $0x40] sm:$0xf]
      %v2422 = vld [vmem:[#allocation4 + $0x44] sm:$0xf]
      %v2423 = vld [vmem:[#allocation4 + $0x48] sm:$0xf]
      %v2424 = vld [vmem:[#allocation4 + $0x4c] sm:$0xf]
      %v2425 = vld [vmem:[#allocation4 + $0x50] sm:$0xf]
      %v2426 = vld [vmem:[#allocation4 + $0x54] sm:$0xf]
      %v2427 = vld [vmem:[#allocation4 + $0x58] sm:$0xf]
      %v2428 = vld [vmem:[#allocation4 + $0x5c] sm:$0xf]
      %v2429 = vld [vmem:[#allocation4 + $0x60] sm:$0xf]
      %v2430 = vld [vmem:[#allocation4 + $0x64] sm:$0xf]
      %v2431 = vld [vmem:[#allocation4 + $0x68] sm:$0xf]
      %v2432 = vld [vmem:[#allocation4 + $0x6c] sm:$0xf]
      %v2433 = vld [vmem:[#allocation4 + $0x70] sm:$0xf]
      %v2434 = vld [vmem:[#allocation4 + $0x74] sm:$0xf]
      %v2435 = vld [vmem:[#allocation4 + $0x78] sm:$0xf]
      %v2436 = vld [vmem:[#allocation4 + $0x7c] sm:$0xf]
      %v2437 = vld [vmem:[#allocation4 + $0x80] sm:$0xf]
      %v2438 = vld [vmem:[%s3] sm:$0xf]
      %v2439 = vld [vmem:[%s3 + $0x4] sm:$0xf]
      %v2440 = vld [vmem:[%s3 + $0x8] sm:$0xf]
      %v2441 = vld [vmem:[%s3 + $0xc] sm:$0xf]
      %v2442 = vld [vmem:[%s3 + $0x10] sm:$0xf]
      %v2443 = vld [vmem:[%s3 + $0x14] sm:$0xf]
      %v2444 = vld [vmem:[%s3 + $0x18] sm:$0xf]
      %v2445 = vld [vmem:[%s3 + $0x1c] sm:$0xf]
      %v2446 = vld [vmem:[%s3 + $0x20] sm:$0xf]
      %v2447 = vld [vmem:[%s3 + $0x24] sm:$0xf]
      %v2448 = vld [vmem:[%s3 + $0x28] sm:$0xf]
      %v2449 = vld [vmem:[%s3 + $0x2c] sm:$0xf]
      %v2450 = vld [vmem:[%s3 + $0x30] sm:$0xf]
      %v2451 = vld [vmem:[%s3 + $0x34] sm:$0xf]
      %v2452 = vld [vmem:[%s3 + $0x38] sm:$0xf]
      %v2453 = vld [vmem:[%s3 + $0x3c] sm:$0xf]
      %v2454 = vld [vmem:[%s3 + $0x40] sm:$0xf]
      %v2455 = vld [vmem:[%s3 + $0x44] sm:$0xf]
      %v2456 = vld [vmem:[%s3 + $0x48] sm:$0xf]
      %v2457 = vld [vmem:[%s3 + $0x4c] sm:$0xf]
      %v2458 = vld [vmem:[%s3 + $0x50] sm:$0xf]
      %v2459 = vld [vmem:[%s3 + $0x54] sm:$0xf]
      %v2460 = vld [vmem:[%s3 + $0x58] sm:$0xf]
      %v2461 = vld [vmem:[%s3 + $0x5c] sm:$0xf]
      %v2462 = vld [vmem:[%s3 + $0x60] sm:$0xf]
      %v2463 = vld [vmem:[%s3 + $0x64] sm:$0xf]
      %v2464 = vld [vmem:[%s3 + $0x68] sm:$0xf]
      %v2465 = vld [vmem:[%s3 + $0x6c] sm:$0xf]
      %v2466 = vld [vmem:[%s3 + $0x70] sm:$0xf]
      %v2467 = vld [vmem:[%s3 + $0x74] sm:$0xf]
      %v2468 = vld [vmem:[%s3 + $0x78] sm:$0xf]
      %v2469 = vld [vmem:[%s3 + $0x7c] sm:$0xf]
      %v2502 = vunpack.c.l.b16 %v2406
      %v2503 = vunpack.c.l.b16 %v2407
      %v2504 = vunpack.c.l.b16 %v2408
      %v2505 = vunpack.c.l.b16 %v2409
      %v2506 = vunpack.c.l.b16 %v2410
      %v2507 = vunpack.c.l.b16 %v2411
      %v2508 = vunpack.c.l.b16 %v2412
      %v2509 = vunpack.c.l.b16 %v2413
      %v2510 = vunpack.c.l.b16 %v2414
      %v2511 = vunpack.c.l.b16 %v2415
      %v2512 = vunpack.c.l.b16 %v2416
      %v2513 = vunpack.c.l.b16 %v2417
      %v2514 = vunpack.c.l.b16 %v2418
      %v2515 = vunpack.c.l.b16 %v2419
      %v2516 = vunpack.c.l.b16 %v2420
      %v2517 = vunpack.c.l.b16 %v2421
      %v2518 = vunpack.c.l.b16 %v2422
      %v2519 = vunpack.c.l.b16 %v2423
      %v2520 = vunpack.c.l.b16 %v2424
      %v2521 = vunpack.c.l.b16 %v2425
      %v2522 = vunpack.c.l.b16 %v2426
      %v2523 = vunpack.c.l.b16 %v2427
      %v2524 = vunpack.c.l.b16 %v2428
      %v2525 = vunpack.c.l.b16 %v2429
      %v2526 = vunpack.c.l.b16 %v2430
      %v2527 = vunpack.c.l.b16 %v2431
      %v2528 = vunpack.c.l.b16 %v2432
      %v2529 = vunpack.c.l.b16 %v2433
      %v2530 = vunpack.c.l.b16 %v2434
      %v2531 = vunpack.c.l.b16 %v2435
      %v2532 = vunpack.c.l.b16 %v2436
      %v2533 = vunpack.c.l.b16 %v2437
      %v2534 = vpack.c.b16 %v2503, %v2502
      %v2535 = vpack.c.b16 %v2505, %v2504
      %v2536 = vpack.c.b16 %v2507, %v2506
      %v2537 = vpack.c.b16 %v2509, %v2508
      %v2538 = vpack.c.b16 %v2511, %v2510
      %v2539 = vpack.c.b16 %v2513, %v2512
      %v2540 = vpack.c.b16 %v2515, %v2514
      %v2541 = vpack.c.b16 %v2517, %v2516
      %v2542 = vpack.c.b16 %v2519, %v2518
      %v2543 = vpack.c.b16 %v2521, %v2520
      %v2544 = vpack.c.b16 %v2523, %v2522
      %v2545 = vpack.c.b16 %v2525, %v2524
      %v2546 = vpack.c.b16 %v2527, %v2526
      %v2547 = vpack.c.b16 %v2529, %v2528
      %v2548 = vpack.c.b16 %v2531, %v2530
      %v2549 = vpack.c.b16 %v2533, %v2532
      %v2582 = vunpack.c.l.b16 %v2454
      %v2583 = vunpack.c.l.b16 %v2455
      %v2584 = vunpack.c.l.b16 %v2456
      %v2585 = vunpack.c.l.b16 %v2457
      %v2586 = vunpack.c.l.b16 %v2458
      %v2587 = vunpack.c.l.b16 %v2459
      %v2588 = vunpack.c.l.b16 %v2460
      %v2589 = vunpack.c.l.b16 %v2461
      %v2590 = vunpack.c.l.b16 %v2462
      %v2591 = vunpack.c.l.b16 %v2463
      %v2592 = vunpack.c.l.b16 %v2464
      %v2593 = vunpack.c.l.b16 %v2465
      %v2594 = vunpack.c.l.b16 %v2466
      %v2595 = vunpack.c.l.b16 %v2467
      %v2596 = vunpack.c.l.b16 %v2468
      %v2597 = vunpack.c.l.b16 %v2469
      %v2598 = vpack.c.b16 %v2583, %v2582
      %v2599 = vpack.c.b16 %v2585, %v2584
      %v2600 = vpack.c.b16 %v2587, %v2586
      %v2601 = vpack.c.b16 %v2589, %v2588
      %v2602 = vpack.c.b16 %v2591, %v2590
      %v2603 = vpack.c.b16 %v2593, %v2592
      %v2604 = vpack.c.b16 %v2595, %v2594
      %v2605 = vpack.c.b16 %v2597, %v2596
      %2614 = vmatpush.bf16.msra.mxu0 %v2605
      %2615 = vmatpush.bf16.msra.mxu0 %v2604
      %2616 = vmatpush.bf16.msra.mxu0 %v2603
      %2617 = vmatpush.bf16.msra.mxu0 %v2602
      %2618 = vmatpush.bf16.msra.mxu0 %v2601
      %2619 = vmatpush.bf16.msra.mxu0 %v2600
      %2620 = vmatpush.bf16.msra.mxu0 %v2599
      %2621 = vmatpush.bf16.msra.mxu0 %v2598
      %2622 = vmatmul.bf16.gmra.mxu0 %v2534
      %v2623 = vpop.f32.mrf.mxu0
      %v2624 = vadd.f32 0.0, %v2623
      %v2625 = vpop.f32.mrf.mxu0
      %v2626 = vadd.f32 0.0, %v2625
      %2627 = vmatmul.bf16.gmra.mxu0 %v2535
      %v2628 = vpop.f32.mrf.mxu0
      %v2629 = vadd.f32 0.0, %v2628
      %v2630 = vpop.f32.mrf.mxu0
      %v2631 = vadd.f32 0.0, %v2630
      %2632 = vmatmul.bf16.gmra.mxu0 %v2536
      %v2633 = vpop.f32.mrf.mxu0
      %v2634 = vadd.f32 0.0, %v2633
      %v2635 = vpop.f32.mrf.mxu0
      %v2636 = vadd.f32 0.0, %v2635
      %2637 = vmatmul.bf16.gmra.mxu0 %v2537
      %v2638 = vpop.f32.mrf.mxu0
      %v2639 = vadd.f32 0.0, %v2638
      %v2640 = vpop.f32.mrf.mxu0
      %v2641 = vadd.f32 0.0, %v2640
      %2642 = vmatmul.bf16.gmra.mxu0 %v2538
      %v2643 = vpop.f32.mrf.mxu0
      %v2644 = vadd.f32 0.0, %v2643
      %v2645 = vpop.f32.mrf.mxu0
      %v2646 = vadd.f32 0.0, %v2645
      %2647 = vmatmul.bf16.gmra.mxu0 %v2539
      %v2648 = vpop.f32.mrf.mxu0
      %v2649 = vadd.f32 0.0, %v2648
      %v2650 = vpop.f32.mrf.mxu0
      %v2651 = vadd.f32 0.0, %v2650
      %2652 = vmatmul.bf16.gmra.mxu0 %v2540
      %v2653 = vpop.f32.mrf.mxu0
      %v2654 = vadd.f32 0.0, %v2653
      %v2655 = vpop.f32.mrf.mxu0
      %v2656 = vadd.f32 0.0, %v2655
      %2657 = vmatmul.bf16.gmra.mxu0 %v2541
      %v2658 = vpop.f32.mrf.mxu0
      %v2659 = vadd.f32 0.0, %v2658
      %v2660 = vpop.f32.mrf.mxu0
      %v2661 = vadd.f32 0.0, %v2660
      %2662 = vmatmul.bf16.gmra.mxu0 %v2542
      %v2663 = vpop.f32.mrf.mxu0
      %v2664 = vadd.f32 0.0, %v2663
      %v2665 = vpop.f32.mrf.mxu0
      %v2666 = vadd.f32 0.0, %v2665
      %2667 = vmatmul.bf16.gmra.mxu0 %v2543
      %v2668 = vpop.f32.mrf.mxu0
      %v2669 = vadd.f32 0.0, %v2668
      %v2670 = vpop.f32.mrf.mxu0
      %v2671 = vadd.f32 0.0, %v2670
      %2672 = vmatmul.bf16.gmra.mxu0 %v2544
      %v2673 = vpop.f32.mrf.mxu0
      %v2674 = vadd.f32 0.0, %v2673
      %v2675 = vpop.f32.mrf.mxu0
      %v2676 = vadd.f32 0.0, %v2675
      %2677 = vmatmul.bf16.gmra.mxu0 %v2545
      %v2678 = vpop.f32.mrf.mxu0
      %v2679 = vadd.f32 0.0, %v2678
      %v2680 = vpop.f32.mrf.mxu0
      %v2681 = vadd.f32 0.0, %v2680
      %2682 = vmatmul.bf16.gmra.mxu0 %v2546
      %v2683 = vpop.f32.mrf.mxu0
      %v2684 = vadd.f32 0.0, %v2683
      %v2685 = vpop.f32.mrf.mxu0
      %v2686 = vadd.f32 0.0, %v2685
      %2687 = vmatmul.bf16.gmra.mxu0 %v2547
      %v2688 = vpop.f32.mrf.mxu0
      %v2689 = vadd.f32 0.0, %v2688
      %v2690 = vpop.f32.mrf.mxu0
      %v2691 = vadd.f32 0.0, %v2690
      %2692 = vmatmul.bf16.gmra.mxu0 %v2548
      %v2693 = vpop.f32.mrf.mxu0
      %v2694 = vadd.f32 0.0, %v2693
      %v2695 = vpop.f32.mrf.mxu0
      %v2696 = vadd.f32 0.0, %v2695
      %2697 = vmatmul.bf16.gmra.mxu0 %v2549
      %v2698 = vpop.f32.mrf.mxu0
      %v2699 = vadd.f32 0.0, %v2698
      %v2700 = vpop.f32.mrf.mxu0
      %v2701 = vadd.f32 0.0, %v2700
      %2702 = vdwg.mxu0
      %v2704 = vunpack.c.l.b16 %v2405
      %v2705 = vpack.c.b16 %v2502, %v2704
      %v2706 = vpack.c.b16 %v2504, %v2503
      %v2707 = vpack.c.b16 %v2506, %v2505
      %v2708 = vpack.c.b16 %v2508, %v2507
      %v2709 = vpack.c.b16 %v2510, %v2509
      %v2710 = vpack.c.b16 %v2512, %v2511
      %v2711 = vpack.c.b16 %v2514, %v2513
      %v2712 = vpack.c.b16 %v2516, %v2515
      %v2713 = vpack.c.b16 %v2518, %v2517
      %v2714 = vpack.c.b16 %v2520, %v2519
      %v2715 = vpack.c.b16 %v2522, %v2521
      %v2716 = vpack.c.b16 %v2524, %v2523
      %v2717 = vpack.c.b16 %v2526, %v2525
      %v2718 = vpack.c.b16 %v2528, %v2527
      %v2719 = vpack.c.b16 %v2530, %v2529
      %v2720 = vpack.c.b16 %v2532, %v2531
      %v2721 = vpack.c.b16 %v2533, %v2533
      %vm2722 = vsmask.f32 4352
      %v2724 = vshrl.u32 %v2705, 16
      %v2726 = vrot.slane %v2724, 3
      %v2727 = vshll.u32 %v2705, 16
      %v2729 = vrot.slane %v2727, 4
      %v2730 = vor.u32 %v2726, %v2729
      %v2732 = vshrl.u32 %v2706, 16
      %v2734 = vrot.slane %v2732, 3
      %v2735 = vshll.u32 %v2706, 16
      %v2737 = vrot.slane %v2735, 4
      %v2738 = vor.u32 %v2734, %v2737
      %v2739 = vsel %vm2722, %v2730, %v2738
      %v2741 = vshrl.u32 %v2707, 16
      %v2743 = vrot.slane %v2741, 3
      %v2744 = vshll.u32 %v2707, 16
      %v2746 = vrot.slane %v2744, 4
      %v2747 = vor.u32 %v2743, %v2746
      %v2748 = vsel %vm2722, %v2738, %v2747
      %v2750 = vshrl.u32 %v2708, 16
      %v2752 = vrot.slane %v2750, 3
      %v2753 = vshll.u32 %v2708, 16
      %v2755 = vrot.slane %v2753, 4
      %v2756 = vor.u32 %v2752, %v2755
      %v2757 = vsel %vm2722, %v2747, %v2756
      %v2759 = vshrl.u32 %v2709, 16
      %v2761 = vrot.slane %v2759, 3
      %v2762 = vshll.u32 %v2709, 16
      %v2764 = vrot.slane %v2762, 4
      %v2765 = vor.u32 %v2761, %v2764
      %v2766 = vsel %vm2722, %v2756, %v2765
      %v2768 = vshrl.u32 %v2710, 16
      %v2770 = vrot.slane %v2768, 3
      %v2771 = vshll.u32 %v2710, 16
      %v2773 = vrot.slane %v2771, 4
      %v2774 = vor.u32 %v2770, %v2773
      %v2775 = vsel %vm2722, %v2765, %v2774
      %v2777 = vshrl.u32 %v2711, 16
      %v2779 = vrot.slane %v2777, 3
      %v2780 = vshll.u32 %v2711, 16
      %v2782 = vrot.slane %v2780, 4
      %v2783 = vor.u32 %v2779, %v2782
      %v2784 = vsel %vm2722, %v2774, %v2783
      %v2786 = vshrl.u32 %v2712, 16
      %v2788 = vrot.slane %v2786, 3
      %v2789 = vshll.u32 %v2712, 16
      %v2791 = vrot.slane %v2789, 4
      %v2792 = vor.u32 %v2788, %v2791
      %v2793 = vsel %vm2722, %v2783, %v2792
      %v2795 = vshrl.u32 %v2713, 16
      %v2797 = vrot.slane %v2795, 3
      %v2798 = vshll.u32 %v2713, 16
      %v2800 = vrot.slane %v2798, 4
      %v2801 = vor.u32 %v2797, %v2800
      %v2802 = vsel %vm2722, %v2792, %v2801
      %v2804 = vshrl.u32 %v2714, 16
      %v2806 = vrot.slane %v2804, 3
      %v2807 = vshll.u32 %v2714, 16
      %v2809 = vrot.slane %v2807, 4
      %v2810 = vor.u32 %v2806, %v2809
      %v2811 = vsel %vm2722, %v2801, %v2810
      %v2813 = vshrl.u32 %v2715, 16
      %v2815 = vrot.slane %v2813, 3
      %v2816 = vshll.u32 %v2715, 16
      %v2818 = vrot.slane %v2816, 4
      %v2819 = vor.u32 %v2815, %v2818
      %v2820 = vsel %vm2722, %v2810, %v2819
      %v2822 = vshrl.u32 %v2716, 16
      %v2824 = vrot.slane %v2822, 3
      %v2825 = vshll.u32 %v2716, 16
      %v2827 = vrot.slane %v2825, 4
      %v2828 = vor.u32 %v2824, %v2827
      %v2829 = vsel %vm2722, %v2819, %v2828
      %v2831 = vshrl.u32 %v2717, 16
      %v2833 = vrot.slane %v2831, 3
      %v2834 = vshll.u32 %v2717, 16
      %v2836 = vrot.slane %v2834, 4
      %v2837 = vor.u32 %v2833, %v2836
      %v2838 = vsel %vm2722, %v2828, %v2837
      %v2840 = vshrl.u32 %v2718, 16
      %v2842 = vrot.slane %v2840, 3
      %v2843 = vshll.u32 %v2718, 16
      %v2845 = vrot.slane %v2843, 4
      %v2846 = vor.u32 %v2842, %v2845
      %v2847 = vsel %vm2722, %v2837, %v2846
      %v2849 = vshrl.u32 %v2719, 16
      %v2851 = vrot.slane %v2849, 3
      %v2852 = vshll.u32 %v2719, 16
      %v2854 = vrot.slane %v2852, 4
      %v2855 = vor.u32 %v2851, %v2854
      %v2856 = vsel %vm2722, %v2846, %v2855
      %v2858 = vshrl.u32 %v2720, 16
      %v2860 = vrot.slane %v2858, 3
      %v2861 = vshll.u32 %v2720, 16
      %v2863 = vrot.slane %v2861, 4
      %v2864 = vor.u32 %v2860, %v2863
      %v2865 = vsel %vm2722, %v2855, %v2864
      %v2867 = vshrl.u32 %v2721, 16
      %v2869 = vrot.slane %v2867, 3
      %v2870 = vshll.u32 %v2721, 16
      %v2872 = vrot.slane %v2870, 4
      %v2873 = vor.u32 %v2869, %v2872
      %v2874 = vsel %vm2722, %v2864, %v2873
      %v2907 = vunpack.c.l.b16 %v2438
      %v2908 = vunpack.c.l.b16 %v2439
      %v2909 = vunpack.c.l.b16 %v2440
      %v2910 = vunpack.c.l.b16 %v2441
      %v2911 = vunpack.c.l.b16 %v2442
      %v2912 = vunpack.c.l.b16 %v2443
      %v2913 = vunpack.c.l.b16 %v2444
      %v2914 = vunpack.c.l.b16 %v2445
      %v2915 = vunpack.c.l.b16 %v2446
      %v2916 = vunpack.c.l.b16 %v2447
      %v2917 = vunpack.c.l.b16 %v2448
      %v2918 = vunpack.c.l.b16 %v2449
      %v2919 = vunpack.c.l.b16 %v2450
      %v2920 = vunpack.c.l.b16 %v2451
      %v2921 = vunpack.c.l.b16 %v2452
      %v2922 = vunpack.c.l.b16 %v2453
      %v2923 = vpack.c.b16 %v2908, %v2907
      %v2924 = vpack.c.b16 %v2910, %v2909
      %v2925 = vpack.c.b16 %v2912, %v2911
      %v2926 = vpack.c.b16 %v2914, %v2913
      %v2927 = vpack.c.b16 %v2916, %v2915
      %v2928 = vpack.c.b16 %v2918, %v2917
      %v2929 = vpack.c.b16 %v2920, %v2919
      %v2930 = vpack.c.b16 %v2922, %v2921
      %2939 = vmatpush.bf16.msra.mxu0 %v2930
      %2940 = vmatpush.bf16.msra.mxu0 %v2929
      %2941 = vmatpush.bf16.msra.mxu0 %v2928
      %2942 = vmatpush.bf16.msra.mxu0 %v2927
      %2943 = vmatpush.bf16.msra.mxu0 %v2926
      %2944 = vmatpush.bf16.msra.mxu0 %v2925
      %2945 = vmatpush.bf16.msra.mxu0 %v2924
      %2946 = vmatpush.bf16.msra.mxu0 %v2923
      %2947 = vmatmul.bf16.gmra.mxu0 %v2739
      %v2948 = vpop.f32.mrf.mxu0
      %v2949 = vadd.f32 %v2624, %v2948
      %v2950 = vpop.f32.mrf.mxu0
      %v2951 = vadd.f32 %v2626, %v2950
      %2952 = vmatmul.bf16.gmra.mxu0 %v2748
      %v2953 = vpop.f32.mrf.mxu0
      %v2954 = vadd.f32 %v2629, %v2953
      %v2955 = vpop.f32.mrf.mxu0
      %v2956 = vadd.f32 %v2631, %v2955
      %2957 = vmatmul.bf16.gmra.mxu0 %v2757
      %v2958 = vpop.f32.mrf.mxu0
      %v2959 = vadd.f32 %v2634, %v2958
      %v2960 = vpop.f32.mrf.mxu0
      %v2961 = vadd.f32 %v2636, %v2960
      %2962 = vmatmul.bf16.gmra.mxu0 %v2766
      %v2963 = vpop.f32.mrf.mxu0
      %v2964 = vadd.f32 %v2639, %v2963
      %v2965 = vpop.f32.mrf.mxu0
      %v2966 = vadd.f32 %v2641, %v2965
      %2967 = vmatmul.bf16.gmra.mxu0 %v2775
      %v2968 = vpop.f32.mrf.mxu0
      %v2969 = vadd.f32 %v2644, %v2968
      %v2970 = vpop.f32.mrf.mxu0
      %v2971 = vadd.f32 %v2646, %v2970
      %2972 = vmatmul.bf16.gmra.mxu0 %v2784
      %v2973 = vpop.f32.mrf.mxu0
      %v2974 = vadd.f32 %v2649, %v2973
      %v2975 = vpop.f32.mrf.mxu0
      %v2976 = vadd.f32 %v2651, %v2975
      %2977 = vmatmul.bf16.gmra.mxu0 %v2793
      %v2978 = vpop.f32.mrf.mxu0
      %v2979 = vadd.f32 %v2654, %v2978
      %v2980 = vpop.f32.mrf.mxu0
      %v2981 = vadd.f32 %v2656, %v2980
      %2982 = vmatmul.bf16.gmra.mxu0 %v2802
      %v2983 = vpop.f32.mrf.mxu0
      %v2984 = vadd.f32 %v2659, %v2983
      %v2985 = vpop.f32.mrf.mxu0
      %v2986 = vadd.f32 %v2661, %v2985
      %2987 = vmatmul.bf16.gmra.mxu0 %v2811
      %v2988 = vpop.f32.mrf.mxu0
      %v2989 = vadd.f32 %v2664, %v2988
      %v2990 = vpop.f32.mrf.mxu0
      %v2991 = vadd.f32 %v2666, %v2990
      %2992 = vmatmul.bf16.gmra.mxu0 %v2820
      %v2993 = vpop.f32.mrf.mxu0
      %v2994 = vadd.f32 %v2669, %v2993
      %v2995 = vpop.f32.mrf.mxu0
      %v2996 = vadd.f32 %v2671, %v2995
      %2997 = vmatmul.bf16.gmra.mxu0 %v2829
      %v2998 = vpop.f32.mrf.mxu0
      %v2999 = vadd.f32 %v2674, %v2998
      %v3000 = vpop.f32.mrf.mxu0
      %v3001 = vadd.f32 %v2676, %v3000
      %3002 = vmatmul.bf16.gmra.mxu0 %v2838
      %v3003 = vpop.f32.mrf.mxu0
      %v3004 = vadd.f32 %v2679, %v3003
      %v3005 = vpop.f32.mrf.mxu0
      %v3006 = vadd.f32 %v2681, %v3005
      %3007 = vmatmul.bf16.gmra.mxu0 %v2847
      %v3008 = vpop.f32.mrf.mxu0
      %v3009 = vadd.f32 %v2684, %v3008
      %v3010 = vpop.f32.mrf.mxu0
      %v3011 = vadd.f32 %v2686, %v3010
      %3012 = vmatmul.bf16.gmra.mxu0 %v2856
      %v3013 = vpop.f32.mrf.mxu0
      %v3014 = vadd.f32 %v2689, %v3013
      %v3015 = vpop.f32.mrf.mxu0
      %v3016 = vadd.f32 %v2691, %v3015
      %3017 = vmatmul.bf16.gmra.mxu0 %v2865
      %v3018 = vpop.f32.mrf.mxu0
      %v3019 = vadd.f32 %v2694, %v3018
      %v3020 = vpop.f32.mrf.mxu0
      %v3021 = vadd.f32 %v2696, %v3020
      %3022 = vmatmul.bf16.gmra.mxu0 %v2874
      %v3023 = vpop.f32.mrf.mxu0
      %v3024 = vadd.f32 %v2699, %v3023
      %v3025 = vpop.f32.mrf.mxu0
      %v3026 = vadd.f32 %v2701, %v3025
      %3027 = vdwg.mxu0
      %v3028 = vld [vmem:[#allocation4 + $0x4] sm:$0xf]
      %v3029 = vld [vmem:[#allocation4 + $0x8] sm:$0xf]
      %v3030 = vld [vmem:[#allocation4 + $0xc] sm:$0xf]
      %v3031 = vld [vmem:[#allocation4 + $0x10] sm:$0xf]
      %v3032 = vld [vmem:[#allocation4 + $0x14] sm:$0xf]
      %v3033 = vld [vmem:[#allocation4 + $0x18] sm:$0xf]
      %v3034 = vld [vmem:[#allocation4 + $0x1c] sm:$0xf]
      %v3035 = vld [vmem:[#allocation4 + $0x20] sm:$0xf]
      %v3036 = vld [vmem:[#allocation4 + $0x24] sm:$0xf]
      %v3037 = vld [vmem:[#allocation4 + $0x28] sm:$0xf]
      %v3038 = vld [vmem:[#allocation4 + $0x2c] sm:$0xf]
      %v3039 = vld [vmem:[#allocation4 + $0x30] sm:$0xf]
      %v3040 = vld [vmem:[#allocation4 + $0x34] sm:$0xf]
      %v3041 = vld [vmem:[#allocation4 + $0x38] sm:$0xf]
      %v3042 = vld [vmem:[#allocation4 + $0x3c] sm:$0xf]
      %v3043 = vld [vmem:[#allocation4 + $0x40] sm:$0xf]
      %v3044 = vld [vmem:[#allocation4 + $0x44] sm:$0xf]
      %v3045 = vld [vmem:[#allocation4 + $0x48] sm:$0xf]
      %v3046 = vld [vmem:[#allocation4 + $0x4c] sm:$0xf]
      %v3047 = vld [vmem:[#allocation4 + $0x50] sm:$0xf]
      %v3048 = vld [vmem:[#allocation4 + $0x54] sm:$0xf]
      %v3049 = vld [vmem:[#allocation4 + $0x58] sm:$0xf]
      %v3050 = vld [vmem:[#allocation4 + $0x5c] sm:$0xf]
      %v3051 = vld [vmem:[#allocation4 + $0x60] sm:$0xf]
      %v3052 = vld [vmem:[#allocation4 + $0x64] sm:$0xf]
      %v3053 = vld [vmem:[#allocation4 + $0x68] sm:$0xf]
      %v3054 = vld [vmem:[#allocation4 + $0x6c] sm:$0xf]
      %v3055 = vld [vmem:[#allocation4 + $0x70] sm:$0xf]
      %v3056 = vld [vmem:[#allocation4 + $0x74] sm:$0xf]
      %v3057 = vld [vmem:[#allocation4 + $0x78] sm:$0xf]
      %v3058 = vld [vmem:[#allocation4 + $0x7c] sm:$0xf]
      %v3059 = vld [vmem:[#allocation4 + $0x80] sm:$0xf]
      %v3060 = vld [vmem:[#allocation4 + $0x84] sm:$0x1]
      %v3061 = vld [vmem:[%s3 + $0x80] sm:$0xf]
      %v3062 = vld [vmem:[%s3 + $0x84] sm:$0xf]
      %v3063 = vld [vmem:[%s3 + $0x88] sm:$0xf]
      %v3064 = vld [vmem:[%s3 + $0x8c] sm:$0xf]
      %v3065 = vld [vmem:[%s3 + $0x90] sm:$0xf]
      %v3066 = vld [vmem:[%s3 + $0x94] sm:$0xf]
      %v3067 = vld [vmem:[%s3 + $0x98] sm:$0xf]
      %v3068 = vld [vmem:[%s3 + $0x9c] sm:$0xf]
      %v3069 = vld [vmem:[%s3 + $0xa0] sm:$0xf]
      %v3070 = vld [vmem:[%s3 + $0xa4] sm:$0xf]
      %v3071 = vld [vmem:[%s3 + $0xa8] sm:$0xf]
      %v3072 = vld [vmem:[%s3 + $0xac] sm:$0xf]
      %v3073 = vld [vmem:[%s3 + $0xb0] sm:$0xf]
      %v3074 = vld [vmem:[%s3 + $0xb4] sm:$0xf]
      %v3075 = vld [vmem:[%s3 + $0xb8] sm:$0xf]
      %v3076 = vld [vmem:[%s3 + $0xbc] sm:$0xf]
      %v3110 = vunpack.c.l.b16 %v3028
      %v3111 = vunpack.c.l.b16 %v3029
      %v3112 = vunpack.c.l.b16 %v3030
      %v3113 = vunpack.c.l.b16 %v3031
      %v3114 = vunpack.c.l.b16 %v3032
      %v3115 = vunpack.c.l.b16 %v3033
      %v3116 = vunpack.c.l.b16 %v3034
      %v3117 = vunpack.c.l.b16 %v3035
      %v3118 = vunpack.c.l.b16 %v3036
      %v3119 = vunpack.c.l.b16 %v3037
      %v3120 = vunpack.c.l.b16 %v3038
      %v3121 = vunpack.c.l.b16 %v3039
      %v3122 = vunpack.c.l.b16 %v3040
      %v3123 = vunpack.c.l.b16 %v3041
      %v3124 = vunpack.c.l.b16 %v3042
      %v3125 = vunpack.c.l.b16 %v3043
      %v3126 = vunpack.c.l.b16 %v3044
      %v3127 = vunpack.c.l.b16 %v3045
      %v3128 = vunpack.c.l.b16 %v3046
      %v3129 = vunpack.c.l.b16 %v3047
      %v3130 = vunpack.c.l.b16 %v3048
      %v3131 = vunpack.c.l.b16 %v3049
      %v3132 = vunpack.c.l.b16 %v3050
      %v3133 = vunpack.c.l.b16 %v3051
      %v3134 = vunpack.c.l.b16 %v3052
      %v3135 = vunpack.c.l.b16 %v3053
      %v3136 = vunpack.c.l.b16 %v3054
      %v3137 = vunpack.c.l.b16 %v3055
      %v3138 = vunpack.c.l.b16 %v3056
      %v3139 = vunpack.c.l.b16 %v3057
      %v3140 = vunpack.c.l.b16 %v3058
      %v3141 = vunpack.c.l.b16 %v3059
      %v3142 = vunpack.c.l.b16 %v3060
      %v3143 = vpack.c.b16 %v3111, %v3110
      %v3144 = vpack.c.b16 %v3113, %v3112
      %v3145 = vpack.c.b16 %v3115, %v3114
      %v3146 = vpack.c.b16 %v3117, %v3116
      %v3147 = vpack.c.b16 %v3119, %v3118
      %v3148 = vpack.c.b16 %v3121, %v3120
      %v3149 = vpack.c.b16 %v3123, %v3122
      %v3150 = vpack.c.b16 %v3125, %v3124
      %v3151 = vpack.c.b16 %v3127, %v3126
      %v3152 = vpack.c.b16 %v3129, %v3128
      %v3153 = vpack.c.b16 %v3131, %v3130
      %v3154 = vpack.c.b16 %v3133, %v3132
      %v3155 = vpack.c.b16 %v3135, %v3134
      %v3156 = vpack.c.b16 %v3137, %v3136
      %v3157 = vpack.c.b16 %v3139, %v3138
      %v3158 = vpack.c.b16 %v3141, %v3140
      %v3159 = vpack.c.b16 %v3142, %v3142
      %vm3160 = vsmask.f32 7424
      %v3162 = vshrl.u32 %v3143, 16
      %v3164 = vshll.u32 %v3143, 16
      %v3166 = vrot.slane %v3164, 1
      %v3167 = vor.u32 %v3162, %v3166
      %v3169 = vshll.u32 %v3144, 16
      %v3171 = vrot.slane %v3169, 1
      %v3172 = vsel %vm3160, %v3167, %v3171
      %v3173 = vshrl.u32 %v3144, 16
      %v3175 = vor.u32 %v3173, %v3171
      %v3177 = vshll.u32 %v3145, 16
      %v3179 = vrot.slane %v3177, 1
      %v3180 = vsel %vm3160, %v3175, %v3179
      %v3181 = vshrl.u32 %v3145, 16
      %v3183 = vor.u32 %v3181, %v3179
      %v3185 = vshll.u32 %v3146, 16
      %v3187 = vrot.slane %v3185, 1
      %v3188 = vsel %vm3160, %v3183, %v3187
      %v3189 = vshrl.u32 %v3146, 16
      %v3191 = vor.u32 %v3189, %v3187
      %v3193 = vshll.u32 %v3147, 16
      %v3195 = vrot.slane %v3193, 1
      %v3196 = vsel %vm3160, %v3191, %v3195
      %v3197 = vshrl.u32 %v3147, 16
      %v3199 = vor.u32 %v3197, %v3195
      %v3201 = vshll.u32 %v3148, 16
      %v3203 = vrot.slane %v3201, 1
      %v3204 = vsel %vm3160, %v3199, %v3203
      %v3205 = vshrl.u32 %v3148, 16
      %v3207 = vor.u32 %v3205, %v3203
      %v3209 = vshll.u32 %v3149, 16
      %v3211 = vrot.slane %v3209, 1
      %v3212 = vsel %vm3160, %v3207, %v3211
      %v3213 = vshrl.u32 %v3149, 16
      %v3215 = vor.u32 %v3213, %v3211
      %v3217 = vshll.u32 %v3150, 16
      %v3219 = vrot.slane %v3217, 1
      %v3220 = vsel %vm3160, %v3215, %v3219
      %v3221 = vshrl.u32 %v3150, 16
      %v3223 = vor.u32 %v3221, %v3219
      %v3225 = vshll.u32 %v3151, 16
      %v3227 = vrot.slane %v3225, 1
      %v3228 = vsel %vm3160, %v3223, %v3227
      %v3229 = vshrl.u32 %v3151, 16
      %v3231 = vor.u32 %v3229, %v3227
      %v3233 = vshll.u32 %v3152, 16
      %v3235 = vrot.slane %v3233, 1
      %v3236 = vsel %vm3160, %v3231, %v3235
      %v3237 = vshrl.u32 %v3152, 16
      %v3239 = vor.u32 %v3237, %v3235
      %v3241 = vshll.u32 %v3153, 16
      %v3243 = vrot.slane %v3241, 1
      %v3244 = vsel %vm3160, %v3239, %v3243
      %v3245 = vshrl.u32 %v3153, 16
      %v3247 = vor.u32 %v3245, %v3243
      %v3249 = vshll.u32 %v3154, 16
      %v3251 = vrot.slane %v3249, 1
      %v3252 = vsel %vm3160, %v3247, %v3251
      %v3253 = vshrl.u32 %v3154, 16
      %v3255 = vor.u32 %v3253, %v3251
      %v3257 = vshll.u32 %v3155, 16
      %v3259 = vrot.slane %v3257, 1
      %v3260 = vsel %vm3160, %v3255, %v3259
      %v3261 = vshrl.u32 %v3155, 16
      %v3263 = vor.u32 %v3261, %v3259
      %v3265 = vshll.u32 %v3156, 16
      %v3267 = vrot.slane %v3265, 1
      %v3268 = vsel %vm3160, %v3263, %v3267
      %v3269 = vshrl.u32 %v3156, 16
      %v3271 = vor.u32 %v3269, %v3267
      %v3273 = vshll.u32 %v3157, 16
      %v3275 = vrot.slane %v3273, 1
      %v3276 = vsel %vm3160, %v3271, %v3275
      %v3277 = vshrl.u32 %v3157, 16
      %v3279 = vor.u32 %v3277, %v3275
      %v3281 = vshll.u32 %v3158, 16
      %v3283 = vrot.slane %v3281, 1
      %v3284 = vsel %vm3160, %v3279, %v3283
      %v3285 = vshrl.u32 %v3158, 16
      %v3287 = vor.u32 %v3285, %v3283
      %v3289 = vshll.u32 %v3159, 16
      %v3291 = vrot.slane %v3289, 1
      %v3292 = vsel %vm3160, %v3287, %v3291
      %v3325 = vunpack.c.l.b16 %v3061
      %v3326 = vunpack.c.l.b16 %v3062
      %v3327 = vunpack.c.l.b16 %v3063
      %v3328 = vunpack.c.l.b16 %v3064
      %v3329 = vunpack.c.l.b16 %v3065
      %v3330 = vunpack.c.l.b16 %v3066
      %v3331 = vunpack.c.l.b16 %v3067
      %v3332 = vunpack.c.l.b16 %v3068
      %v3333 = vunpack.c.l.b16 %v3069
      %v3334 = vunpack.c.l.b16 %v3070
      %v3335 = vunpack.c.l.b16 %v3071
      %v3336 = vunpack.c.l.b16 %v3072
      %v3337 = vunpack.c.l.b16 %v3073
      %v3338 = vunpack.c.l.b16 %v3074
      %v3339 = vunpack.c.l.b16 %v3075
      %v3340 = vunpack.c.l.b16 %v3076
      %v3341 = vpack.c.b16 %v3326, %v3325
      %v3342 = vpack.c.b16 %v3328, %v3327
      %v3343 = vpack.c.b16 %v3330, %v3329
      %v3344 = vpack.c.b16 %v3332, %v3331
      %v3345 = vpack.c.b16 %v3334, %v3333
      %v3346 = vpack.c.b16 %v3336, %v3335
      %v3347 = vpack.c.b16 %v3338, %v3337
      %v3348 = vpack.c.b16 %v3340, %v3339
      %3357 = vmatpush.bf16.msra.mxu0 %v3348
      %3358 = vmatpush.bf16.msra.mxu0 %v3347
      %3359 = vmatpush.bf16.msra.mxu0 %v3346
      %3360 = vmatpush.bf16.msra.mxu0 %v3345
      %3361 = vmatpush.bf16.msra.mxu0 %v3344
      %3362 = vmatpush.bf16.msra.mxu0 %v3343
      %3363 = vmatpush.bf16.msra.mxu0 %v3342
      %3364 = vmatpush.bf16.msra.mxu0 %v3341
      %3365 = vmatmul.bf16.gmra.mxu0 %v3172
      %v3366 = vpop.f32.mrf.mxu0
      %v3367 = vadd.f32 0.0, %v3366
      %v3368 = vpop.f32.mrf.mxu0
      %v3369 = vadd.f32 0.0, %v3368
      %3370 = vmatmul.bf16.gmra.mxu0 %v3180
      %v3371 = vpop.f32.mrf.mxu0
      %v3372 = vadd.f32 0.0, %v3371
      %v3373 = vpop.f32.mrf.mxu0
      %v3374 = vadd.f32 0.0, %v3373
      %3375 = vmatmul.bf16.gmra.mxu0 %v3188
      %v3376 = vpop.f32.mrf.mxu0
      %v3377 = vadd.f32 0.0, %v3376
      %v3378 = vpop.f32.mrf.mxu0
      %v3379 = vadd.f32 0.0, %v3378
      %3380 = vmatmul.bf16.gmra.mxu0 %v3196
      %v3381 = vpop.f32.mrf.mxu0
      %v3382 = vadd.f32 0.0, %v3381
      %v3383 = vpop.f32.mrf.mxu0
      %v3384 = vadd.f32 0.0, %v3383
      %3385 = vmatmul.bf16.gmra.mxu0 %v3204
      %v3386 = vpop.f32.mrf.mxu0
      %v3387 = vadd.f32 0.0, %v3386
      %v3388 = vpop.f32.mrf.mxu0
      %v3389 = vadd.f32 0.0, %v3388
      %3390 = vmatmul.bf16.gmra.mxu0 %v3212
      %v3391 = vpop.f32.mrf.mxu0
      %v3392 = vadd.f32 0.0, %v3391
      %v3393 = vpop.f32.mrf.mxu0
      %v3394 = vadd.f32 0.0, %v3393
      %3395 = vmatmul.bf16.gmra.mxu0 %v3220
      %v3396 = vpop.f32.mrf.mxu0
      %v3397 = vadd.f32 0.0, %v3396
      %v3398 = vpop.f32.mrf.mxu0
      %v3399 = vadd.f32 0.0, %v3398
      %3400 = vmatmul.bf16.gmra.mxu0 %v3228
      %v3401 = vpop.f32.mrf.mxu0
      %v3402 = vadd.f32 0.0, %v3401
      %v3403 = vpop.f32.mrf.mxu0
      %v3404 = vadd.f32 0.0, %v3403
      %3405 = vmatmul.bf16.gmra.mxu0 %v3236
      %v3406 = vpop.f32.mrf.mxu0
      %v3407 = vadd.f32 0.0, %v3406
      %v3408 = vpop.f32.mrf.mxu0
      %v3409 = vadd.f32 0.0, %v3408
      %3410 = vmatmul.bf16.gmra.mxu0 %v3244
      %v3411 = vpop.f32.mrf.mxu0
      %v3412 = vadd.f32 0.0, %v3411
      %v3413 = vpop.f32.mrf.mxu0
      %v3414 = vadd.f32 0.0, %v3413
      %3415 = vmatmul.bf16.gmra.mxu0 %v3252
      %v3416 = vpop.f32.mrf.mxu0
      %v3417 = vadd.f32 0.0, %v3416
      %v3418 = vpop.f32.mrf.mxu0
      %v3419 = vadd.f32 0.0, %v3418
      %3420 = vmatmul.bf16.gmra.mxu0 %v3260
      %v3421 = vpop.f32.mrf.mxu0
      %v3422 = vadd.f32 0.0, %v3421
      %v3423 = vpop.f32.mrf.mxu0
      %v3424 = vadd.f32 0.0, %v3423
      %3425 = vmatmul.bf16.gmra.mxu0 %v3268
      %v3426 = vpop.f32.mrf.mxu0
      %v3427 = vadd.f32 0.0, %v3426
      %v3428 = vpop.f32.mrf.mxu0
      %v3429 = vadd.f32 0.0, %v3428
      %3430 = vmatmul.bf16.gmra.mxu0 %v3276
      %v3431 = vpop.f32.mrf.mxu0
      %v3432 = vadd.f32 0.0, %v3431
      %v3433 = vpop.f32.mrf.mxu0
      %v3434 = vadd.f32 0.0, %v3433
      %3435 = vmatmul.bf16.gmra.mxu0 %v3284
      %v3436 = vpop.f32.mrf.mxu0
      %v3437 = vadd.f32 0.0, %v3436
      %v3438 = vpop.f32.mrf.mxu0
      %v3439 = vadd.f32 0.0, %v3438
      %3440 = vmatmul.bf16.gmra.mxu0 %v3292
      %v3441 = vpop.f32.mrf.mxu0
      %v3442 = vadd.f32 0.0, %v3441
      %v3443 = vpop.f32.mrf.mxu0
      %v3444 = vadd.f32 0.0, %v3443
      %3445 = vdwg.mxu0
      %v3446 = vadd.f32 %v2949, %v3367
      %v3447 = vadd.f32 %v2951, %v3369
      %v3448 = vadd.f32 %v2954, %v3372
      %v3449 = vadd.f32 %v2956, %v3374
      %v3450 = vadd.f32 %v2959, %v3377
      %v3451 = vadd.f32 %v2961, %v3379
      %v3452 = vadd.f32 %v2964, %v3382
      %v3453 = vadd.f32 %v2966, %v3384
      %v3454 = vadd.f32 %v2969, %v3387
      %v3455 = vadd.f32 %v2971, %v3389
      %v3456 = vadd.f32 %v2974, %v3392
      %v3457 = vadd.f32 %v2976, %v3394
      %v3458 = vadd.f32 %v2979, %v3397
      %v3459 = vadd.f32 %v2981, %v3399
      %v3460 = vadd.f32 %v2984, %v3402
      %v3461 = vadd.f32 %v2986, %v3404
      %v3462 = vadd.f32 %v2989, %v3407
      %v3463 = vadd.f32 %v2991, %v3409
      %v3464 = vadd.f32 %v2994, %v3412
      %v3465 = vadd.f32 %v2996, %v3414
      %v3466 = vadd.f32 %v2999, %v3417
      %v3467 = vadd.f32 %v3001, %v3419
      %v3468 = vadd.f32 %v3004, %v3422
      %v3469 = vadd.f32 %v3006, %v3424
      %v3470 = vadd.f32 %v3009, %v3427
      %v3471 = vadd.f32 %v3011, %v3429
      %v3472 = vadd.f32 %v3014, %v3432
      %v3473 = vadd.f32 %v3016, %v3434
      %v3474 = vadd.f32 %v3019, %v3437
      %v3475 = vadd.f32 %v3021, %v3439
      %v3476 = vadd.f32 %v3024, %v3442
      %v3477 = vadd.f32 %v3026, %v3444
      %v3478 = vld [vmem:[#allocation4 + $0x8] sm:$0x8]
      %v3479 = vld [vmem:[#allocation4 + $0xc] sm:$0xf]
      %v3480 = vld [vmem:[#allocation4 + $0x10] sm:$0xf]
      %v3481 = vld [vmem:[#allocation4 + $0x14] sm:$0xf]
      %v3482 = vld [vmem:[#allocation4 + $0x18] sm:$0xf]
      %v3483 = vld [vmem:[#allocation4 + $0x1c] sm:$0xf]
      %v3484 = vld [vmem:[#allocation4 + $0x20] sm:$0xf]
      %v3485 = vld [vmem:[#allocation4 + $0x24] sm:$0xf]
      %v3486 = vld [vmem:[#allocation4 + $0x28] sm:$0xf]
      %v3487 = vld [vmem:[#allocation4 + $0x2c] sm:$0xf]
      %v3488 = vld [vmem:[#allocation4 + $0x30] sm:$0xf]
      %v3489 = vld [vmem:[#allocation4 + $0x34] sm:$0xf]
      %v3490 = vld [vmem:[#allocation4 + $0x38] sm:$0xf]
      %v3491 = vld [vmem:[#allocation4 + $0x3c] sm:$0xf]
      %v3492 = vld [vmem:[#allocation4 + $0x40] sm:$0xf]
      %v3493 = vld [vmem:[#allocation4 + $0x44] sm:$0xf]
      %v3494 = vld [vmem:[#allocation4 + $0x48] sm:$0xf]
      %v3495 = vld [vmem:[#allocation4 + $0x4c] sm:$0xf]
      %v3496 = vld [vmem:[#allocation4 + $0x50] sm:$0xf]
      %v3497 = vld [vmem:[#allocation4 + $0x54] sm:$0xf]
      %v3498 = vld [vmem:[#allocation4 + $0x58] sm:$0xf]
      %v3499 = vld [vmem:[#allocation4 + $0x5c] sm:$0xf]
      %v3500 = vld [vmem:[#allocation4 + $0x60] sm:$0xf]
      %v3501 = vld [vmem:[#allocation4 + $0x64] sm:$0xf]
      %v3502 = vld [vmem:[#allocation4 + $0x68] sm:$0xf]
      %v3503 = vld [vmem:[#allocation4 + $0x6c] sm:$0xf]
      %v3504 = vld [vmem:[#allocation4 + $0x70] sm:$0xf]
      %v3505 = vld [vmem:[#allocation4 + $0x74] sm:$0xf]
      %v3506 = vld [vmem:[#allocation4 + $0x78] sm:$0xf]
      %v3507 = vld [vmem:[#allocation4 + $0x7c] sm:$0xf]
      %v3508 = vld [vmem:[#allocation4 + $0x80] sm:$0xf]
      %v3509 = vld [vmem:[#allocation4 + $0x84] sm:$0xf]
      %v3510 = vld [vmem:[#allocation4 + $0x88] sm:$0xf]
      %v3511 = vld [vmem:[%s3 + $0xc0] sm:$0xf]
      %v3512 = vld [vmem:[%s3 + $0xc4] sm:$0xf]
      %v3513 = vld [vmem:[%s3 + $0xc8] sm:$0xf]
      %v3514 = vld [vmem:[%s3 + $0xcc] sm:$0xf]
      %v3515 = vld [vmem:[%s3 + $0xd0] sm:$0xf]
      %v3516 = vld [vmem:[%s3 + $0xd4] sm:$0xf]
      %v3517 = vld [vmem:[%s3 + $0xd8] sm:$0xf]
      %v3518 = vld [vmem:[%s3 + $0xdc] sm:$0xf]
      %v3519 = vld [vmem:[%s3 + $0xe0] sm:$0xf]
      %v3520 = vld [vmem:[%s3 + $0xe4] sm:$0xf]
      %v3521 = vld [vmem:[%s3 + $0xe8] sm:$0xf]
      %v3522 = vld [vmem:[%s3 + $0xec] sm:$0xf]
      %v3523 = vld [vmem:[%s3 + $0xf0] sm:$0xf]
      %v3524 = vld [vmem:[%s3 + $0xf4] sm:$0xf]
      %v3525 = vld [vmem:[%s3 + $0xf8] sm:$0xf]
      %v3526 = vld [vmem:[%s3 + $0xfc] sm:$0xf]
      %v3560 = vunpack.c.l.b16 %v3478
      %v3561 = vunpack.c.l.b16 %v3479
      %v3562 = vunpack.c.l.b16 %v3480
      %v3563 = vunpack.c.l.b16 %v3481
      %v3564 = vunpack.c.l.b16 %v3482
      %v3565 = vunpack.c.l.b16 %v3483
      %v3566 = vunpack.c.l.b16 %v3484
      %v3567 = vunpack.c.l.b16 %v3485
      %v3568 = vunpack.c.l.b16 %v3486
      %v3569 = vunpack.c.l.b16 %v3487
      %v3570 = vunpack.c.l.b16 %v3488
      %v3571 = vunpack.c.l.b16 %v3489
      %v3572 = vunpack.c.l.b16 %v3490
      %v3573 = vunpack.c.l.b16 %v3491
      %v3574 = vunpack.c.l.b16 %v3492
      %v3575 = vunpack.c.l.b16 %v3493
      %v3576 = vunpack.c.l.b16 %v3494
      %v3577 = vunpack.c.l.b16 %v3495
      %v3578 = vunpack.c.l.b16 %v3496
      %v3579 = vunpack.c.l.b16 %v3497
      %v3580 = vunpack.c.l.b16 %v3498
      %v3581 = vunpack.c.l.b16 %v3499
      %v3582 = vunpack.c.l.b16 %v3500
      %v3583 = vunpack.c.l.b16 %v3501
      %v3584 = vunpack.c.l.b16 %v3502
      %v3585 = vunpack.c.l.b16 %v3503
      %v3586 = vunpack.c.l.b16 %v3504
      %v3587 = vunpack.c.l.b16 %v3505
      %v3588 = vunpack.c.l.b16 %v3506
      %v3589 = vunpack.c.l.b16 %v3507
      %v3590 = vunpack.c.l.b16 %v3508
      %v3591 = vunpack.c.l.b16 %v3509
      %v3592 = vunpack.c.l.b16 %v3510
      %v3593 = vpack.c.b16 %v3561, %v3560
      %v3594 = vpack.c.b16 %v3563, %v3562
      %v3595 = vpack.c.b16 %v3565, %v3564
      %v3596 = vpack.c.b16 %v3567, %v3566
      %v3597 = vpack.c.b16 %v3569, %v3568
      %v3598 = vpack.c.b16 %v3571, %v3570
      %v3599 = vpack.c.b16 %v3573, %v3572
      %v3600 = vpack.c.b16 %v3575, %v3574
      %v3601 = vpack.c.b16 %v3577, %v3576
      %v3602 = vpack.c.b16 %v3579, %v3578
      %v3603 = vpack.c.b16 %v3581, %v3580
      %v3604 = vpack.c.b16 %v3583, %v3582
      %v3605 = vpack.c.b16 %v3585, %v3584
      %v3606 = vpack.c.b16 %v3587, %v3586
      %v3607 = vpack.c.b16 %v3589, %v3588
      %v3608 = vpack.c.b16 %v3591, %v3590
      %v3609 = vpack.c.b16 %v3592, %v3592
      %v3611 = vshrl.u32 %v3593, 16
      %v3613 = vrot.slane %v3611, 3
      %v3614 = vshll.u32 %v3593, 16
      %v3616 = vrot.slane %v3614, 4
      %v3617 = vor.u32 %v3613, %v3616
      %v3619 = vshrl.u32 %v3594, 16
      %v3621 = vrot.slane %v3619, 3
      %v3622 = vshll.u32 %v3594, 16
      %v3624 = vrot.slane %v3622, 4
      %v3625 = vor.u32 %v3621, %v3624
      %v3626 = vsel %vm2722, %v3617, %v3625
      %v3628 = vshrl.u32 %v3595, 16
      %v3630 = vrot.slane %v3628, 3
      %v3631 = vshll.u32 %v3595, 16
      %v3633 = vrot.slane %v3631, 4
      %v3634 = vor.u32 %v3630, %v3633
      %v3635 = vsel %vm2722, %v3625, %v3634
      %v3637 = vshrl.u32 %v3596, 16
      %v3639 = vrot.slane %v3637, 3
      %v3640 = vshll.u32 %v3596, 16
      %v3642 = vrot.slane %v3640, 4
      %v3643 = vor.u32 %v3639, %v3642
      %v3644 = vsel %vm2722, %v3634, %v3643
      %v3646 = vshrl.u32 %v3597, 16
      %v3648 = vrot.slane %v3646, 3
      %v3649 = vshll.u32 %v3597, 16
      %v3651 = vrot.slane %v3649, 4
      %v3652 = vor.u32 %v3648, %v3651
      %v3653 = vsel %vm2722, %v3643, %v3652
      %v3655 = vshrl.u32 %v3598, 16
      %v3657 = vrot.slane %v3655, 3
      %v3658 = vshll.u32 %v3598, 16
      %v3660 = vrot.slane %v3658, 4
      %v3661 = vor.u32 %v3657, %v3660
      %v3662 = vsel %vm2722, %v3652, %v3661
      %v3664 = vshrl.u32 %v3599, 16
      %v3666 = vrot.slane %v3664, 3
      %v3667 = vshll.u32 %v3599, 16
      %v3669 = vrot.slane %v3667, 4
      %v3670 = vor.u32 %v3666, %v3669
      %v3671 = vsel %vm2722, %v3661, %v3670
      %v3673 = vshrl.u32 %v3600, 16
      %v3675 = vrot.slane %v3673, 3
      %v3676 = vshll.u32 %v3600, 16
      %v3678 = vrot.slane %v3676, 4
      %v3679 = vor.u32 %v3675, %v3678
      %v3680 = vsel %vm2722, %v3670, %v3679
      %v3682 = vshrl.u32 %v3601, 16
      %v3684 = vrot.slane %v3682, 3
      %v3685 = vshll.u32 %v3601, 16
      %v3687 = vrot.slane %v3685, 4
      %v3688 = vor.u32 %v3684, %v3687
      %v3689 = vsel %vm2722, %v3679, %v3688
      %v3691 = vshrl.u32 %v3602, 16
      %v3693 = vrot.slane %v3691, 3
      %v3694 = vshll.u32 %v3602, 16
      %v3696 = vrot.slane %v3694, 4
      %v3697 = vor.u32 %v3693, %v3696
      %v3698 = vsel %vm2722, %v3688, %v3697
      %v3700 = vshrl.u32 %v3603, 16
      %v3702 = vrot.slane %v3700, 3
      %v3703 = vshll.u32 %v3603, 16
      %v3705 = vrot.slane %v3703, 4
      %v3706 = vor.u32 %v3702, %v3705
      %v3707 = vsel %vm2722, %v3697, %v3706
      %v3709 = vshrl.u32 %v3604, 16
      %v3711 = vrot.slane %v3709, 3
      %v3712 = vshll.u32 %v3604, 16
      %v3714 = vrot.slane %v3712, 4
      %v3715 = vor.u32 %v3711, %v3714
      %v3716 = vsel %vm2722, %v3706, %v3715
      %v3718 = vshrl.u32 %v3605, 16
      %v3720 = vrot.slane %v3718, 3
      %v3721 = vshll.u32 %v3605, 16
      %v3723 = vrot.slane %v3721, 4
      %v3724 = vor.u32 %v3720, %v3723
      %v3725 = vsel %vm2722, %v3715, %v3724
      %v3727 = vshrl.u32 %v3606, 16
      %v3729 = vrot.slane %v3727, 3
      %v3730 = vshll.u32 %v3606, 16
      %v3732 = vrot.slane %v3730, 4
      %v3733 = vor.u32 %v3729, %v3732
      %v3734 = vsel %vm2722, %v3724, %v3733
      %v3736 = vshrl.u32 %v3607, 16
      %v3738 = vrot.slane %v3736, 3
      %v3739 = vshll.u32 %v3607, 16
      %v3741 = vrot.slane %v3739, 4
      %v3742 = vor.u32 %v3738, %v3741
      %v3743 = vsel %vm2722, %v3733, %v3742
      %v3745 = vshrl.u32 %v3608, 16
      %v3747 = vrot.slane %v3745, 3
      %v3748 = vshll.u32 %v3608, 16
      %v3750 = vrot.slane %v3748, 4
      %v3751 = vor.u32 %v3747, %v3750
      %v3752 = vsel %vm2722, %v3742, %v3751
      %v3754 = vshrl.u32 %v3609, 16
      %v3756 = vrot.slane %v3754, 3
      %v3757 = vshll.u32 %v3609, 16
      %v3759 = vrot.slane %v3757, 4
      %v3760 = vor.u32 %v3756, %v3759
      %v3761 = vsel %vm2722, %v3751, %v3760
      %v3794 = vunpack.c.l.b16 %v3511
      %v3795 = vunpack.c.l.b16 %v3512
      %v3796 = vunpack.c.l.b16 %v3513
      %v3797 = vunpack.c.l.b16 %v3514
      %v3798 = vunpack.c.l.b16 %v3515
      %v3799 = vunpack.c.l.b16 %v3516
      %v3800 = vunpack.c.l.b16 %v3517
      %v3801 = vunpack.c.l.b16 %v3518
      %v3802 = vunpack.c.l.b16 %v3519
      %v3803 = vunpack.c.l.b16 %v3520
      %v3804 = vunpack.c.l.b16 %v3521
      %v3805 = vunpack.c.l.b16 %v3522
      %v3806 = vunpack.c.l.b16 %v3523
      %v3807 = vunpack.c.l.b16 %v3524
      %v3808 = vunpack.c.l.b16 %v3525
      %v3809 = vunpack.c.l.b16 %v3526
      %v3810 = vpack.c.b16 %v3795, %v3794
      %v3811 = vpack.c.b16 %v3797, %v3796
      %v3812 = vpack.c.b16 %v3799, %v3798
      %v3813 = vpack.c.b16 %v3801, %v3800
      %v3814 = vpack.c.b16 %v3803, %v3802
      %v3815 = vpack.c.b16 %v3805, %v3804
      %v3816 = vpack.c.b16 %v3807, %v3806
      %v3817 = vpack.c.b16 %v3809, %v3808
      %3826 = vmatpush.bf16.msra.mxu0 %v3817
      %3827 = vmatpush.bf16.msra.mxu0 %v3816
      %3828 = vmatpush.bf16.msra.mxu0 %v3815
      %3829 = vmatpush.bf16.msra.mxu0 %v3814
      %3830 = vmatpush.bf16.msra.mxu0 %v3813
      %3831 = vmatpush.bf16.msra.mxu0 %v3812
      %3832 = vmatpush.bf16.msra.mxu0 %v3811
      %3833 = vmatpush.bf16.msra.mxu0 %v3810
      %3834 = vmatmul.bf16.gmra.mxu0 %v3626
      %v3835 = vpop.f32.mrf.mxu0
      %v3836 = vadd.f32 0.0, %v3835
      %v3837 = vpop.f32.mrf.mxu0
      %v3838 = vadd.f32 0.0, %v3837
      %3839 = vmatmul.bf16.gmra.mxu0 %v3635
      %v3840 = vpop.f32.mrf.mxu0
      %v3841 = vadd.f32 0.0, %v3840
      %v3842 = vpop.f32.mrf.mxu0
      %v3843 = vadd.f32 0.0, %v3842
      %3844 = vmatmul.bf16.gmra.mxu0 %v3644
      %v3845 = vpop.f32.mrf.mxu0
      %v3846 = vadd.f32 0.0, %v3845
      %v3847 = vpop.f32.mrf.mxu0
      %v3848 = vadd.f32 0.0, %v3847
      %3849 = vmatmul.bf16.gmra.mxu0 %v3653
      %v3850 = vpop.f32.mrf.mxu0
      %v3851 = vadd.f32 0.0, %v3850
      %v3852 = vpop.f32.mrf.mxu0
      %v3853 = vadd.f32 0.0, %v3852
      %3854 = vmatmul.bf16.gmra.mxu0 %v3662
      %v3855 = vpop.f32.mrf.mxu0
      %v3856 = vadd.f32 0.0, %v3855
      %v3857 = vpop.f32.mrf.mxu0
      %v3858 = vadd.f32 0.0, %v3857
      %3859 = vmatmul.bf16.gmra.mxu0 %v3671
      %v3860 = vpop.f32.mrf.mxu0
      %v3861 = vadd.f32 0.0, %v3860
      %v3862 = vpop.f32.mrf.mxu0
      %v3863 = vadd.f32 0.0, %v3862
      %3864 = vmatmul.bf16.gmra.mxu0 %v3680
      %v3865 = vpop.f32.mrf.mxu0
      %v3866 = vadd.f32 0.0, %v3865
      %v3867 = vpop.f32.mrf.mxu0
      %v3868 = vadd.f32 0.0, %v3867
      %3869 = vmatmul.bf16.gmra.mxu0 %v3689
      %v3870 = vpop.f32.mrf.mxu0
      %v3871 = vadd.f32 0.0, %v3870
      %v3872 = vpop.f32.mrf.mxu0
      %v3873 = vadd.f32 0.0, %v3872
      %3874 = vmatmul.bf16.gmra.mxu0 %v3698
      %v3875 = vpop.f32.mrf.mxu0
      %v3876 = vadd.f32 0.0, %v3875
      %v3877 = vpop.f32.mrf.mxu0
      %v3878 = vadd.f32 0.0, %v3877
      %3879 = vmatmul.bf16.gmra.mxu0 %v3707
      %v3880 = vpop.f32.mrf.mxu0
      %v3881 = vadd.f32 0.0, %v3880
      %v3882 = vpop.f32.mrf.mxu0
      %v3883 = vadd.f32 0.0, %v3882
      %3884 = vmatmul.bf16.gmra.mxu0 %v3716
      %v3885 = vpop.f32.mrf.mxu0
      %v3886 = vadd.f32 0.0, %v3885
      %v3887 = vpop.f32.mrf.mxu0
      %v3888 = vadd.f32 0.0, %v3887
      %3889 = vmatmul.bf16.gmra.mxu0 %v3725
      %v3890 = vpop.f32.mrf.mxu0
      %v3891 = vadd.f32 0.0, %v3890
      %v3892 = vpop.f32.mrf.mxu0
      %v3893 = vadd.f32 0.0, %v3892
      %3894 = vmatmul.bf16.gmra.mxu0 %v3734
      %v3895 = vpop.f32.mrf.mxu0
      %v3896 = vadd.f32 0.0, %v3895
      %v3897 = vpop.f32.mrf.mxu0
      %v3898 = vadd.f32 0.0, %v3897
      %3899 = vmatmul.bf16.gmra.mxu0 %v3743
      %v3900 = vpop.f32.mrf.mxu0
      %v3901 = vadd.f32 0.0, %v3900
      %v3902 = vpop.f32.mrf.mxu0
      %v3903 = vadd.f32 0.0, %v3902
      %3904 = vmatmul.bf16.gmra.mxu0 %v3752
      %v3905 = vpop.f32.mrf.mxu0
      %v3906 = vadd.f32 0.0, %v3905
      %v3907 = vpop.f32.mrf.mxu0
      %v3908 = vadd.f32 0.0, %v3907
      %3909 = vmatmul.bf16.gmra.mxu0 %v3761
      %v3910 = vpop.f32.mrf.mxu0
      %v3911 = vadd.f32 0.0, %v3910
      %v3912 = vpop.f32.mrf.mxu0
      %v3913 = vadd.f32 0.0, %v3912
      %3914 = vdwg.mxu0
      %v3915 = vadd.f32 %v3446, %v3836
      %v3916 = vadd.f32 %v3447, %v3838
      %v3917 = vadd.f32 %v3448, %v3841
      %v3918 = vadd.f32 %v3449, %v3843
      %v3919 = vadd.f32 %v3450, %v3846
      %v3920 = vadd.f32 %v3451, %v3848
      %v3921 = vadd.f32 %v3452, %v3851
      %v3922 = vadd.f32 %v3453, %v3853
      %v3923 = vadd.f32 %v3454, %v3856
      %v3924 = vadd.f32 %v3455, %v3858
      %v3925 = vadd.f32 %v3456, %v3861
      %v3926 = vadd.f32 %v3457, %v3863
      %v3927 = vadd.f32 %v3458, %v3866
      %v3928 = vadd.f32 %v3459, %v3868
      %v3929 = vadd.f32 %v3460, %v3871
      %v3930 = vadd.f32 %v3461, %v3873
      %v3931 = vadd.f32 %v3462, %v3876
      %v3932 = vadd.f32 %v3463, %v3878
      %v3933 = vadd.f32 %v3464, %v3881
      %v3934 = vadd.f32 %v3465, %v3883
      %v3935 = vadd.f32 %v3466, %v3886
      %v3936 = vadd.f32 %v3467, %v3888
      %v3937 = vadd.f32 %v3468, %v3891
      %v3938 = vadd.f32 %v3469, %v3893
      %v3939 = vadd.f32 %v3470, %v3896
      %v3940 = vadd.f32 %v3471, %v3898
      %v3941 = vadd.f32 %v3472, %v3901
      %v3942 = vadd.f32 %v3473, %v3903
      %v3943 = vadd.f32 %v3474, %v3906
      %v3944 = vadd.f32 %v3475, %v3908
      %v3945 = vadd.f32 %v3476, %v3911
      %v3946 = vadd.f32 %v3477, %v3913
      %v3947 = vld [vmem:[%s3 + $0x100] sm:$0xf]
      %v3948 = vld [vmem:[%s3 + $0x104] sm:$0xf]
      %v3949 = vld [vmem:[%s3 + $0x108] sm:$0xf]
      %v3950 = vld [vmem:[%s3 + $0x10c] sm:$0xf]
      %v3951 = vld [vmem:[%s3 + $0x110] sm:$0xf]
      %v3952 = vld [vmem:[%s3 + $0x114] sm:$0xf]
      %v3953 = vld [vmem:[%s3 + $0x118] sm:$0xf]
      %v3954 = vld [vmem:[%s3 + $0x11c] sm:$0xf]
      %v3955 = vld [vmem:[%s3 + $0x120] sm:$0xf]
      %v3956 = vld [vmem:[%s3 + $0x124] sm:$0xf]
      %v3957 = vld [vmem:[%s3 + $0x128] sm:$0xf]
      %v3958 = vld [vmem:[%s3 + $0x12c] sm:$0xf]
      %v3959 = vld [vmem:[%s3 + $0x130] sm:$0xf]
      %v3960 = vld [vmem:[%s3 + $0x134] sm:$0xf]
      %v3961 = vld [vmem:[%s3 + $0x138] sm:$0xf]
      %v3962 = vld [vmem:[%s3 + $0x13c] sm:$0xf]
      %v3963 = vpack.c.b16 %v3562, %v3561
      %v3964 = vpack.c.b16 %v3564, %v3563
      %v3965 = vpack.c.b16 %v3566, %v3565
      %v3966 = vpack.c.b16 %v3568, %v3567
      %v3967 = vpack.c.b16 %v3570, %v3569
      %v3968 = vpack.c.b16 %v3572, %v3571
      %v3969 = vpack.c.b16 %v3574, %v3573
      %v3970 = vpack.c.b16 %v3576, %v3575
      %v3971 = vpack.c.b16 %v3578, %v3577
      %v3972 = vpack.c.b16 %v3580, %v3579
      %v3973 = vpack.c.b16 %v3582, %v3581
      %v3974 = vpack.c.b16 %v3584, %v3583
      %v3975 = vpack.c.b16 %v3586, %v3585
      %v3976 = vpack.c.b16 %v3588, %v3587
      %v3977 = vpack.c.b16 %v3590, %v3589
      %v3978 = vpack.c.b16 %v3592, %v3591
      %v4011 = vunpack.c.l.b16 %v3947
      %v4012 = vunpack.c.l.b16 %v3948
      %v4013 = vunpack.c.l.b16 %v3949
      %v4014 = vunpack.c.l.b16 %v3950
      %v4015 = vunpack.c.l.b16 %v3951
      %v4016 = vunpack.c.l.b16 %v3952
      %v4017 = vunpack.c.l.b16 %v3953
      %v4018 = vunpack.c.l.b16 %v3954
      %v4019 = vunpack.c.l.b16 %v3955
      %v4020 = vunpack.c.l.b16 %v3956
      %v4021 = vunpack.c.l.b16 %v3957
      %v4022 = vunpack.c.l.b16 %v3958
      %v4023 = vunpack.c.l.b16 %v3959
      %v4024 = vunpack.c.l.b16 %v3960
      %v4025 = vunpack.c.l.b16 %v3961
      %v4026 = vunpack.c.l.b16 %v3962
      %v4027 = vpack.c.b16 %v4012, %v4011
      %v4028 = vpack.c.b16 %v4014, %v4013
      %v4029 = vpack.c.b16 %v4016, %v4015
      %v4030 = vpack.c.b16 %v4018, %v4017
      %v4031 = vpack.c.b16 %v4020, %v4019
      %v4032 = vpack.c.b16 %v4022, %v4021
      %v4033 = vpack.c.b16 %v4024, %v4023
      %v4034 = vpack.c.b16 %v4026, %v4025
      %4043 = vmatpush.bf16.msra.mxu0 %v4034
      %4044 = vmatpush.bf16.msra.mxu0 %v4033
      %4045 = vmatpush.bf16.msra.mxu0 %v4032
      %4046 = vmatpush.bf16.msra.mxu0 %v4031
      %4047 = vmatpush.bf16.msra.mxu0 %v4030
      %4048 = vmatpush.bf16.msra.mxu0 %v4029
      %4049 = vmatpush.bf16.msra.mxu0 %v4028
      %4050 = vmatpush.bf16.msra.mxu0 %v4027
      %4051 = vmatmul.bf16.gmra.mxu0 %v3963
      %v4052 = vpop.f32.mrf.mxu0
      %v4053 = vadd.f32 0.0, %v4052
      %v4054 = vpop.f32.mrf.mxu0
      %v4055 = vadd.f32 0.0, %v4054
      %4056 = vmatmul.bf16.gmra.mxu0 %v3964
      %v4057 = vpop.f32.mrf.mxu0
      %v4058 = vadd.f32 0.0, %v4057
      %v4059 = vpop.f32.mrf.mxu0
      %v4060 = vadd.f32 0.0, %v4059
      %4061 = vmatmul.bf16.gmra.mxu0 %v3965
      %v4062 = vpop.f32.mrf.mxu0
      %v4063 = vadd.f32 0.0, %v4062
      %v4064 = vpop.f32.mrf.mxu0
      %v4065 = vadd.f32 0.0, %v4064
      %4066 = vmatmul.bf16.gmra.mxu0 %v3966
      %v4067 = vpop.f32.mrf.mxu0
      %v4068 = vadd.f32 0.0, %v4067
      %v4069 = vpop.f32.mrf.mxu0
      %v4070 = vadd.f32 0.0, %v4069
      %4071 = vmatmul.bf16.gmra.mxu0 %v3967
      %v4072 = vpop.f32.mrf.mxu0
      %v4073 = vadd.f32 0.0, %v4072
      %v4074 = vpop.f32.mrf.mxu0
      %v4075 = vadd.f32 0.0, %v4074
      %4076 = vmatmul.bf16.gmra.mxu0 %v3968
      %v4077 = vpop.f32.mrf.mxu0
      %v4078 = vadd.f32 0.0, %v4077
      %v4079 = vpop.f32.mrf.mxu0
      %v4080 = vadd.f32 0.0, %v4079
      %4081 = vmatmul.bf16.gmra.mxu0 %v3969
      %v4082 = vpop.f32.mrf.mxu0
      %v4083 = vadd.f32 0.0, %v4082
      %v4084 = vpop.f32.mrf.mxu0
      %v4085 = vadd.f32 0.0, %v4084
      %4086 = vmatmul.bf16.gmra.mxu0 %v3970
      %v4087 = vpop.f32.mrf.mxu0
      %v4088 = vadd.f32 0.0, %v4087
      %v4089 = vpop.f32.mrf.mxu0
      %v4090 = vadd.f32 0.0, %v4089
      %4091 = vmatmul.bf16.gmra.mxu0 %v3971
      %v4092 = vpop.f32.mrf.mxu0
      %v4093 = vadd.f32 0.0, %v4092
      %v4094 = vpop.f32.mrf.mxu0
      %v4095 = vadd.f32 0.0, %v4094
      %4096 = vmatmul.bf16.gmra.mxu0 %v3972
      %v4097 = vpop.f32.mrf.mxu0
      %v4098 = vadd.f32 0.0, %v4097
      %v4099 = vpop.f32.mrf.mxu0
      %v4100 = vadd.f32 0.0, %v4099
      %4101 = vmatmul.bf16.gmra.mxu0 %v3973
      %v4102 = vpop.f32.mrf.mxu0
      %v4103 = vadd.f32 0.0, %v4102
      %v4104 = vpop.f32.mrf.mxu0
      %v4105 = vadd.f32 0.0, %v4104
      %4106 = vmatmul.bf16.gmra.mxu0 %v3974
      %v4107 = vpop.f32.mrf.mxu0
      %v4108 = vadd.f32 0.0, %v4107
      %v4109 = vpop.f32.mrf.mxu0
      %v4110 = vadd.f32 0.0, %v4109
      %4111 = vmatmul.bf16.gmra.mxu0 %v3975
      %v4112 = vpop.f32.mrf.mxu0
      %v4113 = vadd.f32 0.0, %v4112
      %v4114 = vpop.f32.mrf.mxu0
      %v4115 = vadd.f32 0.0, %v4114
      %4116 = vmatmul.bf16.gmra.mxu0 %v3976
      %v4117 = vpop.f32.mrf.mxu0
      %v4118 = vadd.f32 0.0, %v4117
      %v4119 = vpop.f32.mrf.mxu0
      %v4120 = vadd.f32 0.0, %v4119
      %4121 = vmatmul.bf16.gmra.mxu0 %v3977
      %v4122 = vpop.f32.mrf.mxu0
      %v4123 = vadd.f32 0.0, %v4122
      %v4124 = vpop.f32.mrf.mxu0
      %v4125 = vadd.f32 0.0, %v4124
      %4126 = vmatmul.bf16.gmra.mxu0 %v3978
      %v4127 = vpop.f32.mrf.mxu0
      %v4128 = vadd.f32 0.0, %v4127
      %v4129 = vpop.f32.mrf.mxu0
      %v4130 = vadd.f32 0.0, %v4129
      %4131 = vdwg.mxu0
      %v4132 = vadd.f32 %v3915, %v4053
      %v4133 = vadd.f32 %v3916, %v4055
      %v4134 = vadd.f32 %v3917, %v4058
      %v4135 = vadd.f32 %v3918, %v4060
      %v4136 = vadd.f32 %v3919, %v4063
      %v4137 = vadd.f32 %v3920, %v4065
      %v4138 = vadd.f32 %v3921, %v4068
      %v4139 = vadd.f32 %v3922, %v4070
      %v4140 = vadd.f32 %v3923, %v4073
      %v4141 = vadd.f32 %v3924, %v4075
      %v4142 = vadd.f32 %v3925, %v4078
      %v4143 = vadd.f32 %v3926, %v4080
      %v4144 = vadd.f32 %v3927, %v4083
      %v4145 = vadd.f32 %v3928, %v4085
      %v4146 = vadd.f32 %v3929, %v4088
      %v4147 = vadd.f32 %v3930, %v4090
      %v4148 = vadd.f32 %v3931, %v4093
      %v4149 = vadd.f32 %v3932, %v4095
      %v4150 = vadd.f32 %v3933, %v4098
      %v4151 = vadd.f32 %v3934, %v4100
      %v4152 = vadd.f32 %v3935, %v4103
      %v4153 = vadd.f32 %v3936, %v4105
      %v4154 = vadd.f32 %v3937, %v4108
      %v4155 = vadd.f32 %v3938, %v4110
      %v4156 = vadd.f32 %v3939, %v4113
      %v4157 = vadd.f32 %v3940, %v4115
      %v4158 = vadd.f32 %v3941, %v4118
      %v4159 = vadd.f32 %v3942, %v4120
      %v4160 = vadd.f32 %v3943, %v4123
      %v4161 = vadd.f32 %v3944, %v4125
      %v4162 = vadd.f32 %v3945, %v4128
      %v4163 = vadd.f32 %v3946, %v4130
      %v4164 = vld [vmem:[#allocation4 + $0xc] sm:$0xf]
      %v4165 = vld [vmem:[#allocation4 + $0x10] sm:$0xf]
      %v4166 = vld [vmem:[#allocation4 + $0x14] sm:$0xf]
      %v4167 = vld [vmem:[#allocation4 + $0x18] sm:$0xf]
      %v4168 = vld [vmem:[#allocation4 + $0x1c] sm:$0xf]
      %v4169 = vld [vmem:[#allocation4 + $0x20] sm:$0xf]
      %v4170 = vld [vmem:[#allocation4 + $0x24] sm:$0xf]
      %v4171 = vld [vmem:[#allocation4 + $0x28] sm:$0xf]
      %v4172 = vld [vmem:[#allocation4 + $0x2c] sm:$0xf]
      %v4173 = vld [vmem:[#allocation4 + $0x30] sm:$0xf]
      %v4174 = vld [vmem:[#allocation4 + $0x34] sm:$0xf]
      %v4175 = vld [vmem:[#allocation4 + $0x38] sm:$0xf]
      %v4176 = vld [vmem:[#allocation4 + $0x3c] sm:$0xf]
      %v4177 = vld [vmem:[#allocation4 + $0x40] sm:$0xf]
      %v4178 = vld [vmem:[#allocation4 + $0x44] sm:$0xf]
      %v4179 = vld [vmem:[#allocation4 + $0x48] sm:$0xf]
      %v4180 = vld [vmem:[#allocation4 + $0x4c] sm:$0xf]
      %v4181 = vld [vmem:[#allocation4 + $0x50] sm:$0xf]
      %v4182 = vld [vmem:[#allocation4 + $0x54] sm:$0xf]
      %v4183 = vld [vmem:[#allocation4 + $0x58] sm:$0xf]
      %v4184 = vld [vmem:[#allocation4 + $0x5c] sm:$0xf]
      %v4185 = vld [vmem:[#allocation4 + $0x60] sm:$0xf]
      %v4186 = vld [vmem:[#allocation4 + $0x64] sm:$0xf]
      %v4187 = vld [vmem:[#allocation4 + $0x68] sm:$0xf]
      %v4188 = vld [vmem:[#allocation4 + $0x6c] sm:$0xf]
      %v4189 = vld [vmem:[#allocation4 + $0x70] sm:$0xf]
      %v4190 = vld [vmem:[#allocation4 + $0x74] sm:$0xf]
      %v4191 = vld [vmem:[#allocation4 + $0x78] sm:$0xf]
      %v4192 = vld [vmem:[#allocation4 + $0x7c] sm:$0xf]
      %v4193 = vld [vmem:[#allocation4 + $0x80] sm:$0xf]
      %v4194 = vld [vmem:[#allocation4 + $0x84] sm:$0xf]
      %v4195 = vld [vmem:[#allocation4 + $0x88] sm:$0xf]
      %v4196 = vld [vmem:[#allocation4 + $0x8c] sm:$0x1]
      %v4197 = vld [vmem:[%s3 + $0x140] sm:$0xf]
      %v4198 = vld [vmem:[%s3 + $0x144] sm:$0xf]
      %v4199 = vld [vmem:[%s3 + $0x148] sm:$0xf]
      %v4200 = vld [vmem:[%s3 + $0x14c] sm:$0xf]
      %v4201 = vld [vmem:[%s3 + $0x150] sm:$0xf]
      %v4202 = vld [vmem:[%s3 + $0x154] sm:$0xf]
      %v4203 = vld [vmem:[%s3 + $0x158] sm:$0xf]
      %v4204 = vld [vmem:[%s3 + $0x15c] sm:$0xf]
      %v4205 = vld [vmem:[%s3 + $0x160] sm:$0xf]
      %v4206 = vld [vmem:[%s3 + $0x164] sm:$0xf]
      %v4207 = vld [vmem:[%s3 + $0x168] sm:$0xf]
      %v4208 = vld [vmem:[%s3 + $0x16c] sm:$0xf]
      %v4209 = vld [vmem:[%s3 + $0x170] sm:$0xf]
      %v4210 = vld [vmem:[%s3 + $0x174] sm:$0xf]
      %v4211 = vld [vmem:[%s3 + $0x178] sm:$0xf]
      %v4212 = vld [vmem:[%s3 + $0x17c] sm:$0xf]
      %v4246 = vunpack.c.l.b16 %v4164
      %v4247 = vunpack.c.l.b16 %v4165
      %v4248 = vunpack.c.l.b16 %v4166
      %v4249 = vunpack.c.l.b16 %v4167
      %v4250 = vunpack.c.l.b16 %v4168
      %v4251 = vunpack.c.l.b16 %v4169
      %v4252 = vunpack.c.l.b16 %v4170
      %v4253 = vunpack.c.l.b16 %v4171
      %v4254 = vunpack.c.l.b16 %v4172
      %v4255 = vunpack.c.l.b16 %v4173
      %v4256 = vunpack.c.l.b16 %v4174
      %v4257 = vunpack.c.l.b16 %v4175
      %v4258 = vunpack.c.l.b16 %v4176
      %v4259 = vunpack.c.l.b16 %v4177
      %v4260 = vunpack.c.l.b16 %v4178
      %v4261 = vunpack.c.l.b16 %v4179
      %v4262 = vunpack.c.l.b16 %v4180
      %v4263 = vunpack.c.l.b16 %v4181
      %v4264 = vunpack.c.l.b16 %v4182
      %v4265 = vunpack.c.l.b16 %v4183
      %v4266 = vunpack.c.l.b16 %v4184
      %v4267 = vunpack.c.l.b16 %v4185
      %v4268 = vunpack.c.l.b16 %v4186
      %v4269 = vunpack.c.l.b16 %v4187
      %v4270 = vunpack.c.l.b16 %v4188
      %v4271 = vunpack.c.l.b16 %v4189
      %v4272 = vunpack.c.l.b16 %v4190
      %v4273 = vunpack.c.l.b16 %v4191
      %v4274 = vunpack.c.l.b16 %v4192
      %v4275 = vunpack.c.l.b16 %v4193
      %v4276 = vunpack.c.l.b16 %v4194
      %v4277 = vunpack.c.l.b16 %v4195
      %v4278 = vunpack.c.l.b16 %v4196
      %v4279 = vpack.c.b16 %v4247, %v4246
      %v4280 = vpack.c.b16 %v4249, %v4248
      %v4281 = vpack.c.b16 %v4251, %v4250
      %v4282 = vpack.c.b16 %v4253, %v4252
      %v4283 = vpack.c.b16 %v4255, %v4254
      %v4284 = vpack.c.b16 %v4257, %v4256
      %v4285 = vpack.c.b16 %v4259, %v4258
      %v4286 = vpack.c.b16 %v4261, %v4260
      %v4287 = vpack.c.b16 %v4263, %v4262
      %v4288 = vpack.c.b16 %v4265, %v4264
      %v4289 = vpack.c.b16 %v4267, %v4266
      %v4290 = vpack.c.b16 %v4269, %v4268
      %v4291 = vpack.c.b16 %v4271, %v4270
      %v4292 = vpack.c.b16 %v4273, %v4272
      %v4293 = vpack.c.b16 %v4275, %v4274
      %v4294 = vpack.c.b16 %v4277, %v4276
      %v4295 = vpack.c.b16 %v4278, %v4278
      %v4297 = vshrl.u32 %v4279, 16
      %v4299 = vshll.u32 %v4279, 16
      %v4301 = vrot.slane %v4299, 1
      %v4302 = vor.u32 %v4297, %v4301
      %v4304 = vshll.u32 %v4280, 16
      %v4306 = vrot.slane %v4304, 1
      %v4307 = vsel %vm3160, %v4302, %v4306
      %v4308 = vshrl.u32 %v4280, 16
      %v4310 = vor.u32 %v4308, %v4306
      %v4312 = vshll.u32 %v4281, 16
      %v4314 = vrot.slane %v4312, 1
      %v4315 = vsel %vm3160, %v4310, %v4314
      %v4316 = vshrl.u32 %v4281, 16
      %v4318 = vor.u32 %v4316, %v4314
      %v4320 = vshll.u32 %v4282, 16
      %v4322 = vrot.slane %v4320, 1
      %v4323 = vsel %vm3160, %v4318, %v4322
      %v4324 = vshrl.u32 %v4282, 16
      %v4326 = vor.u32 %v4324, %v4322
      %v4328 = vshll.u32 %v4283, 16
      %v4330 = vrot.slane %v4328, 1
      %v4331 = vsel %vm3160, %v4326, %v4330
      %v4332 = vshrl.u32 %v4283, 16
      %v4334 = vor.u32 %v4332, %v4330
      %v4336 = vshll.u32 %v4284, 16
      %v4338 = vrot.slane %v4336, 1
      %v4339 = vsel %vm3160, %v4334, %v4338
      %v4340 = vshrl.u32 %v4284, 16
      %v4342 = vor.u32 %v4340, %v4338
      %v4344 = vshll.u32 %v4285, 16
      %v4346 = vrot.slane %v4344, 1
      %v4347 = vsel %vm3160, %v4342, %v4346
      %v4348 = vshrl.u32 %v4285, 16
      %v4350 = vor.u32 %v4348, %v4346
      %v4352 = vshll.u32 %v4286, 16
      %v4354 = vrot.slane %v4352, 1
      %v4355 = vsel %vm3160, %v4350, %v4354
      %v4356 = vshrl.u32 %v4286, 16
      %v4358 = vor.u32 %v4356, %v4354
      %v4360 = vshll.u32 %v4287, 16
      %v4362 = vrot.slane %v4360, 1
      %v4363 = vsel %vm3160, %v4358, %v4362
      %v4364 = vshrl.u32 %v4287, 16
      %v4366 = vor.u32 %v4364, %v4362
      %v4368 = vshll.u32 %v4288, 16
      %v4370 = vrot.slane %v4368, 1
      %v4371 = vsel %vm3160, %v4366, %v4370
      %v4372 = vshrl.u32 %v4288, 16
      %v4374 = vor.u32 %v4372, %v4370
      %v4376 = vshll.u32 %v4289, 16
      %v4378 = vrot.slane %v4376, 1
      %v4379 = vsel %vm3160, %v4374, %v4378
      %v4380 = vshrl.u32 %v4289, 16
      %v4382 = vor.u32 %v4380, %v4378
      %v4384 = vshll.u32 %v4290, 16
      %v4386 = vrot.slane %v4384, 1
      %v4387 = vsel %vm3160, %v4382, %v4386
      %v4388 = vshrl.u32 %v4290, 16
      %v4390 = vor.u32 %v4388, %v4386
      %v4392 = vshll.u32 %v4291, 16
      %v4394 = vrot.slane %v4392, 1
      %v4395 = vsel %vm3160, %v4390, %v4394
      %v4396 = vshrl.u32 %v4291, 16
      %v4398 = vor.u32 %v4396, %v4394
      %v4400 = vshll.u32 %v4292, 16
      %v4402 = vrot.slane %v4400, 1
      %v4403 = vsel %vm3160, %v4398, %v4402
      %v4404 = vshrl.u32 %v4292, 16
      %v4406 = vor.u32 %v4404, %v4402
      %v4408 = vshll.u32 %v4293, 16
      %v4410 = vrot.slane %v4408, 1
      %v4411 = vsel %vm3160, %v4406, %v4410
      %v4412 = vshrl.u32 %v4293, 16
      %v4414 = vor.u32 %v4412, %v4410
      %v4416 = vshll.u32 %v4294, 16
      %v4418 = vrot.slane %v4416, 1
      %v4419 = vsel %vm3160, %v4414, %v4418
      %v4420 = vshrl.u32 %v4294, 16
      %v4422 = vor.u32 %v4420, %v4418
      %v4424 = vshll.u32 %v4295, 16
      %v4426 = vrot.slane %v4424, 1
      %v4427 = vsel %vm3160, %v4422, %v4426
      %v4460 = vunpack.c.l.b16 %v4197
      %v4461 = vunpack.c.l.b16 %v4198
      %v4462 = vunpack.c.l.b16 %v4199
      %v4463 = vunpack.c.l.b16 %v4200
      %v4464 = vunpack.c.l.b16 %v4201
      %v4465 = vunpack.c.l.b16 %v4202
      %v4466 = vunpack.c.l.b16 %v4203
      %v4467 = vunpack.c.l.b16 %v4204
      %v4468 = vunpack.c.l.b16 %v4205
      %v4469 = vunpack.c.l.b16 %v4206
      %v4470 = vunpack.c.l.b16 %v4207
      %v4471 = vunpack.c.l.b16 %v4208
      %v4472 = vunpack.c.l.b16 %v4209
      %v4473 = vunpack.c.l.b16 %v4210
      %v4474 = vunpack.c.l.b16 %v4211
      %v4475 = vunpack.c.l.b16 %v4212
      %v4476 = vpack.c.b16 %v4461, %v4460
      %v4477 = vpack.c.b16 %v4463, %v4462
      %v4478 = vpack.c.b16 %v4465, %v4464
      %v4479 = vpack.c.b16 %v4467, %v4466
      %v4480 = vpack.c.b16 %v4469, %v4468
      %v4481 = vpack.c.b16 %v4471, %v4470
      %v4482 = vpack.c.b16 %v4473, %v4472
      %v4483 = vpack.c.b16 %v4475, %v4474
      %4492 = vmatpush.bf16.msra.mxu0 %v4483
      %4493 = vmatpush.bf16.msra.mxu0 %v4482
      %4494 = vmatpush.bf16.msra.mxu0 %v4481
      %4495 = vmatpush.bf16.msra.mxu0 %v4480
      %4496 = vmatpush.bf16.msra.mxu0 %v4479
      %4497 = vmatpush.bf16.msra.mxu0 %v4478
      %4498 = vmatpush.bf16.msra.mxu0 %v4477
      %4499 = vmatpush.bf16.msra.mxu0 %v4476
      %4500 = vmatmul.bf16.gmra.mxu0 %v4307
      %v4501 = vpop.f32.mrf.mxu0
      %v4502 = vadd.f32 0.0, %v4501
      %v4503 = vpop.f32.mrf.mxu0
      %v4504 = vadd.f32 0.0, %v4503
      %4505 = vmatmul.bf16.gmra.mxu0 %v4315
      %v4506 = vpop.f32.mrf.mxu0
      %v4507 = vadd.f32 0.0, %v4506
      %v4508 = vpop.f32.mrf.mxu0
      %v4509 = vadd.f32 0.0, %v4508
      %4510 = vmatmul.bf16.gmra.mxu0 %v4323
      %v4511 = vpop.f32.mrf.mxu0
      %v4512 = vadd.f32 0.0, %v4511
      %v4513 = vpop.f32.mrf.mxu0
      %v4514 = vadd.f32 0.0, %v4513
      %4515 = vmatmul.bf16.gmra.mxu0 %v4331
      %v4516 = vpop.f32.mrf.mxu0
      %v4517 = vadd.f32 0.0, %v4516
      %v4518 = vpop.f32.mrf.mxu0
      %v4519 = vadd.f32 0.0, %v4518
      %4520 = vmatmul.bf16.gmra.mxu0 %v4339
      %v4521 = vpop.f32.mrf.mxu0
      %v4522 = vadd.f32 0.0, %v4521
      %v4523 = vpop.f32.mrf.mxu0
      %v4524 = vadd.f32 0.0, %v4523
      %4525 = vmatmul.bf16.gmra.mxu0 %v4347
      %v4526 = vpop.f32.mrf.mxu0
      %v4527 = vadd.f32 0.0, %v4526
      %v4528 = vpop.f32.mrf.mxu0
      %v4529 = vadd.f32 0.0, %v4528
      %4530 = vmatmul.bf16.gmra.mxu0 %v4355
      %v4531 = vpop.f32.mrf.mxu0
      %v4532 = vadd.f32 0.0, %v4531
      %v4533 = vpop.f32.mrf.mxu0
      %v4534 = vadd.f32 0.0, %v4533
      %4535 = vmatmul.bf16.gmra.mxu0 %v4363
      %v4536 = vpop.f32.mrf.mxu0
      %v4537 = vadd.f32 0.0, %v4536
      %v4538 = vpop.f32.mrf.mxu0
      %v4539 = vadd.f32 0.0, %v4538
      %4540 = vmatmul.bf16.gmra.mxu0 %v4371
      %v4541 = vpop.f32.mrf.mxu0
      %v4542 = vadd.f32 0.0, %v4541
      %v4543 = vpop.f32.mrf.mxu0
      %v4544 = vadd.f32 0.0, %v4543
      %4545 = vmatmul.bf16.gmra.mxu0 %v4379
      %v4546 = vpop.f32.mrf.mxu0
      %v4547 = vadd.f32 0.0, %v4546
      %v4548 = vpop.f32.mrf.mxu0
      %v4549 = vadd.f32 0.0, %v4548
      %4550 = vmatmul.bf16.gmra.mxu0 %v4387
      %v4551 = vpop.f32.mrf.mxu0
      %v4552 = vadd.f32 0.0, %v4551
      %v4553 = vpop.f32.mrf.mxu0
      %v4554 = vadd.f32 0.0, %v4553
      %4555 = vmatmul.bf16.gmra.mxu0 %v4395
      %v4556 = vpop.f32.mrf.mxu0
      %v4557 = vadd.f32 0.0, %v4556
      %v4558 = vpop.f32.mrf.mxu0
      %v4559 = vadd.f32 0.0, %v4558
      %4560 = vmatmul.bf16.gmra.mxu0 %v4403
      %v4561 = vpop.f32.mrf.mxu0
      %v4562 = vadd.f32 0.0, %v4561
      %v4563 = vpop.f32.mrf.mxu0
      %v4564 = vadd.f32 0.0, %v4563
      %4565 = vmatmul.bf16.gmra.mxu0 %v4411
      %v4566 = vpop.f32.mrf.mxu0
      %v4567 = vadd.f32 0.0, %v4566
      %v4568 = vpop.f32.mrf.mxu0
      %v4569 = vadd.f32 0.0, %v4568
      %4570 = vmatmul.bf16.gmra.mxu0 %v4419
      %v4571 = vpop.f32.mrf.mxu0
      %v4572 = vadd.f32 0.0, %v4571
      %v4573 = vpop.f32.mrf.mxu0
      %v4574 = vadd.f32 0.0, %v4573
      %4575 = vmatmul.bf16.gmra.mxu0 %v4427
      %v4576 = vpop.f32.mrf.mxu0
      %v4577 = vadd.f32 0.0, %v4576
      %v4578 = vpop.f32.mrf.mxu0
      %v4579 = vadd.f32 0.0, %v4578
      %4580 = vdwg.mxu0
      %v4581 = vadd.f32 %v4132, %v4502
      %v4582 = vadd.f32 %v4133, %v4504
      %v4583 = vadd.f32 %v4134, %v4507
      %v4584 = vadd.f32 %v4135, %v4509
      %v4585 = vadd.f32 %v4136, %v4512
      %v4586 = vadd.f32 %v4137, %v4514
      %v4587 = vadd.f32 %v4138, %v4517
      %v4588 = vadd.f32 %v4139, %v4519
      %v4589 = vadd.f32 %v4140, %v4522
      %v4590 = vadd.f32 %v4141, %v4524
      %v4591 = vadd.f32 %v4142, %v4527
      %v4592 = vadd.f32 %v4143, %v4529
      %v4593 = vadd.f32 %v4144, %v4532
      %v4594 = vadd.f32 %v4145, %v4534
      %v4595 = vadd.f32 %v4146, %v4537
      %v4596 = vadd.f32 %v4147, %v4539
      %v4597 = vadd.f32 %v4148, %v4542
      %v4598 = vadd.f32 %v4149, %v4544
      %v4599 = vadd.f32 %v4150, %v4547
      %v4600 = vadd.f32 %v4151, %v4549
      %v4601 = vadd.f32 %v4152, %v4552
      %v4602 = vadd.f32 %v4153, %v4554
      %v4603 = vadd.f32 %v4154, %v4557
      %v4604 = vadd.f32 %v4155, %v4559
      %v4605 = vadd.f32 %v4156, %v4562
      %v4606 = vadd.f32 %v4157, %v4564
      %v4607 = vadd.f32 %v4158, %v4567
      %v4608 = vadd.f32 %v4159, %v4569
      %v4609 = vadd.f32 %v4160, %v4572
      %v4610 = vadd.f32 %v4161, %v4574
      %v4611 = vadd.f32 %v4162, %v4577
      %v4612 = vadd.f32 %v4163, %v4579
      %v4613 = vld [vmem:[#allocation4 + $0x10] sm:$0x8]
      %v4614 = vld [vmem:[#allocation4 + $0x14] sm:$0xf]
      %v4615 = vld [vmem:[#allocation4 + $0x18] sm:$0xf]
      %v4616 = vld [vmem:[#allocation4 + $0x1c] sm:$0xf]
      %v4617 = vld [vmem:[#allocation4 + $0x20] sm:$0xf]
      %v4618 = vld [vmem:[#allocation4 + $0x24] sm:$0xf]
      %v4619 = vld [vmem:[#allocation4 + $0x28] sm:$0xf]
      %v4620 = vld [vmem:[#allocation4 + $0x2c] sm:$0xf]
      %v4621 = vld [vmem:[#allocation4 + $0x30] sm:$0xf]
      %v4622 = vld [vmem:[#allocation4 + $0x34] sm:$0xf]
      %v4623 = vld [vmem:[#allocation4 + $0x38] sm:$0xf]
      %v4624 = vld [vmem:[#allocation4 + $0x3c] sm:$0xf]
      %v4625 = vld [vmem:[#allocation4 + $0x40] sm:$0xf]
      %v4626 = vld [vmem:[#allocation4 + $0x44] sm:$0xf]
      %v4627 = vld [vmem:[#allocation4 + $0x48] sm:$0xf]
      %v4628 = vld [vmem:[#allocation4 + $0x4c] sm:$0xf]
      %v4629 = vld [vmem:[#allocation4 + $0x50] sm:$0xf]
      %v4630 = vld [vmem:[#allocation4 + $0x54] sm:$0xf]
      %v4631 = vld [vmem:[#allocation4 + $0x58] sm:$0xf]
      %v4632 = vld [vmem:[#allocation4 + $0x5c] sm:$0xf]
      %v4633 = vld [vmem:[#allocation4 + $0x60] sm:$0xf]
      %v4634 = vld [vmem:[#allocation4 + $0x64] sm:$0xf]
      %v4635 = vld [vmem:[#allocation4 + $0x68] sm:$0xf]
      %v4636 = vld [vmem:[#allocation4 + $0x6c] sm:$0xf]
      %v4637 = vld [vmem:[#allocation4 + $0x70] sm:$0xf]
      %v4638 = vld [vmem:[#allocation4 + $0x74] sm:$0xf]
      %v4639 = vld [vmem:[#allocation4 + $0x78] sm:$0xf]
      %v4640 = vld [vmem:[#allocation4 + $0x7c] sm:$0xf]
      %v4641 = vld [vmem:[#allocation4 + $0x80] sm:$0xf]
      %v4642 = vld [vmem:[#allocation4 + $0x84] sm:$0xf]
      %v4643 = vld [vmem:[#allocation4 + $0x88] sm:$0xf]
      %v4644 = vld [vmem:[#allocation4 + $0x8c] sm:$0xf]
      %v4645 = vld [vmem:[#allocation4 + $0x90] sm:$0xf]
      %v4646 = vld [vmem:[%s3 + $0x180] sm:$0xf]
      %v4647 = vld [vmem:[%s3 + $0x184] sm:$0xf]
      %v4648 = vld [vmem:[%s3 + $0x188] sm:$0xf]
      %v4649 = vld [vmem:[%s3 + $0x18c] sm:$0xf]
      %v4650 = vld [vmem:[%s3 + $0x190] sm:$0xf]
      %v4651 = vld [vmem:[%s3 + $0x194] sm:$0xf]
      %v4652 = vld [vmem:[%s3 + $0x198] sm:$0xf]
      %v4653 = vld [vmem:[%s3 + $0x19c] sm:$0xf]
      %v4654 = vld [vmem:[%s3 + $0x1a0] sm:$0xf]
      %v4655 = vld [vmem:[%s3 + $0x1a4] sm:$0xf]
      %v4656 = vld [vmem:[%s3 + $0x1a8] sm:$0xf]
      %v4657 = vld [vmem:[%s3 + $0x1ac] sm:$0xf]
      %v4658 = vld [vmem:[%s3 + $0x1b0] sm:$0xf]
      %v4659 = vld [vmem:[%s3 + $0x1b4] sm:$0xf]
      %v4660 = vld [vmem:[%s3 + $0x1b8] sm:$0xf]
      %v4661 = vld [vmem:[%s3 + $0x1bc] sm:$0xf]
      %v4695 = vunpack.c.l.b16 %v4613
      %v4696 = vunpack.c.l.b16 %v4614
      %v4697 = vunpack.c.l.b16 %v4615
      %v4698 = vunpack.c.l.b16 %v4616
      %v4699 = vunpack.c.l.b16 %v4617
      %v4700 = vunpack.c.l.b16 %v4618
      %v4701 = vunpack.c.l.b16 %v4619
      %v4702 = vunpack.c.l.b16 %v4620
      %v4703 = vunpack.c.l.b16 %v4621
      %v4704 = vunpack.c.l.b16 %v4622
      %v4705 = vunpack.c.l.b16 %v4623
      %v4706 = vunpack.c.l.b16 %v4624
      %v4707 = vunpack.c.l.b16 %v4625
      %v4708 = vunpack.c.l.b16 %v4626
      %v4709 = vunpack.c.l.b16 %v4627
      %v4710 = vunpack.c.l.b16 %v4628
      %v4711 = vunpack.c.l.b16 %v4629
      %v4712 = vunpack.c.l.b16 %v4630
      %v4713 = vunpack.c.l.b16 %v4631
      %v4714 = vunpack.c.l.b16 %v4632
      %v4715 = vunpack.c.l.b16 %v4633
      %v4716 = vunpack.c.l.b16 %v4634
      %v4717 = vunpack.c.l.b16 %v4635
      %v4718 = vunpack.c.l.b16 %v4636
      %v4719 = vunpack.c.l.b16 %v4637
      %v4720 = vunpack.c.l.b16 %v4638
      %v4721 = vunpack.c.l.b16 %v4639
      %v4722 = vunpack.c.l.b16 %v4640
      %v4723 = vunpack.c.l.b16 %v4641
      %v4724 = vunpack.c.l.b16 %v4642
      %v4725 = vunpack.c.l.b16 %v4643
      %v4726 = vunpack.c.l.b16 %v4644
      %v4727 = vunpack.c.l.b16 %v4645
      %v4728 = vpack.c.b16 %v4696, %v4695
      %v4729 = vpack.c.b16 %v4698, %v4697
      %v4730 = vpack.c.b16 %v4700, %v4699
      %v4731 = vpack.c.b16 %v4702, %v4701
      %v4732 = vpack.c.b16 %v4704, %v4703
      %v4733 = vpack.c.b16 %v4706, %v4705
      %v4734 = vpack.c.b16 %v4708, %v4707
      %v4735 = vpack.c.b16 %v4710, %v4709
      %v4736 = vpack.c.b16 %v4712, %v4711
      %v4737 = vpack.c.b16 %v4714, %v4713
      %v4738 = vpack.c.b16 %v4716, %v4715
      %v4739 = vpack.c.b16 %v4718, %v4717
      %v4740 = vpack.c.b16 %v4720, %v4719
      %v4741 = vpack.c.b16 %v4722, %v4721
      %v4742 = vpack.c.b16 %v4724, %v4723
      %v4743 = vpack.c.b16 %v4726, %v4725
      %v4744 = vpack.c.b16 %v4727, %v4727
      %v4746 = vshrl.u32 %v4728, 16
      %v4748 = vrot.slane %v4746, 3
      %v4749 = vshll.u32 %v4728, 16
      %v4751 = vrot.slane %v4749, 4
      %v4752 = vor.u32 %v4748, %v4751
      %v4754 = vshrl.u32 %v4729, 16
      %v4756 = vrot.slane %v4754, 3
      %v4757 = vshll.u32 %v4729, 16
      %v4759 = vrot.slane %v4757, 4
      %v4760 = vor.u32 %v4756, %v4759
      %v4761 = vsel %vm2722, %v4752, %v4760
      %v4763 = vshrl.u32 %v4730, 16
      %v4765 = vrot.slane %v4763, 3
      %v4766 = vshll.u32 %v4730, 16
      %v4768 = vrot.slane %v4766, 4
      %v4769 = vor.u32 %v4765, %v4768
      %v4770 = vsel %vm2722, %v4760, %v4769
      %v4772 = vshrl.u32 %v4731, 16
      %v4774 = vrot.slane %v4772, 3
      %v4775 = vshll.u32 %v4731, 16
      %v4777 = vrot.slane %v4775, 4
      %v4778 = vor.u32 %v4774, %v4777
      %v4779 = vsel %vm2722, %v4769, %v4778
      %v4781 = vshrl.u32 %v4732, 16
      %v4783 = vrot.slane %v4781, 3
      %v4784 = vshll.u32 %v4732, 16
      %v4786 = vrot.slane %v4784, 4
      %v4787 = vor.u32 %v4783, %v4786
      %v4788 = vsel %vm2722, %v4778, %v4787
      %v4790 = vshrl.u32 %v4733, 16
      %v4792 = vrot.slane %v4790, 3
      %v4793 = vshll.u32 %v4733, 16
      %v4795 = vrot.slane %v4793, 4
      %v4796 = vor.u32 %v4792, %v4795
      %v4797 = vsel %vm2722, %v4787, %v4796
      %v4799 = vshrl.u32 %v4734, 16
      %v4801 = vrot.slane %v4799, 3
      %v4802 = vshll.u32 %v4734, 16
      %v4804 = vrot.slane %v4802, 4
      %v4805 = vor.u32 %v4801, %v4804
      %v4806 = vsel %vm2722, %v4796, %v4805
      %v4808 = vshrl.u32 %v4735, 16
      %v4810 = vrot.slane %v4808, 3
      %v4811 = vshll.u32 %v4735, 16
      %v4813 = vrot.slane %v4811, 4
      %v4814 = vor.u32 %v4810, %v4813
      %v4815 = vsel %vm2722, %v4805, %v4814
      %v4817 = vshrl.u32 %v4736, 16
      %v4819 = vrot.slane %v4817, 3
      %v4820 = vshll.u32 %v4736, 16
      %v4822 = vrot.slane %v4820, 4
      %v4823 = vor.u32 %v4819, %v4822
      %v4824 = vsel %vm2722, %v4814, %v4823
      %v4826 = vshrl.u32 %v4737, 16
      %v4828 = vrot.slane %v4826, 3
      %v4829 = vshll.u32 %v4737, 16
      %v4831 = vrot.slane %v4829, 4
      %v4832 = vor.u32 %v4828, %v4831
      %v4833 = vsel %vm2722, %v4823, %v4832
      %v4835 = vshrl.u32 %v4738, 16
      %v4837 = vrot.slane %v4835, 3
      %v4838 = vshll.u32 %v4738, 16
      %v4840 = vrot.slane %v4838, 4
      %v4841 = vor.u32 %v4837, %v4840
      %v4842 = vsel %vm2722, %v4832, %v4841
      %v4844 = vshrl.u32 %v4739, 16
      %v4846 = vrot.slane %v4844, 3
      %v4847 = vshll.u32 %v4739, 16
      %v4849 = vrot.slane %v4847, 4
      %v4850 = vor.u32 %v4846, %v4849
      %v4851 = vsel %vm2722, %v4841, %v4850
      %v4853 = vshrl.u32 %v4740, 16
      %v4855 = vrot.slane %v4853, 3
      %v4856 = vshll.u32 %v4740, 16
      %v4858 = vrot.slane %v4856, 4
      %v4859 = vor.u32 %v4855, %v4858
      %v4860 = vsel %vm2722, %v4850, %v4859
      %v4862 = vshrl.u32 %v4741, 16
      %v4864 = vrot.slane %v4862, 3
      %v4865 = vshll.u32 %v4741, 16
      %v4867 = vrot.slane %v4865, 4
      %v4868 = vor.u32 %v4864, %v4867
      %v4869 = vsel %vm2722, %v4859, %v4868
      %v4871 = vshrl.u32 %v4742, 16
      %v4873 = vrot.slane %v4871, 3
      %v4874 = vshll.u32 %v4742, 16
      %v4876 = vrot.slane %v4874, 4
      %v4877 = vor.u32 %v4873, %v4876
      %v4878 = vsel %vm2722, %v4868, %v4877
      %v4880 = vshrl.u32 %v4743, 16
      %v4882 = vrot.slane %v4880, 3
      %v4883 = vshll.u32 %v4743, 16
      %v4885 = vrot.slane %v4883, 4
      %v4886 = vor.u32 %v4882, %v4885
      %v4887 = vsel %vm2722, %v4877, %v4886
      %v4889 = vshrl.u32 %v4744, 16
      %v4891 = vrot.slane %v4889, 3
      %v4892 = vshll.u32 %v4744, 16
      %v4894 = vrot.slane %v4892, 4
      %v4895 = vor.u32 %v4891, %v4894
      %v4896 = vsel %vm2722, %v4886, %v4895
      %v4929 = vunpack.c.l.b16 %v4646
      %v4930 = vunpack.c.l.b16 %v4647
      %v4931 = vunpack.c.l.b16 %v4648
      %v4932 = vunpack.c.l.b16 %v4649
      %v4933 = vunpack.c.l.b16 %v4650
      %v4934 = vunpack.c.l.b16 %v4651
      %v4935 = vunpack.c.l.b16 %v4652
      %v4936 = vunpack.c.l.b16 %v4653
      %v4937 = vunpack.c.l.b16 %v4654
      %v4938 = vunpack.c.l.b16 %v4655
      %v4939 = vunpack.c.l.b16 %v4656
      %v4940 = vunpack.c.l.b16 %v4657
      %v4941 = vunpack.c.l.b16 %v4658
      %v4942 = vunpack.c.l.b16 %v4659
      %v4943 = vunpack.c.l.b16 %v4660
      %v4944 = vunpack.c.l.b16 %v4661
      %v4945 = vpack.c.b16 %v4930, %v4929
      %v4946 = vpack.c.b16 %v4932, %v4931
      %v4947 = vpack.c.b16 %v4934, %v4933
      %v4948 = vpack.c.b16 %v4936, %v4935
      %v4949 = vpack.c.b16 %v4938, %v4937
      %v4950 = vpack.c.b16 %v4940, %v4939
      %v4951 = vpack.c.b16 %v4942, %v4941
      %v4952 = vpack.c.b16 %v4944, %v4943
      %4961 = vmatpush.bf16.msra.mxu0 %v4952
      %4962 = vmatpush.bf16.msra.mxu0 %v4951
      %4963 = vmatpush.bf16.msra.mxu0 %v4950
      %4964 = vmatpush.bf16.msra.mxu0 %v4949
      %4965 = vmatpush.bf16.msra.mxu0 %v4948
      %4966 = vmatpush.bf16.msra.mxu0 %v4947
      %4967 = vmatpush.bf16.msra.mxu0 %v4946
      %4968 = vmatpush.bf16.msra.mxu0 %v4945
      %4969 = vmatmul.bf16.gmra.mxu0 %v4761
      %v4970 = vpop.f32.mrf.mxu0
      %v4971 = vadd.f32 0.0, %v4970
      %v4972 = vpop.f32.mrf.mxu0
      %v4973 = vadd.f32 0.0, %v4972
      %4974 = vmatmul.bf16.gmra.mxu0 %v4770
      %v4975 = vpop.f32.mrf.mxu0
      %v4976 = vadd.f32 0.0, %v4975
      %v4977 = vpop.f32.mrf.mxu0
      %v4978 = vadd.f32 0.0, %v4977
      %4979 = vmatmul.bf16.gmra.mxu0 %v4779
      %v4980 = vpop.f32.mrf.mxu0
      %v4981 = vadd.f32 0.0, %v4980
      %v4982 = vpop.f32.mrf.mxu0
      %v4983 = vadd.f32 0.0, %v4982
      %4984 = vmatmul.bf16.gmra.mxu0 %v4788
      %v4985 = vpop.f32.mrf.mxu0
      %v4986 = vadd.f32 0.0, %v4985
      %v4987 = vpop.f32.mrf.mxu0
      %v4988 = vadd.f32 0.0, %v4987
      %4989 = vmatmul.bf16.gmra.mxu0 %v4797
      %v4990 = vpop.f32.mrf.mxu0
      %v4991 = vadd.f32 0.0, %v4990
      %v4992 = vpop.f32.mrf.mxu0
      %v4993 = vadd.f32 0.0, %v4992
      %4994 = vmatmul.bf16.gmra.mxu0 %v4806
      %v4995 = vpop.f32.mrf.mxu0
      %v4996 = vadd.f32 0.0, %v4995
      %v4997 = vpop.f32.mrf.mxu0
      %v4998 = vadd.f32 0.0, %v4997
      %4999 = vmatmul.bf16.gmra.mxu0 %v4815
      %v5000 = vpop.f32.mrf.mxu0
      %v5001 = vadd.f32 0.0, %v5000
      %v5002 = vpop.f32.mrf.mxu0
      %v5003 = vadd.f32 0.0, %v5002
      %5004 = vmatmul.bf16.gmra.mxu0 %v4824
      %v5005 = vpop.f32.mrf.mxu0
      %v5006 = vadd.f32 0.0, %v5005
      %v5007 = vpop.f32.mrf.mxu0
      %v5008 = vadd.f32 0.0, %v5007
      %5009 = vmatmul.bf16.gmra.mxu0 %v4833
      %v5010 = vpop.f32.mrf.mxu0
      %v5011 = vadd.f32 0.0, %v5010
      %v5012 = vpop.f32.mrf.mxu0
      %v5013 = vadd.f32 0.0, %v5012
      %5014 = vmatmul.bf16.gmra.mxu0 %v4842
      %v5015 = vpop.f32.mrf.mxu0
      %v5016 = vadd.f32 0.0, %v5015
      %v5017 = vpop.f32.mrf.mxu0
      %v5018 = vadd.f32 0.0, %v5017
      %5019 = vmatmul.bf16.gmra.mxu0 %v4851
      %v5020 = vpop.f32.mrf.mxu0
      %v5021 = vadd.f32 0.0, %v5020
      %v5022 = vpop.f32.mrf.mxu0
      %v5023 = vadd.f32 0.0, %v5022
      %5024 = vmatmul.bf16.gmra.mxu0 %v4860
      %v5025 = vpop.f32.mrf.mxu0
      %v5026 = vadd.f32 0.0, %v5025
      %v5027 = vpop.f32.mrf.mxu0
      %v5028 = vadd.f32 0.0, %v5027
      %5029 = vmatmul.bf16.gmra.mxu0 %v4869
      %v5030 = vpop.f32.mrf.mxu0
      %v5031 = vadd.f32 0.0, %v5030
      %v5032 = vpop.f32.mrf.mxu0
      %v5033 = vadd.f32 0.0, %v5032
      %5034 = vmatmul.bf16.gmra.mxu0 %v4878
      %v5035 = vpop.f32.mrf.mxu0
      %v5036 = vadd.f32 0.0, %v5035
      %v5037 = vpop.f32.mrf.mxu0
      %v5038 = vadd.f32 0.0, %v5037
      %5039 = vmatmul.bf16.gmra.mxu0 %v4887
      %v5040 = vpop.f32.mrf.mxu0
      %v5041 = vadd.f32 0.0, %v5040
      %v5042 = vpop.f32.mrf.mxu0
      %v5043 = vadd.f32 0.0, %v5042
      %5044 = vmatmul.bf16.gmra.mxu0 %v4896
      %v5045 = vpop.f32.mrf.mxu0
      %v5046 = vadd.f32 0.0, %v5045
      %v5047 = vpop.f32.mrf.mxu0
      %v5048 = vadd.f32 0.0, %v5047
      %5049 = vdwg.mxu0
      %v5050 = vadd.f32 %v4581, %v4971
      %v5051 = vadd.f32 %v4582, %v4973
      %v5052 = vadd.f32 %v4583, %v4976
      %v5053 = vadd.f32 %v4584, %v4978
      %v5054 = vadd.f32 %v4585, %v4981
      %v5055 = vadd.f32 %v4586, %v4983
      %v5056 = vadd.f32 %v4587, %v4986
      %v5057 = vadd.f32 %v4588, %v4988
      %v5058 = vadd.f32 %v4589, %v4991
      %v5059 = vadd.f32 %v4590, %v4993
      %v5060 = vadd.f32 %v4591, %v4996
      %v5061 = vadd.f32 %v4592, %v4998
      %v5062 = vadd.f32 %v4593, %v5001
      %v5063 = vadd.f32 %v4594, %v5003
      %v5064 = vadd.f32 %v4595, %v5006
      %v5065 = vadd.f32 %v4596, %v5008
      %v5066 = vadd.f32 %v4597, %v5011
      %v5067 = vadd.f32 %v4598, %v5013
      %v5068 = vadd.f32 %v4599, %v5016
      %v5069 = vadd.f32 %v4600, %v5018
      %v5070 = vadd.f32 %v4601, %v5021
      %v5071 = vadd.f32 %v4602, %v5023
      %v5072 = vadd.f32 %v4603, %v5026
      %v5073 = vadd.f32 %v4604, %v5028
      %v5074 = vadd.f32 %v4605, %v5031
      %v5075 = vadd.f32 %v4606, %v5033
      %v5076 = vadd.f32 %v4607, %v5036
      %v5077 = vadd.f32 %v4608, %v5038
      %v5078 = vadd.f32 %v4609, %v5041
      %v5079 = vadd.f32 %v4610, %v5043
      %v5080 = vadd.f32 %v4611, %v5046
      %v5081 = vadd.f32 %v4612, %v5048
      %v5082 = vld [vmem:[%s3 + $0x1c0] sm:$0xf]
      %v5083 = vld [vmem:[%s3 + $0x1c4] sm:$0xf]
      %v5084 = vld [vmem:[%s3 + $0x1c8] sm:$0xf]
      %v5085 = vld [vmem:[%s3 + $0x1cc] sm:$0xf]
      %v5086 = vld [vmem:[%s3 + $0x1d0] sm:$0xf]
      %v5087 = vld [vmem:[%s3 + $0x1d4] sm:$0xf]
      %v5088 = vld [vmem:[%s3 + $0x1d8] sm:$0xf]
      %v5089 = vld [vmem:[%s3 + $0x1dc] sm:$0xf]
      %v5090 = vld [vmem:[%s3 + $0x1e0] sm:$0xf]
      %v5091 = vld [vmem:[%s3 + $0x1e4] sm:$0xf]
      %v5092 = vld [vmem:[%s3 + $0x1e8] sm:$0xf]
      %v5093 = vld [vmem:[%s3 + $0x1ec] sm:$0xf]
      %v5094 = vld [vmem:[%s3 + $0x1f0] sm:$0xf]
      %v5095 = vld [vmem:[%s3 + $0x1f4] sm:$0xf]
      %v5096 = vld [vmem:[%s3 + $0x1f8] sm:$0xf]
      %v5097 = vld [vmem:[%s3 + $0x1fc] sm:$0xf]
      %v5098 = vpack.c.b16 %v4697, %v4696
      %v5099 = vpack.c.b16 %v4699, %v4698
      %v5100 = vpack.c.b16 %v4701, %v4700
      %v5101 = vpack.c.b16 %v4703, %v4702
      %v5102 = vpack.c.b16 %v4705, %v4704
      %v5103 = vpack.c.b16 %v4707, %v4706
      %v5104 = vpack.c.b16 %v4709, %v4708
      %v5105 = vpack.c.b16 %v4711, %v4710
      %v5106 = vpack.c.b16 %v4713, %v4712
      %v5107 = vpack.c.b16 %v4715, %v4714
      %v5108 = vpack.c.b16 %v4717, %v4716
      %v5109 = vpack.c.b16 %v4719, %v4718
      %v5110 = vpack.c.b16 %v4721, %v4720
      %v5111 = vpack.c.b16 %v4723, %v4722
      %v5112 = vpack.c.b16 %v4725, %v4724
      %v5113 = vpack.c.b16 %v4727, %v4726
      %v5146 = vunpack.c.l.b16 %v5082
      %v5147 = vunpack.c.l.b16 %v5083
      %v5148 = vunpack.c.l.b16 %v5084
      %v5149 = vunpack.c.l.b16 %v5085
      %v5150 = vunpack.c.l.b16 %v5086
      %v5151 = vunpack.c.l.b16 %v5087
      %v5152 = vunpack.c.l.b16 %v5088
      %v5153 = vunpack.c.l.b16 %v5089
      %v5154 = vunpack.c.l.b16 %v5090
      %v5155 = vunpack.c.l.b16 %v5091
      %v5156 = vunpack.c.l.b16 %v5092
      %v5157 = vunpack.c.l.b16 %v5093
      %v5158 = vunpack.c.l.b16 %v5094
      %v5159 = vunpack.c.l.b16 %v5095
      %v5160 = vunpack.c.l.b16 %v5096
      %v5161 = vunpack.c.l.b16 %v5097
      %v5162 = vpack.c.b16 %v5147, %v5146
      %v5163 = vpack.c.b16 %v5149, %v5148
      %v5164 = vpack.c.b16 %v5151, %v5150
      %v5165 = vpack.c.b16 %v5153, %v5152
      %v5166 = vpack.c.b16 %v5155, %v5154
      %v5167 = vpack.c.b16 %v5157, %v5156
      %v5168 = vpack.c.b16 %v5159, %v5158
      %v5169 = vpack.c.b16 %v5161, %v5160
      %5178 = vmatpush.bf16.msra.mxu0 %v5169
      %5179 = vmatpush.bf16.msra.mxu0 %v5168
      %5180 = vmatpush.bf16.msra.mxu0 %v5167
      %5181 = vmatpush.bf16.msra.mxu0 %v5166
      %5182 = vmatpush.bf16.msra.mxu0 %v5165
      %5183 = vmatpush.bf16.msra.mxu0 %v5164
      %5184 = vmatpush.bf16.msra.mxu0 %v5163
      %5185 = vmatpush.bf16.msra.mxu0 %v5162
      %5186 = vmatmul.bf16.gmra.mxu0 %v5098
      %v5187 = vpop.f32.mrf.mxu0
      %v5188 = vadd.f32 0.0, %v5187
      %v5189 = vpop.f32.mrf.mxu0
      %v5190 = vadd.f32 0.0, %v5189
      %5191 = vmatmul.bf16.gmra.mxu0 %v5099
      %v5192 = vpop.f32.mrf.mxu0
      %v5193 = vadd.f32 0.0, %v5192
      %v5194 = vpop.f32.mrf.mxu0
      %v5195 = vadd.f32 0.0, %v5194
      %5196 = vmatmul.bf16.gmra.mxu0 %v5100
      %v5197 = vpop.f32.mrf.mxu0
      %v5198 = vadd.f32 0.0, %v5197
      %v5199 = vpop.f32.mrf.mxu0
      %v5200 = vadd.f32 0.0, %v5199
      %5201 = vmatmul.bf16.gmra.mxu0 %v5101
      %v5202 = vpop.f32.mrf.mxu0
      %v5203 = vadd.f32 0.0, %v5202
      %v5204 = vpop.f32.mrf.mxu0
      %v5205 = vadd.f32 0.0, %v5204
      %5206 = vmatmul.bf16.gmra.mxu0 %v5102
      %v5207 = vpop.f32.mrf.mxu0
      %v5208 = vadd.f32 0.0, %v5207
      %v5209 = vpop.f32.mrf.mxu0
      %v5210 = vadd.f32 0.0, %v5209
      %5211 = vmatmul.bf16.gmra.mxu0 %v5103
      %v5212 = vpop.f32.mrf.mxu0
      %v5213 = vadd.f32 0.0, %v5212
      %v5214 = vpop.f32.mrf.mxu0
      %v5215 = vadd.f32 0.0, %v5214
      %5216 = vmatmul.bf16.gmra.mxu0 %v5104
      %v5217 = vpop.f32.mrf.mxu0
      %v5218 = vadd.f32 0.0, %v5217
      %v5219 = vpop.f32.mrf.mxu0
      %v5220 = vadd.f32 0.0, %v5219
      %5221 = vmatmul.bf16.gmra.mxu0 %v5105
      %v5222 = vpop.f32.mrf.mxu0
      %v5223 = vadd.f32 0.0, %v5222
      %v5224 = vpop.f32.mrf.mxu0
      %v5225 = vadd.f32 0.0, %v5224
      %5226 = vmatmul.bf16.gmra.mxu0 %v5106
      %v5227 = vpop.f32.mrf.mxu0
      %v5228 = vadd.f32 0.0, %v5227
      %v5229 = vpop.f32.mrf.mxu0
      %v5230 = vadd.f32 0.0, %v5229
      %5231 = vmatmul.bf16.gmra.mxu0 %v5107
      %v5232 = vpop.f32.mrf.mxu0
      %v5233 = vadd.f32 0.0, %v5232
      %v5234 = vpop.f32.mrf.mxu0
      %v5235 = vadd.f32 0.0, %v5234
      %5236 = vmatmul.bf16.gmra.mxu0 %v5108
      %v5237 = vpop.f32.mrf.mxu0
      %v5238 = vadd.f32 0.0, %v5237
      %v5239 = vpop.f32.mrf.mxu0
      %v5240 = vadd.f32 0.0, %v5239
      %5241 = vmatmul.bf16.gmra.mxu0 %v5109
      %v5242 = vpop.f32.mrf.mxu0
      %v5243 = vadd.f32 0.0, %v5242
      %v5244 = vpop.f32.mrf.mxu0
      %v5245 = vadd.f32 0.0, %v5244
      %5246 = vmatmul.bf16.gmra.mxu0 %v5110
      %v5247 = vpop.f32.mrf.mxu0
      %v5248 = vadd.f32 0.0, %v5247
      %v5249 = vpop.f32.mrf.mxu0
      %v5250 = vadd.f32 0.0, %v5249
      %5251 = vmatmul.bf16.gmra.mxu0 %v5111
      %v5252 = vpop.f32.mrf.mxu0
      %v5253 = vadd.f32 0.0, %v5252
      %v5254 = vpop.f32.mrf.mxu0
      %v5255 = vadd.f32 0.0, %v5254
      %5256 = vmatmul.bf16.gmra.mxu0 %v5112
      %v5257 = vpop.f32.mrf.mxu0
      %v5258 = vadd.f32 0.0, %v5257
      %v5259 = vpop.f32.mrf.mxu0
      %v5260 = vadd.f32 0.0, %v5259
      %5261 = vmatmul.bf16.gmra.mxu0 %v5113
      %v5262 = vpop.f32.mrf.mxu0
      %v5263 = vadd.f32 0.0, %v5262
      %v5264 = vpop.f32.mrf.mxu0
      %v5265 = vadd.f32 0.0, %v5264
      %5266 = vdwg.mxu0
      %v5267 = vadd.f32 %v5050, %v5188
      %v5268 = vadd.f32 %v5051, %v5190
      %v5269 = vadd.f32 %v5052, %v5193
      %v5270 = vadd.f32 %v5053, %v5195
      %v5271 = vadd.f32 %v5054, %v5198
      %v5272 = vadd.f32 %v5055, %v5200
      %v5273 = vadd.f32 %v5056, %v5203
      %v5274 = vadd.f32 %v5057, %v5205
      %v5275 = vadd.f32 %v5058, %v5208
      %v5276 = vadd.f32 %v5059, %v5210
      %v5277 = vadd.f32 %v5060, %v5213
      %v5278 = vadd.f32 %v5061, %v5215
      %v5279 = vadd.f32 %v5062, %v5218
      %v5280 = vadd.f32 %v5063, %v5220
      %v5281 = vadd.f32 %v5064, %v5223
      %v5282 = vadd.f32 %v5065, %v5225
      %v5283 = vadd.f32 %v5066, %v5228
      %v5284 = vadd.f32 %v5067, %v5230
      %v5285 = vadd.f32 %v5068, %v5233
      %v5286 = vadd.f32 %v5069, %v5235
      %v5287 = vadd.f32 %v5070, %v5238
      %v5288 = vadd.f32 %v5071, %v5240
      %v5289 = vadd.f32 %v5072, %v5243
      %v5290 = vadd.f32 %v5073, %v5245
      %v5291 = vadd.f32 %v5074, %v5248
      %v5292 = vadd.f32 %v5075, %v5250
      %v5293 = vadd.f32 %v5076, %v5253
      %v5294 = vadd.f32 %v5077, %v5255
      %v5295 = vadd.f32 %v5078, %v5258
      %v5296 = vadd.f32 %v5079, %v5260
      %v5297 = vadd.f32 %v5080, %v5263
      %v5298 = vadd.f32 %v5081, %v5265
      %v5299 = vld [vmem:[#allocation4 + $0x14] sm:$0xf]
      %v5300 = vld [vmem:[#allocation4 + $0x18] sm:$0xf]
      %v5301 = vld [vmem:[#allocation4 + $0x1c] sm:$0xf]
      %v5302 = vld [vmem:[#allocation4 + $0x20] sm:$0xf]
      %v5303 = vld [vmem:[#allocation4 + $0x24] sm:$0xf]
      %v5304 = vld [vmem:[#allocation4 + $0x28] sm:$0xf]
      %v5305 = vld [vmem:[#allocation4 + $0x2c] sm:$0xf]
      %v5306 = vld [vmem:[#allocation4 + $0x30] sm:$0xf]
      %v5307 = vld [vmem:[#allocation4 + $0x34] sm:$0xf]
      %v5308 = vld [vmem:[#allocation4 + $0x38] sm:$0xf]
      %v5309 = vld [vmem:[#allocation4 + $0x3c] sm:$0xf]
      %v5310 = vld [vmem:[#allocation4 + $0x40] sm:$0xf]
      %v5311 = vld [vmem:[#allocation4 + $0x44] sm:$0xf]
      %v5312 = vld [vmem:[#allocation4 + $0x48] sm:$0xf]
      %v5313 = vld [vmem:[#allocation4 + $0x4c] sm:$0xf]
      %v5314 = vld [vmem:[#allocation4 + $0x50] sm:$0xf]
      %v5315 = vld [vmem:[#allocation4 + $0x54] sm:$0xf]
      %v5316 = vld [vmem:[#allocation4 + $0x58] sm:$0xf]
      %v5317 = vld [vmem:[#allocation4 + $0x5c] sm:$0xf]
      %v5318 = vld [vmem:[#allocation4 + $0x60] sm:$0xf]
      %v5319 = vld [vmem:[#allocation4 + $0x64] sm:$0xf]
      %v5320 = vld [vmem:[#allocation4 + $0x68] sm:$0xf]
      %v5321 = vld [vmem:[#allocation4 + $0x6c] sm:$0xf]
      %v5322 = vld [vmem:[#allocation4 + $0x70] sm:$0xf]
      %v5323 = vld [vmem:[#allocation4 + $0x74] sm:$0xf]
      %v5324 = vld [vmem:[#allocation4 + $0x78] sm:$0xf]
      %v5325 = vld [vmem:[#allocation4 + $0x7c] sm:$0xf]
      %v5326 = vld [vmem:[#allocation4 + $0x80] sm:$0xf]
      %v5327 = vld [vmem:[#allocation4 + $0x84] sm:$0xf]
      %v5328 = vld [vmem:[#allocation4 + $0x88] sm:$0xf]
      %v5329 = vld [vmem:[#allocation4 + $0x8c] sm:$0xf]
      %v5330 = vld [vmem:[#allocation4 + $0x90] sm:$0xf]
      %v5331 = vld [vmem:[#allocation4 + $0x94] sm:$0x1]
      %v5332 = vld [vmem:[%s3 + $0x200] sm:$0xf]
      %v5333 = vld [vmem:[%s3 + $0x204] sm:$0xf]
      %v5334 = vld [vmem:[%s3 + $0x208] sm:$0xf]
      %v5335 = vld [vmem:[%s3 + $0x20c] sm:$0xf]
      %v5336 = vld [vmem:[%s3 + $0x210] sm:$0xf]
      %v5337 = vld [vmem:[%s3 + $0x214] sm:$0xf]
      %v5338 = vld [vmem:[%s3 + $0x218] sm:$0xf]
      %v5339 = vld [vmem:[%s3 + $0x21c] sm:$0xf]
      %v5340 = vld [vmem:[%s3 + $0x220] sm:$0xf]
      %v5341 = vld [vmem:[%s3 + $0x224] sm:$0xf]
      %v5342 = vld [vmem:[%s3 + $0x228] sm:$0xf]
      %v5343 = vld [vmem:[%s3 + $0x22c] sm:$0xf]
      %v5344 = vld [vmem:[%s3 + $0x230] sm:$0xf]
      %v5345 = vld [vmem:[%s3 + $0x234] sm:$0xf]
      %v5346 = vld [vmem:[%s3 + $0x238] sm:$0xf]
      %v5347 = vld [vmem:[%s3 + $0x23c] sm:$0xf]
      %v5381 = vunpack.c.l.b16 %v5299
      %v5382 = vunpack.c.l.b16 %v5300
      %v5383 = vunpack.c.l.b16 %v5301
      %v5384 = vunpack.c.l.b16 %v5302
      %v5385 = vunpack.c.l.b16 %v5303
      %v5386 = vunpack.c.l.b16 %v5304
      %v5387 = vunpack.c.l.b16 %v5305
      %v5388 = vunpack.c.l.b16 %v5306
      %v5389 = vunpack.c.l.b16 %v5307
      %v5390 = vunpack.c.l.b16 %v5308
      %v5391 = vunpack.c.l.b16 %v5309
      %v5392 = vunpack.c.l.b16 %v5310
      %v5393 = vunpack.c.l.b16 %v5311
      %v5394 = vunpack.c.l.b16 %v5312
      %v5395 = vunpack.c.l.b16 %v5313
      %v5396 = vunpack.c.l.b16 %v5314
      %v5397 = vunpack.c.l.b16 %v5315
      %v5398 = vunpack.c.l.b16 %v5316
      %v5399 = vunpack.c.l.b16 %v5317
      %v5400 = vunpack.c.l.b16 %v5318
      %v5401 = vunpack.c.l.b16 %v5319
      %v5402 = vunpack.c.l.b16 %v5320
      %v5403 = vunpack.c.l.b16 %v5321
      %v5404 = vunpack.c.l.b16 %v5322
      %v5405 = vunpack.c.l.b16 %v5323
      %v5406 = vunpack.c.l.b16 %v5324
      %v5407 = vunpack.c.l.b16 %v5325
      %v5408 = vunpack.c.l.b16 %v5326
      %v5409 = vunpack.c.l.b16 %v5327
      %v5410 = vunpack.c.l.b16 %v5328
      %v5411 = vunpack.c.l.b16 %v5329
      %v5412 = vunpack.c.l.b16 %v5330
      %v5413 = vunpack.c.l.b16 %v5331
      %v5414 = vpack.c.b16 %v5382, %v5381
      %v5415 = vpack.c.b16 %v5384, %v5383
      %v5416 = vpack.c.b16 %v5386, %v5385
      %v5417 = vpack.c.b16 %v5388, %v5387
      %v5418 = vpack.c.b16 %v5390, %v5389
      %v5419 = vpack.c.b16 %v5392, %v5391
      %v5420 = vpack.c.b16 %v5394, %v5393
      %v5421 = vpack.c.b16 %v5396, %v5395
      %v5422 = vpack.c.b16 %v5398, %v5397
      %v5423 = vpack.c.b16 %v5400, %v5399
      %v5424 = vpack.c.b16 %v5402, %v5401
      %v5425 = vpack.c.b16 %v5404, %v5403
      %v5426 = vpack.c.b16 %v5406, %v5405
      %v5427 = vpack.c.b16 %v5408, %v5407
      %v5428 = vpack.c.b16 %v5410, %v5409
      %v5429 = vpack.c.b16 %v5412, %v5411
      %v5430 = vpack.c.b16 %v5413, %v5413
      %v5432 = vshrl.u32 %v5414, 16
      %v5434 = vshll.u32 %v5414, 16
      %v5436 = vrot.slane %v5434, 1
      %v5437 = vor.u32 %v5432, %v5436
      %v5439 = vshll.u32 %v5415, 16
      %v5441 = vrot.slane %v5439, 1
      %v5442 = vsel %vm3160, %v5437, %v5441
      %v5443 = vshrl.u32 %v5415, 16
      %v5445 = vor.u32 %v5443, %v5441
      %v5447 = vshll.u32 %v5416, 16
      %v5449 = vrot.slane %v5447, 1
      %v5450 = vsel %vm3160, %v5445, %v5449
      %v5451 = vshrl.u32 %v5416, 16
      %v5453 = vor.u32 %v5451, %v5449
      %v5455 = vshll.u32 %v5417, 16
      %v5457 = vrot.slane %v5455, 1
      %v5458 = vsel %vm3160, %v5453, %v5457
      %v5459 = vshrl.u32 %v5417, 16
      %v5461 = vor.u32 %v5459, %v5457
      %v5463 = vshll.u32 %v5418, 16
      %v5465 = vrot.slane %v5463, 1
      %v5466 = vsel %vm3160, %v5461, %v5465
      %v5467 = vshrl.u32 %v5418, 16
      %v5469 = vor.u32 %v5467, %v5465
      %v5471 = vshll.u32 %v5419, 16
      %v5473 = vrot.slane %v5471, 1
      %v5474 = vsel %vm3160, %v5469, %v5473
      %v5475 = vshrl.u32 %v5419, 16
      %v5477 = vor.u32 %v5475, %v5473
      %v5479 = vshll.u32 %v5420, 16
      %v5481 = vrot.slane %v5479, 1
      %v5482 = vsel %vm3160, %v5477, %v5481
      %v5483 = vshrl.u32 %v5420, 16
      %v5485 = vor.u32 %v5483, %v5481
      %v5487 = vshll.u32 %v5421, 16
      %v5489 = vrot.slane %v5487, 1
      %v5490 = vsel %vm3160, %v5485, %v5489
      %v5491 = vshrl.u32 %v5421, 16
      %v5493 = vor.u32 %v5491, %v5489
      %v5495 = vshll.u32 %v5422, 16
      %v5497 = vrot.slane %v5495, 1
      %v5498 = vsel %vm3160, %v5493, %v5497
      %v5499 = vshrl.u32 %v5422, 16
      %v5501 = vor.u32 %v5499, %v5497
      %v5503 = vshll.u32 %v5423, 16
      %v5505 = vrot.slane %v5503, 1
      %v5506 = vsel %vm3160, %v5501, %v5505
      %v5507 = vshrl.u32 %v5423, 16
      %v5509 = vor.u32 %v5507, %v5505
      %v5511 = vshll.u32 %v5424, 16
      %v5513 = vrot.slane %v5511, 1
      %v5514 = vsel %vm3160, %v5509, %v5513
      %v5515 = vshrl.u32 %v5424, 16
      %v5517 = vor.u32 %v5515, %v5513
      %v5519 = vshll.u32 %v5425, 16
      %v5521 = vrot.slane %v5519, 1
      %v5522 = vsel %vm3160, %v5517, %v5521
      %v5523 = vshrl.u32 %v5425, 16
      %v5525 = vor.u32 %v5523, %v5521
      %v5527 = vshll.u32 %v5426, 16
      %v5529 = vrot.slane %v5527, 1
      %v5530 = vsel %vm3160, %v5525, %v5529
      %v5531 = vshrl.u32 %v5426, 16
      %v5533 = vor.u32 %v5531, %v5529
      %v5535 = vshll.u32 %v5427, 16
      %v5537 = vrot.slane %v5535, 1
      %v5538 = vsel %vm3160, %v5533, %v5537
      %v5539 = vshrl.u32 %v5427, 16
      %v5541 = vor.u32 %v5539, %v5537
      %v5543 = vshll.u32 %v5428, 16
      %v5545 = vrot.slane %v5543, 1
      %v5546 = vsel %vm3160, %v5541, %v5545
      %v5547 = vshrl.u32 %v5428, 16
      %v5549 = vor.u32 %v5547, %v5545
      %v5551 = vshll.u32 %v5429, 16
      %v5553 = vrot.slane %v5551, 1
      %v5554 = vsel %vm3160, %v5549, %v5553
      %v5555 = vshrl.u32 %v5429, 16
      %v5557 = vor.u32 %v5555, %v5553
      %v5559 = vshll.u32 %v5430, 16
      %v5561 = vrot.slane %v5559, 1
      %v5562 = vsel %vm3160, %v5557, %v5561
      %v5595 = vunpack.c.l.b16 %v5332
      %v5596 = vunpack.c.l.b16 %v5333
      %v5597 = vunpack.c.l.b16 %v5334
      %v5598 = vunpack.c.l.b16 %v5335
      %v5599 = vunpack.c.l.b16 %v5336
      %v5600 = vunpack.c.l.b16 %v5337
      %v5601 = vunpack.c.l.b16 %v5338
      %v5602 = vunpack.c.l.b16 %v5339
      %v5603 = vunpack.c.l.b16 %v5340
      %v5604 = vunpack.c.l.b16 %v5341
      %v5605 = vunpack.c.l.b16 %v5342
      %v5606 = vunpack.c.l.b16 %v5343
      %v5607 = vunpack.c.l.b16 %v5344
      %v5608 = vunpack.c.l.b16 %v5345
      %v5609 = vunpack.c.l.b16 %v5346
      %v5610 = vunpack.c.l.b16 %v5347
      %v5611 = vpack.c.b16 %v5596, %v5595
      %v5612 = vpack.c.b16 %v5598, %v5597
      %v5613 = vpack.c.b16 %v5600, %v5599
      %v5614 = vpack.c.b16 %v5602, %v5601
      %v5615 = vpack.c.b16 %v5604, %v5603
      %v5616 = vpack.c.b16 %v5606, %v5605
      %v5617 = vpack.c.b16 %v5608, %v5607
      %v5618 = vpack.c.b16 %v5610, %v5609
      %5627 = vmatpush.bf16.msra.mxu0 %v5618
      %5628 = vmatpush.bf16.msra.mxu0 %v5617
      %5629 = vmatpush.bf16.msra.mxu0 %v5616
      %5630 = vmatpush.bf16.msra.mxu0 %v5615
      %5631 = vmatpush.bf16.msra.mxu0 %v5614
      %5632 = vmatpush.bf16.msra.mxu0 %v5613
      %5633 = vmatpush.bf16.msra.mxu0 %v5612
      %5634 = vmatpush.bf16.msra.mxu0 %v5611
      %5635 = vmatmul.bf16.gmra.mxu0 %v5442
      %v5636 = vpop.f32.mrf.mxu0
      %v5637 = vadd.f32 0.0, %v5636
      %v5638 = vpop.f32.mrf.mxu0
      %v5639 = vadd.f32 0.0, %v5638
      %5640 = vmatmul.bf16.gmra.mxu0 %v5450
      %v5641 = vpop.f32.mrf.mxu0
      %v5642 = vadd.f32 0.0, %v5641
      %v5643 = vpop.f32.mrf.mxu0
      %v5644 = vadd.f32 0.0, %v5643
      %5645 = vmatmul.bf16.gmra.mxu0 %v5458
      %v5646 = vpop.f32.mrf.mxu0
      %v5647 = vadd.f32 0.0, %v5646
      %v5648 = vpop.f32.mrf.mxu0
      %v5649 = vadd.f32 0.0, %v5648
      %5650 = vmatmul.bf16.gmra.mxu0 %v5466
      %v5651 = vpop.f32.mrf.mxu0
      %v5652 = vadd.f32 0.0, %v5651
      %v5653 = vpop.f32.mrf.mxu0
      %v5654 = vadd.f32 0.0, %v5653
      %5655 = vmatmul.bf16.gmra.mxu0 %v5474
      %v5656 = vpop.f32.mrf.mxu0
      %v5657 = vadd.f32 0.0, %v5656
      %v5658 = vpop.f32.mrf.mxu0
      %v5659 = vadd.f32 0.0, %v5658
      %5660 = vmatmul.bf16.gmra.mxu0 %v5482
      %v5661 = vpop.f32.mrf.mxu0
      %v5662 = vadd.f32 0.0, %v5661
      %v5663 = vpop.f32.mrf.mxu0
      %v5664 = vadd.f32 0.0, %v5663
      %5665 = vmatmul.bf16.gmra.mxu0 %v5490
      %v5666 = vpop.f32.mrf.mxu0
      %v5667 = vadd.f32 0.0, %v5666
      %v5668 = vpop.f32.mrf.mxu0
      %v5669 = vadd.f32 0.0, %v5668
      %5670 = vmatmul.bf16.gmra.mxu0 %v5498
      %v5671 = vpop.f32.mrf.mxu0
      %v5672 = vadd.f32 0.0, %v5671
      %v5673 = vpop.f32.mrf.mxu0
      %v5674 = vadd.f32 0.0, %v5673
      %5675 = vmatmul.bf16.gmra.mxu0 %v5506
      %v5676 = vpop.f32.mrf.mxu0
      %v5677 = vadd.f32 0.0, %v5676
      %v5678 = vpop.f32.mrf.mxu0
      %v5679 = vadd.f32 0.0, %v5678
      %5680 = vmatmul.bf16.gmra.mxu0 %v5514
      %v5681 = vpop.f32.mrf.mxu0
      %v5682 = vadd.f32 0.0, %v5681
      %v5683 = vpop.f32.mrf.mxu0
      %v5684 = vadd.f32 0.0, %v5683
      %5685 = vmatmul.bf16.gmra.mxu0 %v5522
      %v5686 = vpop.f32.mrf.mxu0
      %v5687 = vadd.f32 0.0, %v5686
      %v5688 = vpop.f32.mrf.mxu0
      %v5689 = vadd.f32 0.0, %v5688
      %5690 = vmatmul.bf16.gmra.mxu0 %v5530
      %v5691 = vpop.f32.mrf.mxu0
      %v5692 = vadd.f32 0.0, %v5691
      %v5693 = vpop.f32.mrf.mxu0
      %v5694 = vadd.f32 0.0, %v5693
      %5695 = vmatmul.bf16.gmra.mxu0 %v5538
      %v5696 = vpop.f32.mrf.mxu0
      %v5697 = vadd.f32 0.0, %v5696
      %v5698 = vpop.f32.mrf.mxu0
      %v5699 = vadd.f32 0.0, %v5698
      %5700 = vmatmul.bf16.gmra.mxu0 %v5546
      %v5701 = vpop.f32.mrf.mxu0
      %v5702 = vadd.f32 0.0, %v5701
      %v5703 = vpop.f32.mrf.mxu0
      %v5704 = vadd.f32 0.0, %v5703
      %5705 = vmatmul.bf16.gmra.mxu0 %v5554
      %v5706 = vpop.f32.mrf.mxu0
      %v5707 = vadd.f32 0.0, %v5706
      %v5708 = vpop.f32.mrf.mxu0
      %v5709 = vadd.f32 0.0, %v5708
      %5710 = vmatmul.bf16.gmra.mxu0 %v5562
      %v5711 = vpop.f32.mrf.mxu0
      %v5712 = vadd.f32 0.0, %v5711
      %v5713 = vpop.f32.mrf.mxu0
      %v5714 = vadd.f32 0.0, %v5713
      %5715 = vdwg.mxu0
      %v5716 = vadd.f32 %v5267, %v5637
      %v5717 = vadd.f32 %v5268, %v5639
      %v5718 = vadd.f32 %v5269, %v5642
      %v5719 = vadd.f32 %v5270, %v5644
      %v5720 = vadd.f32 %v5271, %v5647
      %v5721 = vadd.f32 %v5272, %v5649
      %v5722 = vadd.f32 %v5273, %v5652
      %v5723 = vadd.f32 %v5274, %v5654
      %v5724 = vadd.f32 %v5275, %v5657
      %v5725 = vadd.f32 %v5276, %v5659
      %v5726 = vadd.f32 %v5277, %v5662
      %v5727 = vadd.f32 %v5278, %v5664
      %v5728 = vadd.f32 %v5279, %v5667
      %v5729 = vadd.f32 %v5280, %v5669
      %v5730 = vadd.f32 %v5281, %v5672
      %v5731 = vadd.f32 %v5282, %v5674
      %v5732 = vadd.f32 %v5283, %v5677
      %v5733 = vadd.f32 %v5284, %v5679
      %v5734 = vadd.f32 %v5285, %v5682
      %v5735 = vadd.f32 %v5286, %v5684
      %v5736 = vadd.f32 %v5287, %v5687
      %v5737 = vadd.f32 %v5288, %v5689
      %v5738 = vadd.f32 %v5289, %v5692
      %v5739 = vadd.f32 %v5290, %v5694
      %v5740 = vadd.f32 %v5291, %v5697
      %v5741 = vadd.f32 %v5292, %v5699
      %v5742 = vadd.f32 %v5293, %v5702
      %v5743 = vadd.f32 %v5294, %v5704
      %v5744 = vadd.f32 %v5295, %v5707
      %v5745 = vadd.f32 %v5296, %v5709
      %v5746 = vadd.f32 %v5297, %v5712
      %v5747 = vadd.f32 %v5298, %v5714
      %v5748 = vld [vmem:[%s4] sm:$0x1]
      %v5750 = vperm.slane %v5748, 0
      %v5752 = vadd.f32 %v5716, %v5750
      %v5753 = vadd.f32 %v5717, %v5750
      %v5754 = vadd.f32 %v5718, %v5750
      %v5755 = vadd.f32 %v5719, %v5750
      %v5756 = vadd.f32 %v5720, %v5750
      %v5757 = vadd.f32 %v5721, %v5750
      %v5758 = vadd.f32 %v5722, %v5750
      %v5759 = vadd.f32 %v5723, %v5750
      %v5760 = vadd.f32 %v5724, %v5750
      %v5761 = vadd.f32 %v5725, %v5750
      %v5762 = vadd.f32 %v5726, %v5750
      %v5763 = vadd.f32 %v5727, %v5750
      %v5764 = vadd.f32 %v5728, %v5750
      %v5765 = vadd.f32 %v5729, %v5750
      %v5766 = vadd.f32 %v5730, %v5750
      %v5767 = vadd.f32 %v5731, %v5750
      %v5768 = vadd.f32 %v5732, %v5750
      %v5769 = vadd.f32 %v5733, %v5750
      %v5770 = vadd.f32 %v5734, %v5750
      %v5771 = vadd.f32 %v5735, %v5750
      %v5772 = vadd.f32 %v5736, %v5750
      %v5773 = vadd.f32 %v5737, %v5750
      %v5774 = vadd.f32 %v5738, %v5750
      %v5775 = vadd.f32 %v5739, %v5750
      %v5776 = vadd.f32 %v5740, %v5750
      %v5777 = vadd.f32 %v5741, %v5750
      %v5778 = vadd.f32 %v5742, %v5750
      %v5779 = vadd.f32 %v5743, %v5750
      %v5780 = vadd.f32 %v5744, %v5750
      %v5781 = vadd.f32 %v5745, %v5750
      %v5782 = vadd.f32 %v5746, %v5750
      %v5783 = vadd.f32 %v5747, %v5750
      %v5784 = vmax.f32 %v5752, 0.0
      %v5785 = vmax.f32 %v5753, 0.0
      %v5786 = vmax.f32 %v5754, 0.0
      %v5787 = vmax.f32 %v5755, 0.0
      %v5788 = vmax.f32 %v5756, 0.0
      %v5789 = vmax.f32 %v5757, 0.0
      %v5790 = vmax.f32 %v5758, 0.0
      %v5791 = vmax.f32 %v5759, 0.0
      %v5792 = vmax.f32 %v5760, 0.0
      %v5793 = vmax.f32 %v5761, 0.0
      %v5794 = vmax.f32 %v5762, 0.0
      %v5795 = vmax.f32 %v5763, 0.0
      %v5796 = vmax.f32 %v5764, 0.0
      %v5797 = vmax.f32 %v5765, 0.0
      %v5798 = vmax.f32 %v5766, 0.0
      %v5799 = vmax.f32 %v5767, 0.0
      %v5800 = vmax.f32 %v5768, 0.0
      %v5801 = vmax.f32 %v5769, 0.0
      %v5802 = vmax.f32 %v5770, 0.0
      %v5803 = vmax.f32 %v5771, 0.0
      %v5804 = vmax.f32 %v5772, 0.0
      %v5805 = vmax.f32 %v5773, 0.0
      %v5806 = vmax.f32 %v5774, 0.0
      %v5807 = vmax.f32 %v5775, 0.0
      %v5808 = vmax.f32 %v5776, 0.0
      %v5809 = vmax.f32 %v5777, 0.0
      %v5810 = vmax.f32 %v5778, 0.0
      %v5811 = vmax.f32 %v5779, 0.0
      %v5812 = vmax.f32 %v5780, 0.0
      %v5813 = vmax.f32 %v5781, 0.0
      %v5814 = vmax.f32 %v5782, 0.0
      %v5815 = vmax.f32 %v5783, 0.0
      %5816 = vst [vmem:[#allocation3] sm:$0xff] %v5784
      %5817 = vst [vmem:[#allocation3 + $0x8] sm:$0xff] %v5785
      %5818 = vst [vmem:[#allocation3 + $0x10] sm:$0xff] %v5786
      %5819 = vst [vmem:[#allocation3 + $0x18] sm:$0xff] %v5787
      %5820 = vst [vmem:[#allocation3 + $0x20] sm:$0xff] %v5788
      %5821 = vst [vmem:[#allocation3 + $0x28] sm:$0xff] %v5789
      %5822 = vst [vmem:[#allocation3 + $0x30] sm:$0xff] %v5790
      %5823 = vst [vmem:[#allocation3 + $0x38] sm:$0xff] %v5791
      %5824 = vst [vmem:[#allocation3 + $0x40] sm:$0xff] %v5792
      %5825 = vst [vmem:[#allocation3 + $0x48] sm:$0xff] %v5793
      %5826 = vst [vmem:[#allocation3 + $0x50] sm:$0xff] %v5794
      %5827 = vst [vmem:[#allocation3 + $0x58] sm:$0xff] %v5795
      %5828 = vst [vmem:[#allocation3 + $0x60] sm:$0xff] %v5796
      %5829 = vst [vmem:[#allocation3 + $0x68] sm:$0xff] %v5797
      %5830 = vst [vmem:[#allocation3 + $0x70] sm:$0xff] %v5798
      %5831 = vst [vmem:[#allocation3 + $0x78] sm:$0xff] %v5799
      %5832 = vst [vmem:[#allocation3 + $0x80] sm:$0xff] %v5800
      %5833 = vst [vmem:[#allocation3 + $0x88] sm:$0xff] %v5801
      %5834 = vst [vmem:[#allocation3 + $0x90] sm:$0xff] %v5802
      %5835 = vst [vmem:[#allocation3 + $0x98] sm:$0xff] %v5803
      %5836 = vst [vmem:[#allocation3 + $0xa0] sm:$0xff] %v5804
      %5837 = vst [vmem:[#allocation3 + $0xa8] sm:$0xff] %v5805
      %5838 = vst [vmem:[#allocation3 + $0xb0] sm:$0xff] %v5806
      %5839 = vst [vmem:[#allocation3 + $0xb8] sm:$0xff] %v5807
      %5840 = vst [vmem:[#allocation3 + $0xc0] sm:$0xff] %v5808
      %5841 = vst [vmem:[#allocation3 + $0xc8] sm:$0xff] %v5809
      %5842 = vst [vmem:[#allocation3 + $0xd0] sm:$0xff] %v5810
      %5843 = vst [vmem:[#allocation3 + $0xd8] sm:$0xff] %v5811
      %5844 = vst [vmem:[#allocation3 + $0xe0] sm:$0xff] %v5812
      %5845 = vst [vmem:[#allocation3 + $0xe8] sm:$0xff] %v5813
      %5846 = vst [vmem:[#allocation3 + $0xf0] sm:$0xff] %v5814
      %5847 = vst [vmem:[#allocation3 + $0xf8] sm:$0xff] %v5815
      %v5848 = vld [vmem:[#allocation3 + $0x11] sm:$0xff]
      %v5849 = vld [vmem:[#allocation3 + $0x19] sm:$0x3f]
      %v5850 = vld [vmem:[#allocation3 + $0x21] sm:$0xff]
      %v5851 = vld [vmem:[#allocation3 + $0x29] sm:$0x3f]
      %v5852 = vmax.f32 %v5848, %v5850
      %v5853 = vmax.f32 %v5849, %v5851
      %v5854 = vpack.c.bf16 %v5853, %v5852
      %vm5855 = vcmask 113664
      %v5857 = vsel %vm5855, %v1365, 0
      %vm5859 = vcmask 1046528
      %v5861 = vsel %vm5859, %v5854, 0
      %5863 = vmatpush.bf16.msra.mxu0 0
      %5864 = vmatpush.bf16.msra.mxu0 0
      %5865 = vmatpush.bf16.msra.mxu0 0
      %5866 = vmatpush.bf16.msra.mxu0 0
      %5867 = vmatpush.bf16.msra.mxu0 0
      %5868 = vmatpush.bf16.msra.mxu0 0
      %5869 = vmatpush.bf16.msra.mxu0 0
      %5870 = vmatpush.bf16.msra.mxu0 %v5861
      %5871 = vmatmul.bf16.gmra.mxu0 %v5857
      %v5872 = vpop.f32.mrf.mxu0
      %v5873 = vadd.f32 0.0, %v5872
      %v5874 = vpop.f32.mrf.mxu0
      %5875 = vdwg.mxu0
      %v5877 = vsel %vm5855, %v1366, 0
      %5879 = vmatpush.bf16.msra.mxu0 0
      %5880 = vmatpush.bf16.msra.mxu0 0
      %5881 = vmatpush.bf16.msra.mxu0 0
      %5882 = vmatpush.bf16.msra.mxu0 0
      %5883 = vmatpush.bf16.msra.mxu0 0
      %5884 = vmatpush.bf16.msra.mxu0 0
      %5885 = vmatpush.bf16.msra.mxu0 0
      %5886 = vmatpush.bf16.msra.mxu0 %v5861
      %5887 = vmatmul.bf16.gmra.mxu0 %v5877
      %v5888 = vpop.f32.mrf.mxu0
      %v5889 = vadd.f32 0.0, %v5888
      %v5890 = vpop.f32.mrf.mxu0
      %5891 = vdwg.mxu0
      %v5892 = vmax.f32 %v5873, %v5889
      %v5893 = vpack.c.bf16 %v5892, %v5892
      %v5895 = vrot.slane %v5893, 7
      %v5896 = vrot.slane %v5895, 4
      %5899 = vst [vmem:[#allocation5 + $0xc] sm:$0xe] %v5895
      %vm5900 = vcmask 1040384
      %vm5901 = vmand %vm5900, %vm1424
      %v5902 = vld [vmem:[#allocation5 + $0x10] sm:$0x1]
      %v5903 = vsel %vm5901, %v5896, %v5902
      %5904 = vst [vmem:[#allocation5 + $0x10] sm:$0x1] %v5903
      %v5905 = vld [vmem:[#allocation3 + $0x31] sm:$0xff]
      %v5906 = vld [vmem:[#allocation3 + $0x39] sm:$0x3f]
      %v5907 = vld [vmem:[#allocation3 + $0x41] sm:$0xff]
      %v5908 = vld [vmem:[#allocation3 + $0x49] sm:$0x3f]
      %v5909 = vmax.f32 %v5905, %v5907
      %v5910 = vmax.f32 %v5906, %v5908
      %v5911 = vpack.c.bf16 %v5910, %v5909
      %v5913 = vsel %vm5859, %v5911, 0
      %5915 = vmatpush.bf16.msra.mxu0 0
      %5916 = vmatpush.bf16.msra.mxu0 0
      %5917 = vmatpush.bf16.msra.mxu0 0
      %5918 = vmatpush.bf16.msra.mxu0 0
      %5919 = vmatpush.bf16.msra.mxu0 0
      %5920 = vmatpush.bf16.msra.mxu0 0
      %5921 = vmatpush.bf16.msra.mxu0 0
      %5922 = vmatpush.bf16.msra.mxu0 %v5913
      %5923 = vmatmul.bf16.gmra.mxu0 %v5857
      %v5924 = vpop.f32.mrf.mxu0
      %v5925 = vadd.f32 0.0, %v5924
      %v5926 = vpop.f32.mrf.mxu0
      %5927 = vdwg.mxu0
      %5928 = vmatpush.bf16.msra.mxu0 0
      %5929 = vmatpush.bf16.msra.mxu0 0
      %5930 = vmatpush.bf16.msra.mxu0 0
      %5931 = vmatpush.bf16.msra.mxu0 0
      %5932 = vmatpush.bf16.msra.mxu0 0
      %5933 = vmatpush.bf16.msra.mxu0 0
      %5934 = vmatpush.bf16.msra.mxu0 0
      %5935 = vmatpush.bf16.msra.mxu0 %v5913
      %5936 = vmatmul.bf16.gmra.mxu0 %v5877
      %v5937 = vpop.f32.mrf.mxu0
      %v5938 = vadd.f32 0.0, %v5937
      %v5939 = vpop.f32.mrf.mxu0
      %5940 = vdwg.mxu0
      %v5941 = vmax.f32 %v5925, %v5938
      %v5942 = vpack.c.bf16 %v5941, %v5941
      %v5944 = vshrl.u32 %v5942, 16
      %v5946 = vrot.slane %v5944, 6
      %v5947 = vshll.u32 %v5942, 16
      %v5949 = vrot.slane %v5947, 7
      %v5950 = vor.u32 %v5946, %v5949
      %v5951 = vrot.slane %v5950, 4
      %vm5954 = vcmask 1043457
      %vm5955 = vsmask.f32 7942
      %vm5956 = vmand %vm5954, %vm5955
      %v5957 = vld [vmem:[#allocation5 + $0x10] sm:$0xe]
      %v5958 = vsel %vm5956, %v5950, %v5957
      %5959 = vst [vmem:[#allocation5 + $0x10] sm:$0xe] %v5958
      %5960 = vst [vmem:[#allocation5 + $0x14] sm:$0x1] %v5951
      %v5961 = vld [vmem:[#allocation3 + $0x51] sm:$0xff]
      %v5962 = vld [vmem:[#allocation3 + $0x59] sm:$0x3f]
      %v5963 = vld [vmem:[#allocation3 + $0x61] sm:$0xff]
      %v5964 = vld [vmem:[#allocation3 + $0x69] sm:$0x3f]
      %v5965 = vmax.f32 %v5961, %v5963
      %v5966 = vmax.f32 %v5962, %v5964
      %v5967 = vpack.c.bf16 %v5966, %v5965
      %v5969 = vsel %vm5859, %v5967, 0
      %5971 = vmatpush.bf16.msra.mxu0 0
      %5972 = vmatpush.bf16.msra.mxu0 0
      %5973 = vmatpush.bf16.msra.mxu0 0
      %5974 = vmatpush.bf16.msra.mxu0 0
      %5975 = vmatpush.bf16.msra.mxu0 0
      %5976 = vmatpush.bf16.msra.mxu0 0
      %5977 = vmatpush.bf16.msra.mxu0 0
      %5978 = vmatpush.bf16.msra.mxu0 %v5969
      %5979 = vmatmul.bf16.gmra.mxu0 %v5857
      %v5980 = vpop.f32.mrf.mxu0
      %v5981 = vadd.f32 0.0, %v5980
      %v5982 = vpop.f32.mrf.mxu0
      %5983 = vdwg.mxu0
      %5984 = vmatpush.bf16.msra.mxu0 0
      %5985 = vmatpush.bf16.msra.mxu0 0
      %5986 = vmatpush.bf16.msra.mxu0 0
      %5987 = vmatpush.bf16.msra.mxu0 0
      %5988 = vmatpush.bf16.msra.mxu0 0
      %5989 = vmatpush.bf16.msra.mxu0 0
      %5990 = vmatpush.bf16.msra.mxu0 0
      %5991 = vmatpush.bf16.msra.mxu0 %v5969
      %5992 = vmatmul.bf16.gmra.mxu0 %v5877
      %v5993 = vpop.f32.mrf.mxu0
      %v5994 = vadd.f32 0.0, %v5993
      %v5995 = vpop.f32.mrf.mxu0
      %5996 = vdwg.mxu0
      %v5997 = vmax.f32 %v5981, %v5994
      %v5998 = vpack.c.bf16 %v5997, %v5997
      %v6000 = vrot.slane %v5998, 6
      %v6001 = vrot.slane %v6000, 4
      %6004 = vst [vmem:[#allocation5 + $0x14] sm:$0xc] %v6000
      %vm6005 = vcmask 1041408
      %vm6006 = vsmask.f32 1280
      %vm6007 = vmand %vm6005, %vm6006
      %v6008 = vld [vmem:[#allocation5 + $0x18] sm:$0x3]
      %v6009 = vsel %vm6007, %v6001, %v6008
      %6010 = vst [vmem:[#allocation5 + $0x18] sm:$0x3] %v6009
      %v6011 = vld [vmem:[#allocation3 + $0x71] sm:$0xff]
      %v6012 = vld [vmem:[#allocation3 + $0x79] sm:$0x3f]
      %v6013 = vld [vmem:[#allocation3 + $0x81] sm:$0xff]
      %v6014 = vld [vmem:[#allocation3 + $0x89] sm:$0x3f]
      %v6015 = vmax.f32 %v6011, %v6013
      %v6016 = vmax.f32 %v6012, %v6014
      %v6017 = vpack.c.bf16 %v6016, %v6015
      %v6019 = vsel %vm5859, %v6017, 0
      %6021 = vmatpush.bf16.msra.mxu0 0
      %6022 = vmatpush.bf16.msra.mxu0 0
      %6023 = vmatpush.bf16.msra.mxu0 0
      %6024 = vmatpush.bf16.msra.mxu0 0
      %6025 = vmatpush.bf16.msra.mxu0 0
      %6026 = vmatpush.bf16.msra.mxu0 0
      %6027 = vmatpush.bf16.msra.mxu0 0
      %6028 = vmatpush.bf16.msra.mxu0 %v6019
      %6029 = vmatmul.bf16.gmra.mxu0 %v5857
      %v6030 = vpop.f32.mrf.mxu0
      %v6031 = vadd.f32 0.0, %v6030
      %v6032 = vpop.f32.mrf.mxu0
      %6033 = vdwg.mxu0
      %6034 = vmatpush.bf16.msra.mxu0 0
      %6035 = vmatpush.bf16.msra.mxu0 0
      %6036 = vmatpush.bf16.msra.mxu0 0
      %6037 = vmatpush.bf16.msra.mxu0 0
      %6038 = vmatpush.bf16.msra.mxu0 0
      %6039 = vmatpush.bf16.msra.mxu0 0
      %6040 = vmatpush.bf16.msra.mxu0 0
      %6041 = vmatpush.bf16.msra.mxu0 %v6019
      %6042 = vmatmul.bf16.gmra.mxu0 %v5877
      %v6043 = vpop.f32.mrf.mxu0
      %v6044 = vadd.f32 0.0, %v6043
      %v6045 = vpop.f32.mrf.mxu0
      %6046 = vdwg.mxu0
      %v6047 = vmax.f32 %v6031, %v6044
      %v6048 = vpack.c.bf16 %v6047, %v6047
      %v6050 = vshrl.u32 %v6048, 16
      %v6052 = vrot.slane %v6050, 5
      %v6053 = vshll.u32 %v6048, 16
      %v6055 = vrot.slane %v6053, 6
      %v6056 = vor.u32 %v6052, %v6055
      %v6057 = vrot.slane %v6056, 4
      %vm6060 = vcmask 1043458
      %vm6061 = vsmask.f32 7946
      %vm6062 = vmand %vm6060, %vm6061
      %v6063 = vld [vmem:[#allocation5 + $0x18] sm:$0xc]
      %v6064 = vsel %vm6062, %v6056, %v6063
      %6065 = vst [vmem:[#allocation5 + $0x18] sm:$0xc] %v6064
      %6066 = vst [vmem:[#allocation5 + $0x1c] sm:$0x3] %v6057
      %v6067 = vld [vmem:[#allocation3 + $0x91] sm:$0xff]
      %v6068 = vld [vmem:[#allocation3 + $0x99] sm:$0x3f]
      %v6069 = vld [vmem:[#allocation3 + $0xa1] sm:$0xff]
      %v6070 = vld [vmem:[#allocation3 + $0xa9] sm:$0x3f]
      %v6071 = vmax.f32 %v6067, %v6069
      %v6072 = vmax.f32 %v6068, %v6070
      %v6073 = vpack.c.bf16 %v6072, %v6071
      %v6075 = vsel %vm5859, %v6073, 0
      %6077 = vmatpush.bf16.msra.mxu0 0
      %6078 = vmatpush.bf16.msra.mxu0 0
      %6079 = vmatpush.bf16.msra.mxu0 0
      %6080 = vmatpush.bf16.msra.mxu0 0
      %6081 = vmatpush.bf16.msra.mxu0 0
      %6082 = vmatpush.bf16.msra.mxu0 0
      %6083 = vmatpush.bf16.msra.mxu0 0
      %6084 = vmatpush.bf16.msra.mxu0 %v6075
      %6085 = vmatmul.bf16.gmra.mxu0 %v5857
      %v6086 = vpop.f32.mrf.mxu0
      %v6087 = vadd.f32 0.0, %v6086
      %v6088 = vpop.f32.mrf.mxu0
      %6089 = vdwg.mxu0
      %6090 = vmatpush.bf16.msra.mxu0 0
      %6091 = vmatpush.bf16.msra.mxu0 0
      %6092 = vmatpush.bf16.msra.mxu0 0
      %6093 = vmatpush.bf16.msra.mxu0 0
      %6094 = vmatpush.bf16.msra.mxu0 0
      %6095 = vmatpush.bf16.msra.mxu0 0
      %6096 = vmatpush.bf16.msra.mxu0 0
      %6097 = vmatpush.bf16.msra.mxu0 %v6075
      %6098 = vmatmul.bf16.gmra.mxu0 %v5877
      %v6099 = vpop.f32.mrf.mxu0
      %v6100 = vadd.f32 0.0, %v6099
      %v6101 = vpop.f32.mrf.mxu0
      %6102 = vdwg.mxu0
      %v6103 = vmax.f32 %v6087, %v6100
      %v6104 = vpack.c.bf16 %v6103, %v6103
      %v6106 = vrot.slane %v6104, 5
      %v6107 = vrot.slane %v6106, 4
      %6110 = vst [vmem:[#allocation5 + $0x1c] sm:$0x8] %v6106
      %vm6111 = vcmask 1042432
      %vm6112 = vsmask.f32 2304
      %vm6113 = vmand %vm6111, %vm6112
      %v6114 = vld [vmem:[#allocation5 + $0x20] sm:$0x7]
      %v6115 = vsel %vm6113, %v6107, %v6114
      %6116 = vst [vmem:[#allocation5 + $0x20] sm:$0x7] %v6115
      %v6117 = vld [vmem:[#allocation3 + $0xb1] sm:$0xff]
      %v6118 = vld [vmem:[#allocation3 + $0xb9] sm:$0x3f]
      %v6119 = vld [vmem:[#allocation3 + $0xc1] sm:$0xff]
      %v6120 = vld [vmem:[#allocation3 + $0xc9] sm:$0x3f]
      %v6121 = vmax.f32 %v6117, %v6119
      %v6122 = vmax.f32 %v6118, %v6120
      %v6123 = vpack.c.bf16 %v6122, %v6121
      %v6125 = vsel %vm5859, %v6123, 0
      %6127 = vmatpush.bf16.msra.mxu0 0
      %6128 = vmatpush.bf16.msra.mxu0 0
      %6129 = vmatpush.bf16.msra.mxu0 0
      %6130 = vmatpush.bf16.msra.mxu0 0
      %6131 = vmatpush.bf16.msra.mxu0 0
      %6132 = vmatpush.bf16.msra.mxu0 0
      %6133 = vmatpush.bf16.msra.mxu0 0
      %6134 = vmatpush.bf16.msra.mxu0 %v6125
      %6135 = vmatmul.bf16.gmra.mxu0 %v5857
      %v6136 = vpop.f32.mrf.mxu0
      %v6137 = vadd.f32 0.0, %v6136
      %v6138 = vpop.f32.mrf.mxu0
      %6139 = vdwg.mxu0
      %6140 = vmatpush.bf16.msra.mxu0 0
      %6141 = vmatpush.bf16.msra.mxu0 0
      %6142 = vmatpush.bf16.msra.mxu0 0
      %6143 = vmatpush.bf16.msra.mxu0 0
      %6144 = vmatpush.bf16.msra.mxu0 0
      %6145 = vmatpush.bf16.msra.mxu0 0
      %6146 = vmatpush.bf16.msra.mxu0 0
      %6147 = vmatpush.bf16.msra.mxu0 %v6125
      %6148 = vmatmul.bf16.gmra.mxu0 %v5877
      %v6149 = vpop.f32.mrf.mxu0
      %v6150 = vadd.f32 0.0, %v6149
      %v6151 = vpop.f32.mrf.mxu0
      %6152 = vdwg.mxu0
      %v6153 = vmax.f32 %v6137, %v6150
      %v6154 = vpack.c.bf16 %v6153, %v6153
      %v6156 = vshll.u32 %v6154, 16
      %v6158 = vrot.slane %v6156, 5
      %v6159 = vshrl.u32 %v6154, 16
      %v6161 = vrot.slane %v6159, 4
      %v6162 = vor.u32 %v6161, %v6158
      %v6163 = vrot.slane %v6162, 4
      %vm6166 = vcmask 1043459
      %vm6167 = vsmask.f32 7950
      %vm6168 = vmand %vm6166, %vm6167
      %v6169 = vld [vmem:[#allocation5 + $0x20] sm:$0x8]
      %v6170 = vsel %vm6168, %v6158, %v6169
      %6171 = vst [vmem:[#allocation5 + $0x20] sm:$0x8] %v6170
      %6172 = vst [vmem:[#allocation5 + $0x24] sm:$0x7] %v6163
      %v6173 = vld [vmem:[#allocation3 + $0xd1] sm:$0xff]
      %v6174 = vld [vmem:[#allocation3 + $0xd9] sm:$0x3f]
      %v6175 = vld [vmem:[#allocation3 + $0xe1] sm:$0xff]
      %v6176 = vld [vmem:[#allocation3 + $0xe9] sm:$0x3f]
      %v6177 = vmax.f32 %v6173, %v6175
      %v6178 = vmax.f32 %v6174, %v6176
      %v6179 = vpack.c.bf16 %v6178, %v6177
      %v6181 = vsel %vm5859, %v6179, 0
      %6183 = vmatpush.bf16.msra.mxu0 0
      %6184 = vmatpush.bf16.msra.mxu0 0
      %6185 = vmatpush.bf16.msra.mxu0 0
      %6186 = vmatpush.bf16.msra.mxu0 0
      %6187 = vmatpush.bf16.msra.mxu0 0
      %6188 = vmatpush.bf16.msra.mxu0 0
      %6189 = vmatpush.bf16.msra.mxu0 0
      %6190 = vmatpush.bf16.msra.mxu0 %v6181
      %6191 = vmatmul.bf16.gmra.mxu0 %v5857
      %v6192 = vpop.f32.mrf.mxu0
      %v6193 = vadd.f32 0.0, %v6192
      %v6194 = vpop.f32.mrf.mxu0
      %6195 = vdwg.mxu0
      %6196 = vmatpush.bf16.msra.mxu0 0
      %6197 = vmatpush.bf16.msra.mxu0 0
      %6198 = vmatpush.bf16.msra.mxu0 0
      %6199 = vmatpush.bf16.msra.mxu0 0
      %6200 = vmatpush.bf16.msra.mxu0 0
      %6201 = vmatpush.bf16.msra.mxu0 0
      %6202 = vmatpush.bf16.msra.mxu0 0
      %6203 = vmatpush.bf16.msra.mxu0 %v6181
      %6204 = vmatmul.bf16.gmra.mxu0 %v5877
      %v6205 = vpop.f32.mrf.mxu0
      %v6206 = vadd.f32 0.0, %v6205
      %v6207 = vpop.f32.mrf.mxu0
      %6208 = vdwg.mxu0
      %v6209 = vmax.f32 %v6193, %v6206
      %v6210 = vpack.c.bf16 %v6209, %v6209
      %v6211 = vld [vmem:[#allocation5 + $0x28] sm:$0xf]
      %v6212 = vsel %vm1452, %v6210, %v6211
      %6213 = vst [vmem:[#allocation5 + $0x28] sm:$0xf] %v6212
      %v6214 = vld [vmem:[#allocation5] sm:$0x8]
      %v6215 = vld [vmem:[#allocation5 + $0x4] sm:$0xf]
      %v6216 = vld [vmem:[#allocation5 + $0x8] sm:$0xf]
      %v6217 = vld [vmem:[#allocation5 + $0xc] sm:$0xf]
      %v6218 = vld [vmem:[#allocation5 + $0x10] sm:$0xf]
      %v6219 = vld [vmem:[#allocation5 + $0x14] sm:$0xf]
      %v6220 = vld [vmem:[#allocation5 + $0x18] sm:$0xf]
      %v6221 = vld [vmem:[#allocation5 + $0x1c] sm:$0xf]
      %v6222 = vld [vmem:[#allocation5 + $0x20] sm:$0xf]
      %v6223 = vld [vmem:[#allocation5 + $0x24] sm:$0xf]
      %v6224 = vld [vmem:[#allocation5 + $0x28] sm:$0xf]
      %v6225 = vld [vmem:[%s5] sm:$0xf]
      %v6226 = vld [vmem:[%s5 + $0x4] sm:$0xf]
      %v6227 = vld [vmem:[%s5 + $0x8] sm:$0xf]
      %v6228 = vld [vmem:[%s5 + $0xc] sm:$0xf]
      %v6229 = vld [vmem:[%s5 + $0x10] sm:$0xf]
      %v6230 = vld [vmem:[%s5 + $0x14] sm:$0xf]
      %v6231 = vld [vmem:[%s5 + $0x18] sm:$0xf]
      %v6232 = vld [vmem:[%s5 + $0x1c] sm:$0xf]
      %v6233 = vld [vmem:[%s5 + $0x20] sm:$0xf]
      %v6234 = vld [vmem:[%s5 + $0x24] sm:$0xf]
      %v6235 = vld [vmem:[%s5 + $0x28] sm:$0xf]
      %v6236 = vld [vmem:[%s5 + $0x2c] sm:$0xf]
      %v6237 = vld [vmem:[%s5 + $0x30] sm:$0xf]
      %v6238 = vld [vmem:[%s5 + $0x34] sm:$0xf]
      %v6239 = vld [vmem:[%s5 + $0x38] sm:$0xf]
      %v6240 = vld [vmem:[%s5 + $0x3c] sm:$0xf]
      %v6241 = vld [vmem:[%s5 + $0x40] sm:$0xf]
      %v6242 = vld [vmem:[%s5 + $0x44] sm:$0xf]
      %v6243 = vld [vmem:[%s5 + $0x48] sm:$0xf]
      %v6244 = vld [vmem:[%s5 + $0x4c] sm:$0xf]
      %v6245 = vld [vmem:[%s5 + $0x50] sm:$0xf]
      %v6246 = vld [vmem:[%s5 + $0x54] sm:$0xf]
      %v6247 = vld [vmem:[%s5 + $0x58] sm:$0xf]
      %v6248 = vld [vmem:[%s5 + $0x5c] sm:$0xf]
      %v6249 = vld [vmem:[%s5 + $0x60] sm:$0xf]
      %v6250 = vld [vmem:[%s5 + $0x64] sm:$0xf]
      %v6251 = vld [vmem:[%s5 + $0x68] sm:$0xf]
      %v6252 = vld [vmem:[%s5 + $0x6c] sm:$0xf]
      %v6253 = vld [vmem:[%s5 + $0x70] sm:$0xf]
      %v6254 = vld [vmem:[%s5 + $0x74] sm:$0xf]
      %v6255 = vld [vmem:[%s5 + $0x78] sm:$0xf]
      %v6256 = vld [vmem:[%s5 + $0x7c] sm:$0xf]
      %v6268 = vunpack.c.l.b16 %v6214
      %v6269 = vunpack.c.l.b16 %v6215
      %v6270 = vunpack.c.l.b16 %v6216
      %v6271 = vunpack.c.l.b16 %v6217
      %v6272 = vunpack.c.l.b16 %v6218
      %v6273 = vunpack.c.l.b16 %v6219
      %v6274 = vunpack.c.l.b16 %v6220
      %v6275 = vunpack.c.l.b16 %v6221
      %v6276 = vunpack.c.l.b16 %v6222
      %v6277 = vunpack.c.l.b16 %v6223
      %v6278 = vunpack.c.l.b16 %v6224
      %v6279 = vpack.c.b16 %v6269, %v6268
      %v6280 = vpack.c.b16 %v6271, %v6270
      %v6281 = vpack.c.b16 %v6273, %v6272
      %v6282 = vpack.c.b16 %v6275, %v6274
      %v6283 = vpack.c.b16 %v6277, %v6276
      %v6284 = vpack.c.b16 %v6278, %v6278
      %v6286 = vshrl.u32 %v6279, 16
      %v6288 = vrot.slane %v6286, 3
      %v6289 = vshll.u32 %v6279, 16
      %v6291 = vrot.slane %v6289, 4
      %v6292 = vor.u32 %v6288, %v6291
      %v6294 = vshrl.u32 %v6280, 16
      %v6296 = vrot.slane %v6294, 3
      %v6297 = vshll.u32 %v6280, 16
      %v6299 = vrot.slane %v6297, 4
      %v6300 = vor.u32 %v6296, %v6299
      %v6301 = vsel %vm2722, %v6292, %v6300
      %v6303 = vshrl.u32 %v6281, 16
      %v6305 = vrot.slane %v6303, 3
      %v6306 = vshll.u32 %v6281, 16
      %v6308 = vrot.slane %v6306, 4
      %v6309 = vor.u32 %v6305, %v6308
      %v6310 = vsel %vm2722, %v6300, %v6309
      %v6312 = vshrl.u32 %v6282, 16
      %v6314 = vrot.slane %v6312, 3
      %v6315 = vshll.u32 %v6282, 16
      %v6317 = vrot.slane %v6315, 4
      %v6318 = vor.u32 %v6314, %v6317
      %v6319 = vsel %vm2722, %v6309, %v6318
      %v6321 = vshrl.u32 %v6283, 16
      %v6323 = vrot.slane %v6321, 3
      %v6324 = vshll.u32 %v6283, 16
      %v6326 = vrot.slane %v6324, 4
      %v6327 = vor.u32 %v6323, %v6326
      %v6328 = vsel %vm2722, %v6318, %v6327
      %v6330 = vshrl.u32 %v6284, 16
      %v6332 = vrot.slane %v6330, 3
      %v6333 = vshll.u32 %v6284, 16
      %v6335 = vrot.slane %v6333, 4
      %v6336 = vor.u32 %v6332, %v6335
      %v6337 = vsel %vm2722, %v6327, %v6336
      %v6360 = vunpack.c.l.b16 %v6241
      %v6361 = vunpack.c.l.b16 %v6242
      %v6362 = vunpack.c.l.b16 %v6243
      %v6363 = vunpack.c.l.b16 %v6244
      %v6364 = vunpack.c.l.b16 %v6245
      %v6365 = vunpack.c.l.b16 %v6246
      %v6366 = vunpack.c.l.b16 %v6247
      %v6367 = vunpack.c.l.b16 %v6248
      %v6368 = vunpack.c.l.b16 %v6249
      %v6369 = vunpack.c.l.b16 %v6250
      %v6370 = vunpack.c.l.b16 %v6251
      %v6371 = vunpack.c.l.b16 %v6252
      %v6372 = vunpack.c.l.b16 %v6253
      %v6373 = vunpack.c.l.b16 %v6254
      %v6374 = vunpack.c.l.b16 %v6255
      %v6375 = vunpack.c.l.b16 %v6256
      %v6376 = vpack.c.b16 %v6361, %v6360
      %v6377 = vpack.c.b16 %v6363, %v6362
      %v6378 = vpack.c.b16 %v6365, %v6364
      %v6379 = vpack.c.b16 %v6367, %v6366
      %v6380 = vpack.c.b16 %v6369, %v6368
      %v6381 = vpack.c.b16 %v6371, %v6370
      %v6382 = vpack.c.b16 %v6373, %v6372
      %v6383 = vpack.c.b16 %v6375, %v6374
      %6392 = vmatpush.bf16.msra.mxu0 %v6383
      %6393 = vmatpush.bf16.msra.mxu0 %v6382
      %6394 = vmatpush.bf16.msra.mxu0 %v6381
      %6395 = vmatpush.bf16.msra.mxu0 %v6380
      %6396 = vmatpush.bf16.msra.mxu0 %v6379
      %6397 = vmatpush.bf16.msra.mxu0 %v6378
      %6398 = vmatpush.bf16.msra.mxu0 %v6377
      %6399 = vmatpush.bf16.msra.mxu0 %v6376
      %6400 = vmatmul.bf16.gmra.mxu0 %v6301
      %v6401 = vpop.f32.mrf.mxu0
      %v6402 = vadd.f32 0.0, %v6401
      %v6403 = vpop.f32.mrf.mxu0
      %v6404 = vadd.f32 0.0, %v6403
      %6405 = vmatmul.bf16.gmra.mxu0 %v6310
      %v6406 = vpop.f32.mrf.mxu0
      %v6407 = vadd.f32 0.0, %v6406
      %v6408 = vpop.f32.mrf.mxu0
      %v6409 = vadd.f32 0.0, %v6408
      %6410 = vmatmul.bf16.gmra.mxu0 %v6319
      %v6411 = vpop.f32.mrf.mxu0
      %v6412 = vadd.f32 0.0, %v6411
      %v6413 = vpop.f32.mrf.mxu0
      %v6414 = vadd.f32 0.0, %v6413
      %6415 = vmatmul.bf16.gmra.mxu0 %v6328
      %v6416 = vpop.f32.mrf.mxu0
      %v6417 = vadd.f32 0.0, %v6416
      %v6418 = vpop.f32.mrf.mxu0
      %v6419 = vadd.f32 0.0, %v6418
      %6420 = vmatmul.bf16.gmra.mxu0 %v6337
      %v6421 = vpop.f32.mrf.mxu0
      %v6422 = vadd.f32 0.0, %v6421
      %v6423 = vpop.f32.mrf.mxu0
      %v6424 = vadd.f32 0.0, %v6423
      %6425 = vmatmul.bf16.gmra.mxu0 %v6332
      %v6426 = vpop.f32.mrf.mxu0
      %v6427 = vadd.f32 0.0, %v6426
      %v6428 = vpop.f32.mrf.mxu0
      %6429 = vdwg.mxu0
      %vm6430 = vcmask 1044480
      %v6431 = vrot.slane %v6279, 3
      %v6432 = vrot.slane %v6280, 3
      %v6433 = vsel %vm6430, %v6431, %v6432
      %v6434 = vrot.slane %v6281, 3
      %v6435 = vsel %vm6430, %v6432, %v6434
      %v6436 = vrot.slane %v6282, 3
      %v6437 = vsel %vm6430, %v6434, %v6436
      %v6438 = vrot.slane %v6283, 3
      %v6439 = vsel %vm6430, %v6436, %v6438
      %v6440 = vrot.slane %v6284, 3
      %v6441 = vsel %vm6430, %v6438, %v6440
      %v6464 = vunpack.c.l.b16 %v6225
      %v6465 = vunpack.c.l.b16 %v6226
      %v6466 = vunpack.c.l.b16 %v6227
      %v6467 = vunpack.c.l.b16 %v6228
      %v6468 = vunpack.c.l.b16 %v6229
      %v6469 = vunpack.c.l.b16 %v6230
      %v6470 = vunpack.c.l.b16 %v6231
      %v6471 = vunpack.c.l.b16 %v6232
      %v6472 = vunpack.c.l.b16 %v6233
      %v6473 = vunpack.c.l.b16 %v6234
      %v6474 = vunpack.c.l.b16 %v6235
      %v6475 = vunpack.c.l.b16 %v6236
      %v6476 = vunpack.c.l.b16 %v6237
      %v6477 = vunpack.c.l.b16 %v6238
      %v6478 = vunpack.c.l.b16 %v6239
      %v6479 = vunpack.c.l.b16 %v6240
      %v6480 = vpack.c.b16 %v6465, %v6464
      %v6481 = vpack.c.b16 %v6467, %v6466
      %v6482 = vpack.c.b16 %v6469, %v6468
      %v6483 = vpack.c.b16 %v6471, %v6470
      %v6484 = vpack.c.b16 %v6473, %v6472
      %v6485 = vpack.c.b16 %v6475, %v6474
      %v6486 = vpack.c.b16 %v6477, %v6476
      %v6487 = vpack.c.b16 %v6479, %v6478
      %6496 = vmatpush.bf16.msra.mxu0 %v6487
      %6497 = vmatpush.bf16.msra.mxu0 %v6486
      %6498 = vmatpush.bf16.msra.mxu0 %v6485
      %6499 = vmatpush.bf16.msra.mxu0 %v6484
      %6500 = vmatpush.bf16.msra.mxu0 %v6483
      %6501 = vmatpush.bf16.msra.mxu0 %v6482
      %6502 = vmatpush.bf16.msra.mxu0 %v6481
      %6503 = vmatpush.bf16.msra.mxu0 %v6480
      %6504 = vmatmul.bf16.gmra.mxu0 %v6433
      %v6505 = vpop.f32.mrf.mxu0
      %v6506 = vadd.f32 %v6402, %v6505
      %v6507 = vpop.f32.mrf.mxu0
      %v6508 = vadd.f32 %v6404, %v6507
      %6509 = vmatmul.bf16.gmra.mxu0 %v6435
      %v6510 = vpop.f32.mrf.mxu0
      %v6511 = vadd.f32 %v6407, %v6510
      %v6512 = vpop.f32.mrf.mxu0
      %v6513 = vadd.f32 %v6409, %v6512
      %6514 = vmatmul.bf16.gmra.mxu0 %v6437
      %v6515 = vpop.f32.mrf.mxu0
      %v6516 = vadd.f32 %v6412, %v6515
      %v6517 = vpop.f32.mrf.mxu0
      %v6518 = vadd.f32 %v6414, %v6517
      %6519 = vmatmul.bf16.gmra.mxu0 %v6439
      %v6520 = vpop.f32.mrf.mxu0
      %v6521 = vadd.f32 %v6417, %v6520
      %v6522 = vpop.f32.mrf.mxu0
      %v6523 = vadd.f32 %v6419, %v6522
      %6524 = vmatmul.bf16.gmra.mxu0 %v6441
      %v6525 = vpop.f32.mrf.mxu0
      %v6526 = vadd.f32 %v6422, %v6525
      %v6527 = vpop.f32.mrf.mxu0
      %v6528 = vadd.f32 %v6424, %v6527
      %6529 = vmatmul.bf16.gmra.mxu0 %v6440
      %v6530 = vpop.f32.mrf.mxu0
      %v6531 = vadd.f32 %v6427, %v6530
      %v6532 = vpop.f32.mrf.mxu0
      %6533 = vdwg.mxu0
      %v6534 = vld [vmem:[#allocation5 + $0x4] sm:$0xf]
      %v6535 = vld [vmem:[#allocation5 + $0x8] sm:$0xf]
      %v6536 = vld [vmem:[#allocation5 + $0xc] sm:$0xf]
      %v6537 = vld [vmem:[#allocation5 + $0x10] sm:$0xf]
      %v6538 = vld [vmem:[#allocation5 + $0x14] sm:$0xf]
      %v6539 = vld [vmem:[#allocation5 + $0x18] sm:$0xf]
      %v6540 = vld [vmem:[#allocation5 + $0x1c] sm:$0xf]
      %v6541 = vld [vmem:[#allocation5 + $0x20] sm:$0xf]
      %v6542 = vld [vmem:[#allocation5 + $0x24] sm:$0xf]
      %v6543 = vld [vmem:[#allocation5 + $0x28] sm:$0xf]
      %v6544 = vld [vmem:[#allocation5 + $0x2c] sm:$0x1]
      %v6545 = vld [vmem:[%s5 + $0x80] sm:$0xf]
      %v6546 = vld [vmem:[%s5 + $0x84] sm:$0xf]
      %v6547 = vld [vmem:[%s5 + $0x88] sm:$0xf]
      %v6548 = vld [vmem:[%s5 + $0x8c] sm:$0xf]
      %v6549 = vld [vmem:[%s5 + $0x90] sm:$0xf]
      %v6550 = vld [vmem:[%s5 + $0x94] sm:$0xf]
      %v6551 = vld [vmem:[%s5 + $0x98] sm:$0xf]
      %v6552 = vld [vmem:[%s5 + $0x9c] sm:$0xf]
      %v6553 = vld [vmem:[%s5 + $0xa0] sm:$0xf]
      %v6554 = vld [vmem:[%s5 + $0xa4] sm:$0xf]
      %v6555 = vld [vmem:[%s5 + $0xa8] sm:$0xf]
      %v6556 = vld [vmem:[%s5 + $0xac] sm:$0xf]
      %v6557 = vld [vmem:[%s5 + $0xb0] sm:$0xf]
      %v6558 = vld [vmem:[%s5 + $0xb4] sm:$0xf]
      %v6559 = vld [vmem:[%s5 + $0xb8] sm:$0xf]
      %v6560 = vld [vmem:[%s5 + $0xbc] sm:$0xf]
      %v6572 = vunpack.c.l.b16 %v6534
      %v6573 = vunpack.c.l.b16 %v6535
      %v6574 = vunpack.c.l.b16 %v6536
      %v6575 = vunpack.c.l.b16 %v6537
      %v6576 = vunpack.c.l.b16 %v6538
      %v6577 = vunpack.c.l.b16 %v6539
      %v6578 = vunpack.c.l.b16 %v6540
      %v6579 = vunpack.c.l.b16 %v6541
      %v6580 = vunpack.c.l.b16 %v6542
      %v6581 = vunpack.c.l.b16 %v6543
      %v6582 = vunpack.c.l.b16 %v6544
      %v6583 = vpack.c.b16 %v6573, %v6572
      %v6584 = vpack.c.b16 %v6575, %v6574
      %v6585 = vpack.c.b16 %v6577, %v6576
      %v6586 = vpack.c.b16 %v6579, %v6578
      %v6587 = vpack.c.b16 %v6581, %v6580
      %v6588 = vpack.c.b16 %v6582, %v6582
      %v6611 = vunpack.c.l.b16 %v6545
      %v6612 = vunpack.c.l.b16 %v6546
      %v6613 = vunpack.c.l.b16 %v6547
      %v6614 = vunpack.c.l.b16 %v6548
      %v6615 = vunpack.c.l.b16 %v6549
      %v6616 = vunpack.c.l.b16 %v6550
      %v6617 = vunpack.c.l.b16 %v6551
      %v6618 = vunpack.c.l.b16 %v6552
      %v6619 = vunpack.c.l.b16 %v6553
      %v6620 = vunpack.c.l.b16 %v6554
      %v6621 = vunpack.c.l.b16 %v6555
      %v6622 = vunpack.c.l.b16 %v6556
      %v6623 = vunpack.c.l.b16 %v6557
      %v6624 = vunpack.c.l.b16 %v6558
      %v6625 = vunpack.c.l.b16 %v6559
      %v6626 = vunpack.c.l.b16 %v6560
      %v6627 = vpack.c.b16 %v6612, %v6611
      %v6628 = vpack.c.b16 %v6614, %v6613
      %v6629 = vpack.c.b16 %v6616, %v6615
      %v6630 = vpack.c.b16 %v6618, %v6617
      %v6631 = vpack.c.b16 %v6620, %v6619
      %v6632 = vpack.c.b16 %v6622, %v6621
      %v6633 = vpack.c.b16 %v6624, %v6623
      %v6634 = vpack.c.b16 %v6626, %v6625
      %6643 = vmatpush.bf16.msra.mxu0 %v6634
      %6644 = vmatpush.bf16.msra.mxu0 %v6633
      %6645 = vmatpush.bf16.msra.mxu0 %v6632
      %6646 = vmatpush.bf16.msra.mxu0 %v6631
      %6647 = vmatpush.bf16.msra.mxu0 %v6630
      %6648 = vmatpush.bf16.msra.mxu0 %v6629
      %6649 = vmatpush.bf16.msra.mxu0 %v6628
      %6650 = vmatpush.bf16.msra.mxu0 %v6627
      %6651 = vmatmul.bf16.gmra.mxu0 %v6583
      %v6652 = vpop.f32.mrf.mxu0
      %v6653 = vadd.f32 0.0, %v6652
      %v6654 = vpop.f32.mrf.mxu0
      %v6655 = vadd.f32 0.0, %v6654
      %6656 = vmatmul.bf16.gmra.mxu0 %v6584
      %v6657 = vpop.f32.mrf.mxu0
      %v6658 = vadd.f32 0.0, %v6657
      %v6659 = vpop.f32.mrf.mxu0
      %v6660 = vadd.f32 0.0, %v6659
      %6661 = vmatmul.bf16.gmra.mxu0 %v6585
      %v6662 = vpop.f32.mrf.mxu0
      %v6663 = vadd.f32 0.0, %v6662
      %v6664 = vpop.f32.mrf.mxu0
      %v6665 = vadd.f32 0.0, %v6664
      %6666 = vmatmul.bf16.gmra.mxu0 %v6586
      %v6667 = vpop.f32.mrf.mxu0
      %v6668 = vadd.f32 0.0, %v6667
      %v6669 = vpop.f32.mrf.mxu0
      %v6670 = vadd.f32 0.0, %v6669
      %6671 = vmatmul.bf16.gmra.mxu0 %v6587
      %v6672 = vpop.f32.mrf.mxu0
      %v6673 = vadd.f32 0.0, %v6672
      %v6674 = vpop.f32.mrf.mxu0
      %v6675 = vadd.f32 0.0, %v6674
      %6676 = vmatmul.bf16.gmra.mxu0 %v6588
      %v6677 = vpop.f32.mrf.mxu0
      %v6678 = vadd.f32 0.0, %v6677
      %v6679 = vpop.f32.mrf.mxu0
      %6680 = vdwg.mxu0
      %v6681 = vadd.f32 %v6506, %v6653
      %v6682 = vadd.f32 %v6508, %v6655
      %v6683 = vadd.f32 %v6511, %v6658
      %v6684 = vadd.f32 %v6513, %v6660
      %v6685 = vadd.f32 %v6516, %v6663
      %v6686 = vadd.f32 %v6518, %v6665
      %v6687 = vadd.f32 %v6521, %v6668
      %v6688 = vadd.f32 %v6523, %v6670
      %v6689 = vadd.f32 %v6526, %v6673
      %v6690 = vadd.f32 %v6528, %v6675
      %v6691 = vadd.f32 %v6531, %v6678
      %v6692 = vld [vmem:[#allocation5 + $0x4] sm:$0x8]
      %v6693 = vld [vmem:[#allocation5 + $0x2c] sm:$0xf]
      %v6694 = vld [vmem:[%s5 + $0xc0] sm:$0xf]
      %v6695 = vld [vmem:[%s5 + $0xc4] sm:$0xf]
      %v6696 = vld [vmem:[%s5 + $0xc8] sm:$0xf]
      %v6697 = vld [vmem:[%s5 + $0xcc] sm:$0xf]
      %v6698 = vld [vmem:[%s5 + $0xd0] sm:$0xf]
      %v6699 = vld [vmem:[%s5 + $0xd4] sm:$0xf]
      %v6700 = vld [vmem:[%s5 + $0xd8] sm:$0xf]
      %v6701 = vld [vmem:[%s5 + $0xdc] sm:$0xf]
      %v6702 = vld [vmem:[%s5 + $0xe0] sm:$0xf]
      %v6703 = vld [vmem:[%s5 + $0xe4] sm:$0xf]
      %v6704 = vld [vmem:[%s5 + $0xe8] sm:$0xf]
      %v6705 = vld [vmem:[%s5 + $0xec] sm:$0xf]
      %v6706 = vld [vmem:[%s5 + $0xf0] sm:$0xf]
      %v6707 = vld [vmem:[%s5 + $0xf4] sm:$0xf]
      %v6708 = vld [vmem:[%s5 + $0xf8] sm:$0xf]
      %v6709 = vld [vmem:[%s5 + $0xfc] sm:$0xf]
      %v6712 = vunpack.c.l.b16 %v6692
      %v6713 = vunpack.c.l.b16 %v6693
      %v6714 = vpack.c.b16 %v6573, %v6712
      %v6715 = vpack.c.b16 %v6713, %v6713
      %v6717 = vshrl.u32 %v6714, 16
      %v6719 = vrot.slane %v6717, 3
      %v6720 = vshll.u32 %v6714, 16
      %v6722 = vrot.slane %v6720, 4
      %v6723 = vor.u32 %v6719, %v6722
      %v6725 = vshrl.u32 %v6584, 16
      %v6727 = vrot.slane %v6725, 3
      %v6728 = vshll.u32 %v6584, 16
      %v6730 = vrot.slane %v6728, 4
      %v6731 = vor.u32 %v6727, %v6730
      %v6732 = vsel %vm2722, %v6723, %v6731
      %v6734 = vshrl.u32 %v6585, 16
      %v6736 = vrot.slane %v6734, 3
      %v6737 = vshll.u32 %v6585, 16
      %v6739 = vrot.slane %v6737, 4
      %v6740 = vor.u32 %v6736, %v6739
      %v6741 = vsel %vm2722, %v6731, %v6740
      %v6743 = vshrl.u32 %v6586, 16
      %v6745 = vrot.slane %v6743, 3
      %v6746 = vshll.u32 %v6586, 16
      %v6748 = vrot.slane %v6746, 4
      %v6749 = vor.u32 %v6745, %v6748
      %v6750 = vsel %vm2722, %v6740, %v6749
      %v6752 = vshrl.u32 %v6587, 16
      %v6754 = vrot.slane %v6752, 3
      %v6755 = vshll.u32 %v6587, 16
      %v6757 = vrot.slane %v6755, 4
      %v6758 = vor.u32 %v6754, %v6757
      %v6759 = vsel %vm2722, %v6749, %v6758
      %v6761 = vshrl.u32 %v6715, 16
      %v6763 = vrot.slane %v6761, 3
      %v6764 = vshll.u32 %v6715, 16
      %v6766 = vrot.slane %v6764, 4
      %v6767 = vor.u32 %v6763, %v6766
      %v6768 = vsel %vm2722, %v6758, %v6767
      %v6791 = vunpack.c.l.b16 %v6694
      %v6792 = vunpack.c.l.b16 %v6695
      %v6793 = vunpack.c.l.b16 %v6696
      %v6794 = vunpack.c.l.b16 %v6697
      %v6795 = vunpack.c.l.b16 %v6698
      %v6796 = vunpack.c.l.b16 %v6699
      %v6797 = vunpack.c.l.b16 %v6700
      %v6798 = vunpack.c.l.b16 %v6701
      %v6799 = vunpack.c.l.b16 %v6702
      %v6800 = vunpack.c.l.b16 %v6703
      %v6801 = vunpack.c.l.b16 %v6704
      %v6802 = vunpack.c.l.b16 %v6705
      %v6803 = vunpack.c.l.b16 %v6706
      %v6804 = vunpack.c.l.b16 %v6707
      %v6805 = vunpack.c.l.b16 %v6708
      %v6806 = vunpack.c.l.b16 %v6709
      %v6807 = vpack.c.b16 %v6792, %v6791
      %v6808 = vpack.c.b16 %v6794, %v6793
      %v6809 = vpack.c.b16 %v6796, %v6795
      %v6810 = vpack.c.b16 %v6798, %v6797
      %v6811 = vpack.c.b16 %v6800, %v6799
      %v6812 = vpack.c.b16 %v6802, %v6801
      %v6813 = vpack.c.b16 %v6804, %v6803
      %v6814 = vpack.c.b16 %v6806, %v6805
      %6823 = vmatpush.bf16.msra.mxu0 %v6814
      %6824 = vmatpush.bf16.msra.mxu0 %v6813
      %6825 = vmatpush.bf16.msra.mxu0 %v6812
      %6826 = vmatpush.bf16.msra.mxu0 %v6811
      %6827 = vmatpush.bf16.msra.mxu0 %v6810
      %6828 = vmatpush.bf16.msra.mxu0 %v6809
      %6829 = vmatpush.bf16.msra.mxu0 %v6808
      %6830 = vmatpush.bf16.msra.mxu0 %v6807
      %6831 = vmatmul.bf16.gmra.mxu0 %v6732
      %v6832 = vpop.f32.mrf.mxu0
      %v6833 = vadd.f32 0.0, %v6832
      %v6834 = vpop.f32.mrf.mxu0
      %v6835 = vadd.f32 0.0, %v6834
      %6836 = vmatmul.bf16.gmra.mxu0 %v6741
      %v6837 = vpop.f32.mrf.mxu0
      %v6838 = vadd.f32 0.0, %v6837
      %v6839 = vpop.f32.mrf.mxu0
      %v6840 = vadd.f32 0.0, %v6839
      %6841 = vmatmul.bf16.gmra.mxu0 %v6750
      %v6842 = vpop.f32.mrf.mxu0
      %v6843 = vadd.f32 0.0, %v6842
      %v6844 = vpop.f32.mrf.mxu0
      %v6845 = vadd.f32 0.0, %v6844
      %6846 = vmatmul.bf16.gmra.mxu0 %v6759
      %v6847 = vpop.f32.mrf.mxu0
      %v6848 = vadd.f32 0.0, %v6847
      %v6849 = vpop.f32.mrf.mxu0
      %v6850 = vadd.f32 0.0, %v6849
      %6851 = vmatmul.bf16.gmra.mxu0 %v6768
      %v6852 = vpop.f32.mrf.mxu0
      %v6853 = vadd.f32 0.0, %v6852
      %v6854 = vpop.f32.mrf.mxu0
      %v6855 = vadd.f32 0.0, %v6854
      %6856 = vmatmul.bf16.gmra.mxu0 %v6763
      %v6857 = vpop.f32.mrf.mxu0
      %v6858 = vadd.f32 0.0, %v6857
      %v6859 = vpop.f32.mrf.mxu0
      %6860 = vdwg.mxu0
      %v6861 = vadd.f32 %v6681, %v6833
      %v6862 = vadd.f32 %v6682, %v6835
      %v6863 = vadd.f32 %v6683, %v6838
      %v6864 = vadd.f32 %v6684, %v6840
      %v6865 = vadd.f32 %v6685, %v6843
      %v6866 = vadd.f32 %v6686, %v6845
      %v6867 = vadd.f32 %v6687, %v6848
      %v6868 = vadd.f32 %v6688, %v6850
      %v6869 = vadd.f32 %v6689, %v6853
      %v6870 = vadd.f32 %v6690, %v6855
      %v6871 = vadd.f32 %v6691, %v6858
      %v6872 = vld [vmem:[#allocation5 + $0x8] sm:$0xf]
      %v6873 = vld [vmem:[#allocation5 + $0xc] sm:$0xf]
      %v6874 = vld [vmem:[#allocation5 + $0x10] sm:$0xf]
      %v6875 = vld [vmem:[#allocation5 + $0x14] sm:$0xf]
      %v6876 = vld [vmem:[#allocation5 + $0x18] sm:$0xf]
      %v6877 = vld [vmem:[#allocation5 + $0x1c] sm:$0xf]
      %v6878 = vld [vmem:[#allocation5 + $0x20] sm:$0xf]
      %v6879 = vld [vmem:[#allocation5 + $0x24] sm:$0xf]
      %v6880 = vld [vmem:[#allocation5 + $0x28] sm:$0xf]
      %v6881 = vld [vmem:[#allocation5 + $0x2c] sm:$0xf]
      %v6882 = vld [vmem:[#allocation5 + $0x30] sm:$0x1]
      %v6883 = vld [vmem:[%s5 + $0x100] sm:$0xf]
      %v6884 = vld [vmem:[%s5 + $0x104] sm:$0xf]
      %v6885 = vld [vmem:[%s5 + $0x108] sm:$0xf]
      %v6886 = vld [vmem:[%s5 + $0x10c] sm:$0xf]
      %v6887 = vld [vmem:[%s5 + $0x110] sm:$0xf]
      %v6888 = vld [vmem:[%s5 + $0x114] sm:$0xf]
      %v6889 = vld [vmem:[%s5 + $0x118] sm:$0xf]
      %v6890 = vld [vmem:[%s5 + $0x11c] sm:$0xf]
      %v6891 = vld [vmem:[%s5 + $0x120] sm:$0xf]
      %v6892 = vld [vmem:[%s5 + $0x124] sm:$0xf]
      %v6893 = vld [vmem:[%s5 + $0x128] sm:$0xf]
      %v6894 = vld [vmem:[%s5 + $0x12c] sm:$0xf]
      %v6895 = vld [vmem:[%s5 + $0x130] sm:$0xf]
      %v6896 = vld [vmem:[%s5 + $0x134] sm:$0xf]
      %v6897 = vld [vmem:[%s5 + $0x138] sm:$0xf]
      %v6898 = vld [vmem:[%s5 + $0x13c] sm:$0xf]
      %v6910 = vunpack.c.l.b16 %v6872
      %v6911 = vunpack.c.l.b16 %v6873
      %v6912 = vunpack.c.l.b16 %v6874
      %v6913 = vunpack.c.l.b16 %v6875
      %v6914 = vunpack.c.l.b16 %v6876
      %v6915 = vunpack.c.l.b16 %v6877
      %v6916 = vunpack.c.l.b16 %v6878
      %v6917 = vunpack.c.l.b16 %v6879
      %v6918 = vunpack.c.l.b16 %v6880
      %v6919 = vunpack.c.l.b16 %v6881
      %v6920 = vunpack.c.l.b16 %v6882
      %v6921 = vpack.c.b16 %v6911, %v6910
      %v6922 = vpack.c.b16 %v6913, %v6912
      %v6923 = vpack.c.b16 %v6915, %v6914
      %v6924 = vpack.c.b16 %v6917, %v6916
      %v6925 = vpack.c.b16 %v6919, %v6918
      %v6926 = vpack.c.b16 %v6920, %v6920
      %v6949 = vunpack.c.l.b16 %v6883
      %v6950 = vunpack.c.l.b16 %v6884
      %v6951 = vunpack.c.l.b16 %v6885
      %v6952 = vunpack.c.l.b16 %v6886
      %v6953 = vunpack.c.l.b16 %v6887
      %v6954 = vunpack.c.l.b16 %v6888
      %v6955 = vunpack.c.l.b16 %v6889
      %v6956 = vunpack.c.l.b16 %v6890
      %v6957 = vunpack.c.l.b16 %v6891
      %v6958 = vunpack.c.l.b16 %v6892
      %v6959 = vunpack.c.l.b16 %v6893
      %v6960 = vunpack.c.l.b16 %v6894
      %v6961 = vunpack.c.l.b16 %v6895
      %v6962 = vunpack.c.l.b16 %v6896
      %v6963 = vunpack.c.l.b16 %v6897
      %v6964 = vunpack.c.l.b16 %v6898
      %v6965 = vpack.c.b16 %v6950, %v6949
      %v6966 = vpack.c.b16 %v6952, %v6951
      %v6967 = vpack.c.b16 %v6954, %v6953
      %v6968 = vpack.c.b16 %v6956, %v6955
      %v6969 = vpack.c.b16 %v6958, %v6957
      %v6970 = vpack.c.b16 %v6960, %v6959
      %v6971 = vpack.c.b16 %v6962, %v6961
      %v6972 = vpack.c.b16 %v6964, %v6963
      %6981 = vmatpush.bf16.msra.mxu0 %v6972
      %6982 = vmatpush.bf16.msra.mxu0 %v6971
      %6983 = vmatpush.bf16.msra.mxu0 %v6970
      %6984 = vmatpush.bf16.msra.mxu0 %v6969
      %6985 = vmatpush.bf16.msra.mxu0 %v6968
      %6986 = vmatpush.bf16.msra.mxu0 %v6967
      %6987 = vmatpush.bf16.msra.mxu0 %v6966
      %6988 = vmatpush.bf16.msra.mxu0 %v6965
      %6989 = vmatmul.bf16.gmra.mxu0 %v6921
      %v6990 = vpop.f32.mrf.mxu0
      %v6991 = vadd.f32 0.0, %v6990
      %v6992 = vpop.f32.mrf.mxu0
      %v6993 = vadd.f32 0.0, %v6992
      %6994 = vmatmul.bf16.gmra.mxu0 %v6922
      %v6995 = vpop.f32.mrf.mxu0
      %v6996 = vadd.f32 0.0, %v6995
      %v6997 = vpop.f32.mrf.mxu0
      %v6998 = vadd.f32 0.0, %v6997
      %6999 = vmatmul.bf16.gmra.mxu0 %v6923
      %v7000 = vpop.f32.mrf.mxu0
      %v7001 = vadd.f32 0.0, %v7000
      %v7002 = vpop.f32.mrf.mxu0
      %v7003 = vadd.f32 0.0, %v7002
      %7004 = vmatmul.bf16.gmra.mxu0 %v6924
      %v7005 = vpop.f32.mrf.mxu0
      %v7006 = vadd.f32 0.0, %v7005
      %v7007 = vpop.f32.mrf.mxu0
      %v7008 = vadd.f32 0.0, %v7007
      %7009 = vmatmul.bf16.gmra.mxu0 %v6925
      %v7010 = vpop.f32.mrf.mxu0
      %v7011 = vadd.f32 0.0, %v7010
      %v7012 = vpop.f32.mrf.mxu0
      %v7013 = vadd.f32 0.0, %v7012
      %7014 = vmatmul.bf16.gmra.mxu0 %v6926
      %v7015 = vpop.f32.mrf.mxu0
      %v7016 = vadd.f32 0.0, %v7015
      %v7017 = vpop.f32.mrf.mxu0
      %7018 = vdwg.mxu0
      %v7019 = vadd.f32 %v6861, %v6991
      %v7020 = vadd.f32 %v6862, %v6993
      %v7021 = vadd.f32 %v6863, %v6996
      %v7022 = vadd.f32 %v6864, %v6998
      %v7023 = vadd.f32 %v6865, %v7001
      %v7024 = vadd.f32 %v6866, %v7003
      %v7025 = vadd.f32 %v6867, %v7006
      %v7026 = vadd.f32 %v6868, %v7008
      %v7027 = vadd.f32 %v6869, %v7011
      %v7028 = vadd.f32 %v6870, %v7013
      %v7029 = vadd.f32 %v6871, %v7016
      %v7030 = vld [vmem:[%s5 + $0x140] sm:$0xf]
      %v7031 = vld [vmem:[%s5 + $0x144] sm:$0xf]
      %v7032 = vld [vmem:[%s5 + $0x148] sm:$0xf]
      %v7033 = vld [vmem:[%s5 + $0x14c] sm:$0xf]
      %v7034 = vld [vmem:[%s5 + $0x150] sm:$0xf]
      %v7035 = vld [vmem:[%s5 + $0x154] sm:$0xf]
      %v7036 = vld [vmem:[%s5 + $0x158] sm:$0xf]
      %v7037 = vld [vmem:[%s5 + $0x15c] sm:$0xf]
      %v7038 = vld [vmem:[%s5 + $0x160] sm:$0xf]
      %v7039 = vld [vmem:[%s5 + $0x164] sm:$0xf]
      %v7040 = vld [vmem:[%s5 + $0x168] sm:$0xf]
      %v7041 = vld [vmem:[%s5 + $0x16c] sm:$0xf]
      %v7042 = vld [vmem:[%s5 + $0x170] sm:$0xf]
      %v7043 = vld [vmem:[%s5 + $0x174] sm:$0xf]
      %v7044 = vld [vmem:[%s5 + $0x178] sm:$0xf]
      %v7045 = vld [vmem:[%s5 + $0x17c] sm:$0xf]
      %v7047 = vshrl.u32 %v6921, 16
      %v7049 = vshll.u32 %v6921, 16
      %v7051 = vrot.slane %v7049, 1
      %v7052 = vor.u32 %v7047, %v7051
      %v7054 = vshll.u32 %v6922, 16
      %v7056 = vrot.slane %v7054, 1
      %v7057 = vsel %vm3160, %v7052, %v7056
      %v7058 = vshrl.u32 %v6922, 16
      %v7060 = vor.u32 %v7058, %v7056
      %v7062 = vshll.u32 %v6923, 16
      %v7064 = vrot.slane %v7062, 1
      %v7065 = vsel %vm3160, %v7060, %v7064
      %v7066 = vshrl.u32 %v6923, 16
      %v7068 = vor.u32 %v7066, %v7064
      %v7070 = vshll.u32 %v6924, 16
      %v7072 = vrot.slane %v7070, 1
      %v7073 = vsel %vm3160, %v7068, %v7072
      %v7074 = vshrl.u32 %v6924, 16
      %v7076 = vor.u32 %v7074, %v7072
      %v7078 = vshll.u32 %v6925, 16
      %v7080 = vrot.slane %v7078, 1
      %v7081 = vsel %vm3160, %v7076, %v7080
      %v7082 = vshrl.u32 %v6925, 16
      %v7084 = vor.u32 %v7082, %v7080
      %v7086 = vshll.u32 %v6926, 16
      %v7088 = vrot.slane %v7086, 1
      %v7089 = vsel %vm3160, %v7084, %v7088
      %v7090 = vshrl.u32 %v6926, 16
      %v7114 = vunpack.c.l.b16 %v7030
      %v7115 = vunpack.c.l.b16 %v7031
      %v7116 = vunpack.c.l.b16 %v7032
      %v7117 = vunpack.c.l.b16 %v7033
      %v7118 = vunpack.c.l.b16 %v7034
      %v7119 = vunpack.c.l.b16 %v7035
      %v7120 = vunpack.c.l.b16 %v7036
      %v7121 = vunpack.c.l.b16 %v7037
      %v7122 = vunpack.c.l.b16 %v7038
      %v7123 = vunpack.c.l.b16 %v7039
      %v7124 = vunpack.c.l.b16 %v7040
      %v7125 = vunpack.c.l.b16 %v7041
      %v7126 = vunpack.c.l.b16 %v7042
      %v7127 = vunpack.c.l.b16 %v7043
      %v7128 = vunpack.c.l.b16 %v7044
      %v7129 = vunpack.c.l.b16 %v7045
      %v7130 = vpack.c.b16 %v7115, %v7114
      %v7131 = vpack.c.b16 %v7117, %v7116
      %v7132 = vpack.c.b16 %v7119, %v7118
      %v7133 = vpack.c.b16 %v7121, %v7120
      %v7134 = vpack.c.b16 %v7123, %v7122
      %v7135 = vpack.c.b16 %v7125, %v7124
      %v7136 = vpack.c.b16 %v7127, %v7126
      %v7137 = vpack.c.b16 %v7129, %v7128
      %7146 = vmatpush.bf16.msra.mxu0 %v7137
      %7147 = vmatpush.bf16.msra.mxu0 %v7136
      %7148 = vmatpush.bf16.msra.mxu0 %v7135
      %7149 = vmatpush.bf16.msra.mxu0 %v7134
      %7150 = vmatpush.bf16.msra.mxu0 %v7133
      %7151 = vmatpush.bf16.msra.mxu0 %v7132
      %7152 = vmatpush.bf16.msra.mxu0 %v7131
      %7153 = vmatpush.bf16.msra.mxu0 %v7130
      %7154 = vmatmul.bf16.gmra.mxu0 %v7057
      %v7155 = vpop.f32.mrf.mxu0
      %v7156 = vadd.f32 0.0, %v7155
      %v7157 = vpop.f32.mrf.mxu0
      %v7158 = vadd.f32 0.0, %v7157
      %7159 = vmatmul.bf16.gmra.mxu0 %v7065
      %v7160 = vpop.f32.mrf.mxu0
      %v7161 = vadd.f32 0.0, %v7160
      %v7162 = vpop.f32.mrf.mxu0
      %v7163 = vadd.f32 0.0, %v7162
      %7164 = vmatmul.bf16.gmra.mxu0 %v7073
      %v7165 = vpop.f32.mrf.mxu0
      %v7166 = vadd.f32 0.0, %v7165
      %v7167 = vpop.f32.mrf.mxu0
      %v7168 = vadd.f32 0.0, %v7167
      %7169 = vmatmul.bf16.gmra.mxu0 %v7081
      %v7170 = vpop.f32.mrf.mxu0
      %v7171 = vadd.f32 0.0, %v7170
      %v7172 = vpop.f32.mrf.mxu0
      %v7173 = vadd.f32 0.0, %v7172
      %7174 = vmatmul.bf16.gmra.mxu0 %v7089
      %v7175 = vpop.f32.mrf.mxu0
      %v7176 = vadd.f32 0.0, %v7175
      %v7177 = vpop.f32.mrf.mxu0
      %v7178 = vadd.f32 0.0, %v7177
      %7179 = vmatmul.bf16.gmra.mxu0 %v7090
      %v7180 = vpop.f32.mrf.mxu0
      %v7181 = vadd.f32 0.0, %v7180
      %v7182 = vpop.f32.mrf.mxu0
      %7183 = vdwg.mxu0
      %v7184 = vadd.f32 %v7019, %v7156
      %v7185 = vadd.f32 %v7020, %v7158
      %v7186 = vadd.f32 %v7021, %v7161
      %v7187 = vadd.f32 %v7022, %v7163
      %v7188 = vadd.f32 %v7023, %v7166
      %v7189 = vadd.f32 %v7024, %v7168
      %v7190 = vadd.f32 %v7025, %v7171
      %v7191 = vadd.f32 %v7026, %v7173
      %v7192 = vadd.f32 %v7027, %v7176
      %v7193 = vadd.f32 %v7028, %v7178
      %v7194 = vadd.f32 %v7029, %v7181
      %v7195 = vld [vmem:[#allocation5 + $0xc] sm:$0xf]
      %v7196 = vld [vmem:[#allocation5 + $0x10] sm:$0xf]
      %v7197 = vld [vmem:[#allocation5 + $0x14] sm:$0xf]
      %v7198 = vld [vmem:[#allocation5 + $0x18] sm:$0xf]
      %v7199 = vld [vmem:[#allocation5 + $0x1c] sm:$0xf]
      %v7200 = vld [vmem:[#allocation5 + $0x20] sm:$0xf]
      %v7201 = vld [vmem:[#allocation5 + $0x24] sm:$0xf]
      %v7202 = vld [vmem:[#allocation5 + $0x28] sm:$0xf]
      %v7203 = vld [vmem:[#allocation5 + $0x2c] sm:$0xf]
      %v7204 = vld [vmem:[#allocation5 + $0x30] sm:$0xf]
      %v7205 = vld [vmem:[#allocation5 + $0x34] sm:$0x1]
      %v7206 = vld [vmem:[%s5 + $0x180] sm:$0xf]
      %v7207 = vld [vmem:[%s5 + $0x184] sm:$0xf]
      %v7208 = vld [vmem:[%s5 + $0x188] sm:$0xf]
      %v7209 = vld [vmem:[%s5 + $0x18c] sm:$0xf]
      %v7210 = vld [vmem:[%s5 + $0x190] sm:$0xf]
      %v7211 = vld [vmem:[%s5 + $0x194] sm:$0xf]
      %v7212 = vld [vmem:[%s5 + $0x198] sm:$0xf]
      %v7213 = vld [vmem:[%s5 + $0x19c] sm:$0xf]
      %v7214 = vld [vmem:[%s5 + $0x1a0] sm:$0xf]
      %v7215 = vld [vmem:[%s5 + $0x1a4] sm:$0xf]
      %v7216 = vld [vmem:[%s5 + $0x1a8] sm:$0xf]
      %v7217 = vld [vmem:[%s5 + $0x1ac] sm:$0xf]
      %v7218 = vld [vmem:[%s5 + $0x1b0] sm:$0xf]
      %v7219 = vld [vmem:[%s5 + $0x1b4] sm:$0xf]
      %v7220 = vld [vmem:[%s5 + $0x1b8] sm:$0xf]
      %v7221 = vld [vmem:[%s5 + $0x1bc] sm:$0xf]
      %v7233 = vunpack.c.l.b16 %v7195
      %v7234 = vunpack.c.l.b16 %v7196
      %v7235 = vunpack.c.l.b16 %v7197
      %v7236 = vunpack.c.l.b16 %v7198
      %v7237 = vunpack.c.l.b16 %v7199
      %v7238 = vunpack.c.l.b16 %v7200
      %v7239 = vunpack.c.l.b16 %v7201
      %v7240 = vunpack.c.l.b16 %v7202
      %v7241 = vunpack.c.l.b16 %v7203
      %v7242 = vunpack.c.l.b16 %v7204
      %v7243 = vunpack.c.l.b16 %v7205
      %v7244 = vpack.c.b16 %v7234, %v7233
      %v7245 = vpack.c.b16 %v7236, %v7235
      %v7246 = vpack.c.b16 %v7238, %v7237
      %v7247 = vpack.c.b16 %v7240, %v7239
      %v7248 = vpack.c.b16 %v7242, %v7241
      %v7249 = vpack.c.b16 %v7243, %v7243
      %v7272 = vunpack.c.l.b16 %v7206
      %v7273 = vunpack.c.l.b16 %v7207
      %v7274 = vunpack.c.l.b16 %v7208
      %v7275 = vunpack.c.l.b16 %v7209
      %v7276 = vunpack.c.l.b16 %v7210
      %v7277 = vunpack.c.l.b16 %v7211
      %v7278 = vunpack.c.l.b16 %v7212
      %v7279 = vunpack.c.l.b16 %v7213
      %v7280 = vunpack.c.l.b16 %v7214
      %v7281 = vunpack.c.l.b16 %v7215
      %v7282 = vunpack.c.l.b16 %v7216
      %v7283 = vunpack.c.l.b16 %v7217
      %v7284 = vunpack.c.l.b16 %v7218
      %v7285 = vunpack.c.l.b16 %v7219
      %v7286 = vunpack.c.l.b16 %v7220
      %v7287 = vunpack.c.l.b16 %v7221
      %v7288 = vpack.c.b16 %v7273, %v7272
      %v7289 = vpack.c.b16 %v7275, %v7274
      %v7290 = vpack.c.b16 %v7277, %v7276
      %v7291 = vpack.c.b16 %v7279, %v7278
      %v7292 = vpack.c.b16 %v7281, %v7280
      %v7293 = vpack.c.b16 %v7283, %v7282
      %v7294 = vpack.c.b16 %v7285, %v7284
      %v7295 = vpack.c.b16 %v7287, %v7286
      %7304 = vmatpush.bf16.msra.mxu0 %v7295
      %7305 = vmatpush.bf16.msra.mxu0 %v7294
      %7306 = vmatpush.bf16.msra.mxu0 %v7293
      %7307 = vmatpush.bf16.msra.mxu0 %v7292
      %7308 = vmatpush.bf16.msra.mxu0 %v7291
      %7309 = vmatpush.bf16.msra.mxu0 %v7290
      %7310 = vmatpush.bf16.msra.mxu0 %v7289
      %7311 = vmatpush.bf16.msra.mxu0 %v7288
      %7312 = vmatmul.bf16.gmra.mxu0 %v7244
      %v7313 = vpop.f32.mrf.mxu0
      %v7314 = vadd.f32 0.0, %v7313
      %v7315 = vpop.f32.mrf.mxu0
      %v7316 = vadd.f32 0.0, %v7315
      %7317 = vmatmul.bf16.gmra.mxu0 %v7245
      %v7318 = vpop.f32.mrf.mxu0
      %v7319 = vadd.f32 0.0, %v7318
      %v7320 = vpop.f32.mrf.mxu0
      %v7321 = vadd.f32 0.0, %v7320
      %7322 = vmatmul.bf16.gmra.mxu0 %v7246
      %v7323 = vpop.f32.mrf.mxu0
      %v7324 = vadd.f32 0.0, %v7323
      %v7325 = vpop.f32.mrf.mxu0
      %v7326 = vadd.f32 0.0, %v7325
      %7327 = vmatmul.bf16.gmra.mxu0 %v7247
      %v7328 = vpop.f32.mrf.mxu0
      %v7329 = vadd.f32 0.0, %v7328
      %v7330 = vpop.f32.mrf.mxu0
      %v7331 = vadd.f32 0.0, %v7330
      %7332 = vmatmul.bf16.gmra.mxu0 %v7248
      %v7333 = vpop.f32.mrf.mxu0
      %v7334 = vadd.f32 0.0, %v7333
      %v7335 = vpop.f32.mrf.mxu0
      %v7336 = vadd.f32 0.0, %v7335
      %7337 = vmatmul.bf16.gmra.mxu0 %v7249
      %v7338 = vpop.f32.mrf.mxu0
      %v7339 = vadd.f32 0.0, %v7338
      %v7340 = vpop.f32.mrf.mxu0
      %7341 = vdwg.mxu0
      %v7342 = vadd.f32 %v7184, %v7314
      %v7343 = vadd.f32 %v7185, %v7316
      %v7344 = vadd.f32 %v7186, %v7319
      %v7345 = vadd.f32 %v7187, %v7321
      %v7346 = vadd.f32 %v7188, %v7324
      %v7347 = vadd.f32 %v7189, %v7326
      %v7348 = vadd.f32 %v7190, %v7329
      %v7349 = vadd.f32 %v7191, %v7331
      %v7350 = vadd.f32 %v7192, %v7334
      %v7351 = vadd.f32 %v7193, %v7336
      %v7352 = vadd.f32 %v7194, %v7339
      %v7353 = vld [vmem:[%s5 + $0x1c0] sm:$0xf]
      %v7354 = vld [vmem:[%s5 + $0x1c4] sm:$0xf]
      %v7355 = vld [vmem:[%s5 + $0x1c8] sm:$0xf]
      %v7356 = vld [vmem:[%s5 + $0x1cc] sm:$0xf]
      %v7357 = vld [vmem:[%s5 + $0x1d0] sm:$0xf]
      %v7358 = vld [vmem:[%s5 + $0x1d4] sm:$0xf]
      %v7359 = vld [vmem:[%s5 + $0x1d8] sm:$0xf]
      %v7360 = vld [vmem:[%s5 + $0x1dc] sm:$0xf]
      %v7361 = vld [vmem:[%s5 + $0x1e0] sm:$0xf]
      %v7362 = vld [vmem:[%s5 + $0x1e4] sm:$0xf]
      %v7363 = vld [vmem:[%s5 + $0x1e8] sm:$0xf]
      %v7364 = vld [vmem:[%s5 + $0x1ec] sm:$0xf]
      %v7365 = vld [vmem:[%s5 + $0x1f0] sm:$0xf]
      %v7366 = vld [vmem:[%s5 + $0x1f4] sm:$0xf]
      %v7367 = vld [vmem:[%s5 + $0x1f8] sm:$0xf]
      %v7368 = vld [vmem:[%s5 + $0x1fc] sm:$0xf]
      %v7370 = vshrl.u32 %v7244, 16
      %v7372 = vshll.u32 %v7244, 16
      %v7374 = vrot.slane %v7372, 1
      %v7375 = vor.u32 %v7370, %v7374
      %v7377 = vshll.u32 %v7245, 16
      %v7379 = vrot.slane %v7377, 1
      %v7380 = vsel %vm3160, %v7375, %v7379
      %v7381 = vshrl.u32 %v7245, 16
      %v7383 = vor.u32 %v7381, %v7379
      %v7385 = vshll.u32 %v7246, 16
      %v7387 = vrot.slane %v7385, 1
      %v7388 = vsel %vm3160, %v7383, %v7387
      %v7389 = vshrl.u32 %v7246, 16
      %v7391 = vor.u32 %v7389, %v7387
      %v7393 = vshll.u32 %v7247, 16
      %v7395 = vrot.slane %v7393, 1
      %v7396 = vsel %vm3160, %v7391, %v7395
      %v7397 = vshrl.u32 %v7247, 16
      %v7399 = vor.u32 %v7397, %v7395
      %v7401 = vshll.u32 %v7248, 16
      %v7403 = vrot.slane %v7401, 1
      %v7404 = vsel %vm3160, %v7399, %v7403
      %v7405 = vshrl.u32 %v7248, 16
      %v7407 = vor.u32 %v7405, %v7403
      %v7409 = vshll.u32 %v7249, 16
      %v7411 = vrot.slane %v7409, 1
      %v7412 = vsel %vm3160, %v7407, %v7411
      %v7413 = vshrl.u32 %v7249, 16
      %v7437 = vunpack.c.l.b16 %v7353
      %v7438 = vunpack.c.l.b16 %v7354
      %v7439 = vunpack.c.l.b16 %v7355
      %v7440 = vunpack.c.l.b16 %v7356
      %v7441 = vunpack.c.l.b16 %v7357
      %v7442 = vunpack.c.l.b16 %v7358
      %v7443 = vunpack.c.l.b16 %v7359
      %v7444 = vunpack.c.l.b16 %v7360
      %v7445 = vunpack.c.l.b16 %v7361
      %v7446 = vunpack.c.l.b16 %v7362
      %v7447 = vunpack.c.l.b16 %v7363
      %v7448 = vunpack.c.l.b16 %v7364
      %v7449 = vunpack.c.l.b16 %v7365
      %v7450 = vunpack.c.l.b16 %v7366
      %v7451 = vunpack.c.l.b16 %v7367
      %v7452 = vunpack.c.l.b16 %v7368
      %v7453 = vpack.c.b16 %v7438, %v7437
      %v7454 = vpack.c.b16 %v7440, %v7439
      %v7455 = vpack.c.b16 %v7442, %v7441
      %v7456 = vpack.c.b16 %v7444, %v7443
      %v7457 = vpack.c.b16 %v7446, %v7445
      %v7458 = vpack.c.b16 %v7448, %v7447
      %v7459 = vpack.c.b16 %v7450, %v7449
      %v7460 = vpack.c.b16 %v7452, %v7451
      %7469 = vmatpush.bf16.msra.mxu0 %v7460
      %7470 = vmatpush.bf16.msra.mxu0 %v7459
      %7471 = vmatpush.bf16.msra.mxu0 %v7458
      %7472 = vmatpush.bf16.msra.mxu0 %v7457
      %7473 = vmatpush.bf16.msra.mxu0 %v7456
      %7474 = vmatpush.bf16.msra.mxu0 %v7455
      %7475 = vmatpush.bf16.msra.mxu0 %v7454
      %7476 = vmatpush.bf16.msra.mxu0 %v7453
      %7477 = vmatmul.bf16.gmra.mxu0 %v7380
      %v7478 = vpop.f32.mrf.mxu0
      %v7479 = vadd.f32 0.0, %v7478
      %v7480 = vpop.f32.mrf.mxu0
      %v7481 = vadd.f32 0.0, %v7480
      %7482 = vmatmul.bf16.gmra.mxu0 %v7388
      %v7483 = vpop.f32.mrf.mxu0
      %v7484 = vadd.f32 0.0, %v7483
      %v7485 = vpop.f32.mrf.mxu0
      %v7486 = vadd.f32 0.0, %v7485
      %7487 = vmatmul.bf16.gmra.mxu0 %v7396
      %v7488 = vpop.f32.mrf.mxu0
      %v7489 = vadd.f32 0.0, %v7488
      %v7490 = vpop.f32.mrf.mxu0
      %v7491 = vadd.f32 0.0, %v7490
      %7492 = vmatmul.bf16.gmra.mxu0 %v7404
      %v7493 = vpop.f32.mrf.mxu0
      %v7494 = vadd.f32 0.0, %v7493
      %v7495 = vpop.f32.mrf.mxu0
      %v7496 = vadd.f32 0.0, %v7495
      %7497 = vmatmul.bf16.gmra.mxu0 %v7412
      %v7498 = vpop.f32.mrf.mxu0
      %v7499 = vadd.f32 0.0, %v7498
      %v7500 = vpop.f32.mrf.mxu0
      %v7501 = vadd.f32 0.0, %v7500
      %7502 = vmatmul.bf16.gmra.mxu0 %v7413
      %v7503 = vpop.f32.mrf.mxu0
      %v7504 = vadd.f32 0.0, %v7503
      %v7505 = vpop.f32.mrf.mxu0
      %7506 = vdwg.mxu0
      %v7507 = vadd.f32 %v7342, %v7479
      %v7508 = vadd.f32 %v7343, %v7481
      %v7509 = vadd.f32 %v7344, %v7484
      %v7510 = vadd.f32 %v7345, %v7486
      %v7511 = vadd.f32 %v7346, %v7489
      %v7512 = vadd.f32 %v7347, %v7491
      %v7513 = vadd.f32 %v7348, %v7494
      %v7514 = vadd.f32 %v7349, %v7496
      %v7515 = vadd.f32 %v7350, %v7499
      %v7516 = vadd.f32 %v7351, %v7501
      %v7517 = vadd.f32 %v7352, %v7504
      %v7518 = vld [vmem:[#allocation5 + $0xc] sm:$0xe]
      %v7519 = vld [vmem:[#allocation5 + $0x34] sm:$0x3]
      %v7520 = vld [vmem:[%s5 + $0x200] sm:$0xf]
      %v7521 = vld [vmem:[%s5 + $0x204] sm:$0xf]
      %v7522 = vld [vmem:[%s5 + $0x208] sm:$0xf]
      %v7523 = vld [vmem:[%s5 + $0x20c] sm:$0xf]
      %v7524 = vld [vmem:[%s5 + $0x210] sm:$0xf]
      %v7525 = vld [vmem:[%s5 + $0x214] sm:$0xf]
      %v7526 = vld [vmem:[%s5 + $0x218] sm:$0xf]
      %v7527 = vld [vmem:[%s5 + $0x21c] sm:$0xf]
      %v7528 = vld [vmem:[%s5 + $0x220] sm:$0xf]
      %v7529 = vld [vmem:[%s5 + $0x224] sm:$0xf]
      %v7530 = vld [vmem:[%s5 + $0x228] sm:$0xf]
      %v7531 = vld [vmem:[%s5 + $0x22c] sm:$0xf]
      %v7532 = vld [vmem:[%s5 + $0x230] sm:$0xf]
      %v7533 = vld [vmem:[%s5 + $0x234] sm:$0xf]
      %v7534 = vld [vmem:[%s5 + $0x238] sm:$0xf]
      %v7535 = vld [vmem:[%s5 + $0x23c] sm:$0xf]
      %v7538 = vunpack.c.l.b16 %v7518
      %v7539 = vunpack.c.l.b16 %v7519
      %v7540 = vpack.c.b16 %v7234, %v7538
      %v7541 = vpack.c.b16 %v7539, %v7539
      %vm7542 = vcmask 1046528
      %v7543 = vrot.slane %v7540, 1
      %v7544 = vrot.slane %v7245, 1
      %v7545 = vsel %vm7542, %v7543, %v7544
      %v7546 = vrot.slane %v7246, 1
      %v7547 = vsel %vm7542, %v7544, %v7546
      %v7548 = vrot.slane %v7247, 1
      %v7549 = vsel %vm7542, %v7546, %v7548
      %v7550 = vrot.slane %v7248, 1
      %v7551 = vsel %vm7542, %v7548, %v7550
      %v7552 = vrot.slane %v7541, 1
      %v7553 = vsel %vm7542, %v7550, %v7552
      %v7576 = vunpack.c.l.b16 %v7520
      %v7577 = vunpack.c.l.b16 %v7521
      %v7578 = vunpack.c.l.b16 %v7522
      %v7579 = vunpack.c.l.b16 %v7523
      %v7580 = vunpack.c.l.b16 %v7524
      %v7581 = vunpack.c.l.b16 %v7525
      %v7582 = vunpack.c.l.b16 %v7526
      %v7583 = vunpack.c.l.b16 %v7527
      %v7584 = vunpack.c.l.b16 %v7528
      %v7585 = vunpack.c.l.b16 %v7529
      %v7586 = vunpack.c.l.b16 %v7530
      %v7587 = vunpack.c.l.b16 %v7531
      %v7588 = vunpack.c.l.b16 %v7532
      %v7589 = vunpack.c.l.b16 %v7533
      %v7590 = vunpack.c.l.b16 %v7534
      %v7591 = vunpack.c.l.b16 %v7535
      %v7592 = vpack.c.b16 %v7577, %v7576
      %v7593 = vpack.c.b16 %v7579, %v7578
      %v7594 = vpack.c.b16 %v7581, %v7580
      %v7595 = vpack.c.b16 %v7583, %v7582
      %v7596 = vpack.c.b16 %v7585, %v7584
      %v7597 = vpack.c.b16 %v7587, %v7586
      %v7598 = vpack.c.b16 %v7589, %v7588
      %v7599 = vpack.c.b16 %v7591, %v7590
      %7608 = vmatpush.bf16.msra.mxu0 %v7599
      %7609 = vmatpush.bf16.msra.mxu0 %v7598
      %7610 = vmatpush.bf16.msra.mxu0 %v7597
      %7611 = vmatpush.bf16.msra.mxu0 %v7596
      %7612 = vmatpush.bf16.msra.mxu0 %v7595
      %7613 = vmatpush.bf16.msra.mxu0 %v7594
      %7614 = vmatpush.bf16.msra.mxu0 %v7593
      %7615 = vmatpush.bf16.msra.mxu0 %v7592
      %7616 = vmatmul.bf16.gmra.mxu0 %v7545
      %v7617 = vpop.f32.mrf.mxu0
      %v7618 = vadd.f32 0.0, %v7617
      %v7619 = vpop.f32.mrf.mxu0
      %v7620 = vadd.f32 0.0, %v7619
      %7621 = vmatmul.bf16.gmra.mxu0 %v7547
      %v7622 = vpop.f32.mrf.mxu0
      %v7623 = vadd.f32 0.0, %v7622
      %v7624 = vpop.f32.mrf.mxu0
      %v7625 = vadd.f32 0.0, %v7624
      %7626 = vmatmul.bf16.gmra.mxu0 %v7549
      %v7627 = vpop.f32.mrf.mxu0
      %v7628 = vadd.f32 0.0, %v7627
      %v7629 = vpop.f32.mrf.mxu0
      %v7630 = vadd.f32 0.0, %v7629
      %7631 = vmatmul.bf16.gmra.mxu0 %v7551
      %v7632 = vpop.f32.mrf.mxu0
      %v7633 = vadd.f32 0.0, %v7632
      %v7634 = vpop.f32.mrf.mxu0
      %v7635 = vadd.f32 0.0, %v7634
      %7636 = vmatmul.bf16.gmra.mxu0 %v7553
      %v7637 = vpop.f32.mrf.mxu0
      %v7638 = vadd.f32 0.0, %v7637
      %v7639 = vpop.f32.mrf.mxu0
      %v7640 = vadd.f32 0.0, %v7639
      %7641 = vmatmul.bf16.gmra.mxu0 %v7552
      %v7642 = vpop.f32.mrf.mxu0
      %v7643 = vadd.f32 0.0, %v7642
      %v7644 = vpop.f32.mrf.mxu0
      %7645 = vdwg.mxu0
      %v7646 = vadd.f32 %v7507, %v7618
      %v7647 = vadd.f32 %v7508, %v7620
      %v7648 = vadd.f32 %v7509, %v7623
      %v7649 = vadd.f32 %v7510, %v7625
      %v7650 = vadd.f32 %v7511, %v7628
      %v7651 = vadd.f32 %v7512, %v7630
      %v7652 = vadd.f32 %v7513, %v7633
      %v7653 = vadd.f32 %v7514, %v7635
      %v7654 = vadd.f32 %v7515, %v7638
      %v7655 = vadd.f32 %v7516, %v7640
      %v7656 = vadd.f32 %v7517, %v7643
      %v7657 = vld [vmem:[%s6] sm:$0x1]
      %v7659 = vperm.slane %v7657, 0
      %v7661 = vadd.f32 %v7646, %v7659
      %v7662 = vadd.f32 %v7647, %v7659
      %v7663 = vadd.f32 %v7648, %v7659
      %v7664 = vadd.f32 %v7649, %v7659
      %v7665 = vadd.f32 %v7650, %v7659
      %v7666 = vadd.f32 %v7651, %v7659
      %v7667 = vadd.f32 %v7652, %v7659
      %v7668 = vadd.f32 %v7653, %v7659
      %v7669 = vadd.f32 %v7654, %v7659
      %v7670 = vadd.f32 %v7655, %v7659
      %v7671 = vadd.f32 %v7656, %v7659
      %v7672 = vmax.f32 %v7661, 0.0
      %v7673 = vmax.f32 %v7662, 0.0
      %v7674 = vmax.f32 %v7663, 0.0
      %v7675 = vmax.f32 %v7664, 0.0
      %v7676 = vmax.f32 %v7665, 0.0
      %v7677 = vmax.f32 %v7666, 0.0
      %v7678 = vmax.f32 %v7667, 0.0
      %v7679 = vmax.f32 %v7668, 0.0
      %v7680 = vmax.f32 %v7669, 0.0
      %v7681 = vmax.f32 %v7670, 0.0
      %v7682 = vmax.f32 %v7671, 0.0
      %v7683 = vld [vmem:[%s7] sm:$0xf]
      %v7684 = vld [vmem:[%s7 + $0x4] sm:$0x1]
      %v7685 = vpack.c.bf16 %v7673, %v7672
      %v7686 = vpack.c.bf16 %v7675, %v7674
      %v7687 = vpack.c.bf16 %v7677, %v7676
      %v7688 = vpack.c.bf16 %v7679, %v7678
      %v7689 = vpack.c.bf16 %v7681, %v7680
      %v7690 = vpack.c.bf16 %v7682, %v7682
      %v7693 = vunpack.c.l.b16 %v7683
      %v7694 = vunpack.c.l.b16 %v7684
      %v7695 = vpack.c.b16 %v7694, %v7693
      %vm7696 = vcmask 662528
      %v7698 = vsel %vm7696, %v7695, 0
      %vm7700 = vcmask 1040384
      %v7701 = vsel 0, 4294967295, 65535
      %v7702 = vsel %vm7700, %v7701, 0
      %v7704 = vand.u32 %v7690, %v7702
      %7706 = vmatpush.bf16.msra.mxu0 0
      %7707 = vmatpush.bf16.msra.mxu0 0
      %7708 = vmatpush.bf16.msra.mxu0 %v7704
      %7709 = vmatpush.bf16.msra.mxu0 %v7689
      %7710 = vmatpush.bf16.msra.mxu0 %v7688
      %7711 = vmatpush.bf16.msra.mxu0 %v7687
      %7712 = vmatpush.bf16.msra.mxu0 %v7686
      %7713 = vmatpush.bf16.msra.mxu0 %v7685
      %7714 = vmatmul.bf16.gmra.mxu0 %v7698
      %v7715 = vpop.f32.mrf.mxu0
      %v7716 = vadd.f32 0.0, %v7715
      %v7717 = vpop.f32.mrf.mxu0
      %v7718 = vadd.f32 0.0, %v7717
      %7719 = vdwg.mxu0
      %v7720 = vld [vmem:[%s8] sm:$0xff]
      %v7721 = vld [vmem:[%s8 + $0x8] sm:$0x3]
      %v7722 = vadd.f32 %v7716, %v7720
      %v7723 = vadd.f32 %v7718, %v7721
      %vm7724 = vcmask 7168
      %7725 = vst.msk [vmem:[%s332] sm:$0xff] %vm7724, %v7722
      %vm7726 = vcmask 1024
      %7727 = vst.msk [vmem:[%s332 + $0x8] sm:$0x3] %vm7726, %v7723
      %p7728 = scmp.lt.s32.totalorder %s20, 1
      %s7729 = scalar_select %p7728, %s20, 1
      %s7730 = smul.addr %s7729, 2
      %s7731 = smul.addr %s7730, 8
      %s7732 = scalar_lea.vmem %s9, %s7731
      // Predicated region
      $region57: #{demo_net_forward.1} parent=55 // pred_check
        %p7733 = pneg %p232
      $region58: #{demo_net_forward.1} parent=55 // pred_check_branch
        %7735 = sbr.rel (%p7733) target = $region60
      $region59: #{demo_net_forward.1} parent=55 // pred_region
        _
      $region60: #{demo_net_forward.1} parent=55 // pred_fallthru
        _
    $region56: #{demo_net_forward.1} parent=5 // pred_fallthru
      _
    %p7736 = scmp.le.s32.totalorder 2, %s15
    // Predicated region
    $region61: #{demo_net_forward.1} parent=5 // pred_check
      %p7737 = pneg %p7736
    $region62: #{demo_net_forward.1} parent=5 // pred_check_branch
      %7739 = sbr.rel (%p7737) target = $region64
    $region63: #{demo_net_forward.1} parent=5 // pred_region
      %s7740 = ssub.s32 %s15, 2
      // Predicated region
      $region65: #{demo_net_forward.1} parent=63 // pred_check
        %p7741 = pneg %p238
      $region66: #{demo_net_forward.1} parent=63 // pred_check_branch
        %7743 = sbr.rel (%p7741) target = $region68
      $region67: #{demo_net_forward.1} parent=63 // pred_region
        %p7744 = scmp.lt.s32.totalorder %s21, 1
        %s7745 = scalar_select %p7744, %s21, 1
        %s7746 = smul.addr %s7745, 2
        %s7747 = smul.addr %s7746, 8
        %s7748 = scalar_lea.vmem %s9, %s7747
      $region68: #{demo_net_forward.1} parent=63 // pred_fallthru
        _
    $region64: #{demo_net_forward.1} parent=5 // pred_fallthru
      _
  $region6: #{demo_net_forward.1} parent=0 // loop_footer
    %s19 = sadd.s32 1, %s15
  $region7: #{demo_net_forward.1} parent=0 // loop_footer_branch
    %14 = sbr.rel target = $region3
  $region8: #{demo_net_forward.1} parent=0 // loop_exit
    _

</llo_original>
